<compile_context>
chip_gen: v5e
topology: v5e:2x2
jax: 0.10.0
libtpu: 0.0.40
codegen_flags: <defaults>
</compile_context>

<pallas_src>
import jax
import jax.numpy as jnp
from jax.experimental import pallas as pl
from jax.experimental.pallas import tpu as pltpu


# ------------------------------ helpers -------------------------------------

def _round_up(a, b):
    return ((a + b - 1) // b) * b


def _fold_bn(gamma, beta, running_mean, running_var, eps=1e-5):
    # TODO(synk): BN folded in inference mode (running stats); training-mode
    # batch-statistic reduction is not implemented.
    scale = gamma / jnp.sqrt(running_var + eps)
    shift = beta - running_mean * scale
    return scale.reshape(1, -1), shift.reshape(1, -1)


def _prep_weight(w, scale, cin_pad, cout_pad):
    """(3,3,3,Cin,Cout) f32 -> BN-scale-folded, zero-padded (27,Cin_pad,Cout_pad) bf16."""
    kd, kh, kw, cin, cout = w.shape
    wf = w * scale.reshape((1, 1, 1, 1, cout))
    wf = jnp.pad(wf, ((0, 0), (0, 0), (0, 0), (0, cin_pad - cin), (0, cout_pad - cout)))
    return wf.reshape(kd * kh * kw, cin_pad, cout_pad).astype(jnp.bfloat16)


# ----------------------------- Pallas kernel --------------------------------

def _make_conv_kernel(H, W, TN, add_residual):
    """Fused 3x3x3 conv (tap accumulation) + BN shift (+ residual) + ReLU + junk-column zeroing.

    Input slab refs are one halo-padded depth slice each, flattened to (R, Cpad)
    with R >= Hp*Wp + 2 so every tap slice [off : off+HWo] is in range.
    Output rows are indexed g = h*Wp + w; rows with (g % Wp) >= W are zeroed via
    `mask_ref` so the caller can re-pad the output directly into the next
    conv's halo layout.
    """
    Wp = W + 2
    HWo = H * Wp  # output rows per depth slice (incl. the 2 masked cols/row)

    def kernel(*refs):
        if add_residual:
            s0, s1, s2, w_ref, shift_ref, mask_ref, res_ref, o_ref = refs
        else:
            s0, s1, s2, w_ref, shift_ref, mask_ref, o_ref = refs
        slabs = (s0, s1, s2)

        acc = jnp.zeros((HWo, TN), jnp.float32)
        for kd in range(3):
            slab = slabs[kd][...]                        # (R, Cpad) bf16, one aligned load
            for kh in range(3):
                for kw in range(3):
                    off = kh * Wp + kw
                    lhs = slab[off:off + HWo, :]         # (HWo, Cpad) bf16 MXU operand
                    wt = w_ref[kd * 9 + kh * 3 + kw]     # (Cpad, TN)  bf16
                    acc = acc + jnp.dot(lhs, wt, preferred_element_type=jnp.float32)

        y = acc + shift_ref[...]                 # BN shift (scale folded into weights)
        if add_residual:
            y = y + res_ref[...]                 # f32 residual
        y = jnp.maximum(y, 0.0)                  # ReLU
        y = y * mask_ref[...]                    # zero junk columns ((g % Wp) >= W)
        o_ref[...] = y.astype(o_ref.dtype)

    return kernel


def _conv3x3x3_fused(xp, H, W, w_mat, shift, row_mask, residual=None,
                     out_dtype=jnp.float32):
    """Fused conv3x3x3 (stride 1, pad 1) + BN + (residual) + ReLU.

    xp       : (N, D+2, R, Cpad)    bf16 halo-padded, row-flattened activation
    w_mat    : (27, Cpad, Copad)    bf16, BN-scale-folded weight
    shift    : (1, Copad)           f32 BN shift
    row_mask : (HWo, 1)             f32 validity of each flattened output row
    residual : (N, D, HWo, Cpad)    f32 or None
    returns  : (N, D, HWo, Copad)   out_dtype  (junk rows are exactly zero)
    """
    N, Dp2, R, Cpad = xp.shape
    D = Dp2 - 2
    Copad = w_mat.shape[-1]
    Wp = W + 2
    HWo = H * Wp
    # TODO(synk): gate TN on chip generation (128 on v5e) via pltpu.get_tpu_info.
    TN = 256 if Copad % 256 == 0 else 128
    nco = Copad // TN

    def slab_spec(kd):
        # Same padded array passed three times with depth offsets 0/1/2 -> the
        # depth halo without overlapping BlockSpec windows.
        return pl.BlockSpec((None, None, R, Cpad),
                            lambda n, j, d, kd=kd: (n, d + kd, 0, 0))

    # Grid order (N, nco, D): weight / shift / mask block indices are invariant
    # in the innermost d axis, so those blocks stay VMEM-resident (no re-DMA).
    in_specs = [
        slab_spec(0), slab_spec(1), slab_spec(2),
        pl.BlockSpec((27, Cpad, TN), lambda n, j, d: (0, 0, j)),   # folded weights
        pl.BlockSpec((1, TN), lambda n, j, d: (0, j)),             # BN shift
        pl.BlockSpec((HWo, 1), lambda n, j, d: (0, 0)),            # row validity mask
    ]
    args = [xp, xp, xp, w_mat, shift, row_mask]
    if residual is not None:
        in_specs.append(pl.BlockSpec((None, None, HWo, TN), lambda n, j, d: (n, d, 0, j)))
        args.append(residual)

    kernel = _make_conv_kernel(H, W, TN, add_residual=residual is not None)

    out_itemsize = jnp.dtype(out_dtype).itemsize
    steps = N * nco * D
    res_bytes = HWo * TN * 4 if residual is not None else 0
    cost = pl.CostEstimate(
        flops=2 * steps * 27 * HWo * Cpad * TN,
        transcendentals=0,
        bytes_accessed=(N * nco * 27 * Cpad * TN * 2          # weights (resident over d)
                        + steps * (3 * R * Cpad * 2           # bf16 slabs
                                   + res_bytes
                                   + HWo * TN * out_itemsize)))

    # VMEM budget from the actual (double-buffered) block footprint, with
    # headroom and capped below v7x's 64 MiB / TensorCore.
    slab_b = R * Cpad * 2
    w_b = 27 * Cpad * TN * 2
    misc_b = 8 * TN * 4 + HWo * 128 * 4
    out_b = HWo * TN * out_itemsize
    needed = 2 * (3 * slab_b + w_b + misc_b + res_bytes + out_b) + HWo * TN * 4
    vmem_limit = min(3 * needed, 56 * 1024 * 1024)
    vmem_limit = int(max(vmem_limit, 2 * needed + (8 << 20), 24 * 1024 * 1024))

    # TODO(synk): add an H-tile grid axis (with its own row halo) for large
    # spatial extents, a manual rolling 3-slot depth buffer so each depth slice
    # is DMA'd once, and pipeline_mode=pl.Buffered(1) on the d-invariant
    # weight spec to halve its VMEM footprint.
    return pl.pallas_call(
        kernel,
        out_shape=jax.ShapeDtypeStruct((N, D, HWo, Copad), out_dtype),
        grid_spec=pltpu.PrefetchScalarGridSpec(
            num_scalar_prefetch=0,
            grid=(N, nco, D),
            in_specs=in_specs,
            out_specs=pl.BlockSpec((None, None, HWo, TN), lambda n, j, d: (n, d, 0, j)),
        ),
        compiler_params=pltpu.CompilerParams(
            dimension_semantics=("parallel", "parallel", "arbitrary"),
            vmem_limit_bytes=vmem_limit),
        cost_estimate=cost,
    )(*args)


# ------------------------------- forward ------------------------------------

def init_basic_block_params(key, in_planes, planes):
    k1, k2, k3, k4, k5, k6 = jax.random.split(key, 6)
    # conv weights stored as (kd, kh, kw, Cin, Cout)  (PyTorch: (Cout, Cin, kd, kh, kw))
    w1 = jax.random.normal(k1, (3, 3, 3, in_planes, planes), jnp.float32) / jnp.sqrt(27.0 * in_planes)
    w2 = jax.random.normal(k2, (3, 3, 3, planes, planes), jnp.float32) / jnp.sqrt(27.0 * planes)
    return {
        "w1": w1, "w2": w2,
        "bn1_gamma": 1.0 + 0.1 * jax.random.normal(k3, (planes,), jnp.float32),
        "bn1_beta": 0.1 * jax.random.normal(k4, (planes,), jnp.float32),
        "bn1_mean": jnp.zeros((planes,), jnp.float32),
        "bn1_var": jnp.ones((planes,), jnp.float32),
        "bn2_gamma": 1.0 + 0.1 * jax.random.normal(k5, (planes,), jnp.float32),
        "bn2_beta": 0.1 * jax.random.normal(k6, (planes,), jnp.float32),
        "bn2_mean": jnp.zeros((planes,), jnp.float32),
        "bn2_var": jnp.ones((planes,), jnp.float32),
    }


def basic_block_forward(x_ncdhw, params):
    """BasicBlock forward (stride=1, downsample=None). Input/output: NCDHW."""
    x = jnp.transpose(x_ncdhw, (0, 2, 3, 4, 1)).astype(jnp.float32)   # -> NDHWC
    N, D, H, W, Cin = x.shape
    planes = params["w1"].shape[-1]
    assert Cin == planes, "stride=1 / downsample=None BasicBlock requires in_planes == planes"
    Cpad = _round_up(planes, 128)        # lane-dense channel padding
    Hp, Wp = H + 2, W + 2
    HWo = H * Wp
    # Flattened-row slab length: the kh=2 taps read rows up to Hp*Wp + 1, so pad
    # the row space by >= 2 slack rows (rounded to a sublane multiple).
    R = _round_up(Hp * Wp + 2, 8)

    scale1, shift1 = _fold_bn(params["bn1_gamma"], params["bn1_beta"],
                              params["bn1_mean"], params["bn1_var"])
    scale2, shift2 = _fold_bn(params["bn2_gamma"], params["bn2_beta"],
                              params["bn2_mean"], params["bn2_var"])

    w1m = _prep_weight(params["w1"], scale1, Cpad, Cpad)
    w2m = _prep_weight(params["w2"], scale2, Cpad, Cpad)
    shift1p = jnp.pad(shift1, ((0, 0), (0, Cpad - planes)))
    shift2p = jnp.pad(shift2, ((0, 0), (0, Cpad - planes)))

    # Validity of each flattened output row g = h*Wp + w (junk when w >= W).
    w_idx = jnp.arange(HWo, dtype=jnp.int32) % Wp
    row_mask = (w_idx < W).astype(jnp.float32).reshape(HWo, 1)

    xcp = jnp.pad(x, ((0, 0), (0, 0), (0, 0), (0, 0), (0, Cpad - Cin)))   # f32, channel-padded

    # conv1 input: halo-pad D/H/W, flatten (Hp, Wp) rows, pad rows to R.
    x1 = jnp.pad(xcp.astype(jnp.bfloat16), ((0, 0), (1, 1), (1, 1), (1, 1), (0, 0)))
    x1 = x1.reshape(N, D + 2, Hp * Wp, Cpad)
    x1 = jnp.pad(x1, ((0, 0), (0, 0), (0, R - Hp * Wp), (0, 0)))

    # conv1 + bn1 + relu  (bf16 output: it is conv2's MXU operand)
    out1 = _conv3x3x3_fused(x1, H, W, w1m, shift1p, row_mask,
                            residual=None, out_dtype=jnp.bfloat16)

    # conv2 input: conv1's junk columns are already zero, so a single pad
    # re-creates the halo'd slab layout (Wp+1 leading zero rows = top halo row
    # + first left border; the zeroed junk columns supply the remaining
    # left/right borders; the tail pad is the bottom halo + slack rows).
    x2 = jnp.pad(out1, ((0, 0), (1, 1), (Wp + 1, R - HWo - Wp - 1), (0, 0)))

    # residual = original activation (f32), laid out to match the kernel's row indexing
    res = jnp.pad(xcp, ((0, 0), (0, 0), (0, 0), (0, Wp - W), (0, 0)))
    res = res.reshape(N, D, HWo, Cpad)

    # conv2 + bn2 + residual add + relu
    out2 = _conv3x3x3_fused(x2, H, W, w2m, shift2p, row_mask,
                            residual=res, out_dtype=jnp.float32)
    y = out2.reshape(N, D, H, Wp, Cpad)[:, :, :, :W, :planes]
    return jnp.transpose(y, (0, 4, 1, 2, 3))                             # -> NCDHW


# ------------------------------ reference -----------------------------------

def _reference_forward(x_ncdhw, params):
    """XLA reference mirroring the kernel's bf16 operand rounding (f32 accumulation)."""
    x = jnp.transpose(x_ncdhw, (0, 2, 3, 4, 1)).astype(jnp.float32)
    s1, b1 = _fold_bn(params["bn1_gamma"], params["bn1_beta"],
                      params["bn1_mean"], params["bn1_var"])
    s2, b2 = _fold_bn(params["bn2_gamma"], params["bn2_beta"],
                      params["bn2_mean"], params["bn2_var"])

    def conv3(inp, w):
        return jax.lax.conv_general_dilated(
            inp, w, window_strides=(1, 1, 1),
            padding=((1, 1), (1, 1), (1, 1)),
            dimension_numbers=("NDHWC", "DHWIO", "NDHWC"))

    q = lambda a: a.astype(jnp.bfloat16).astype(jnp.float32)
    w1f = q(params["w1"] * s1.reshape(-1))
    w2f = q(params["w2"] * s2.reshape(-1))
    y1 = jnp.maximum(conv3(q(x), w1f) + b1.reshape(-1), 0.0)
    y2 = conv3(q(y1), w2f) + b2.reshape(-1) + x
    out = jnp.maximum(y2, 0.0)
    return jnp.transpose(out, (0, 4, 1, 2, 3))


# --------------------------------- main --------------------------------------

if __name__ == "__main__":
    key = jax.random.PRNGKey(0)
    k_x, k_p = jax.random.split(key)

    N, C, D, H, W = 2, 4, 8, 8, 8            # NCDHW, in_planes == planes == 4
    x = jax.random.normal(k_x, (N, C, D, H, W), jnp.float32)
    params = init_basic_block_params(k_p, C, C)

    fwd = jax.jit(basic_block_forward)
    out = jax.block_until_ready(fwd(x, params))

    ref = jax.block_until_ready(_reference_forward(x, params))
    assert out.shape == (N, C, D, H, W)
    max_err = float(jnp.max(jnp.abs(out - ref)))
    assert jnp.allclose(out, ref, atol=2e-3, rtol=2e-3), f"mismatch vs reference (max abs err={max_err})"

    print("KERNEL_OK")
</pallas_src>

<mosaic_0001>
module attributes {stable_mosaic.version = 11 : i64} {
  func.func @kernel(%arg0: i32, %arg1: i32, %arg2: i32, %arg3: memref<1x1x104x128xbf16, #tpu.memory_space<vmem>>, %arg4: memref<1x1x104x128xbf16, #tpu.memory_space<vmem>>, %arg5: memref<1x1x104x128xbf16, #tpu.memory_space<vmem>>, %arg6: memref<27x128x128xbf16, #tpu.memory_space<vmem>>, %arg7: memref<1x128xf32, #tpu.memory_space<vmem>>, %arg8: memref<80x1xf32, #tpu.memory_space<vmem>>, %arg9: memref<1x1x80x128xbf16, #tpu.memory_space<vmem>>) attributes {dimension_semantics = [#tpu.dimension_semantics<parallel>, #tpu.dimension_semantics<parallel>, #tpu.dimension_semantics<arbitrary>], iteration_bounds = array<i64: 2, 1, 8>, scalar_prefetch = 0 : i64, scratch_operands = 0 : i64, tpu.core_type = #tpu.core_type<tc>, window_params = [{transform_indices = @transform_0, window_bounds = array<i64: 1, 1, 104, 128>}, {transform_indices = @transform_1, window_bounds = array<i64: 1, 1, 104, 128>}, {transform_indices = @transform_2, window_bounds = array<i64: 1, 1, 104, 128>}, {transform_indices = @transform_3, window_bounds = array<i64: 27, 128, 128>}, {transform_indices = @transform_4, window_bounds = array<i64: 1, 128>}, {pipeline_mode = #tpu.pipeline_mode<synchronous>, transform_indices = @transform_5, window_bounds = array<i64: 80, 1>}, {transform_indices = @transform_6, window_bounds = array<i64: 1, 1, 80, 128>}]} {
    %cst = arith.constant 0.000000e+00 : f32
    %0 = vector.broadcast %cst : f32 to vector<80x128xf32>
    %c0 = arith.constant 0 : index
    %c0_0 = arith.constant 0 : index
    %c0_1 = arith.constant 0 : index
    %c0_2 = arith.constant 0 : index
    %1 = vector.load %arg3[%c0, %c0_0, %c0_1, %c0_2] : memref<1x1x104x128xbf16, #tpu.memory_space<vmem>>, vector<1x1x104x128xbf16>
    %2 = vector.shape_cast %1 : vector<1x1x104x128xbf16> to vector<104x128xbf16>
    %3 = vector.extract_strided_slice %2 {offsets = [0, 0], sizes = [80, 128], strides = [1, 1]} : vector<104x128xbf16> to vector<80x128xbf16>
    %c0_3 = arith.constant 0 : index
    %c0_4 = arith.constant 0 : index
    %c0_5 = arith.constant 0 : index
    %4 = vector.load %arg6[%c0_3, %c0_4, %c0_5] : memref<27x128x128xbf16, #tpu.memory_space<vmem>>, vector<1x128x128xbf16>
    %5 = vector.shape_cast %4 : vector<1x128x128xbf16> to vector<128x128xbf16>
    %cst_6 = arith.constant dense<0.000000e+00> : vector<80x128xf32>
    %6 = tpu.matmul %3, %5, %cst_6 {dimension_numbers = #tpu.dot_dimension_numbers<[1], [0], [0], [1], [0, 0, 1, 1], [], []>} : vector<80x128xbf16>, vector<128x128xbf16>, vector<80x128xf32> -> vector<80x128xf32>
    %7 = arith.addf %0, %6 : vector<80x128xf32>
    %8 = vector.extract_strided_slice %2 {offsets = [1, 0], sizes = [80, 128], strides = [1, 1]} : vector<104x128xbf16> to vector<80x128xbf16>
    %c1 = arith.constant 1 : index
    %c0_7 = arith.constant 0 : index
    %c0_8 = arith.constant 0 : index
    %9 = vector.load %arg6[%c1, %c0_7, %c0_8] : memref<27x128x128xbf16, #tpu.memory_space<vmem>>, vector<1x128x128xbf16>
    %10 = vector.shape_cast %9 : vector<1x128x128xbf16> to vector<128x128xbf16>
    %cst_9 = arith.constant dense<0.000000e+00> : vector<80x128xf32>
    %11 = tpu.matmul %8, %10, %cst_9 {dimension_numbers = #tpu.dot_dimension_numbers<[1], [0], [0], [1], [0, 0, 1, 1], [], []>} : vector<80x128xbf16>, vector<128x128xbf16>, vector<80x128xf32> -> vector<80x128xf32>
    %12 = arith.addf %7, %11 : vector<80x128xf32>
    %13 = vector.extract_strided_slice %2 {offsets = [2, 0], sizes = [80, 128], strides = [1, 1]} : vector<104x128xbf16> to vector<80x128xbf16>
    %c2 = arith.constant 2 : index
    %c0_10 = arith.constant 0 : index
    %c0_11 = arith.constant 0 : index
    %14 = vector.load %arg6[%c2, %c0_10, %c0_11] : memref<27x128x128xbf16, #tpu.memory_space<vmem>>, vector<1x128x128xbf16>
    %15 = vector.shape_cast %14 : vector<1x128x128xbf16> to vector<128x128xbf16>
    %cst_12 = arith.constant dense<0.000000e+00> : vector<80x128xf32>
    %16 = tpu.matmul %13, %15, %cst_12 {dimension_numbers = #tpu.dot_dimension_numbers<[1], [0], [0], [1], [0, 0, 1, 1], [], []>} : vector<80x128xbf16>, vector<128x128xbf16>, vector<80x128xf32> -> vector<80x128xf32>
    %17 = arith.addf %12, %16 : vector<80x128xf32>
    %18 = vector.extract_strided_slice %2 {offsets = [10, 0], sizes = [80, 128], strides = [1, 1]} : vector<104x128xbf16> to vector<80x128xbf16>
    %c3 = arith.constant 3 : index
    %c0_13 = arith.constant 0 : index
    %c0_14 = arith.constant 0 : index
    %19 = vector.load %arg6[%c3, %c0_13, %c0_14] : memref<27x128x128xbf16, #tpu.memory_space<vmem>>, vector<1x128x128xbf16>
    %20 = vector.shape_cast %19 : vector<1x128x128xbf16> to vector<128x128xbf16>
    %cst_15 = arith.constant dense<0.000000e+00> : vector<80x128xf32>
    %21 = tpu.matmul %18, %20, %cst_15 {dimension_numbers = #tpu.dot_dimension_numbers<[1], [0], [0], [1], [0, 0, 1, 1], [], []>} : vector<80x128xbf16>, vector<128x128xbf16>, vector<80x128xf32> -> vector<80x128xf32>
    %22 = arith.addf %17, %21 : vector<80x128xf32>
    %23 = vector.extract_strided_slice %2 {offsets = [11, 0], sizes = [80, 128], strides = [1, 1]} : vector<104x128xbf16> to vector<80x128xbf16>
    %c4 = arith.constant 4 : index
    %c0_16 = arith.constant 0 : index
    %c0_17 = arith.constant 0 : index
    %24 = vector.load %arg6[%c4, %c0_16, %c0_17] : memref<27x128x128xbf16, #tpu.memory_space<vmem>>, vector<1x128x128xbf16>
    %25 = vector.shape_cast %24 : vector<1x128x128xbf16> to vector<128x128xbf16>
    %cst_18 = arith.constant dense<0.000000e+00> : vector<80x128xf32>
    %26 = tpu.matmul %23, %25, %cst_18 {dimension_numbers = #tpu.dot_dimension_numbers<[1], [0], [0], [1], [0, 0, 1, 1], [], []>} : vector<80x128xbf16>, vector<128x128xbf16>, vector<80x128xf32> -> vector<80x128xf32>
    %27 = arith.addf %22, %26 : vector<80x128xf32>
    %28 = vector.extract_strided_slice %2 {offsets = [12, 0], sizes = [80, 128], strides = [1, 1]} : vector<104x128xbf16> to vector<80x128xbf16>
    %c5 = arith.constant 5 : index
    %c0_19 = arith.constant 0 : index
    %c0_20 = arith.constant 0 : index
    %29 = vector.load %arg6[%c5, %c0_19, %c0_20] : memref<27x128x128xbf16, #tpu.memory_space<vmem>>, vector<1x128x128xbf16>
    %30 = vector.shape_cast %29 : vector<1x128x128xbf16> to vector<128x128xbf16>
    %cst_21 = arith.constant dense<0.000000e+00> : vector<80x128xf32>
    %31 = tpu.matmul %28, %30, %cst_21 {dimension_numbers = #tpu.dot_dimension_numbers<[1], [0], [0], [1], [0, 0, 1, 1], [], []>} : vector<80x128xbf16>, vector<128x128xbf16>, vector<80x128xf32> -> vector<80x128xf32>
    %32 = arith.addf %27, %31 : vector<80x128xf32>
    %33 = vector.extract_strided_slice %2 {offsets = [20, 0], sizes = [80, 128], strides = [1, 1]} : vector<104x128xbf16> to vector<80x128xbf16>
    %c6 = arith.constant 6 : index
    %c0_22 = arith.constant 0 : index
    %c0_23 = arith.constant 0 : index
    %34 = vector.load %arg6[%c6, %c0_22, %c0_23] : memref<27x128x128xbf16, #tpu.memory_space<vmem>>, vector<1x128x128xbf16>
    %35 = vector.shape_cast %34 : vector<1x128x128xbf16> to vector<128x128xbf16>
    %cst_24 = arith.constant dense<0.000000e+00> : vector<80x128xf32>
    %36 = tpu.matmul %33, %35, %cst_24 {dimension_numbers = #tpu.dot_dimension_numbers<[1], [0], [0], [1], [0, 0, 1, 1], [], []>} : vector<80x128xbf16>, vector<128x128xbf16>, vector<80x128xf32> -> vector<80x128xf32>
    %37 = arith.addf %32, %36 : vector<80x128xf32>
    %38 = vector.extract_strided_slice %2 {offsets = [21, 0], sizes = [80, 128], strides = [1, 1]} : vector<104x128xbf16> to vector<80x128xbf16>
    %c7 = arith.constant 7 : index
    %c0_25 = arith.constant 0 : index
    %c0_26 = arith.constant 0 : index
    %39 = vector.load %arg6[%c7, %c0_25, %c0_26] : memref<27x128x128xbf16, #tpu.memory_space<vmem>>, vector<1x128x128xbf16>
    %40 = vector.shape_cast %39 : vector<1x128x128xbf16> to vector<128x128xbf16>
    %cst_27 = arith.constant dense<0.000000e+00> : vector<80x128xf32>
    %41 = tpu.matmul %38, %40, %cst_27 {dimension_numbers = #tpu.dot_dimension_numbers<[1], [0], [0], [1], [0, 0, 1, 1], [], []>} : vector<80x128xbf16>, vector<128x128xbf16>, vector<80x128xf32> -> vector<80x128xf32>
    %42 = arith.addf %37, %41 : vector<80x128xf32>
    %43 = vector.extract_strided_slice %2 {offsets = [22, 0], sizes = [80, 128], strides = [1, 1]} : vector<104x128xbf16> to vector<80x128xbf16>
    %c8 = arith.constant 8 : index
    %c0_28 = arith.constant 0 : index
    %c0_29 = arith.constant 0 : index
    %44 = vector.load %arg6[%c8, %c0_28, %c0_29] : memref<27x128x128xbf16, #tpu.memory_space<vmem>>, vector<1x128x128xbf16>
    %45 = vector.shape_cast %44 : vector<1x128x128xbf16> to vector<128x128xbf16>
    %cst_30 = arith.constant dense<0.000000e+00> : vector<80x128xf32>
    %46 = tpu.matmul %43, %45, %cst_30 {dimension_numbers = #tpu.dot_dimension_numbers<[1], [0], [0], [1], [0, 0, 1, 1], [], []>} : vector<80x128xbf16>, vector<128x128xbf16>, vector<80x128xf32> -> vector<80x128xf32>
    %47 = arith.addf %42, %46 : vector<80x128xf32>
    %c0_31 = arith.constant 0 : index
    %c0_32 = arith.constant 0 : index
    %c0_33 = arith.constant 0 : index
    %c0_34 = arith.constant 0 : index
    %48 = vector.load %arg4[%c0_31, %c0_32, %c0_33, %c0_34] : memref<1x1x104x128xbf16, #tpu.memory_space<vmem>>, vector<1x1x104x128xbf16>
    %49 = vector.shape_cast %48 : vector<1x1x104x128xbf16> to vector<104x128xbf16>
    %50 = vector.extract_strided_slice %49 {offsets = [0, 0], sizes = [80, 128], strides = [1, 1]} : vector<104x128xbf16> to vector<80x128xbf16>
    %c9 = arith.constant 9 : index
    %c0_35 = arith.constant 0 : index
    %c0_36 = arith.constant 0 : index
    %51 = vector.load %arg6[%c9, %c0_35, %c0_36] : memref<27x128x128xbf16, #tpu.memory_space<vmem>>, vector<1x128x128xbf16>
    %52 = vector.shape_cast %51 : vector<1x128x128xbf16> to vector<128x128xbf16>
    %cst_37 = arith.constant dense<0.000000e+00> : vector<80x128xf32>
    %53 = tpu.matmul %50, %52, %cst_37 {dimension_numbers = #tpu.dot_dimension_numbers<[1], [0], [0], [1], [0, 0, 1, 1], [], []>} : vector<80x128xbf16>, vector<128x128xbf16>, vector<80x128xf32> -> vector<80x128xf32>
    %54 = arith.addf %47, %53 : vector<80x128xf32>
    %55 = vector.extract_strided_slice %49 {offsets = [1, 0], sizes = [80, 128], strides = [1, 1]} : vector<104x128xbf16> to vector<80x128xbf16>
    %c10 = arith.constant 10 : index
    %c0_38 = arith.constant 0 : index
    %c0_39 = arith.constant 0 : index
    %56 = vector.load %arg6[%c10, %c0_38, %c0_39] : memref<27x128x128xbf16, #tpu.memory_space<vmem>>, vector<1x128x128xbf16>
    %57 = vector.shape_cast %56 : vector<1x128x128xbf16> to vector<128x128xbf16>
    %cst_40 = arith.constant dense<0.000000e+00> : vector<80x128xf32>
    %58 = tpu.matmul %55, %57, %cst_40 {dimension_numbers = #tpu.dot_dimension_numbers<[1], [0], [0], [1], [0, 0, 1, 1], [], []>} : vector<80x128xbf16>, vector<128x128xbf16>, vector<80x128xf32> -> vector<80x128xf32>
    %59 = arith.addf %54, %58 : vector<80x128xf32>
    %60 = vector.extract_strided_slice %49 {offsets = [2, 0], sizes = [80, 128], strides = [1, 1]} : vector<104x128xbf16> to vector<80x128xbf16>
    %c11 = arith.constant 11 : index
    %c0_41 = arith.constant 0 : index
    %c0_42 = arith.constant 0 : index
    %61 = vector.load %arg6[%c11, %c0_41, %c0_42] : memref<27x128x128xbf16, #tpu.memory_space<vmem>>, vector<1x128x128xbf16>
    %62 = vector.shape_cast %61 : vector<1x128x128xbf16> to vector<128x128xbf16>
    %cst_43 = arith.constant dense<0.000000e+00> : vector<80x128xf32>
    %63 = tpu.matmul %60, %62, %cst_43 {dimension_numbers = #tpu.dot_dimension_numbers<[1], [0], [0], [1], [0, 0, 1, 1], [], []>} : vector<80x128xbf16>, vector<128x128xbf16>, vector<80x128xf32> -> vector<80x128xf32>
    %64 = arith.addf %59, %63 : vector<80x128xf32>
    %65 = vector.extract_strided_slice %49 {offsets = [10, 0], sizes = [80, 128], strides = [1, 1]} : vector<104x128xbf16> to vector<80x128xbf16>
    %c12 = arith.constant 12 : index
    %c0_44 = arith.constant 0 : index
    %c0_45 = arith.constant 0 : index
    %66 = vector.load %arg6[%c12, %c0_44, %c0_45] : memref<27x128x128xbf16, #tpu.memory_space<vmem>>, vector<1x128x128xbf16>
    %67 = vector.shape_cast %66 : vector<1x128x128xbf16> to vector<128x128xbf16>
    %cst_46 = arith.constant dense<0.000000e+00> : vector<80x128xf32>
    %68 = tpu.matmul %65, %67, %cst_46 {dimension_numbers = #tpu.dot_dimension_numbers<[1], [0], [0], [1], [0, 0, 1, 1], [], []>} : vector<80x128xbf16>, vector<128x128xbf16>, vector<80x128xf32> -> vector<80x128xf32>
    %69 = arith.addf %64, %68 : vector<80x128xf32>
    %70 = vector.extract_strided_slice %49 {offsets = [11, 0], sizes = [80, 128], strides = [1, 1]} : vector<104x128xbf16> to vector<80x128xbf16>
    %c13 = arith.constant 13 : index
    %c0_47 = arith.constant 0 : index
    %c0_48 = arith.constant 0 : index
    %71 = vector.load %arg6[%c13, %c0_47, %c0_48] : memref<27x128x128xbf16, #tpu.memory_space<vmem>>, vector<1x128x128xbf16>
    %72 = vector.shape_cast %71 : vector<1x128x128xbf16> to vector<128x128xbf16>
    %cst_49 = arith.constant dense<0.000000e+00> : vector<80x128xf32>
    %73 = tpu.matmul %70, %72, %cst_49 {dimension_numbers = #tpu.dot_dimension_numbers<[1], [0], [0], [1], [0, 0, 1, 1], [], []>} : vector<80x128xbf16>, vector<128x128xbf16>, vector<80x128xf32> -> vector<80x128xf32>
    %74 = arith.addf %69, %73 : vector<80x128xf32>
    %75 = vector.extract_strided_slice %49 {offsets = [12, 0], sizes = [80, 128], strides = [1, 1]} : vector<104x128xbf16> to vector<80x128xbf16>
    %c14 = arith.constant 14 : index
    %c0_50 = arith.constant 0 : index
    %c0_51 = arith.constant 0 : index
    %76 = vector.load %arg6[%c14, %c0_50, %c0_51] : memref<27x128x128xbf16, #tpu.memory_space<vmem>>, vector<1x128x128xbf16>
    %77 = vector.shape_cast %76 : vector<1x128x128xbf16> to vector<128x128xbf16>
    %cst_52 = arith.constant dense<0.000000e+00> : vector<80x128xf32>
    %78 = tpu.matmul %75, %77, %cst_52 {dimension_numbers = #tpu.dot_dimension_numbers<[1], [0], [0], [1], [0, 0, 1, 1], [], []>} : vector<80x128xbf16>, vector<128x128xbf16>, vector<80x128xf32> -> vector<80x128xf32>
    %79 = arith.addf %74, %78 : vector<80x128xf32>
    %80 = vector.extract_strided_slice %49 {offsets = [20, 0], sizes = [80, 128], strides = [1, 1]} : vector<104x128xbf16> to vector<80x128xbf16>
    %c15 = arith.constant 15 : index
    %c0_53 = arith.constant 0 : index
    %c0_54 = arith.constant 0 : index
    %81 = vector.load %arg6[%c15, %c0_53, %c0_54] : memref<27x128x128xbf16, #tpu.memory_space<vmem>>, vector<1x128x128xbf16>
    %82 = vector.shape_cast %81 : vector<1x128x128xbf16> to vector<128x128xbf16>
    %cst_55 = arith.constant dense<0.000000e+00> : vector<80x128xf32>
    %83 = tpu.matmul %80, %82, %cst_55 {dimension_numbers = #tpu.dot_dimension_numbers<[1], [0], [0], [1], [0, 0, 1, 1], [], []>} : vector<80x128xbf16>, vector<128x128xbf16>, vector<80x128xf32> -> vector<80x128xf32>
    %84 = arith.addf %79, %83 : vector<80x128xf32>
    %85 = vector.extract_strided_slice %49 {offsets = [21, 0], sizes = [80, 128], strides = [1, 1]} : vector<104x128xbf16> to vector<80x128xbf16>
    %c16 = arith.constant 16 : index
    %c0_56 = arith.constant 0 : index
    %c0_57 = arith.constant 0 : index
    %86 = vector.load %arg6[%c16, %c0_56, %c0_57] : memref<27x128x128xbf16, #tpu.memory_space<vmem>>, vector<1x128x128xbf16>
    %87 = vector.shape_cast %86 : vector<1x128x128xbf16> to vector<128x128xbf16>
    %cst_58 = arith.constant dense<0.000000e+00> : vector<80x128xf32>
    %88 = tpu.matmul %85, %87, %cst_58 {dimension_numbers = #tpu.dot_dimension_numbers<[1], [0], [0], [1], [0, 0, 1, 1], [], []>} : vector<80x128xbf16>, vector<128x128xbf16>, vector<80x128xf32> -> vector<80x128xf32>
    %89 = arith.addf %84, %88 : vector<80x128xf32>
    %90 = vector.extract_strided_slice %49 {offsets = [22, 0], sizes = [80, 128], strides = [1, 1]} : vector<104x128xbf16> to vector<80x128xbf16>
    %c17 = arith.constant 17 : index
    %c0_59 = arith.constant 0 : index
    %c0_60 = arith.constant 0 : index
    %91 = vector.load %arg6[%c17, %c0_59, %c0_60] : memref<27x128x128xbf16, #tpu.memory_space<vmem>>, vector<1x128x128xbf16>
    %92 = vector.shape_cast %91 : vector<1x128x128xbf16> to vector<128x128xbf16>
    %cst_61 = arith.constant dense<0.000000e+00> : vector<80x128xf32>
    %93 = tpu.matmul %90, %92, %cst_61 {dimension_numbers = #tpu.dot_dimension_numbers<[1], [0], [0], [1], [0, 0, 1, 1], [], []>} : vector<80x128xbf16>, vector<128x128xbf16>, vector<80x128xf32> -> vector<80x128xf32>
    %94 = arith.addf %89, %93 : vector<80x128xf32>
    %c0_62 = arith.constant 0 : index
    %c0_63 = arith.constant 0 : index
    %c0_64 = arith.constant 0 : index
    %c0_65 = arith.constant 0 : index
    %95 = vector.load %arg5[%c0_62, %c0_63, %c0_64, %c0_65] : memref<1x1x104x128xbf16, #tpu.memory_space<vmem>>, vector<1x1x104x128xbf16>
    %96 = vector.shape_cast %95 : vector<1x1x104x128xbf16> to vector<104x128xbf16>
    %97 = vector.extract_strided_slice %96 {offsets = [0, 0], sizes = [80, 128], strides = [1, 1]} : vector<104x128xbf16> to vector<80x128xbf16>
    %c18 = arith.constant 18 : index
    %c0_66 = arith.constant 0 : index
    %c0_67 = arith.constant 0 : index
    %98 = vector.load %arg6[%c18, %c0_66, %c0_67] : memref<27x128x128xbf16, #tpu.memory_space<vmem>>, vector<1x128x128xbf16>
    %99 = vector.shape_cast %98 : vector<1x128x128xbf16> to vector<128x128xbf16>
    %cst_68 = arith.constant dense<0.000000e+00> : vector<80x128xf32>
    %100 = tpu.matmul %97, %99, %cst_68 {dimension_numbers = #tpu.dot_dimension_numbers<[1], [0], [0], [1], [0, 0, 1, 1], [], []>} : vector<80x128xbf16>, vector<128x128xbf16>, vector<80x128xf32> -> vector<80x128xf32>
    %101 = arith.addf %94, %100 : vector<80x128xf32>
    %102 = vector.extract_strided_slice %96 {offsets = [1, 0], sizes = [80, 128], strides = [1, 1]} : vector<104x128xbf16> to vector<80x128xbf16>
    %c19 = arith.constant 19 : index
    %c0_69 = arith.constant 0 : index
    %c0_70 = arith.constant 0 : index
    %103 = vector.load %arg6[%c19, %c0_69, %c0_70] : memref<27x128x128xbf16, #tpu.memory_space<vmem>>, vector<1x128x128xbf16>
    %104 = vector.shape_cast %103 : vector<1x128x128xbf16> to vector<128x128xbf16>
    %cst_71 = arith.constant dense<0.000000e+00> : vector<80x128xf32>
    %105 = tpu.matmul %102, %104, %cst_71 {dimension_numbers = #tpu.dot_dimension_numbers<[1], [0], [0], [1], [0, 0, 1, 1], [], []>} : vector<80x128xbf16>, vector<128x128xbf16>, vector<80x128xf32> -> vector<80x128xf32>
    %106 = arith.addf %101, %105 : vector<80x128xf32>
    %107 = vector.extract_strided_slice %96 {offsets = [2, 0], sizes = [80, 128], strides = [1, 1]} : vector<104x128xbf16> to vector<80x128xbf16>
    %c20 = arith.constant 20 : index
    %c0_72 = arith.constant 0 : index
    %c0_73 = arith.constant 0 : index
    %108 = vector.load %arg6[%c20, %c0_72, %c0_73] : memref<27x128x128xbf16, #tpu.memory_space<vmem>>, vector<1x128x128xbf16>
    %109 = vector.shape_cast %108 : vector<1x128x128xbf16> to vector<128x128xbf16>
    %cst_74 = arith.constant dense<0.000000e+00> : vector<80x128xf32>
    %110 = tpu.matmul %107, %109, %cst_74 {dimension_numbers = #tpu.dot_dimension_numbers<[1], [0], [0], [1], [0, 0, 1, 1], [], []>} : vector<80x128xbf16>, vector<128x128xbf16>, vector<80x128xf32> -> vector<80x128xf32>
    %111 = arith.addf %106, %110 : vector<80x128xf32>
    %112 = vector.extract_strided_slice %96 {offsets = [10, 0], sizes = [80, 128], strides = [1, 1]} : vector<104x128xbf16> to vector<80x128xbf16>
    %c21 = arith.constant 21 : index
    %c0_75 = arith.constant 0 : index
    %c0_76 = arith.constant 0 : index
    %113 = vector.load %arg6[%c21, %c0_75, %c0_76] : memref<27x128x128xbf16, #tpu.memory_space<vmem>>, vector<1x128x128xbf16>
    %114 = vector.shape_cast %113 : vector<1x128x128xbf16> to vector<128x128xbf16>
    %cst_77 = arith.constant dense<0.000000e+00> : vector<80x128xf32>
    %115 = tpu.matmul %112, %114, %cst_77 {dimension_numbers = #tpu.dot_dimension_numbers<[1], [0], [0], [1], [0, 0, 1, 1], [], []>} : vector<80x128xbf16>, vector<128x128xbf16>, vector<80x128xf32> -> vector<80x128xf32>
    %116 = arith.addf %111, %115 : vector<80x128xf32>
    %117 = vector.extract_strided_slice %96 {offsets = [11, 0], sizes = [80, 128], strides = [1, 1]} : vector<104x128xbf16> to vector<80x128xbf16>
    %c22 = arith.constant 22 : index
    %c0_78 = arith.constant 0 : index
    %c0_79 = arith.constant 0 : index
    %118 = vector.load %arg6[%c22, %c0_78, %c0_79] : memref<27x128x128xbf16, #tpu.memory_space<vmem>>, vector<1x128x128xbf16>
    %119 = vector.shape_cast %118 : vector<1x128x128xbf16> to vector<128x128xbf16>
    %cst_80 = arith.constant dense<0.000000e+00> : vector<80x128xf32>
    %120 = tpu.matmul %117, %119, %cst_80 {dimension_numbers = #tpu.dot_dimension_numbers<[1], [0], [0], [1], [0, 0, 1, 1], [], []>} : vector<80x128xbf16>, vector<128x128xbf16>, vector<80x128xf32> -> vector<80x128xf32>
    %121 = arith.addf %116, %120 : vector<80x128xf32>
    %122 = vector.extract_strided_slice %96 {offsets = [12, 0], sizes = [80, 128], strides = [1, 1]} : vector<104x128xbf16> to vector<80x128xbf16>
    %c23 = arith.constant 23 : index
    %c0_81 = arith.constant 0 : index
    %c0_82 = arith.constant 0 : index
    %123 = vector.load %arg6[%c23, %c0_81, %c0_82] : memref<27x128x128xbf16, #tpu.memory_space<vmem>>, vector<1x128x128xbf16>
    %124 = vector.shape_cast %123 : vector<1x128x128xbf16> to vector<128x128xbf16>
    %cst_83 = arith.constant dense<0.000000e+00> : vector<80x128xf32>
    %125 = tpu.matmul %122, %124, %cst_83 {dimension_numbers = #tpu.dot_dimension_numbers<[1], [0], [0], [1], [0, 0, 1, 1], [], []>} : vector<80x128xbf16>, vector<128x128xbf16>, vector<80x128xf32> -> vector<80x128xf32>
    %126 = arith.addf %121, %125 : vector<80x128xf32>
    %127 = vector.extract_strided_slice %96 {offsets = [20, 0], sizes = [80, 128], strides = [1, 1]} : vector<104x128xbf16> to vector<80x128xbf16>
    %c24 = arith.constant 24 : index
    %c0_84 = arith.constant 0 : index
    %c0_85 = arith.constant 0 : index
    %128 = vector.load %arg6[%c24, %c0_84, %c0_85] : memref<27x128x128xbf16, #tpu.memory_space<vmem>>, vector<1x128x128xbf16>
    %129 = vector.shape_cast %128 : vector<1x128x128xbf16> to vector<128x128xbf16>
    %cst_86 = arith.constant dense<0.000000e+00> : vector<80x128xf32>
    %130 = tpu.matmul %127, %129, %cst_86 {dimension_numbers = #tpu.dot_dimension_numbers<[1], [0], [0], [1], [0, 0, 1, 1], [], []>} : vector<80x128xbf16>, vector<128x128xbf16>, vector<80x128xf32> -> vector<80x128xf32>
    %131 = arith.addf %126, %130 : vector<80x128xf32>
    %132 = vector.extract_strided_slice %96 {offsets = [21, 0], sizes = [80, 128], strides = [1, 1]} : vector<104x128xbf16> to vector<80x128xbf16>
    %c25 = arith.constant 25 : index
    %c0_87 = arith.constant 0 : index
    %c0_88 = arith.constant 0 : index
    %133 = vector.load %arg6[%c25, %c0_87, %c0_88] : memref<27x128x128xbf16, #tpu.memory_space<vmem>>, vector<1x128x128xbf16>
    %134 = vector.shape_cast %133 : vector<1x128x128xbf16> to vector<128x128xbf16>
    %cst_89 = arith.constant dense<0.000000e+00> : vector<80x128xf32>
    %135 = tpu.matmul %132, %134, %cst_89 {dimension_numbers = #tpu.dot_dimension_numbers<[1], [0], [0], [1], [0, 0, 1, 1], [], []>} : vector<80x128xbf16>, vector<128x128xbf16>, vector<80x128xf32> -> vector<80x128xf32>
    %136 = arith.addf %131, %135 : vector<80x128xf32>
    %137 = vector.extract_strided_slice %96 {offsets = [22, 0], sizes = [80, 128], strides = [1, 1]} : vector<104x128xbf16> to vector<80x128xbf16>
    %c26 = arith.constant 26 : index
    %c0_90 = arith.constant 0 : index
    %c0_91 = arith.constant 0 : index
    %138 = vector.load %arg6[%c26, %c0_90, %c0_91] : memref<27x128x128xbf16, #tpu.memory_space<vmem>>, vector<1x128x128xbf16>
    %139 = vector.shape_cast %138 : vector<1x128x128xbf16> to vector<128x128xbf16>
    %cst_92 = arith.constant dense<0.000000e+00> : vector<80x128xf32>
    %140 = tpu.matmul %137, %139, %cst_92 {dimension_numbers = #tpu.dot_dimension_numbers<[1], [0], [0], [1], [0, 0, 1, 1], [], []>} : vector<80x128xbf16>, vector<128x128xbf16>, vector<80x128xf32> -> vector<80x128xf32>
    %141 = arith.addf %136, %140 : vector<80x128xf32>
    %c0_93 = arith.constant 0 : index
    %c0_94 = arith.constant 0 : index
    %142 = vector.load %arg7[%c0_93, %c0_94] : memref<1x128xf32, #tpu.memory_space<vmem>>, vector<1x128xf32>
    %143 = vector.broadcast %142 : vector<1x128xf32> to vector<80x128xf32>
    %144 = arith.addf %141, %143 : vector<80x128xf32>
    %cst_95 = arith.constant 0.000000e+00 : f32
    %145 = vector.broadcast %cst_95 : f32 to vector<80x128xf32>
    %146 = arith.maximumf %144, %145 : vector<80x128xf32>
    %c0_96 = arith.constant 0 : index
    %c0_97 = arith.constant 0 : index
    %147 = vector.load %arg8[%c0_96, %c0_97] : memref<80x1xf32, #tpu.memory_space<vmem>>, vector<80x1xf32>
    %148 = vector.broadcast %147 : vector<80x1xf32> to vector<80x128xf32>
    %149 = arith.mulf %146, %148 : vector<80x128xf32>
    %150 = arith.truncf %149 : vector<80x128xf32> to vector<80x128xbf16>
    %c0_98 = arith.constant 0 : index
    %c0_99 = arith.constant 0 : index
    %c0_100 = arith.constant 0 : index
    %c0_101 = arith.constant 0 : index
    %151 = vector.load %arg9[%c0_98, %c0_99, %c0_100, %c0_101] : memref<1x1x80x128xbf16, #tpu.memory_space<vmem>>, vector<1x1x80x128xbf16>
    %152 = vector.shape_cast %151 : vector<1x1x80x128xbf16> to vector<80x128xbf16>
    %153 = vector.shape_cast %150 : vector<80x128xbf16> to vector<1x1x80x128xbf16>
    tpu.vector_store %arg9[%c0_98, %c0_99, %c0_100, %c0_101], %153 {strides = array<i32>} : memref<1x1x80x128xbf16, #tpu.memory_space<vmem>>, vector<1x1x80x128xbf16>,
    return
  }
  func.func @transform_0(%arg0: i32, %arg1: i32, %arg2: i32) -> (i32, i32, i32, i32) {
    %c0_i32 = arith.constant 0 : i32
    %0 = arith.addi %arg2, %c0_i32 : i32
    %c0_i32_0 = arith.constant 0 : i32
    %c0_i32_1 = arith.constant 0 : i32
    %c0_i32_2 = arith.constant 0 : i32
    return %arg0, %0, %c0_i32_0, %c0_i32_1 : i32, i32, i32, i32
  }
  func.func @transform_1(%arg0: i32, %arg1: i32, %arg2: i32) -> (i32, i32, i32, i32) {
    %c1_i32 = arith.constant 1 : i32
    %0 = arith.addi %arg2, %c1_i32 : i32
    %c0_i32 = arith.constant 0 : i32
    %c0_i32_0 = arith.constant 0 : i32
    %c0_i32_1 = arith.constant 0 : i32
    return %arg0, %0, %c0_i32, %c0_i32_0 : i32, i32, i32, i32
  }
  func.func @transform_2(%arg0: i32, %arg1: i32, %arg2: i32) -> (i32, i32, i32, i32) {
    %c2_i32 = arith.constant 2 : i32
    %0 = arith.addi %arg2, %c2_i32 : i32
    %c0_i32 = arith.constant 0 : i32
    %c0_i32_0 = arith.constant 0 : i32
    %c0_i32_1 = arith.constant 0 : i32
    return %arg0, %0, %c0_i32, %c0_i32_0 : i32, i32, i32, i32
  }
  func.func @transform_3(%arg0: i32, %arg1: i32, %arg2: i32) -> (i32, i32, i32) {
    %c0_i32 = arith.constant 0 : i32
    %c0_i32_0 = arith.constant 0 : i32
    %c0_i32_1 = arith.constant 0 : i32
    return %c0_i32, %c0_i32_0, %arg1 : i32, i32, i32
  }
  func.func @transform_4(%arg0: i32, %arg1: i32, %arg2: i32) -> (i32, i32) {
    %c0_i32 = arith.constant 0 : i32
    %c0_i32_0 = arith.constant 0 : i32
    return %c0_i32, %arg1 : i32, i32
  }
  func.func @transform_5(%arg0: i32, %arg1: i32, %arg2: i32) -> (i32, i32) {
    %c0_i32 = arith.constant 0 : i32
    %c0_i32_0 = arith.constant 0 : i32
    %c0_i32_1 = arith.constant 0 : i32
    return %c0_i32, %c0_i32_0 : i32, i32
  }
  func.func @transform_6(%arg0: i32, %arg1: i32, %arg2: i32) -> (i32, i32, i32, i32) {
    %c0_i32 = arith.constant 0 : i32
    %c0_i32_0 = arith.constant 0 : i32
    return %arg0, %arg2, %c0_i32, %arg1 : i32, i32, i32, i32
  }
}

module attributes {stable_mosaic.version = 11 : i64} {
  func.func @kernel(%arg0: i32, %arg1: i32, %arg2: i32, %arg3: memref<1x1x104x128xbf16, #tpu.memory_space<vmem>>, %arg4: memref<1x1x104x128xbf16, #tpu.memory_space<vmem>>, %arg5: memref<1x1x104x128xbf16, #tpu.memory_space<vmem>>, %arg6: memref<27x128x128xbf16, #tpu.memory_space<vmem>>, %arg7: memref<1x128xf32, #tpu.memory_space<vmem>>, %arg8: memref<80x1xf32, #tpu.memory_space<vmem>>, %arg9: memref<1x1x80x128xf32, #tpu.memory_space<vmem>>, %arg10: memref<1x1x80x128xf32, #tpu.memory_space<vmem>>) attributes {dimension_semantics = [#tpu.dimension_semantics<parallel>, #tpu.dimension_semantics<parallel>, #tpu.dimension_semantics<arbitrary>], iteration_bounds = array<i64: 2, 1, 8>, scalar_prefetch = 0 : i64, scratch_operands = 0 : i64, tpu.core_type = #tpu.core_type<tc>, window_params = [{transform_indices = @transform_0, window_bounds = array<i64: 1, 1, 104, 128>}, {transform_indices = @transform_1, window_bounds = array<i64: 1, 1, 104, 128>}, {transform_indices = @transform_2, window_bounds = array<i64: 1, 1, 104, 128>}, {transform_indices = @transform_3, window_bounds = array<i64: 27, 128, 128>}, {transform_indices = @transform_4, window_bounds = array<i64: 1, 128>}, {pipeline_mode = #tpu.pipeline_mode<synchronous>, transform_indices = @transform_5, window_bounds = array<i64: 80, 1>}, {transform_indices = @transform_6, window_bounds = array<i64: 1, 1, 80, 128>}, {transform_indices = @transform_7, window_bounds = array<i64: 1, 1, 80, 128>}]} {
    %cst = arith.constant 0.000000e+00 : f32
    %0 = vector.broadcast %cst : f32 to vector<80x128xf32>
    %c0 = arith.constant 0 : index
    %c0_0 = arith.constant 0 : index
    %c0_1 = arith.constant 0 : index
    %c0_2 = arith.constant 0 : index
    %1 = vector.load %arg3[%c0, %c0_0, %c0_1, %c0_2] : memref<1x1x104x128xbf16, #tpu.memory_space<vmem>>, vector<1x1x104x128xbf16>
    %2 = vector.shape_cast %1 : vector<1x1x104x128xbf16> to vector<104x128xbf16>
    %3 = vector.extract_strided_slice %2 {offsets = [0, 0], sizes = [80, 128], strides = [1, 1]} : vector<104x128xbf16> to vector<80x128xbf16>
    %c0_3 = arith.constant 0 : index
    %c0_4 = arith.constant 0 : index
    %c0_5 = arith.constant 0 : index
    %4 = vector.load %arg6[%c0_3, %c0_4, %c0_5] : memref<27x128x128xbf16, #tpu.memory_space<vmem>>, vector<1x128x128xbf16>
    %5 = vector.shape_cast %4 : vector<1x128x128xbf16> to vector<128x128xbf16>
    %cst_6 = arith.constant dense<0.000000e+00> : vector<80x128xf32>
    %6 = tpu.matmul %3, %5, %cst_6 {dimension_numbers = #tpu.dot_dimension_numbers<[1], [0], [0], [1], [0, 0, 1, 1], [], []>} : vector<80x128xbf16>, vector<128x128xbf16>, vector<80x128xf32> -> vector<80x128xf32>
    %7 = arith.addf %0, %6 : vector<80x128xf32>
    %8 = vector.extract_strided_slice %2 {offsets = [1, 0], sizes = [80, 128], strides = [1, 1]} : vector<104x128xbf16> to vector<80x128xbf16>
    %c1 = arith.constant 1 : index
    %c0_7 = arith.constant 0 : index
    %c0_8 = arith.constant 0 : index
    %9 = vector.load %arg6[%c1, %c0_7, %c0_8] : memref<27x128x128xbf16, #tpu.memory_space<vmem>>, vector<1x128x128xbf16>
    %10 = vector.shape_cast %9 : vector<1x128x128xbf16> to vector<128x128xbf16>
    %cst_9 = arith.constant dense<0.000000e+00> : vector<80x128xf32>
    %11 = tpu.matmul %8, %10, %cst_9 {dimension_numbers = #tpu.dot_dimension_numbers<[1], [0], [0], [1], [0, 0, 1, 1], [], []>} : vector<80x128xbf16>, vector<128x128xbf16>, vector<80x128xf32> -> vector<80x128xf32>
    %12 = arith.addf %7, %11 : vector<80x128xf32>
    %13 = vector.extract_strided_slice %2 {offsets = [2, 0], sizes = [80, 128], strides = [1, 1]} : vector<104x128xbf16> to vector<80x128xbf16>
    %c2 = arith.constant 2 : index
    %c0_10 = arith.constant 0 : index
    %c0_11 = arith.constant 0 : index
    %14 = vector.load %arg6[%c2, %c0_10, %c0_11] : memref<27x128x128xbf16, #tpu.memory_space<vmem>>, vector<1x128x128xbf16>
    %15 = vector.shape_cast %14 : vector<1x128x128xbf16> to vector<128x128xbf16>
    %cst_12 = arith.constant dense<0.000000e+00> : vector<80x128xf32>
    %16 = tpu.matmul %13, %15, %cst_12 {dimension_numbers = #tpu.dot_dimension_numbers<[1], [0], [0], [1], [0, 0, 1, 1], [], []>} : vector<80x128xbf16>, vector<128x128xbf16>, vector<80x128xf32> -> vector<80x128xf32>
    %17 = arith.addf %12, %16 : vector<80x128xf32>
    %18 = vector.extract_strided_slice %2 {offsets = [10, 0], sizes = [80, 128], strides = [1, 1]} : vector<104x128xbf16> to vector<80x128xbf16>
    %c3 = arith.constant 3 : index
    %c0_13 = arith.constant 0 : index
    %c0_14 = arith.constant 0 : index
    %19 = vector.load %arg6[%c3, %c0_13, %c0_14] : memref<27x128x128xbf16, #tpu.memory_space<vmem>>, vector<1x128x128xbf16>
    %20 = vector.shape_cast %19 : vector<1x128x128xbf16> to vector<128x128xbf16>
    %cst_15 = arith.constant dense<0.000000e+00> : vector<80x128xf32>
    %21 = tpu.matmul %18, %20, %cst_15 {dimension_numbers = #tpu.dot_dimension_numbers<[1], [0], [0], [1], [0, 0, 1, 1], [], []>} : vector<80x128xbf16>, vector<128x128xbf16>, vector<80x128xf32> -> vector<80x128xf32>
    %22 = arith.addf %17, %21 : vector<80x128xf32>
    %23 = vector.extract_strided_slice %2 {offsets = [11, 0], sizes = [80, 128], strides = [1, 1]} : vector<104x128xbf16> to vector<80x128xbf16>
    %c4 = arith.constant 4 : index
    %c0_16 = arith.constant 0 : index
    %c0_17 = arith.constant 0 : index
    %24 = vector.load %arg6[%c4, %c0_16, %c0_17] : memref<27x128x128xbf16, #tpu.memory_space<vmem>>, vector<1x128x128xbf16>
    %25 = vector.shape_cast %24 : vector<1x128x128xbf16> to vector<128x128xbf16>
    %cst_18 = arith.constant dense<0.000000e+00> : vector<80x128xf32>
    %26 = tpu.matmul %23, %25, %cst_18 {dimension_numbers = #tpu.dot_dimension_numbers<[1], [0], [0], [1], [0, 0, 1, 1], [], []>} : vector<80x128xbf16>, vector<128x128xbf16>, vector<80x128xf32> -> vector<80x128xf32>
    %27 = arith.addf %22, %26 : vector<80x128xf32>
    %28 = vector.extract_strided_slice %2 {offsets = [12, 0], sizes = [80, 128], strides = [1, 1]} : vector<104x128xbf16> to vector<80x128xbf16>
    %c5 = arith.constant 5 : index
    %c0_19 = arith.constant 0 : index
    %c0_20 = arith.constant 0 : index
    %29 = vector.load %arg6[%c5, %c0_19, %c0_20] : memref<27x128x128xbf16, #tpu.memory_space<vmem>>, vector<1x128x128xbf16>
    %30 = vector.shape_cast %29 : vector<1x128x128xbf16> to vector<128x128xbf16>
    %cst_21 = arith.constant dense<0.000000e+00> : vector<80x128xf32>
    %31 = tpu.matmul %28, %30, %cst_21 {dimension_numbers = #tpu.dot_dimension_numbers<[1], [0], [0], [1], [0, 0, 1, 1], [], []>} : vector<80x128xbf16>, vector<128x128xbf16>, vector<80x128xf32> -> vector<80x128xf32>
    %32 = arith.addf %27, %31 : vector<80x128xf32>
    %33 = vector.extract_strided_slice %2 {offsets = [20, 0], sizes = [80, 128], strides = [1, 1]} : vector<104x128xbf16> to vector<80x128xbf16>
    %c6 = arith.constant 6 : index
    %c0_22 = arith.constant 0 : index
    %c0_23 = arith.constant 0 : index
    %34 = vector.load %arg6[%c6, %c0_22, %c0_23] : memref<27x128x128xbf16, #tpu.memory_space<vmem>>, vector<1x128x128xbf16>
    %35 = vector.shape_cast %34 : vector<1x128x128xbf16> to vector<128x128xbf16>
    %cst_24 = arith.constant dense<0.000000e+00> : vector<80x128xf32>
    %36 = tpu.matmul %33, %35, %cst_24 {dimension_numbers = #tpu.dot_dimension_numbers<[1], [0], [0], [1], [0, 0, 1, 1], [], []>} : vector<80x128xbf16>, vector<128x128xbf16>, vector<80x128xf32> -> vector<80x128xf32>
    %37 = arith.addf %32, %36 : vector<80x128xf32>
    %38 = vector.extract_strided_slice %2 {offsets = [21, 0], sizes = [80, 128], strides = [1, 1]} : vector<104x128xbf16> to vector<80x128xbf16>
    %c7 = arith.constant 7 : index
    %c0_25 = arith.constant 0 : index
    %c0_26 = arith.constant 0 : index
    %39 = vector.load %arg6[%c7, %c0_25, %c0_26] : memref<27x128x128xbf16, #tpu.memory_space<vmem>>, vector<1x128x128xbf16>
    %40 = vector.shape_cast %39 : vector<1x128x128xbf16> to vector<128x128xbf16>
    %cst_27 = arith.constant dense<0.000000e+00> : vector<80x128xf32>
    %41 = tpu.matmul %38, %40, %cst_27 {dimension_numbers = #tpu.dot_dimension_numbers<[1], [0], [0], [1], [0, 0, 1, 1], [], []>} : vector<80x128xbf16>, vector<128x128xbf16>, vector<80x128xf32> -> vector<80x128xf32>
    %42 = arith.addf %37, %41 : vector<80x128xf32>
    %43 = vector.extract_strided_slice %2 {offsets = [22, 0], sizes = [80, 128], strides = [1, 1]} : vector<104x128xbf16> to vector<80x128xbf16>
    %c8 = arith.constant 8 : index
    %c0_28 = arith.constant 0 : index
    %c0_29 = arith.constant 0 : index
    %44 = vector.load %arg6[%c8, %c0_28, %c0_29] : memref<27x128x128xbf16, #tpu.memory_space<vmem>>, vector<1x128x128xbf16>
    %45 = vector.shape_cast %44 : vector<1x128x128xbf16> to vector<128x128xbf16>
    %cst_30 = arith.constant dense<0.000000e+00> : vector<80x128xf32>
    %46 = tpu.matmul %43, %45, %cst_30 {dimension_numbers = #tpu.dot_dimension_numbers<[1], [0], [0], [1], [0, 0, 1, 1], [], []>} : vector<80x128xbf16>, vector<128x128xbf16>, vector<80x128xf32> -> vector<80x128xf32>
    %47 = arith.addf %42, %46 : vector<80x128xf32>
    %c0_31 = arith.constant 0 : index
    %c0_32 = arith.constant 0 : index
    %c0_33 = arith.constant 0 : index
    %c0_34 = arith.constant 0 : index
    %48 = vector.load %arg4[%c0_31, %c0_32, %c0_33, %c0_34] : memref<1x1x104x128xbf16, #tpu.memory_space<vmem>>, vector<1x1x104x128xbf16>
    %49 = vector.shape_cast %48 : vector<1x1x104x128xbf16> to vector<104x128xbf16>
    %50 = vector.extract_strided_slice %49 {offsets = [0, 0], sizes = [80, 128], strides = [1, 1]} : vector<104x128xbf16> to vector<80x128xbf16>
    %c9 = arith.constant 9 : index
    %c0_35 = arith.constant 0 : index
    %c0_36 = arith.constant 0 : index
    %51 = vector.load %arg6[%c9, %c0_35, %c0_36] : memref<27x128x128xbf16, #tpu.memory_space<vmem>>, vector<1x128x128xbf16>
    %52 = vector.shape_cast %51 : vector<1x128x128xbf16> to vector<128x128xbf16>
    %cst_37 = arith.constant dense<0.000000e+00> : vector<80x128xf32>
    %53 = tpu.matmul %50, %52, %cst_37 {dimension_numbers = #tpu.dot_dimension_numbers<[1], [0], [0], [1], [0, 0, 1, 1], [], []>} : vector<80x128xbf16>, vector<128x128xbf16>, vector<80x128xf32> -> vector<80x128xf32>
    %54 = arith.addf %47, %53 : vector<80x128xf32>
    %55 = vector.extract_strided_slice %49 {offsets = [1, 0], sizes = [80, 128], strides = [1, 1]} : vector<104x128xbf16> to vector<80x128xbf16>
    %c10 = arith.constant 10 : index
    %c0_38 = arith.constant 0 : index
    %c0_39 = arith.constant 0 : index
    %56 = vector.load %arg6[%c10, %c0_38, %c0_39] : memref<27x128x128xbf16, #tpu.memory_space<vmem>>, vector<1x128x128xbf16>
    %57 = vector.shape_cast %56 : vector<1x128x128xbf16> to vector<128x128xbf16>
    %cst_40 = arith.constant dense<0.000000e+00> : vector<80x128xf32>
    %58 = tpu.matmul %55, %57, %cst_40 {dimension_numbers = #tpu.dot_dimension_numbers<[1], [0], [0], [1], [0, 0, 1, 1], [], []>} : vector<80x128xbf16>, vector<128x128xbf16>, vector<80x128xf32> -> vector<80x128xf32>
    %59 = arith.addf %54, %58 : vector<80x128xf32>
    %60 = vector.extract_strided_slice %49 {offsets = [2, 0], sizes = [80, 128], strides = [1, 1]} : vector<104x128xbf16> to vector<80x128xbf16>
    %c11 = arith.constant 11 : index
    %c0_41 = arith.constant 0 : index
    %c0_42 = arith.constant 0 : index
    %61 = vector.load %arg6[%c11, %c0_41, %c0_42] : memref<27x128x128xbf16, #tpu.memory_space<vmem>>, vector<1x128x128xbf16>
    %62 = vector.shape_cast %61 : vector<1x128x128xbf16> to vector<128x128xbf16>
    %cst_43 = arith.constant dense<0.000000e+00> : vector<80x128xf32>
    %63 = tpu.matmul %60, %62, %cst_43 {dimension_numbers = #tpu.dot_dimension_numbers<[1], [0], [0], [1], [0, 0, 1, 1], [], []>} : vector<80x128xbf16>, vector<128x128xbf16>, vector<80x128xf32> -> vector<80x128xf32>
    %64 = arith.addf %59, %63 : vector<80x128xf32>
    %65 = vector.extract_strided_slice %49 {offsets = [10, 0], sizes = [80, 128], strides = [1, 1]} : vector<104x128xbf16> to vector<80x128xbf16>
    %c12 = arith.constant 12 : index
    %c0_44 = arith.constant 0 : index
    %c0_45 = arith.constant 0 : index
    %66 = vector.load %arg6[%c12, %c0_44, %c0_45] : memref<27x128x128xbf16, #tpu.memory_space<vmem>>, vector<1x128x128xbf16>
    %67 = vector.shape_cast %66 : vector<1x128x128xbf16> to vector<128x128xbf16>
    %cst_46 = arith.constant dense<0.000000e+00> : vector<80x128xf32>
    %68 = tpu.matmul %65, %67, %cst_46 {dimension_numbers = #tpu.dot_dimension_numbers<[1], [0], [0], [1], [0, 0, 1, 1], [], []>} : vector<80x128xbf16>, vector<128x128xbf16>, vector<80x128xf32> -> vector<80x128xf32>
    %69 = arith.addf %64, %68 : vector<80x128xf32>
    %70 = vector.extract_strided_slice %49 {offsets = [11, 0], sizes = [80, 128], strides = [1, 1]} : vector<104x128xbf16> to vector<80x128xbf16>
    %c13 = arith.constant 13 : index
    %c0_47 = arith.constant 0 : index
    %c0_48 = arith.constant 0 : index
    %71 = vector.load %arg6[%c13, %c0_47, %c0_48] : memref<27x128x128xbf16, #tpu.memory_space<vmem>>, vector<1x128x128xbf16>
    %72 = vector.shape_cast %71 : vector<1x128x128xbf16> to vector<128x128xbf16>
    %cst_49 = arith.constant dense<0.000000e+00> : vector<80x128xf32>
    %73 = tpu.matmul %70, %72, %cst_49 {dimension_numbers = #tpu.dot_dimension_numbers<[1], [0], [0], [1], [0, 0, 1, 1], [], []>} : vector<80x128xbf16>, vector<128x128xbf16>, vector<80x128xf32> -> vector<80x128xf32>
    %74 = arith.addf %69, %73 : vector<80x128xf32>
    %75 = vector.extract_strided_slice %49 {offsets = [12, 0], sizes = [80, 128], strides = [1, 1]} : vector<104x128xbf16> to vector<80x128xbf16>
    %c14 = arith.constant 14 : index
    %c0_50 = arith.constant 0 : index
    %c0_51 = arith.constant 0 : index
    %76 = vector.load %arg6[%c14, %c0_50, %c0_51] : memref<27x128x128xbf16, #tpu.memory_space<vmem>>, vector<1x128x128xbf16>
    %77 = vector.shape_cast %76 : vector<1x128x128xbf16> to vector<128x128xbf16>
    %cst_52 = arith.constant dense<0.000000e+00> : vector<80x128xf32>
    %78 = tpu.matmul %75, %77, %cst_52 {dimension_numbers = #tpu.dot_dimension_numbers<[1], [0], [0], [1], [0, 0, 1, 1], [], []>} : vector<80x128xbf16>, vector<128x128xbf16>, vector<80x128xf32> -> vector<80x128xf32>
    %79 = arith.addf %74, %78 : vector<80x128xf32>
    %80 = vector.extract_strided_slice %49 {offsets = [20, 0], sizes = [80, 128], strides = [1, 1]} : vector<104x128xbf16> to vector<80x128xbf16>
    %c15 = arith.constant 15 : index
    %c0_53 = arith.constant 0 : index
    %c0_54 = arith.constant 0 : index
    %81 = vector.load %arg6[%c15, %c0_53, %c0_54] : memref<27x128x128xbf16, #tpu.memory_space<vmem>>, vector<1x128x128xbf16>
    %82 = vector.shape_cast %81 : vector<1x128x128xbf16> to vector<128x128xbf16>
    %cst_55 = arith.constant dense<0.000000e+00> : vector<80x128xf32>
    %83 = tpu.matmul %80, %82, %cst_55 {dimension_numbers = #tpu.dot_dimension_numbers<[1], [0], [0], [1], [0, 0, 1, 1], [], []>} : vector<80x128xbf16>, vector<128x128xbf16>, vector<80x128xf32> -> vector<80x128xf32>
    %84 = arith.addf %79, %83 : vector<80x128xf32>
    %85 = vector.extract_strided_slice %49 {offsets = [21, 0], sizes = [80, 128], strides = [1, 1]} : vector<104x128xbf16> to vector<80x128xbf16>
    %c16 = arith.constant 16 : index
    %c0_56 = arith.constant 0 : index
    %c0_57 = arith.constant 0 : index
    %86 = vector.load %arg6[%c16, %c0_56, %c0_57] : memref<27x128x128xbf16, #tpu.memory_space<vmem>>, vector<1x128x128xbf16>
    %87 = vector.shape_cast %86 : vector<1x128x128xbf16> to vector<128x128xbf16>
    %cst_58 = arith.constant dense<0.000000e+00> : vector<80x128xf32>
    %88 = tpu.matmul %85, %87, %cst_58 {dimension_numbers = #tpu.dot_dimension_numbers<[1], [0], [0], [1], [0, 0, 1, 1], [], []>} : vector<80x128xbf16>, vector<128x128xbf16>, vector<80x128xf32> -> vector<80x128xf32>
    %89 = arith.addf %84, %88 : vector<80x128xf32>
    %90 = vector.extract_strided_slice %49 {offsets = [22, 0], sizes = [80, 128], strides = [1, 1]} : vector<104x128xbf16> to vector<80x128xbf16>
    %c17 = arith.constant 17 : index
    %c0_59 = arith.constant 0 : index
    %c0_60 = arith.constant 0 : index
    %91 = vector.load %arg6[%c17, %c0_59, %c0_60] : memref<27x128x128xbf16, #tpu.memory_space<vmem>>, vector<1x128x128xbf16>
    %92 = vector.shape_cast %91 : vector<1x128x128xbf16> to vector<128x128xbf16>
    %cst_61 = arith.constant dense<0.000000e+00> : vector<80x128xf32>
    %93 = tpu.matmul %90, %92, %cst_61 {dimension_numbers = #tpu.dot_dimension_numbers<[1], [0], [0], [1], [0, 0, 1, 1], [], []>} : vector<80x128xbf16>, vector<128x128xbf16>, vector<80x128xf32> -> vector<80x128xf32>
    %94 = arith.addf %89, %93 : vector<80x128xf32>
    %c0_62 = arith.constant 0 : index
    %c0_63 = arith.constant 0 : index
    %c0_64 = arith.constant 0 : index
    %c0_65 = arith.constant 0 : index
    %95 = vector.load %arg5[%c0_62, %c0_63, %c0_64, %c0_65] : memref<1x1x104x128xbf16, #tpu.memory_space<vmem>>, vector<1x1x104x128xbf16>
    %96 = vector.shape_cast %95 : vector<1x1x104x128xbf16> to vector<104x128xbf16>
    %97 = vector.extract_strided_slice %96 {offsets = [0, 0], sizes = [80, 128], strides = [1, 1]} : vector<104x128xbf16> to vector<80x128xbf16>
    %c18 = arith.constant 18 : index
    %c0_66 = arith.constant 0 : index
    %c0_67 = arith.constant 0 : index
    %98 = vector.load %arg6[%c18, %c0_66, %c0_67] : memref<27x128x128xbf16, #tpu.memory_space<vmem>>, vector<1x128x128xbf16>
    %99 = vector.shape_cast %98 : vector<1x128x128xbf16> to vector<128x128xbf16>
    %cst_68 = arith.constant dense<0.000000e+00> : vector<80x128xf32>
    %100 = tpu.matmul %97, %99, %cst_68 {dimension_numbers = #tpu.dot_dimension_numbers<[1], [0], [0], [1], [0, 0, 1, 1], [], []>} : vector<80x128xbf16>, vector<128x128xbf16>, vector<80x128xf32> -> vector<80x128xf32>
    %101 = arith.addf %94, %100 : vector<80x128xf32>
    %102 = vector.extract_strided_slice %96 {offsets = [1, 0], sizes = [80, 128], strides = [1, 1]} : vector<104x128xbf16> to vector<80x128xbf16>
    %c19 = arith.constant 19 : index
    %c0_69 = arith.constant 0 : index
    %c0_70 = arith.constant 0 : index
    %103 = vector.load %arg6[%c19, %c0_69, %c0_70] : memref<27x128x128xbf16, #tpu.memory_space<vmem>>, vector<1x128x128xbf16>
    %104 = vector.shape_cast %103 : vector<1x128x128xbf16> to vector<128x128xbf16>
    %cst_71 = arith.constant dense<0.000000e+00> : vector<80x128xf32>
    %105 = tpu.matmul %102, %104, %cst_71 {dimension_numbers = #tpu.dot_dimension_numbers<[1], [0], [0], [1], [0, 0, 1, 1], [], []>} : vector<80x128xbf16>, vector<128x128xbf16>, vector<80x128xf32> -> vector<80x128xf32>
    %106 = arith.addf %101, %105 : vector<80x128xf32>
    %107 = vector.extract_strided_slice %96 {offsets = [2, 0], sizes = [80, 128], strides = [1, 1]} : vector<104x128xbf16> to vector<80x128xbf16>
    %c20 = arith.constant 20 : index
    %c0_72 = arith.constant 0 : index
    %c0_73 = arith.constant 0 : index
    %108 = vector.load %arg6[%c20, %c0_72, %c0_73] : memref<27x128x128xbf16, #tpu.memory_space<vmem>>, vector<1x128x128xbf16>
    %109 = vector.shape_cast %108 : vector<1x128x128xbf16> to vector<128x128xbf16>
    %cst_74 = arith.constant dense<0.000000e+00> : vector<80x128xf32>
    %110 = tpu.matmul %107, %109, %cst_74 {dimension_numbers = #tpu.dot_dimension_numbers<[1], [0], [0], [1], [0, 0, 1, 1], [], []>} : vector<80x128xbf16>, vector<128x128xbf16>, vector<80x128xf32> -> vector<80x128xf32>
    %111 = arith.addf %106, %110 : vector<80x128xf32>
    %112 = vector.extract_strided_slice %96 {offsets = [10, 0], sizes = [80, 128], strides = [1, 1]} : vector<104x128xbf16> to vector<80x128xbf16>
    %c21 = arith.constant 21 : index
    %c0_75 = arith.constant 0 : index
    %c0_76 = arith.constant 0 : index
    %113 = vector.load %arg6[%c21, %c0_75, %c0_76] : memref<27x128x128xbf16, #tpu.memory_space<vmem>>, vector<1x128x128xbf16>
    %114 = vector.shape_cast %113 : vector<1x128x128xbf16> to vector<128x128xbf16>
    %cst_77 = arith.constant dense<0.000000e+00> : vector<80x128xf32>
    %115 = tpu.matmul %112, %114, %cst_77 {dimension_numbers = #tpu.dot_dimension_numbers<[1], [0], [0], [1], [0, 0, 1, 1], [], []>} : vector<80x128xbf16>, vector<128x128xbf16>, vector<80x128xf32> -> vector<80x128xf32>
    %116 = arith.addf %111, %115 : vector<80x128xf32>
    %117 = vector.extract_strided_slice %96 {offsets = [11, 0], sizes = [80, 128], strides = [1, 1]} : vector<104x128xbf16> to vector<80x128xbf16>
    %c22 = arith.constant 22 : index
    %c0_78 = arith.constant 0 : index
    %c0_79 = arith.constant 0 : index
    %118 = vector.load %arg6[%c22, %c0_78, %c0_79] : memref<27x128x128xbf16, #tpu.memory_space<vmem>>, vector<1x128x128xbf16>
    %119 = vector.shape_cast %118 : vector<1x128x128xbf16> to vector<128x128xbf16>
    %cst_80 = arith.constant dense<0.000000e+00> : vector<80x128xf32>
    %120 = tpu.matmul %117, %119, %cst_80 {dimension_numbers = #tpu.dot_dimension_numbers<[1], [0], [0], [1], [0, 0, 1, 1], [], []>} : vector<80x128xbf16>, vector<128x128xbf16>, vector<80x128xf32> -> vector<80x128xf32>
    %121 = arith.addf %116, %120 : vector<80x128xf32>
    %122 = vector.extract_strided_slice %96 {offsets = [12, 0], sizes = [80, 128], strides = [1, 1]} : vector<104x128xbf16> to vector<80x128xbf16>
    %c23 = arith.constant 23 : index
    %c0_81 = arith.constant 0 : index
    %c0_82 = arith.constant 0 : index
    %123 = vector.load %arg6[%c23, %c0_81, %c0_82] : memref<27x128x128xbf16, #tpu.memory_space<vmem>>, vector<1x128x128xbf16>
    %124 = vector.shape_cast %123 : vector<1x128x128xbf16> to vector<128x128xbf16>
    %cst_83 = arith.constant dense<0.000000e+00> : vector<80x128xf32>
    %125 = tpu.matmul %122, %124, %cst_83 {dimension_numbers = #tpu.dot_dimension_numbers<[1], [0], [0], [1], [0, 0, 1, 1], [], []>} : vector<80x128xbf16>, vector<128x128xbf16>, vector<80x128xf32> -> vector<80x128xf32>
    %126 = arith.addf %121, %125 : vector<80x128xf32>
    %127 = vector.extract_strided_slice %96 {offsets = [20, 0], sizes = [80, 128], strides = [1, 1]} : vector<104x128xbf16> to vector<80x128xbf16>
    %c24 = arith.constant 24 : index
    %c0_84 = arith.constant 0 : index
    %c0_85 = arith.constant 0 : index
    %128 = vector.load %arg6[%c24, %c0_84, %c0_85] : memref<27x128x128xbf16, #tpu.memory_space<vmem>>, vector<1x128x128xbf16>
    %129 = vector.shape_cast %128 : vector<1x128x128xbf16> to vector<128x128xbf16>
    %cst_86 = arith.constant dense<0.000000e+00> : vector<80x128xf32>
    %130 = tpu.matmul %127, %129, %cst_86 {dimension_numbers = #tpu.dot_dimension_numbers<[1], [0], [0], [1], [0, 0, 1, 1], [], []>} : vector<80x128xbf16>, vector<128x128xbf16>, vector<80x128xf32> -> vector<80x128xf32>
    %131 = arith.addf %126, %130 : vector<80x128xf32>
    %132 = vector.extract_strided_slice %96 {offsets = [21, 0], sizes = [80, 128], strides = [1, 1]} : vector<104x128xbf16> to vector<80x128xbf16>
    %c25 = arith.constant 25 : index
    %c0_87 = arith.constant 0 : index
    %c0_88 = arith.constant 0 : index
    %133 = vector.load %arg6[%c25, %c0_87, %c0_88] : memref<27x128x128xbf16, #tpu.memory_space<vmem>>, vector<1x128x128xbf16>
    %134 = vector.shape_cast %133 : vector<1x128x128xbf16> to vector<128x128xbf16>
    %cst_89 = arith.constant dense<0.000000e+00> : vector<80x128xf32>
    %135 = tpu.matmul %132, %134, %cst_89 {dimension_numbers = #tpu.dot_dimension_numbers<[1], [0], [0], [1], [0, 0, 1, 1], [], []>} : vector<80x128xbf16>, vector<128x128xbf16>, vector<80x128xf32> -> vector<80x128xf32>
    %136 = arith.addf %131, %135 : vector<80x128xf32>
    %137 = vector.extract_strided_slice %96 {offsets = [22, 0], sizes = [80, 128], strides = [1, 1]} : vector<104x128xbf16> to vector<80x128xbf16>
    %c26 = arith.constant 26 : index
    %c0_90 = arith.constant 0 : index
    %c0_91 = arith.constant 0 : index
    %138 = vector.load %arg6[%c26, %c0_90, %c0_91] : memref<27x128x128xbf16, #tpu.memory_space<vmem>>, vector<1x128x128xbf16>
    %139 = vector.shape_cast %138 : vector<1x128x128xbf16> to vector<128x128xbf16>
    %cst_92 = arith.constant dense<0.000000e+00> : vector<80x128xf32>
    %140 = tpu.matmul %137, %139, %cst_92 {dimension_numbers = #tpu.dot_dimension_numbers<[1], [0], [0], [1], [0, 0, 1, 1], [], []>} : vector<80x128xbf16>, vector<128x128xbf16>, vector<80x128xf32> -> vector<80x128xf32>
    %141 = arith.addf %136, %140 : vector<80x128xf32>
    %c0_93 = arith.constant 0 : index
    %c0_94 = arith.constant 0 : index
    %142 = vector.load %arg7[%c0_93, %c0_94] : memref<1x128xf32, #tpu.memory_space<vmem>>, vector<1x128xf32>
    %143 = vector.broadcast %142 : vector<1x128xf32> to vector<80x128xf32>
    %144 = arith.addf %141, %143 : vector<80x128xf32>
    %c0_95 = arith.constant 0 : index
    %c0_96 = arith.constant 0 : index
    %c0_97 = arith.constant 0 : index
    %c0_98 = arith.constant 0 : index
    %145 = vector.load %arg9[%c0_95, %c0_96, %c0_97, %c0_98] : memref<1x1x80x128xf32, #tpu.memory_space<vmem>>, vector<1x1x80x128xf32>
    %146 = vector.shape_cast %145 : vector<1x1x80x128xf32> to vector<80x128xf32>
    %147 = arith.addf %144, %146 : vector<80x128xf32>
    %cst_99 = arith.constant 0.000000e+00 : f32
    %148 = vector.broadcast %cst_99 : f32 to vector<80x128xf32>
    %149 = arith.maximumf %147, %148 : vector<80x128xf32>
    %c0_100 = arith.constant 0 : index
    %c0_101 = arith.constant 0 : index
    %150 = vector.load %arg8[%c0_100, %c0_101] : memref<80x1xf32, #tpu.memory_space<vmem>>, vector<80x1xf32>
    %151 = vector.broadcast %150 : vector<80x1xf32> to vector<80x128xf32>
    %152 = arith.mulf %149, %151 : vector<80x128xf32>
    %c0_102 = arith.constant 0 : index
    %c0_103 = arith.constant 0 : index
    %c0_104 = arith.constant 0 : index
    %c0_105 = arith.constant 0 : index
    %153 = vector.load %arg10[%c0_102, %c0_103, %c0_104, %c0_105] : memref<1x1x80x128xf32, #tpu.memory_space<vmem>>, vector<1x1x80x128xf32>
    %154 = vector.shape_cast %153 : vector<1x1x80x128xf32> to vector<80x128xf32>
    %155 = vector.shape_cast %152 : vector<80x128xf32> to vector<1x1x80x128xf32>
    tpu.vector_store %arg10[%c0_102, %c0_103, %c0_104, %c0_105], %155 {strides = array<i32>} : memref<1x1x80x128xf32, #tpu.memory_space<vmem>>, vector<1x1x80x128xf32>,
    return
  }
  func.func @transform_0(%arg0: i32, %arg1: i32, %arg2: i32) -> (i32, i32, i32, i32) {
    %c0_i32 = arith.constant 0 : i32
    %0 = arith.addi %arg2, %c0_i32 : i32
    %c0_i32_0 = arith.constant 0 : i32
    %c0_i32_1 = arith.constant 0 : i32
    %c0_i32_2 = arith.constant 0 : i32
    return %arg0, %0, %c0_i32_0, %c0_i32_1 : i32, i32, i32, i32
  }
  func.func @transform_1(%arg0: i32, %arg1: i32, %arg2: i32) -> (i32, i32, i32, i32) {
    %c1_i32 = arith.constant 1 : i32
    %0 = arith.addi %arg2, %c1_i32 : i32
    %c0_i32 = arith.constant 0 : i32
    %c0_i32_0 = arith.constant 0 : i32
    %c0_i32_1 = arith.constant 0 : i32
    return %arg0, %0, %c0_i32, %c0_i32_0 : i32, i32, i32, i32
  }
  func.func @transform_2(%arg0: i32, %arg1: i32, %arg2: i32) -> (i32, i32, i32, i32) {
    %c2_i32 = arith.constant 2 : i32
    %0 = arith.addi %arg2, %c2_i32 : i32
    %c0_i32 = arith.constant 0 : i32
    %c0_i32_0 = arith.constant 0 : i32
    %c0_i32_1 = arith.constant 0 : i32
    return %arg0, %0, %c0_i32, %c0_i32_0 : i32, i32, i32, i32
  }
  func.func @transform_3(%arg0: i32, %arg1: i32, %arg2: i32) -> (i32, i32, i32) {
    %c0_i32 = arith.constant 0 : i32
    %c0_i32_0 = arith.constant 0 : i32
    %c0_i32_1 = arith.constant 0 : i32
    return %c0_i32, %c0_i32_0, %arg1 : i32, i32, i32
  }
  func.func @transform_4(%arg0: i32, %arg1: i32, %arg2: i32) -> (i32, i32) {
    %c0_i32 = arith.constant 0 : i32
    %c0_i32_0 = arith.constant 0 : i32
    return %c0_i32, %arg1 : i32, i32
  }
  func.func @transform_5(%arg0: i32, %arg1: i32, %arg2: i32) -> (i32, i32) {
    %c0_i32 = arith.constant 0 : i32
    %c0_i32_0 = arith.constant 0 : i32
    %c0_i32_1 = arith.constant 0 : i32
    return %c0_i32, %c0_i32_0 : i32, i32
  }
  func.func @transform_6(%arg0: i32, %arg1: i32, %arg2: i32) -> (i32, i32, i32, i32) {
    %c0_i32 = arith.constant 0 : i32
    %c0_i32_0 = arith.constant 0 : i32
    return %arg0, %arg2, %c0_i32, %arg1 : i32, i32, i32, i32
  }
  func.func @transform_7(%arg0: i32, %arg1: i32, %arg2: i32) -> (i32, i32, i32, i32) {
    %c0_i32 = arith.constant 0 : i32
    %c0_i32_0 = arith.constant 0 : i32
    return %arg0, %arg2, %c0_i32, %arg1 : i32, i32, i32, i32
  }
}

</mosaic_0001>

<llo_original>
// kernel: basic_block_forward.2
$region0: #{basic_block_forward.2}
  #allocation0 [shape = 'u32[]', space=smem, size = 0x4, offset = 0x4, fixed_abs, tag = 'smem constant byte address 0x4 - core index']
  #allocation1 [shape = 'u32[72,128]{1,0:T(1,128)}', space=vmem, size = 0x9000, scoped, tag = 'internal scratch']
  %s0 = inlined_call_operand.vmem [shape: bf16[2,10,104,128], index: 0, kind: input, shape index: {}, may-alias: {0,1,2}]
  %s1 = inlined_call_operand.vmem [shape: bf16[2,10,104,128], index: 1, kind: input, shape index: {}, may-alias: {0,1,2}]
  %s2 = inlined_call_operand.vmem [shape: bf16[2,10,104,128], index: 2, kind: input, shape index: {}, may-alias: {0,1,2}]
  %s3 = inlined_call_operand.vmem [shape: bf16[27,128,128], index: 3, kind: input, shape index: {}]
  %s4 = inlined_call_operand.vmem [shape: f32[1,128], index: 4, kind: input, shape index: {}]
  %s5 = inlined_call_operand.vmem [shape: f32[80,1], index: 5, kind: input, shape index: {}]
  %s6 = inlined_call_operand.vmem [shape: bf16[2,8,80,128], index: 6, kind: output, shape index: {}]
  %s7 = sld [smem:[#allocation0]]
  $region57: #{basic_block_forward.2} parent=0
    _
  %s9 = ssub.s32 1, %s7
  %s10 = scalar_select 0, %s9, %s7
  loop: start=0, step=1, limit=18
  $region2: #{basic_block_forward.2} parent=0 // loop_pre_header
    _
  $region3: #{basic_block_forward.2} parent=0 // loop_header
    %s12 = sphi 0, %s16
    %p13 = scmp.ge.s32.totalorder %s12, 18
    %s19 = sphi 0, %s38
    %s20 = sphi 0, %s34
    %s21 = sphi 0, %s30
    %s22 = sphi 0, %s19
    %s23 = sphi 0, %s20
    %s24 = sphi 0, %s21
    %s25 = sphi 0, %s22
    %s26 = sphi 0, %s23
    %s27 = sphi 0, %s24
    %s43 = sphi 0, %s45
    %s46 = sphi 0, %s43
    %s47 = sphi 0, %s46
    %s63 = sphi 0, %s47
    %s73 = sphi 0, %s75
    %s76 = sphi 0, %s73
    %s77 = sphi 0, %s76
    %s93 = sphi 0, %s77
    %s103 = sphi 0, %s105
    %s106 = sphi 0, %s103
    %s107 = sphi 0, %s106
    %s123 = sphi 0, %s107
    %s129 = sphi 0, %s131
    %s132 = sphi 0, %s129
    %s133 = sphi 0, %s132
    %s149 = sphi 0, %s133
    %s155 = sphi 0, %s157
    %s158 = sphi 0, %s155
    %s159 = sphi 0, %s158
    %s175 = sphi 0, %s159
    %s179 = sphi 0, %s179
    %s181 = sphi 0, %s179
    %s182 = sphi 0, %s181
    %s196 = sphi 0, %s182
    %s206 = sphi 0, %s208
    %s209 = sphi 0, %s206
    %s210 = sphi 0, %s209
    %s226 = sphi 0, %s210
  $region4: #{basic_block_forward.2} parent=0 // loop_header_branch
    %15 = sbr.rel (%p13) target = $region8
  $region5: #{basic_block_forward.2} parent=0 // loop_body
    %s17 = ssub.s32 %s12, 1
    %s18 = ssub.s32 %s12, 2
    %s28 = sadd.s32 1, %s21
    %p29 = scmp.ge.s32.totalorder %s28, 8
    %s30 = scalar_select %p29, 0, %s28
    %s31 = sadd.s32 1, %s20
    %s32 = scalar_select %p29, %s31, %s20
    %p33 = scmp.ge.s32.totalorder %s32, 1
    %s34 = scalar_select %p33, 0, %s32
    %s35 = sadd.s32 1, %s19
    %s36 = scalar_select %p33, %s35, %s19
    %p37 = scmp.ge.s32.totalorder %s36, 2
    %s38 = scalar_select %p37, 0, %s36
    %s39 = ssub.s32 %s19, %s38
    %s40 = ssub.s32 %s21, %s30
    %s41 = sor.u32 %s39, %s40
    %p42 = scmp.eq.s32.totalorder %s41, 0
    %s44 = sadd.s32 %s43, 1
    %s45 = scalar_select %p42, %s43, %s44
    %p48 = pneg %p42
    %p49 = scmp.eq.s32.totalorder %s12, 15
    %p50 = por %p48, %p49
    %p51 = scmp.ne.s32.totalorder %s43, %s46
    %p52 = scmp.eq.s32.totalorder %s12, 0
    %p53 = por %p51, %p52
    %p54 = scmp.ne.s32.totalorder %s43, %s46
    %p55 = scmp.eq.s32.totalorder %s17, 15
    %p56 = por %p54, %p55
    %p57 = scmp.ne.s32.totalorder %s46, %s47
    %p58 = scmp.eq.s32.totalorder %s17, 0
    %p59 = por %p57, %p58
    %p60 = scmp.ne.s32.totalorder %s46, %s47
    %p61 = scmp.eq.s32.totalorder %s18, 15
    %p62 = por %p60, %p61
    %p64 = scmp.ne.s32.totalorder %s47, %s63
    %p65 = scmp.eq.s32.totalorder %s18, 0
    %p66 = por %p64, %p65
    %s67 = sadd.s32 %s21, 1
    %s68 = sadd.s32 %s30, 1
    %s69 = ssub.s32 %s19, %s38
    %s70 = ssub.s32 %s67, %s68
    %s71 = sor.u32 %s69, %s70
    %p72 = scmp.eq.s32.totalorder %s71, 0
    %s74 = sadd.s32 %s73, 1
    %s75 = scalar_select %p72, %s73, %s74
    %p78 = pneg %p72
    %p79 = scmp.eq.s32.totalorder %s12, 15
    %p80 = por %p78, %p79
    %p81 = scmp.ne.s32.totalorder %s73, %s76
    %p82 = scmp.eq.s32.totalorder %s12, 0
    %p83 = por %p81, %p82
    %p84 = scmp.ne.s32.totalorder %s73, %s76
    %p85 = scmp.eq.s32.totalorder %s17, 15
    %p86 = por %p84, %p85
    %p87 = scmp.ne.s32.totalorder %s76, %s77
    %p88 = scmp.eq.s32.totalorder %s17, 0
    %p89 = por %p87, %p88
    %p90 = scmp.ne.s32.totalorder %s76, %s77
    %p91 = scmp.eq.s32.totalorder %s18, 15
    %p92 = por %p90, %p91
    %p94 = scmp.ne.s32.totalorder %s77, %s93
    %p95 = scmp.eq.s32.totalorder %s18, 0
    %p96 = por %p94, %p95
    %s97 = sadd.s32 %s21, 2
    %s98 = sadd.s32 %s30, 2
    %s99 = ssub.s32 %s19, %s38
    %s100 = ssub.s32 %s97, %s98
    %s101 = sor.u32 %s99, %s100
    %p102 = scmp.eq.s32.totalorder %s101, 0
    %s104 = sadd.s32 %s103, 1
    %s105 = scalar_select %p102, %s103, %s104
    %p108 = pneg %p102
    %p109 = scmp.eq.s32.totalorder %s12, 15
    %p110 = por %p108, %p109
    %p111 = scmp.ne.s32.totalorder %s103, %s106
    %p112 = scmp.eq.s32.totalorder %s12, 0
    %p113 = por %p111, %p112
    %p114 = scmp.ne.s32.totalorder %s103, %s106
    %p115 = scmp.eq.s32.totalorder %s17, 15
    %p116 = por %p114, %p115
    %p117 = scmp.ne.s32.totalorder %s106, %s107
    %p118 = scmp.eq.s32.totalorder %s17, 0
    %p119 = por %p117, %p118
    %p120 = scmp.ne.s32.totalorder %s106, %s107
    %p121 = scmp.eq.s32.totalorder %s18, 15
    %p122 = por %p120, %p121
    %p124 = scmp.ne.s32.totalorder %s107, %s123
    %p125 = scmp.eq.s32.totalorder %s18, 0
    %p126 = por %p124, %p125
    %s127 = ssub.s32 %s20, %s34
    %p128 = scmp.eq.s32.totalorder %s127, 0
    %s130 = sadd.s32 %s129, 1
    %s131 = scalar_select %p128, %s129, %s130
    %p134 = pneg %p128
    %p135 = scmp.eq.s32.totalorder %s12, 15
    %p136 = por %p134, %p135
    %p137 = scmp.ne.s32.totalorder %s129, %s132
    %p138 = scmp.eq.s32.totalorder %s12, 0
    %p139 = por %p137, %p138
    %p140 = scmp.ne.s32.totalorder %s129, %s132
    %p141 = scmp.eq.s32.totalorder %s17, 15
    %p142 = por %p140, %p141
    %p143 = scmp.ne.s32.totalorder %s132, %s133
    %p144 = scmp.eq.s32.totalorder %s17, 0
    %p145 = por %p143, %p144
    %p146 = scmp.ne.s32.totalorder %s132, %s133
    %p147 = scmp.eq.s32.totalorder %s18, 15
    %p148 = por %p146, %p147
    %p150 = scmp.ne.s32.totalorder %s133, %s149
    %p151 = scmp.eq.s32.totalorder %s18, 0
    %p152 = por %p150, %p151
    %s153 = ssub.s32 %s20, %s34
    %p154 = scmp.eq.s32.totalorder %s153, 0
    %s156 = sadd.s32 %s155, 1
    %s157 = scalar_select %p154, %s155, %s156
    %p160 = pneg %p154
    %p161 = scmp.eq.s32.totalorder %s12, 15
    %p162 = por %p160, %p161
    %p163 = scmp.ne.s32.totalorder %s155, %s158
    %p164 = scmp.eq.s32.totalorder %s12, 0
    %p165 = por %p163, %p164
    %p166 = scmp.ne.s32.totalorder %s155, %s158
    %p167 = scmp.eq.s32.totalorder %s17, 15
    %p168 = por %p166, %p167
    %p169 = scmp.ne.s32.totalorder %s158, %s159
    %p170 = scmp.eq.s32.totalorder %s17, 0
    %p171 = por %p169, %p170
    %p172 = scmp.ne.s32.totalorder %s158, %s159
    %p173 = scmp.eq.s32.totalorder %s18, 15
    %p174 = por %p172, %p173
    %p176 = scmp.ne.s32.totalorder %s159, %s175
    %p177 = scmp.eq.s32.totalorder %s18, 0
    %p178 = por %p176, %p177
    %s180 = sadd.s32 %s179, 1
    %p183 = scmp.eq.s32.totalorder %s12, 15
    %p184 = scmp.ne.s32.totalorder %s179, %s181
    %p185 = scmp.eq.s32.totalorder %s12, 0
    %p186 = por %p184, %p185
    %p187 = scmp.ne.s32.totalorder %s179, %s181
    %p188 = scmp.eq.s32.totalorder %s17, 15
    %p189 = por %p187, %p188
    %p190 = scmp.ne.s32.totalorder %s181, %s182
    %p191 = scmp.eq.s32.totalorder %s17, 0
    %p192 = por %p190, %p191
    %p193 = scmp.ne.s32.totalorder %s181, %s182
    %p194 = scmp.eq.s32.totalorder %s18, 15
    %p195 = por %p193, %p194
    %p197 = scmp.ne.s32.totalorder %s182, %s196
    %p198 = scmp.eq.s32.totalorder %s18, 0
    %p199 = por %p197, %p198
    %s200 = ssub.s32 %s19, %s38
    %s201 = ssub.s32 %s21, %s30
    %s202 = sor.u32 %s200, %s201
    %s203 = ssub.s32 %s20, %s34
    %s204 = sor.u32 %s202, %s203
    %p205 = scmp.eq.s32.totalorder %s204, 0
    %s207 = sadd.s32 %s206, 1
    %s208 = scalar_select %p205, %s206, %s207
    %p211 = pneg %p205
    %p212 = scmp.eq.s32.totalorder %s12, 15
    %p213 = por %p211, %p212
    %p214 = scmp.ne.s32.totalorder %s206, %s209
    %p215 = scmp.eq.s32.totalorder %s12, 0
    %p216 = por %p214, %p215
    %p217 = scmp.ne.s32.totalorder %s206, %s209
    %p218 = scmp.eq.s32.totalorder %s17, 15
    %p219 = por %p217, %p218
    %p220 = scmp.ne.s32.totalorder %s209, %s210
    %p221 = scmp.eq.s32.totalorder %s17, 0
    %p222 = por %p220, %p221
    %p223 = scmp.ne.s32.totalorder %s209, %s210
    %p224 = scmp.eq.s32.totalorder %s18, 15
    %p225 = por %p223, %p224
    %p227 = scmp.ne.s32.totalorder %s210, %s226
    %p228 = scmp.eq.s32.totalorder %s18, 0
    %p229 = por %p227, %p228
    %p230 = scmp.le.s32.totalorder 1, %s12
    %p231 = scmp.lt.s32.totalorder %s12, 17
    %p232 = pnand %p230, %p231
    %p233 = pneg %p232
    // Predicated region
    $region9: #{basic_block_forward.2} parent=5 // pred_check
      _
    $region10: #{basic_block_forward.2} parent=5 // pred_check_branch
      %235 = sbr.rel (%p232) target = $region12
    $region11: #{basic_block_forward.2} parent=5 // pred_region
      %s236 = ssub.s32 %s12, 1
      // Predicated region
      $region13: #{basic_block_forward.2} parent=11 // pred_check
        %p237 = pneg %p145
      $region14: #{basic_block_forward.2} parent=11 // pred_check_branch
        %239 = sbr.rel (%p237) target = $region16
      $region15: #{basic_block_forward.2} parent=11 // pred_region
        %p240 = scmp.lt.s32.totalorder %s23, 0
        %s241 = scalar_select %p240, %s23, 0
        %s242 = smul.addr %s241, 4
        %s243 = scalar_lea.vmem %s3, %s242
      $region16: #{basic_block_forward.2} parent=11 // pred_fallthru
        _
      // Predicated region
      $region17: #{basic_block_forward.2} parent=11 // pred_check
        %p244 = pneg %p171
      $region18: #{basic_block_forward.2} parent=11 // pred_check_branch
        %246 = sbr.rel (%p244) target = $region20
      $region19: #{basic_block_forward.2} parent=11 // pred_region
        %p247 = scmp.lt.s32.totalorder %s23, 0
        %s248 = scalar_select %p247, %s23, 0
        %s249 = scalar_lea.vmem %s4, %s248
      $region20: #{basic_block_forward.2} parent=11 // pred_fallthru
        _
      // Predicated region
      $region21: #{basic_block_forward.2} parent=11 // pred_check
        %p250 = pneg %p192
      $region22: #{basic_block_forward.2} parent=11 // pred_check_branch
        %252 = sbr.rel (%p250) target = $region24
      $region23: #{basic_block_forward.2} parent=11 // pred_region
        _
      $region24: #{basic_block_forward.2} parent=11 // pred_fallthru
        _
    $region12: #{basic_block_forward.2} parent=5 // pred_fallthru
      _
    %p253 = scmp.lt.s32.totalorder %s12, 16
    // Predicated region
    $region25: #{basic_block_forward.2} parent=5 // pred_check
      %p254 = pneg %p253
    $region26: #{basic_block_forward.2} parent=5 // pred_check_branch
      %256 = sbr.rel (%p254) target = $region28
    $region27: #{basic_block_forward.2} parent=5 // pred_region
      // Predicated region
      $region29: #{basic_block_forward.2} parent=27 // pred_check
        %p257 = pneg %p53
      $region30: #{basic_block_forward.2} parent=27 // pred_check_branch
        %259 = sbr.rel (%p257) target = $region32
      $region31: #{basic_block_forward.2} parent=27 // pred_region
        %p260 = scmp.lt.s32.totalorder %s19, 1
        %s261 = scalar_select %p260, %s19, 1
        %p262 = scmp.lt.s32.totalorder %s21, 9
        %s263 = scalar_select %p262, %s21, 9
        %s264 = smul.addr %s263, 13
        %s265 = smul.addr %s261, 130
        %s266 = sadd.s32 %s264, %s265
        %s267 = smul.addr %s266, 4
        %s268 = scalar_lea.vmem %s0, %s267
      $region32: #{basic_block_forward.2} parent=27 // pred_fallthru
        _
      // Predicated region
      $region33: #{basic_block_forward.2} parent=27 // pred_check
        %p269 = pneg %p83
      $region34: #{basic_block_forward.2} parent=27 // pred_check_branch
        %271 = sbr.rel (%p269) target = $region36
      $region35: #{basic_block_forward.2} parent=27 // pred_region
        %s272 = sadd.s32 %s21, 1
        %p273 = scmp.lt.s32.totalorder %s19, 1
        %s274 = scalar_select %p273, %s19, 1
        %p275 = scmp.lt.s32.totalorder %s272, 9
        %s276 = scalar_select %p275, %s272, 9
        %s277 = smul.addr %s276, 13
        %s278 = smul.addr %s274, 130
        %s279 = sadd.s32 %s277, %s278
        %s280 = smul.addr %s279, 4
        %s281 = scalar_lea.vmem %s1, %s280
        %s282 = sadd.s32 %s21, 1
      $region36: #{basic_block_forward.2} parent=27 // pred_fallthru
        _
      // Predicated region
      $region37: #{basic_block_forward.2} parent=27 // pred_check
        %p283 = pneg %p113
      $region38: #{basic_block_forward.2} parent=27 // pred_check_branch
        %285 = sbr.rel (%p283) target = $region40
      $region39: #{basic_block_forward.2} parent=27 // pred_region
        %s286 = sadd.s32 %s21, 2
        %p287 = scmp.lt.s32.totalorder %s19, 1
        %s288 = scalar_select %p287, %s19, 1
        %p289 = scmp.lt.s32.totalorder %s286, 9
        %s290 = scalar_select %p289, %s286, 9
        %s291 = smul.addr %s290, 13
        %s292 = smul.addr %s288, 130
        %s293 = sadd.s32 %s291, %s292
        %s294 = smul.addr %s293, 4
        %s295 = scalar_lea.vmem %s2, %s294
        %s296 = sadd.s32 %s21, 2
      $region40: #{basic_block_forward.2} parent=27 // pred_fallthru
        _
    $region28: #{basic_block_forward.2} parent=5 // pred_fallthru
      _
    %p297 = scmp.le.s32.totalorder 1, %s12
    %p298 = scmp.lt.s32.totalorder %s12, 17
    %p299 = pnand %p297, %p298
    %p300 = pneg %p299
    // Predicated region
    $region41: #{basic_block_forward.2} parent=5 // pred_check
      _
    $region42: #{basic_block_forward.2} parent=5 // pred_check_branch
      %302 = sbr.rel (%p299) target = $region44
    $region43: #{basic_block_forward.2} parent=5 // pred_region
      %s303 = ssub.s32 %s12, 1
      %p304 = scmp.lt.s32.totalorder %s22, 1
      %s305 = scalar_select %p304, %s22, 1
      %p306 = scmp.lt.s32.totalorder %s24, 9
      %s307 = scalar_select %p306, %s24, 9
      %s308 = smul.addr %s307, 13
      %s309 = smul.addr %s305, 130
      %s310 = sadd.s32 %s308, %s309
      %s311 = smul.addr %s310, 4
      %s312 = scalar_lea.vmem %s0, %s311
      %p313 = pneg %p59
      %p314 = pneg %p56
      %s315 = sadd.s32 %s24, 1
      %p316 = scmp.lt.s32.totalorder %s22, 1
      %s317 = scalar_select %p316, %s22, 1
      %p318 = scmp.lt.s32.totalorder %s315, 9
      %s319 = scalar_select %p318, %s315, 9
      %s320 = smul.addr %s319, 13
      %s321 = smul.addr %s317, 130
      %s322 = sadd.s32 %s320, %s321
      %s323 = smul.addr %s322, 4
      %s324 = scalar_lea.vmem %s1, %s323
      %p325 = pneg %p89
      %p326 = pneg %p86
      %s327 = sadd.s32 %s24, 2
      %p328 = scmp.lt.s32.totalorder %s22, 1
      %s329 = scalar_select %p328, %s22, 1
      %p330 = scmp.lt.s32.totalorder %s327, 9
      %s331 = scalar_select %p330, %s327, 9
      %s332 = smul.addr %s331, 13
      %s333 = smul.addr %s329, 130
      %s334 = sadd.s32 %s332, %s333
      %s335 = smul.addr %s334, 4
      %s336 = scalar_lea.vmem %s2, %s335
      %p337 = pneg %p119
      %p338 = pneg %p116
      %p339 = scmp.lt.s32.totalorder %s23, 0
      %s340 = scalar_select %p339, %s23, 0
      %s341 = smul.addr %s340, 4
      %s342 = scalar_lea.vmem %s3, %s341
      %p343 = pneg %p145
      %p344 = pneg %p142
      %p345 = scmp.lt.s32.totalorder %s23, 0
      %s346 = scalar_select %p345, %s23, 0
      %s347 = scalar_lea.vmem %s4, %s346
      %p348 = pneg %p171
      %p349 = pneg %p168
      %p350 = pneg %p192
      %p351 = pneg %p189
      %p352 = pneg %p222
      %p353 = pneg %p219
      %p354 = scmp.lt.s32.totalorder %s22, 1
      %s355 = scalar_select %p354, %s22, 1
      %p356 = scmp.lt.s32.totalorder %s24, 7
      %s357 = scalar_select %p356, %s24, 7
      %p358 = scmp.lt.s32.totalorder %s23, 0
      %s359 = scalar_select %p358, %s23, 0
      %s360 = smul.addr %s357, 10
      %s361 = sadd.s32 %s359, %s360
      %s362 = smul.addr %s355, 80
      %s363 = sadd.s32 %s361, %s362
      %s364 = smul.addr %s363, 4
      %s365 = scalar_lea.vmem %s6, %s364
      %p366 = scmp.lt.s32.totalorder %s22, 1
      %s367 = scalar_select %p366, %s22, 1
      %p368 = scmp.lt.s32.totalorder %s24, 9
      %s369 = scalar_select %p368, %s24, 9
      %s370 = smul.addr %s369, 13
      %s371 = smul.addr %s367, 130
      %s372 = sadd.s32 %s370, %s371
      %s373 = smul.addr %s372, 4
      %s374 = scalar_lea.vmem %s0, %s373
      %s375 = sadd.s32 %s24, 1
      %p376 = scmp.lt.s32.totalorder %s22, 1
      %s377 = scalar_select %p376, %s22, 1
      %p378 = scmp.lt.s32.totalorder %s375, 9
      %s379 = scalar_select %p378, %s375, 9
      %s380 = smul.addr %s379, 13
      %s381 = smul.addr %s377, 130
      %s382 = sadd.s32 %s380, %s381
      %s383 = smul.addr %s382, 4
      %s384 = scalar_lea.vmem %s1, %s383
      %s385 = sadd.s32 %s24, 1
      %s386 = sadd.s32 %s24, 2
      %p387 = scmp.lt.s32.totalorder %s22, 1
      %s388 = scalar_select %p387, %s22, 1
      %p389 = scmp.lt.s32.totalorder %s386, 9
      %s390 = scalar_select %p389, %s386, 9
      %s391 = smul.addr %s390, 13
      %s392 = smul.addr %s388, 130
      %s393 = sadd.s32 %s391, %s392
      %s394 = smul.addr %s393, 4
      %s395 = scalar_lea.vmem %s2, %s394
      %s396 = sadd.s32 %s24, 2
      %p397 = scmp.lt.s32.totalorder %s23, 0
      %s398 = scalar_select %p397, %s23, 0
      %s399 = smul.addr %s398, 4
      %s400 = scalar_lea.vmem %s3, %s399
      %p401 = scmp.lt.s32.totalorder %s23, 0
      %s402 = scalar_select %p401, %s23, 0
      %s403 = scalar_lea.vmem %s4, %s402
      %p404 = scmp.lt.s32.totalorder %s22, 1
      %s405 = scalar_select %p404, %s22, 1
      %p406 = scmp.lt.s32.totalorder %s24, 7
      %s407 = scalar_select %p406, %s24, 7
      %p408 = scmp.lt.s32.totalorder %s23, 0
      %s409 = scalar_select %p408, %s23, 0
      %s410 = smul.addr %s407, 10
      %s411 = sadd.s32 %s409, %s410
      %s412 = smul.addr %s405, 80
      %s413 = sadd.s32 %s411, %s412
      %s414 = smul.addr %s413, 4
      %s415 = scalar_lea.vmem %s6, %s414
      %v416 = vld [vmem:[%s374] sm:$0xf]
      %v417 = vld [vmem:[%s374 + $0x4] sm:$0xf]
      %v418 = vld [vmem:[%s374 + $0x8] sm:$0xf]
      %v419 = vld [vmem:[%s374 + $0xc] sm:$0xf]
      %v420 = vld [vmem:[%s374 + $0x10] sm:$0xf]
      %v421 = vld [vmem:[%s374 + $0x14] sm:$0xf]
      %v422 = vld [vmem:[%s374 + $0x18] sm:$0xf]
      %v423 = vld [vmem:[%s374 + $0x1c] sm:$0xf]
      %v424 = vld [vmem:[%s374 + $0x20] sm:$0xf]
      %v425 = vld [vmem:[%s374 + $0x24] sm:$0xf]
      %v426 = vld [vmem:[%s374 + $0x28] sm:$0xf]
      %v427 = vld [vmem:[%s374 + $0x2c] sm:$0xf]
      %v428 = vld [vmem:[%s374 + $0x30] sm:$0xf]
      %v429 = vld [vmem:[%s400] sm:$0xf]
      %v430 = vld [vmem:[%s400 + $0x4] sm:$0xf]
      %v431 = vld [vmem:[%s400 + $0x8] sm:$0xf]
      %v432 = vld [vmem:[%s400 + $0xc] sm:$0xf]
      %v433 = vld [vmem:[%s400 + $0x10] sm:$0xf]
      %v434 = vld [vmem:[%s400 + $0x14] sm:$0xf]
      %v435 = vld [vmem:[%s400 + $0x18] sm:$0xf]
      %v436 = vld [vmem:[%s400 + $0x1c] sm:$0xf]
      %v437 = vld [vmem:[%s400 + $0x20] sm:$0xf]
      %v438 = vld [vmem:[%s400 + $0x24] sm:$0xf]
      %v439 = vld [vmem:[%s400 + $0x28] sm:$0xf]
      %v440 = vld [vmem:[%s400 + $0x2c] sm:$0xf]
      %v441 = vld [vmem:[%s400 + $0x30] sm:$0xf]
      %v442 = vld [vmem:[%s400 + $0x34] sm:$0xf]
      %v443 = vld [vmem:[%s400 + $0x38] sm:$0xf]
      %v444 = vld [vmem:[%s400 + $0x3c] sm:$0xf]
      %s445 = scalar_lea.vmem %s400, 64
      %v446 = vld [vmem:[%s445] sm:$0xf]
      %v447 = vld [vmem:[%s445 + $0x4] sm:$0xf]
      %v448 = vld [vmem:[%s445 + $0x8] sm:$0xf]
      %v449 = vld [vmem:[%s445 + $0xc] sm:$0xf]
      %v450 = vld [vmem:[%s445 + $0x10] sm:$0xf]
      %v451 = vld [vmem:[%s445 + $0x14] sm:$0xf]
      %v452 = vld [vmem:[%s445 + $0x18] sm:$0xf]
      %v453 = vld [vmem:[%s445 + $0x1c] sm:$0xf]
      %v454 = vld [vmem:[%s445 + $0x20] sm:$0xf]
      %v455 = vld [vmem:[%s445 + $0x24] sm:$0xf]
      %v456 = vld [vmem:[%s445 + $0x28] sm:$0xf]
      %v457 = vld [vmem:[%s445 + $0x2c] sm:$0xf]
      %v458 = vld [vmem:[%s445 + $0x30] sm:$0xf]
      %v459 = vld [vmem:[%s445 + $0x34] sm:$0xf]
      %v460 = vld [vmem:[%s445 + $0x38] sm:$0xf]
      %v461 = vld [vmem:[%s445 + $0x3c] sm:$0xf]
      %v473 = vunpack.c.l.b16 %v416
      %v474 = vunpack.c.l.b16 %v417
      %v475 = vunpack.c.l.b16 %v418
      %v476 = vunpack.c.l.b16 %v419
      %v477 = vunpack.c.l.b16 %v420
      %v478 = vunpack.c.l.b16 %v421
      %v479 = vunpack.c.l.b16 %v422
      %v480 = vunpack.c.l.b16 %v423
      %v481 = vunpack.c.l.b16 %v424
      %v482 = vunpack.c.l.b16 %v425
      %v483 = vunpack.c.l.b16 %v426
      %v484 = vpack.c.b16 %v474, %v473
      %v485 = vpack.c.b16 %v476, %v475
      %v486 = vpack.c.b16 %v478, %v477
      %v487 = vpack.c.b16 %v480, %v479
      %v488 = vpack.c.b16 %v482, %v481
      %v489 = vpack.c.b16 %v483, %v483
      %vm490 = vsmask.f32 7424
      %v492 = vshrl.u32 %v484, 16
      %v494 = vshll.u32 %v484, 16
      %v496 = vrot.slane %v494, 1
      %v497 = vor.u32 %v492, %v496
      %v499 = vshll.u32 %v485, 16
      %v501 = vrot.slane %v499, 1
      %v502 = vsel %vm490, %v497, %v501
      %v503 = vshrl.u32 %v485, 16
      %v505 = vor.u32 %v503, %v501
      %v507 = vshll.u32 %v486, 16
      %v509 = vrot.slane %v507, 1
      %v510 = vsel %vm490, %v505, %v509
      %v511 = vshrl.u32 %v486, 16
      %v513 = vor.u32 %v511, %v509
      %v515 = vshll.u32 %v487, 16
      %v517 = vrot.slane %v515, 1
      %v518 = vsel %vm490, %v513, %v517
      %v519 = vshrl.u32 %v487, 16
      %v521 = vor.u32 %v519, %v517
      %v523 = vshll.u32 %v488, 16
      %v525 = vrot.slane %v523, 1
      %v526 = vsel %vm490, %v521, %v525
      %v527 = vshrl.u32 %v488, 16
      %v529 = vor.u32 %v527, %v525
      %v531 = vshll.u32 %v489, 16
      %v533 = vrot.slane %v531, 1
      %v534 = vsel %vm490, %v529, %v533
      %v556 = vunpack.c.l.b16 %v446
      %v557 = vunpack.c.l.b16 %v447
      %v558 = vunpack.c.l.b16 %v448
      %v559 = vunpack.c.l.b16 %v449
      %v560 = vunpack.c.l.b16 %v450
      %v561 = vunpack.c.l.b16 %v451
      %v562 = vunpack.c.l.b16 %v452
      %v563 = vunpack.c.l.b16 %v453
      %v564 = vunpack.c.l.b16 %v454
      %v565 = vunpack.c.l.b16 %v455
      %v566 = vunpack.c.l.b16 %v456
      %v567 = vunpack.c.l.b16 %v457
      %v568 = vunpack.c.l.b16 %v458
      %v569 = vunpack.c.l.b16 %v459
      %v570 = vunpack.c.l.b16 %v460
      %v571 = vunpack.c.l.b16 %v461
      %v572 = vpack.c.b16 %v557, %v556
      %v573 = vpack.c.b16 %v559, %v558
      %v574 = vpack.c.b16 %v561, %v560
      %v575 = vpack.c.b16 %v563, %v562
      %v576 = vpack.c.b16 %v565, %v564
      %v577 = vpack.c.b16 %v567, %v566
      %v578 = vpack.c.b16 %v569, %v568
      %v579 = vpack.c.b16 %v571, %v570
      %588 = vmatpush.bf16.msra.mxu0 %v579
      %589 = vmatpush.bf16.msra.mxu0 %v578
      %590 = vmatpush.bf16.msra.mxu0 %v577
      %591 = vmatpush.bf16.msra.mxu0 %v576
      %592 = vmatpush.bf16.msra.mxu0 %v575
      %593 = vmatpush.bf16.msra.mxu0 %v574
      %594 = vmatpush.bf16.msra.mxu0 %v573
      %595 = vmatpush.bf16.msra.mxu0 %v572
      %596 = vmatmul.bf16.gmra.mxu0 %v502
      %v597 = vpop.f32.mrf.mxu0
      %v598 = vadd.f32 0.0, %v597
      %v599 = vpop.f32.mrf.mxu0
      %v600 = vadd.f32 0.0, %v599
      %601 = vmatmul.bf16.gmra.mxu0 %v510
      %v602 = vpop.f32.mrf.mxu0
      %v603 = vadd.f32 0.0, %v602
      %v604 = vpop.f32.mrf.mxu0
      %v605 = vadd.f32 0.0, %v604
      %606 = vmatmul.bf16.gmra.mxu0 %v518
      %v607 = vpop.f32.mrf.mxu0
      %v608 = vadd.f32 0.0, %v607
      %v609 = vpop.f32.mrf.mxu0
      %v610 = vadd.f32 0.0, %v609
      %611 = vmatmul.bf16.gmra.mxu0 %v526
      %v612 = vpop.f32.mrf.mxu0
      %v613 = vadd.f32 0.0, %v612
      %v614 = vpop.f32.mrf.mxu0
      %v615 = vadd.f32 0.0, %v614
      %616 = vmatmul.bf16.gmra.mxu0 %v534
      %v617 = vpop.f32.mrf.mxu0
      %v618 = vadd.f32 0.0, %v617
      %v619 = vpop.f32.mrf.mxu0
      %v620 = vadd.f32 0.0, %v619
      %621 = vdwg.mxu0
      %v643 = vunpack.c.l.b16 %v429
      %v644 = vunpack.c.l.b16 %v430
      %v645 = vunpack.c.l.b16 %v431
      %v646 = vunpack.c.l.b16 %v432
      %v647 = vunpack.c.l.b16 %v433
      %v648 = vunpack.c.l.b16 %v434
      %v649 = vunpack.c.l.b16 %v435
      %v650 = vunpack.c.l.b16 %v436
      %v651 = vunpack.c.l.b16 %v437
      %v652 = vunpack.c.l.b16 %v438
      %v653 = vunpack.c.l.b16 %v439
      %v654 = vunpack.c.l.b16 %v440
      %v655 = vunpack.c.l.b16 %v441
      %v656 = vunpack.c.l.b16 %v442
      %v657 = vunpack.c.l.b16 %v443
      %v658 = vunpack.c.l.b16 %v444
      %v659 = vpack.c.b16 %v644, %v643
      %v660 = vpack.c.b16 %v646, %v645
      %v661 = vpack.c.b16 %v648, %v647
      %v662 = vpack.c.b16 %v650, %v649
      %v663 = vpack.c.b16 %v652, %v651
      %v664 = vpack.c.b16 %v654, %v653
      %v665 = vpack.c.b16 %v656, %v655
      %v666 = vpack.c.b16 %v658, %v657
      %675 = vmatpush.bf16.msra.mxu0 %v666
      %676 = vmatpush.bf16.msra.mxu0 %v665
      %677 = vmatpush.bf16.msra.mxu0 %v664
      %678 = vmatpush.bf16.msra.mxu0 %v663
      %679 = vmatpush.bf16.msra.mxu0 %v662
      %680 = vmatpush.bf16.msra.mxu0 %v661
      %681 = vmatpush.bf16.msra.mxu0 %v660
      %682 = vmatpush.bf16.msra.mxu0 %v659
      %683 = vmatmul.bf16.gmra.mxu0 %v484
      %v684 = vpop.f32.mrf.mxu0
      %v685 = vadd.f32 %v598, %v684
      %v686 = vpop.f32.mrf.mxu0
      %v687 = vadd.f32 %v600, %v686
      %688 = vmatmul.bf16.gmra.mxu0 %v485
      %v689 = vpop.f32.mrf.mxu0
      %v690 = vadd.f32 %v603, %v689
      %v691 = vpop.f32.mrf.mxu0
      %v692 = vadd.f32 %v605, %v691
      %693 = vmatmul.bf16.gmra.mxu0 %v486
      %v694 = vpop.f32.mrf.mxu0
      %v695 = vadd.f32 %v608, %v694
      %v696 = vpop.f32.mrf.mxu0
      %v697 = vadd.f32 %v610, %v696
      %698 = vmatmul.bf16.gmra.mxu0 %v487
      %v699 = vpop.f32.mrf.mxu0
      %v700 = vadd.f32 %v613, %v699
      %v701 = vpop.f32.mrf.mxu0
      %v702 = vadd.f32 %v615, %v701
      %703 = vmatmul.bf16.gmra.mxu0 %v488
      %v704 = vpop.f32.mrf.mxu0
      %v705 = vadd.f32 %v618, %v704
      %v706 = vpop.f32.mrf.mxu0
      %v707 = vadd.f32 %v620, %v706
      %708 = vdwg.mxu0
      %s709 = scalar_lea.vmem %s400, 128
      %v710 = vld [vmem:[%s709] sm:$0xf]
      %v711 = vld [vmem:[%s709 + $0x4] sm:$0xf]
      %v712 = vld [vmem:[%s709 + $0x8] sm:$0xf]
      %v713 = vld [vmem:[%s709 + $0xc] sm:$0xf]
      %v714 = vld [vmem:[%s709 + $0x10] sm:$0xf]
      %v715 = vld [vmem:[%s709 + $0x14] sm:$0xf]
      %v716 = vld [vmem:[%s709 + $0x18] sm:$0xf]
      %v717 = vld [vmem:[%s709 + $0x1c] sm:$0xf]
      %v718 = vld [vmem:[%s709 + $0x20] sm:$0xf]
      %v719 = vld [vmem:[%s709 + $0x24] sm:$0xf]
      %v720 = vld [vmem:[%s709 + $0x28] sm:$0xf]
      %v721 = vld [vmem:[%s709 + $0x2c] sm:$0xf]
      %v722 = vld [vmem:[%s709 + $0x30] sm:$0xf]
      %v723 = vld [vmem:[%s709 + $0x34] sm:$0xf]
      %v724 = vld [vmem:[%s709 + $0x38] sm:$0xf]
      %v725 = vld [vmem:[%s709 + $0x3c] sm:$0xf]
      %vm726 = vcmask 1046528
      %v727 = vrot.slane %v484, 1
      %v728 = vrot.slane %v485, 1
      %v729 = vsel %vm726, %v727, %v728
      %v730 = vrot.slane %v486, 1
      %v731 = vsel %vm726, %v728, %v730
      %v732 = vrot.slane %v487, 1
      %v733 = vsel %vm726, %v730, %v732
      %v734 = vrot.slane %v488, 1
      %v735 = vsel %vm726, %v732, %v734
      %v736 = vrot.slane %v489, 1
      %v737 = vsel %vm726, %v734, %v736
      %v759 = vunpack.c.l.b16 %v710
      %v760 = vunpack.c.l.b16 %v711
      %v761 = vunpack.c.l.b16 %v712
      %v762 = vunpack.c.l.b16 %v713
      %v763 = vunpack.c.l.b16 %v714
      %v764 = vunpack.c.l.b16 %v715
      %v765 = vunpack.c.l.b16 %v716
      %v766 = vunpack.c.l.b16 %v717
      %v767 = vunpack.c.l.b16 %v718
      %v768 = vunpack.c.l.b16 %v719
      %v769 = vunpack.c.l.b16 %v720
      %v770 = vunpack.c.l.b16 %v721
      %v771 = vunpack.c.l.b16 %v722
      %v772 = vunpack.c.l.b16 %v723
      %v773 = vunpack.c.l.b16 %v724
      %v774 = vunpack.c.l.b16 %v725
      %v775 = vpack.c.b16 %v760, %v759
      %v776 = vpack.c.b16 %v762, %v761
      %v777 = vpack.c.b16 %v764, %v763
      %v778 = vpack.c.b16 %v766, %v765
      %v779 = vpack.c.b16 %v768, %v767
      %v780 = vpack.c.b16 %v770, %v769
      %v781 = vpack.c.b16 %v772, %v771
      %v782 = vpack.c.b16 %v774, %v773
      %791 = vmatpush.bf16.msra.mxu0 %v782
      %792 = vmatpush.bf16.msra.mxu0 %v781
      %793 = vmatpush.bf16.msra.mxu0 %v780
      %794 = vmatpush.bf16.msra.mxu0 %v779
      %795 = vmatpush.bf16.msra.mxu0 %v778
      %796 = vmatpush.bf16.msra.mxu0 %v777
      %797 = vmatpush.bf16.msra.mxu0 %v776
      %798 = vmatpush.bf16.msra.mxu0 %v775
      %799 = vmatmul.bf16.gmra.mxu0 %v729
      %v800 = vpop.f32.mrf.mxu0
      %v801 = vadd.f32 0.0, %v800
      %v802 = vpop.f32.mrf.mxu0
      %v803 = vadd.f32 0.0, %v802
      %804 = vmatmul.bf16.gmra.mxu0 %v731
      %v805 = vpop.f32.mrf.mxu0
      %v806 = vadd.f32 0.0, %v805
      %v807 = vpop.f32.mrf.mxu0
      %v808 = vadd.f32 0.0, %v807
      %809 = vmatmul.bf16.gmra.mxu0 %v733
      %v810 = vpop.f32.mrf.mxu0
      %v811 = vadd.f32 0.0, %v810
      %v812 = vpop.f32.mrf.mxu0
      %v813 = vadd.f32 0.0, %v812
      %814 = vmatmul.bf16.gmra.mxu0 %v735
      %v815 = vpop.f32.mrf.mxu0
      %v816 = vadd.f32 0.0, %v815
      %v817 = vpop.f32.mrf.mxu0
      %v818 = vadd.f32 0.0, %v817
      %819 = vmatmul.bf16.gmra.mxu0 %v737
      %v820 = vpop.f32.mrf.mxu0
      %v821 = vadd.f32 0.0, %v820
      %v822 = vpop.f32.mrf.mxu0
      %v823 = vadd.f32 0.0, %v822
      %824 = vdwg.mxu0
      %v825 = vadd.f32 %v685, %v801
      %v826 = vadd.f32 %v687, %v803
      %v827 = vadd.f32 %v690, %v806
      %v828 = vadd.f32 %v692, %v808
      %v829 = vadd.f32 %v695, %v811
      %v830 = vadd.f32 %v697, %v813
      %v831 = vadd.f32 %v700, %v816
      %v832 = vadd.f32 %v702, %v818
      %v833 = vadd.f32 %v705, %v821
      %v834 = vadd.f32 %v707, %v823
      %s835 = scalar_lea.vmem %s400, 192
      %v836 = vld [vmem:[%s835] sm:$0xf]
      %v837 = vld [vmem:[%s835 + $0x4] sm:$0xf]
      %v838 = vld [vmem:[%s835 + $0x8] sm:$0xf]
      %v839 = vld [vmem:[%s835 + $0xc] sm:$0xf]
      %v840 = vld [vmem:[%s835 + $0x10] sm:$0xf]
      %v841 = vld [vmem:[%s835 + $0x14] sm:$0xf]
      %v842 = vld [vmem:[%s835 + $0x18] sm:$0xf]
      %v843 = vld [vmem:[%s835 + $0x1c] sm:$0xf]
      %v844 = vld [vmem:[%s835 + $0x20] sm:$0xf]
      %v845 = vld [vmem:[%s835 + $0x24] sm:$0xf]
      %v846 = vld [vmem:[%s835 + $0x28] sm:$0xf]
      %v847 = vld [vmem:[%s835 + $0x2c] sm:$0xf]
      %v848 = vld [vmem:[%s835 + $0x30] sm:$0xf]
      %v849 = vld [vmem:[%s835 + $0x34] sm:$0xf]
      %v850 = vld [vmem:[%s835 + $0x38] sm:$0xf]
      %v851 = vld [vmem:[%s835 + $0x3c] sm:$0xf]
      %v853 = vunpack.c.l.b16 %v427
      %v854 = vpack.c.b16 %v475, %v474
      %v855 = vpack.c.b16 %v477, %v476
      %v856 = vpack.c.b16 %v479, %v478
      %v857 = vpack.c.b16 %v481, %v480
      %v858 = vpack.c.b16 %v483, %v482
      %v859 = vpack.c.b16 %v853, %v853
      %v860 = vrot.slane %v854, 1
      %v861 = vrot.slane %v855, 1
      %v862 = vsel %vm726, %v860, %v861
      %v863 = vrot.slane %v856, 1
      %v864 = vsel %vm726, %v861, %v863
      %v865 = vrot.slane %v857, 1
      %v866 = vsel %vm726, %v863, %v865
      %v867 = vrot.slane %v858, 1
      %v868 = vsel %vm726, %v865, %v867
      %v869 = vrot.slane %v859, 1
      %v870 = vsel %vm726, %v867, %v869
      %v892 = vunpack.c.l.b16 %v836
      %v893 = vunpack.c.l.b16 %v837
      %v894 = vunpack.c.l.b16 %v838
      %v895 = vunpack.c.l.b16 %v839
      %v896 = vunpack.c.l.b16 %v840
      %v897 = vunpack.c.l.b16 %v841
      %v898 = vunpack.c.l.b16 %v842
      %v899 = vunpack.c.l.b16 %v843
      %v900 = vunpack.c.l.b16 %v844
      %v901 = vunpack.c.l.b16 %v845
      %v902 = vunpack.c.l.b16 %v846
      %v903 = vunpack.c.l.b16 %v847
      %v904 = vunpack.c.l.b16 %v848
      %v905 = vunpack.c.l.b16 %v849
      %v906 = vunpack.c.l.b16 %v850
      %v907 = vunpack.c.l.b16 %v851
      %v908 = vpack.c.b16 %v893, %v892
      %v909 = vpack.c.b16 %v895, %v894
      %v910 = vpack.c.b16 %v897, %v896
      %v911 = vpack.c.b16 %v899, %v898
      %v912 = vpack.c.b16 %v901, %v900
      %v913 = vpack.c.b16 %v903, %v902
      %v914 = vpack.c.b16 %v905, %v904
      %v915 = vpack.c.b16 %v907, %v906
      %924 = vmatpush.bf16.msra.mxu0 %v915
      %925 = vmatpush.bf16.msra.mxu0 %v914
      %926 = vmatpush.bf16.msra.mxu0 %v913
      %927 = vmatpush.bf16.msra.mxu0 %v912
      %928 = vmatpush.bf16.msra.mxu0 %v911
      %929 = vmatpush.bf16.msra.mxu0 %v910
      %930 = vmatpush.bf16.msra.mxu0 %v909
      %931 = vmatpush.bf16.msra.mxu0 %v908
      %932 = vmatmul.bf16.gmra.mxu0 %v862
      %v933 = vpop.f32.mrf.mxu0
      %v934 = vadd.f32 0.0, %v933
      %v935 = vpop.f32.mrf.mxu0
      %v936 = vadd.f32 0.0, %v935
      %937 = vmatmul.bf16.gmra.mxu0 %v864
      %v938 = vpop.f32.mrf.mxu0
      %v939 = vadd.f32 0.0, %v938
      %v940 = vpop.f32.mrf.mxu0
      %v941 = vadd.f32 0.0, %v940
      %942 = vmatmul.bf16.gmra.mxu0 %v866
      %v943 = vpop.f32.mrf.mxu0
      %v944 = vadd.f32 0.0, %v943
      %v945 = vpop.f32.mrf.mxu0
      %v946 = vadd.f32 0.0, %v945
      %947 = vmatmul.bf16.gmra.mxu0 %v868
      %v948 = vpop.f32.mrf.mxu0
      %v949 = vadd.f32 0.0, %v948
      %v950 = vpop.f32.mrf.mxu0
      %v951 = vadd.f32 0.0, %v950
      %952 = vmatmul.bf16.gmra.mxu0 %v870
      %v953 = vpop.f32.mrf.mxu0
      %v954 = vadd.f32 0.0, %v953
      %v955 = vpop.f32.mrf.mxu0
      %v956 = vadd.f32 0.0, %v955
      %957 = vdwg.mxu0
      %v958 = vadd.f32 %v825, %v934
      %v959 = vadd.f32 %v826, %v936
      %v960 = vadd.f32 %v827, %v939
      %v961 = vadd.f32 %v828, %v941
      %v962 = vadd.f32 %v829, %v944
      %v963 = vadd.f32 %v830, %v946
      %v964 = vadd.f32 %v831, %v949
      %v965 = vadd.f32 %v832, %v951
      %v966 = vadd.f32 %v833, %v954
      %v967 = vadd.f32 %v834, %v956
      %s968 = scalar_lea.vmem %s400, 256
      %v969 = vld [vmem:[%s968] sm:$0xf]
      %v970 = vld [vmem:[%s968 + $0x4] sm:$0xf]
      %v971 = vld [vmem:[%s968 + $0x8] sm:$0xf]
      %v972 = vld [vmem:[%s968 + $0xc] sm:$0xf]
      %v973 = vld [vmem:[%s968 + $0x10] sm:$0xf]
      %v974 = vld [vmem:[%s968 + $0x14] sm:$0xf]
      %v975 = vld [vmem:[%s968 + $0x18] sm:$0xf]
      %v976 = vld [vmem:[%s968 + $0x1c] sm:$0xf]
      %v977 = vld [vmem:[%s968 + $0x20] sm:$0xf]
      %v978 = vld [vmem:[%s968 + $0x24] sm:$0xf]
      %v979 = vld [vmem:[%s968 + $0x28] sm:$0xf]
      %v980 = vld [vmem:[%s968 + $0x2c] sm:$0xf]
      %v981 = vld [vmem:[%s968 + $0x30] sm:$0xf]
      %v982 = vld [vmem:[%s968 + $0x34] sm:$0xf]
      %v983 = vld [vmem:[%s968 + $0x38] sm:$0xf]
      %v984 = vld [vmem:[%s968 + $0x3c] sm:$0xf]
      %vm985 = vsmask.f32 6400
      %v987 = vshrl.u32 %v854, 16
      %v989 = vrot.slane %v987, 1
      %v990 = vshll.u32 %v854, 16
      %v992 = vrot.slane %v990, 2
      %v993 = vor.u32 %v989, %v992
      %v995 = vshrl.u32 %v855, 16
      %v997 = vrot.slane %v995, 1
      %v998 = vshll.u32 %v855, 16
      %v1000 = vrot.slane %v998, 2
      %v1001 = vor.u32 %v997, %v1000
      %v1002 = vsel %vm985, %v993, %v1001
      %v1004 = vshrl.u32 %v856, 16
      %v1006 = vrot.slane %v1004, 1
      %v1007 = vshll.u32 %v856, 16
      %v1009 = vrot.slane %v1007, 2
      %v1010 = vor.u32 %v1006, %v1009
      %v1011 = vsel %vm985, %v1001, %v1010
      %v1013 = vshrl.u32 %v857, 16
      %v1015 = vrot.slane %v1013, 1
      %v1016 = vshll.u32 %v857, 16
      %v1018 = vrot.slane %v1016, 2
      %v1019 = vor.u32 %v1015, %v1018
      %v1020 = vsel %vm985, %v1010, %v1019
      %v1022 = vshrl.u32 %v858, 16
      %v1024 = vrot.slane %v1022, 1
      %v1025 = vshll.u32 %v858, 16
      %v1027 = vrot.slane %v1025, 2
      %v1028 = vor.u32 %v1024, %v1027
      %v1029 = vsel %vm985, %v1019, %v1028
      %v1031 = vshrl.u32 %v859, 16
      %v1033 = vrot.slane %v1031, 1
      %v1034 = vshll.u32 %v859, 16
      %v1036 = vrot.slane %v1034, 2
      %v1037 = vor.u32 %v1033, %v1036
      %v1038 = vsel %vm985, %v1028, %v1037
      %v1060 = vunpack.c.l.b16 %v969
      %v1061 = vunpack.c.l.b16 %v970
      %v1062 = vunpack.c.l.b16 %v971
      %v1063 = vunpack.c.l.b16 %v972
      %v1064 = vunpack.c.l.b16 %v973
      %v1065 = vunpack.c.l.b16 %v974
      %v1066 = vunpack.c.l.b16 %v975
      %v1067 = vunpack.c.l.b16 %v976
      %v1068 = vunpack.c.l.b16 %v977
      %v1069 = vunpack.c.l.b16 %v978
      %v1070 = vunpack.c.l.b16 %v979
      %v1071 = vunpack.c.l.b16 %v980
      %v1072 = vunpack.c.l.b16 %v981
      %v1073 = vunpack.c.l.b16 %v982
      %v1074 = vunpack.c.l.b16 %v983
      %v1075 = vunpack.c.l.b16 %v984
      %v1076 = vpack.c.b16 %v1061, %v1060
      %v1077 = vpack.c.b16 %v1063, %v1062
      %v1078 = vpack.c.b16 %v1065, %v1064
      %v1079 = vpack.c.b16 %v1067, %v1066
      %v1080 = vpack.c.b16 %v1069, %v1068
      %v1081 = vpack.c.b16 %v1071, %v1070
      %v1082 = vpack.c.b16 %v1073, %v1072
      %v1083 = vpack.c.b16 %v1075, %v1074
      %1092 = vmatpush.bf16.msra.mxu0 %v1083
      %1093 = vmatpush.bf16.msra.mxu0 %v1082
      %1094 = vmatpush.bf16.msra.mxu0 %v1081
      %1095 = vmatpush.bf16.msra.mxu0 %v1080
      %1096 = vmatpush.bf16.msra.mxu0 %v1079
      %1097 = vmatpush.bf16.msra.mxu0 %v1078
      %1098 = vmatpush.bf16.msra.mxu0 %v1077
      %1099 = vmatpush.bf16.msra.mxu0 %v1076
      %1100 = vmatmul.bf16.gmra.mxu0 %v1002
      %v1101 = vpop.f32.mrf.mxu0
      %v1102 = vadd.f32 0.0, %v1101
      %v1103 = vpop.f32.mrf.mxu0
      %v1104 = vadd.f32 0.0, %v1103
      %1105 = vmatmul.bf16.gmra.mxu0 %v1011
      %v1106 = vpop.f32.mrf.mxu0
      %v1107 = vadd.f32 0.0, %v1106
      %v1108 = vpop.f32.mrf.mxu0
      %v1109 = vadd.f32 0.0, %v1108
      %1110 = vmatmul.bf16.gmra.mxu0 %v1020
      %v1111 = vpop.f32.mrf.mxu0
      %v1112 = vadd.f32 0.0, %v1111
      %v1113 = vpop.f32.mrf.mxu0
      %v1114 = vadd.f32 0.0, %v1113
      %1115 = vmatmul.bf16.gmra.mxu0 %v1029
      %v1116 = vpop.f32.mrf.mxu0
      %v1117 = vadd.f32 0.0, %v1116
      %v1118 = vpop.f32.mrf.mxu0
      %v1119 = vadd.f32 0.0, %v1118
      %1120 = vmatmul.bf16.gmra.mxu0 %v1038
      %v1121 = vpop.f32.mrf.mxu0
      %v1122 = vadd.f32 0.0, %v1121
      %v1123 = vpop.f32.mrf.mxu0
      %v1124 = vadd.f32 0.0, %v1123
      %1125 = vdwg.mxu0
      %v1126 = vadd.f32 %v958, %v1102
      %v1127 = vadd.f32 %v959, %v1104
      %v1128 = vadd.f32 %v960, %v1107
      %v1129 = vadd.f32 %v961, %v1109
      %v1130 = vadd.f32 %v962, %v1112
      %v1131 = vadd.f32 %v963, %v1114
      %v1132 = vadd.f32 %v964, %v1117
      %v1133 = vadd.f32 %v965, %v1119
      %v1134 = vadd.f32 %v966, %v1122
      %v1135 = vadd.f32 %v967, %v1124
      %s1136 = scalar_lea.vmem %s400, 320
      %v1137 = vld [vmem:[%s1136] sm:$0xf]
      %v1138 = vld [vmem:[%s1136 + $0x4] sm:$0xf]
      %v1139 = vld [vmem:[%s1136 + $0x8] sm:$0xf]
      %v1140 = vld [vmem:[%s1136 + $0xc] sm:$0xf]
      %v1141 = vld [vmem:[%s1136 + $0x10] sm:$0xf]
      %v1142 = vld [vmem:[%s1136 + $0x14] sm:$0xf]
      %v1143 = vld [vmem:[%s1136 + $0x18] sm:$0xf]
      %v1144 = vld [vmem:[%s1136 + $0x1c] sm:$0xf]
      %v1145 = vld [vmem:[%s1136 + $0x20] sm:$0xf]
      %v1146 = vld [vmem:[%s1136 + $0x24] sm:$0xf]
      %v1147 = vld [vmem:[%s1136 + $0x28] sm:$0xf]
      %v1148 = vld [vmem:[%s1136 + $0x2c] sm:$0xf]
      %v1149 = vld [vmem:[%s1136 + $0x30] sm:$0xf]
      %v1150 = vld [vmem:[%s1136 + $0x34] sm:$0xf]
      %v1151 = vld [vmem:[%s1136 + $0x38] sm:$0xf]
      %v1152 = vld [vmem:[%s1136 + $0x3c] sm:$0xf]
      %vm1153 = vcmask 1045504
      %v1154 = vrot.slane %v854, 2
      %v1155 = vrot.slane %v855, 2
      %v1156 = vsel %vm1153, %v1154, %v1155
      %v1157 = vrot.slane %v856, 2
      %v1158 = vsel %vm1153, %v1155, %v1157
      %v1159 = vrot.slane %v857, 2
      %v1160 = vsel %vm1153, %v1157, %v1159
      %v1161 = vrot.slane %v858, 2
      %v1162 = vsel %vm1153, %v1159, %v1161
      %v1163 = vrot.slane %v859, 2
      %v1164 = vsel %vm1153, %v1161, %v1163
      %v1186 = vunpack.c.l.b16 %v1137
      %v1187 = vunpack.c.l.b16 %v1138
      %v1188 = vunpack.c.l.b16 %v1139
      %v1189 = vunpack.c.l.b16 %v1140
      %v1190 = vunpack.c.l.b16 %v1141
      %v1191 = vunpack.c.l.b16 %v1142
      %v1192 = vunpack.c.l.b16 %v1143
      %v1193 = vunpack.c.l.b16 %v1144
      %v1194 = vunpack.c.l.b16 %v1145
      %v1195 = vunpack.c.l.b16 %v1146
      %v1196 = vunpack.c.l.b16 %v1147
      %v1197 = vunpack.c.l.b16 %v1148
      %v1198 = vunpack.c.l.b16 %v1149
      %v1199 = vunpack.c.l.b16 %v1150
      %v1200 = vunpack.c.l.b16 %v1151
      %v1201 = vunpack.c.l.b16 %v1152
      %v1202 = vpack.c.b16 %v1187, %v1186
      %v1203 = vpack.c.b16 %v1189, %v1188
      %v1204 = vpack.c.b16 %v1191, %v1190
      %v1205 = vpack.c.b16 %v1193, %v1192
      %v1206 = vpack.c.b16 %v1195, %v1194
      %v1207 = vpack.c.b16 %v1197, %v1196
      %v1208 = vpack.c.b16 %v1199, %v1198
      %v1209 = vpack.c.b16 %v1201, %v1200
      %1218 = vmatpush.bf16.msra.mxu0 %v1209
      %1219 = vmatpush.bf16.msra.mxu0 %v1208
      %1220 = vmatpush.bf16.msra.mxu0 %v1207
      %1221 = vmatpush.bf16.msra.mxu0 %v1206
      %1222 = vmatpush.bf16.msra.mxu0 %v1205
      %1223 = vmatpush.bf16.msra.mxu0 %v1204
      %1224 = vmatpush.bf16.msra.mxu0 %v1203
      %1225 = vmatpush.bf16.msra.mxu0 %v1202
      %1226 = vmatmul.bf16.gmra.mxu0 %v1156
      %v1227 = vpop.f32.mrf.mxu0
      %v1228 = vadd.f32 0.0, %v1227
      %v1229 = vpop.f32.mrf.mxu0
      %v1230 = vadd.f32 0.0, %v1229
      %1231 = vmatmul.bf16.gmra.mxu0 %v1158
      %v1232 = vpop.f32.mrf.mxu0
      %v1233 = vadd.f32 0.0, %v1232
      %v1234 = vpop.f32.mrf.mxu0
      %v1235 = vadd.f32 0.0, %v1234
      %1236 = vmatmul.bf16.gmra.mxu0 %v1160
      %v1237 = vpop.f32.mrf.mxu0
      %v1238 = vadd.f32 0.0, %v1237
      %v1239 = vpop.f32.mrf.mxu0
      %v1240 = vadd.f32 0.0, %v1239
      %1241 = vmatmul.bf16.gmra.mxu0 %v1162
      %v1242 = vpop.f32.mrf.mxu0
      %v1243 = vadd.f32 0.0, %v1242
      %v1244 = vpop.f32.mrf.mxu0
      %v1245 = vadd.f32 0.0, %v1244
      %1246 = vmatmul.bf16.gmra.mxu0 %v1164
      %v1247 = vpop.f32.mrf.mxu0
      %v1248 = vadd.f32 0.0, %v1247
      %v1249 = vpop.f32.mrf.mxu0
      %v1250 = vadd.f32 0.0, %v1249
      %1251 = vdwg.mxu0
      %v1252 = vadd.f32 %v1126, %v1228
      %v1253 = vadd.f32 %v1127, %v1230
      %v1254 = vadd.f32 %v1128, %v1233
      %v1255 = vadd.f32 %v1129, %v1235
      %v1256 = vadd.f32 %v1130, %v1238
      %v1257 = vadd.f32 %v1131, %v1240
      %v1258 = vadd.f32 %v1132, %v1243
      %v1259 = vadd.f32 %v1133, %v1245
      %v1260 = vadd.f32 %v1134, %v1248
      %v1261 = vadd.f32 %v1135, %v1250
      %s1262 = scalar_lea.vmem %s400, 384
      %v1263 = vld [vmem:[%s1262] sm:$0xf]
      %v1264 = vld [vmem:[%s1262 + $0x4] sm:$0xf]
      %v1265 = vld [vmem:[%s1262 + $0x8] sm:$0xf]
      %v1266 = vld [vmem:[%s1262 + $0xc] sm:$0xf]
      %v1267 = vld [vmem:[%s1262 + $0x10] sm:$0xf]
      %v1268 = vld [vmem:[%s1262 + $0x14] sm:$0xf]
      %v1269 = vld [vmem:[%s1262 + $0x18] sm:$0xf]
      %v1270 = vld [vmem:[%s1262 + $0x1c] sm:$0xf]
      %v1271 = vld [vmem:[%s1262 + $0x20] sm:$0xf]
      %v1272 = vld [vmem:[%s1262 + $0x24] sm:$0xf]
      %v1273 = vld [vmem:[%s1262 + $0x28] sm:$0xf]
      %v1274 = vld [vmem:[%s1262 + $0x2c] sm:$0xf]
      %v1275 = vld [vmem:[%s1262 + $0x30] sm:$0xf]
      %v1276 = vld [vmem:[%s1262 + $0x34] sm:$0xf]
      %v1277 = vld [vmem:[%s1262 + $0x38] sm:$0xf]
      %v1278 = vld [vmem:[%s1262 + $0x3c] sm:$0xf]
      %v1280 = vunpack.c.l.b16 %v428
      %v1281 = vpack.c.b16 %v853, %v483
      %v1282 = vpack.c.b16 %v1280, %v1280
      %v1283 = vrot.slane %v485, 2
      %v1284 = vrot.slane %v486, 2
      %v1285 = vsel %vm1153, %v1283, %v1284
      %v1286 = vrot.slane %v487, 2
      %v1287 = vsel %vm1153, %v1284, %v1286
      %v1288 = vrot.slane %v488, 2
      %v1289 = vsel %vm1153, %v1286, %v1288
      %v1290 = vrot.slane %v1281, 2
      %v1291 = vsel %vm1153, %v1288, %v1290
      %v1292 = vrot.slane %v1282, 2
      %v1293 = vsel %vm1153, %v1290, %v1292
      %v1315 = vunpack.c.l.b16 %v1263
      %v1316 = vunpack.c.l.b16 %v1264
      %v1317 = vunpack.c.l.b16 %v1265
      %v1318 = vunpack.c.l.b16 %v1266
      %v1319 = vunpack.c.l.b16 %v1267
      %v1320 = vunpack.c.l.b16 %v1268
      %v1321 = vunpack.c.l.b16 %v1269
      %v1322 = vunpack.c.l.b16 %v1270
      %v1323 = vunpack.c.l.b16 %v1271
      %v1324 = vunpack.c.l.b16 %v1272
      %v1325 = vunpack.c.l.b16 %v1273
      %v1326 = vunpack.c.l.b16 %v1274
      %v1327 = vunpack.c.l.b16 %v1275
      %v1328 = vunpack.c.l.b16 %v1276
      %v1329 = vunpack.c.l.b16 %v1277
      %v1330 = vunpack.c.l.b16 %v1278
      %v1331 = vpack.c.b16 %v1316, %v1315
      %v1332 = vpack.c.b16 %v1318, %v1317
      %v1333 = vpack.c.b16 %v1320, %v1319
      %v1334 = vpack.c.b16 %v1322, %v1321
      %v1335 = vpack.c.b16 %v1324, %v1323
      %v1336 = vpack.c.b16 %v1326, %v1325
      %v1337 = vpack.c.b16 %v1328, %v1327
      %v1338 = vpack.c.b16 %v1330, %v1329
      %1347 = vmatpush.bf16.msra.mxu0 %v1338
      %1348 = vmatpush.bf16.msra.mxu0 %v1337
      %1349 = vmatpush.bf16.msra.mxu0 %v1336
      %1350 = vmatpush.bf16.msra.mxu0 %v1335
      %1351 = vmatpush.bf16.msra.mxu0 %v1334
      %1352 = vmatpush.bf16.msra.mxu0 %v1333
      %1353 = vmatpush.bf16.msra.mxu0 %v1332
      %1354 = vmatpush.bf16.msra.mxu0 %v1331
      %1355 = vmatmul.bf16.gmra.mxu0 %v1285
      %v1356 = vpop.f32.mrf.mxu0
      %v1357 = vadd.f32 0.0, %v1356
      %v1358 = vpop.f32.mrf.mxu0
      %v1359 = vadd.f32 0.0, %v1358
      %1360 = vmatmul.bf16.gmra.mxu0 %v1287
      %v1361 = vpop.f32.mrf.mxu0
      %v1362 = vadd.f32 0.0, %v1361
      %v1363 = vpop.f32.mrf.mxu0
      %v1364 = vadd.f32 0.0, %v1363
      %1365 = vmatmul.bf16.gmra.mxu0 %v1289
      %v1366 = vpop.f32.mrf.mxu0
      %v1367 = vadd.f32 0.0, %v1366
      %v1368 = vpop.f32.mrf.mxu0
      %v1369 = vadd.f32 0.0, %v1368
      %1370 = vmatmul.bf16.gmra.mxu0 %v1291
      %v1371 = vpop.f32.mrf.mxu0
      %v1372 = vadd.f32 0.0, %v1371
      %v1373 = vpop.f32.mrf.mxu0
      %v1374 = vadd.f32 0.0, %v1373
      %1375 = vmatmul.bf16.gmra.mxu0 %v1293
      %v1376 = vpop.f32.mrf.mxu0
      %v1377 = vadd.f32 0.0, %v1376
      %v1378 = vpop.f32.mrf.mxu0
      %v1379 = vadd.f32 0.0, %v1378
      %1380 = vdwg.mxu0
      %v1381 = vadd.f32 %v1252, %v1357
      %v1382 = vadd.f32 %v1253, %v1359
      %v1383 = vadd.f32 %v1254, %v1362
      %v1384 = vadd.f32 %v1255, %v1364
      %v1385 = vadd.f32 %v1256, %v1367
      %v1386 = vadd.f32 %v1257, %v1369
      %v1387 = vadd.f32 %v1258, %v1372
      %v1388 = vadd.f32 %v1259, %v1374
      %v1389 = vadd.f32 %v1260, %v1377
      %v1390 = vadd.f32 %v1261, %v1379
      %s1391 = scalar_lea.vmem %s400, 448
      %v1392 = vld [vmem:[%s1391] sm:$0xf]
      %v1393 = vld [vmem:[%s1391 + $0x4] sm:$0xf]
      %v1394 = vld [vmem:[%s1391 + $0x8] sm:$0xf]
      %v1395 = vld [vmem:[%s1391 + $0xc] sm:$0xf]
      %v1396 = vld [vmem:[%s1391 + $0x10] sm:$0xf]
      %v1397 = vld [vmem:[%s1391 + $0x14] sm:$0xf]
      %v1398 = vld [vmem:[%s1391 + $0x18] sm:$0xf]
      %v1399 = vld [vmem:[%s1391 + $0x1c] sm:$0xf]
      %v1400 = vld [vmem:[%s1391 + $0x20] sm:$0xf]
      %v1401 = vld [vmem:[%s1391 + $0x24] sm:$0xf]
      %v1402 = vld [vmem:[%s1391 + $0x28] sm:$0xf]
      %v1403 = vld [vmem:[%s1391 + $0x2c] sm:$0xf]
      %v1404 = vld [vmem:[%s1391 + $0x30] sm:$0xf]
      %v1405 = vld [vmem:[%s1391 + $0x34] sm:$0xf]
      %v1406 = vld [vmem:[%s1391 + $0x38] sm:$0xf]
      %v1407 = vld [vmem:[%s1391 + $0x3c] sm:$0xf]
      %vm1408 = vsmask.f32 5376
      %v1409 = vrot.slane %v503, 2
      %v1410 = vrot.slane %v499, 3
      %v1411 = vor.u32 %v1409, %v1410
      %v1412 = vrot.slane %v511, 2
      %v1413 = vrot.slane %v507, 3
      %v1414 = vor.u32 %v1412, %v1413
      %v1415 = vsel %vm1408, %v1411, %v1414
      %v1416 = vrot.slane %v519, 2
      %v1417 = vrot.slane %v515, 3
      %v1418 = vor.u32 %v1416, %v1417
      %v1419 = vsel %vm1408, %v1414, %v1418
      %v1420 = vrot.slane %v527, 2
      %v1421 = vrot.slane %v523, 3
      %v1422 = vor.u32 %v1420, %v1421
      %v1423 = vsel %vm1408, %v1418, %v1422
      %v1425 = vshrl.u32 %v1281, 16
      %v1427 = vrot.slane %v1425, 2
      %v1428 = vshll.u32 %v1281, 16
      %v1430 = vrot.slane %v1428, 3
      %v1431 = vor.u32 %v1427, %v1430
      %v1432 = vsel %vm1408, %v1422, %v1431
      %v1434 = vshrl.u32 %v1282, 16
      %v1436 = vrot.slane %v1434, 2
      %v1437 = vshll.u32 %v1282, 16
      %v1439 = vrot.slane %v1437, 3
      %v1440 = vor.u32 %v1436, %v1439
      %v1441 = vsel %vm1408, %v1431, %v1440
      %v1463 = vunpack.c.l.b16 %v1392
      %v1464 = vunpack.c.l.b16 %v1393
      %v1465 = vunpack.c.l.b16 %v1394
      %v1466 = vunpack.c.l.b16 %v1395
      %v1467 = vunpack.c.l.b16 %v1396
      %v1468 = vunpack.c.l.b16 %v1397
      %v1469 = vunpack.c.l.b16 %v1398
      %v1470 = vunpack.c.l.b16 %v1399
      %v1471 = vunpack.c.l.b16 %v1400
      %v1472 = vunpack.c.l.b16 %v1401
      %v1473 = vunpack.c.l.b16 %v1402
      %v1474 = vunpack.c.l.b16 %v1403
      %v1475 = vunpack.c.l.b16 %v1404
      %v1476 = vunpack.c.l.b16 %v1405
      %v1477 = vunpack.c.l.b16 %v1406
      %v1478 = vunpack.c.l.b16 %v1407
      %v1479 = vpack.c.b16 %v1464, %v1463
      %v1480 = vpack.c.b16 %v1466, %v1465
      %v1481 = vpack.c.b16 %v1468, %v1467
      %v1482 = vpack.c.b16 %v1470, %v1469
      %v1483 = vpack.c.b16 %v1472, %v1471
      %v1484 = vpack.c.b16 %v1474, %v1473
      %v1485 = vpack.c.b16 %v1476, %v1475
      %v1486 = vpack.c.b16 %v1478, %v1477
      %1495 = vmatpush.bf16.msra.mxu0 %v1486
      %1496 = vmatpush.bf16.msra.mxu0 %v1485
      %1497 = vmatpush.bf16.msra.mxu0 %v1484
      %1498 = vmatpush.bf16.msra.mxu0 %v1483
      %1499 = vmatpush.bf16.msra.mxu0 %v1482
      %1500 = vmatpush.bf16.msra.mxu0 %v1481
      %1501 = vmatpush.bf16.msra.mxu0 %v1480
      %1502 = vmatpush.bf16.msra.mxu0 %v1479
      %1503 = vmatmul.bf16.gmra.mxu0 %v1415
      %v1504 = vpop.f32.mrf.mxu0
      %v1505 = vadd.f32 0.0, %v1504
      %v1506 = vpop.f32.mrf.mxu0
      %v1507 = vadd.f32 0.0, %v1506
      %1508 = vmatmul.bf16.gmra.mxu0 %v1419
      %v1509 = vpop.f32.mrf.mxu0
      %v1510 = vadd.f32 0.0, %v1509
      %v1511 = vpop.f32.mrf.mxu0
      %v1512 = vadd.f32 0.0, %v1511
      %1513 = vmatmul.bf16.gmra.mxu0 %v1423
      %v1514 = vpop.f32.mrf.mxu0
      %v1515 = vadd.f32 0.0, %v1514
      %v1516 = vpop.f32.mrf.mxu0
      %v1517 = vadd.f32 0.0, %v1516
      %1518 = vmatmul.bf16.gmra.mxu0 %v1432
      %v1519 = vpop.f32.mrf.mxu0
      %v1520 = vadd.f32 0.0, %v1519
      %v1521 = vpop.f32.mrf.mxu0
      %v1522 = vadd.f32 0.0, %v1521
      %1523 = vmatmul.bf16.gmra.mxu0 %v1441
      %v1524 = vpop.f32.mrf.mxu0
      %v1525 = vadd.f32 0.0, %v1524
      %v1526 = vpop.f32.mrf.mxu0
      %v1527 = vadd.f32 0.0, %v1526
      %1528 = vdwg.mxu0
      %v1529 = vadd.f32 %v1381, %v1505
      %v1530 = vadd.f32 %v1382, %v1507
      %v1531 = vadd.f32 %v1383, %v1510
      %v1532 = vadd.f32 %v1384, %v1512
      %v1533 = vadd.f32 %v1385, %v1515
      %v1534 = vadd.f32 %v1386, %v1517
      %v1535 = vadd.f32 %v1387, %v1520
      %v1536 = vadd.f32 %v1388, %v1522
      %v1537 = vadd.f32 %v1389, %v1525
      %v1538 = vadd.f32 %v1390, %v1527
      %s1539 = scalar_lea.vmem %s400, 512
      %v1540 = vld [vmem:[%s1539] sm:$0xf]
      %v1541 = vld [vmem:[%s1539 + $0x4] sm:$0xf]
      %v1542 = vld [vmem:[%s1539 + $0x8] sm:$0xf]
      %v1543 = vld [vmem:[%s1539 + $0xc] sm:$0xf]
      %v1544 = vld [vmem:[%s1539 + $0x10] sm:$0xf]
      %v1545 = vld [vmem:[%s1539 + $0x14] sm:$0xf]
      %v1546 = vld [vmem:[%s1539 + $0x18] sm:$0xf]
      %v1547 = vld [vmem:[%s1539 + $0x1c] sm:$0xf]
      %v1548 = vld [vmem:[%s1539 + $0x20] sm:$0xf]
      %v1549 = vld [vmem:[%s1539 + $0x24] sm:$0xf]
      %v1550 = vld [vmem:[%s1539 + $0x28] sm:$0xf]
      %v1551 = vld [vmem:[%s1539 + $0x2c] sm:$0xf]
      %v1552 = vld [vmem:[%s1539 + $0x30] sm:$0xf]
      %v1553 = vld [vmem:[%s1539 + $0x34] sm:$0xf]
      %v1554 = vld [vmem:[%s1539 + $0x38] sm:$0xf]
      %v1555 = vld [vmem:[%s1539 + $0x3c] sm:$0xf]
      %vm1556 = vcmask 1044480
      %v1557 = vrot.slane %v485, 3
      %v1558 = vrot.slane %v486, 3
      %v1559 = vsel %vm1556, %v1557, %v1558
      %v1560 = vrot.slane %v487, 3
      %v1561 = vsel %vm1556, %v1558, %v1560
      %v1562 = vrot.slane %v488, 3
      %v1563 = vsel %vm1556, %v1560, %v1562
      %v1564 = vrot.slane %v1281, 3
      %v1565 = vsel %vm1556, %v1562, %v1564
      %v1566 = vrot.slane %v1282, 3
      %v1567 = vsel %vm1556, %v1564, %v1566
      %v1589 = vunpack.c.l.b16 %v1540
      %v1590 = vunpack.c.l.b16 %v1541
      %v1591 = vunpack.c.l.b16 %v1542
      %v1592 = vunpack.c.l.b16 %v1543
      %v1593 = vunpack.c.l.b16 %v1544
      %v1594 = vunpack.c.l.b16 %v1545
      %v1595 = vunpack.c.l.b16 %v1546
      %v1596 = vunpack.c.l.b16 %v1547
      %v1597 = vunpack.c.l.b16 %v1548
      %v1598 = vunpack.c.l.b16 %v1549
      %v1599 = vunpack.c.l.b16 %v1550
      %v1600 = vunpack.c.l.b16 %v1551
      %v1601 = vunpack.c.l.b16 %v1552
      %v1602 = vunpack.c.l.b16 %v1553
      %v1603 = vunpack.c.l.b16 %v1554
      %v1604 = vunpack.c.l.b16 %v1555
      %v1605 = vpack.c.b16 %v1590, %v1589
      %v1606 = vpack.c.b16 %v1592, %v1591
      %v1607 = vpack.c.b16 %v1594, %v1593
      %v1608 = vpack.c.b16 %v1596, %v1595
      %v1609 = vpack.c.b16 %v1598, %v1597
      %v1610 = vpack.c.b16 %v1600, %v1599
      %v1611 = vpack.c.b16 %v1602, %v1601
      %v1612 = vpack.c.b16 %v1604, %v1603
      %1621 = vmatpush.bf16.msra.mxu0 %v1612
      %1622 = vmatpush.bf16.msra.mxu0 %v1611
      %1623 = vmatpush.bf16.msra.mxu0 %v1610
      %1624 = vmatpush.bf16.msra.mxu0 %v1609
      %1625 = vmatpush.bf16.msra.mxu0 %v1608
      %1626 = vmatpush.bf16.msra.mxu0 %v1607
      %1627 = vmatpush.bf16.msra.mxu0 %v1606
      %1628 = vmatpush.bf16.msra.mxu0 %v1605
      %1629 = vmatmul.bf16.gmra.mxu0 %v1559
      %v1630 = vpop.f32.mrf.mxu0
      %v1631 = vadd.f32 0.0, %v1630
      %v1632 = vpop.f32.mrf.mxu0
      %v1633 = vadd.f32 0.0, %v1632
      %1634 = vmatmul.bf16.gmra.mxu0 %v1561
      %v1635 = vpop.f32.mrf.mxu0
      %v1636 = vadd.f32 0.0, %v1635
      %v1637 = vpop.f32.mrf.mxu0
      %v1638 = vadd.f32 0.0, %v1637
      %1639 = vmatmul.bf16.gmra.mxu0 %v1563
      %v1640 = vpop.f32.mrf.mxu0
      %v1641 = vadd.f32 0.0, %v1640
      %v1642 = vpop.f32.mrf.mxu0
      %v1643 = vadd.f32 0.0, %v1642
      %1644 = vmatmul.bf16.gmra.mxu0 %v1565
      %v1645 = vpop.f32.mrf.mxu0
      %v1646 = vadd.f32 0.0, %v1645
      %v1647 = vpop.f32.mrf.mxu0
      %v1648 = vadd.f32 0.0, %v1647
      %1649 = vmatmul.bf16.gmra.mxu0 %v1567
      %v1650 = vpop.f32.mrf.mxu0
      %v1651 = vadd.f32 0.0, %v1650
      %v1652 = vpop.f32.mrf.mxu0
      %v1653 = vadd.f32 0.0, %v1652
      %1654 = vdwg.mxu0
      %v1655 = vadd.f32 %v1529, %v1631
      %v1656 = vadd.f32 %v1530, %v1633
      %v1657 = vadd.f32 %v1531, %v1636
      %v1658 = vadd.f32 %v1532, %v1638
      %v1659 = vadd.f32 %v1533, %v1641
      %v1660 = vadd.f32 %v1534, %v1643
      %v1661 = vadd.f32 %v1535, %v1646
      %v1662 = vadd.f32 %v1536, %v1648
      %v1663 = vadd.f32 %v1537, %v1651
      %v1664 = vadd.f32 %v1538, %v1653
      %v1665 = vld [vmem:[%s384] sm:$0xf]
      %v1666 = vld [vmem:[%s384 + $0x4] sm:$0xf]
      %v1667 = vld [vmem:[%s384 + $0x8] sm:$0xf]
      %v1668 = vld [vmem:[%s384 + $0xc] sm:$0xf]
      %v1669 = vld [vmem:[%s384 + $0x10] sm:$0xf]
      %v1670 = vld [vmem:[%s384 + $0x14] sm:$0xf]
      %v1671 = vld [vmem:[%s384 + $0x18] sm:$0xf]
      %v1672 = vld [vmem:[%s384 + $0x1c] sm:$0xf]
      %v1673 = vld [vmem:[%s384 + $0x20] sm:$0xf]
      %v1674 = vld [vmem:[%s384 + $0x24] sm:$0xf]
      %v1675 = vld [vmem:[%s384 + $0x28] sm:$0xf]
      %v1676 = vld [vmem:[%s384 + $0x2c] sm:$0xf]
      %v1677 = vld [vmem:[%s384 + $0x30] sm:$0xf]
      %s1678 = scalar_lea.vmem %s400, 576
      %v1679 = vld [vmem:[%s1678] sm:$0xf]
      %v1680 = vld [vmem:[%s1678 + $0x4] sm:$0xf]
      %v1681 = vld [vmem:[%s1678 + $0x8] sm:$0xf]
      %v1682 = vld [vmem:[%s1678 + $0xc] sm:$0xf]
      %v1683 = vld [vmem:[%s1678 + $0x10] sm:$0xf]
      %v1684 = vld [vmem:[%s1678 + $0x14] sm:$0xf]
      %v1685 = vld [vmem:[%s1678 + $0x18] sm:$0xf]
      %v1686 = vld [vmem:[%s1678 + $0x1c] sm:$0xf]
      %v1687 = vld [vmem:[%s1678 + $0x20] sm:$0xf]
      %v1688 = vld [vmem:[%s1678 + $0x24] sm:$0xf]
      %v1689 = vld [vmem:[%s1678 + $0x28] sm:$0xf]
      %v1690 = vld [vmem:[%s1678 + $0x2c] sm:$0xf]
      %v1691 = vld [vmem:[%s1678 + $0x30] sm:$0xf]
      %v1692 = vld [vmem:[%s1678 + $0x34] sm:$0xf]
      %v1693 = vld [vmem:[%s1678 + $0x38] sm:$0xf]
      %v1694 = vld [vmem:[%s1678 + $0x3c] sm:$0xf]
      %v1705 = vunpack.c.l.b16 %v1665
      %v1706 = vunpack.c.l.b16 %v1666
      %v1707 = vunpack.c.l.b16 %v1667
      %v1708 = vunpack.c.l.b16 %v1668
      %v1709 = vunpack.c.l.b16 %v1669
      %v1710 = vunpack.c.l.b16 %v1670
      %v1711 = vunpack.c.l.b16 %v1671
      %v1712 = vunpack.c.l.b16 %v1672
      %v1713 = vunpack.c.l.b16 %v1673
      %v1714 = vunpack.c.l.b16 %v1674
      %v1715 = vpack.c.b16 %v1706, %v1705
      %v1716 = vpack.c.b16 %v1708, %v1707
      %v1717 = vpack.c.b16 %v1710, %v1709
      %v1718 = vpack.c.b16 %v1712, %v1711
      %v1719 = vpack.c.b16 %v1714, %v1713
      %v1741 = vunpack.c.l.b16 %v1679
      %v1742 = vunpack.c.l.b16 %v1680
      %v1743 = vunpack.c.l.b16 %v1681
      %v1744 = vunpack.c.l.b16 %v1682
      %v1745 = vunpack.c.l.b16 %v1683
      %v1746 = vunpack.c.l.b16 %v1684
      %v1747 = vunpack.c.l.b16 %v1685
      %v1748 = vunpack.c.l.b16 %v1686
      %v1749 = vunpack.c.l.b16 %v1687
      %v1750 = vunpack.c.l.b16 %v1688
      %v1751 = vunpack.c.l.b16 %v1689
      %v1752 = vunpack.c.l.b16 %v1690
      %v1753 = vunpack.c.l.b16 %v1691
      %v1754 = vunpack.c.l.b16 %v1692
      %v1755 = vunpack.c.l.b16 %v1693
      %v1756 = vunpack.c.l.b16 %v1694
      %v1757 = vpack.c.b16 %v1742, %v1741
      %v1758 = vpack.c.b16 %v1744, %v1743
      %v1759 = vpack.c.b16 %v1746, %v1745
      %v1760 = vpack.c.b16 %v1748, %v1747
      %v1761 = vpack.c.b16 %v1750, %v1749
      %v1762 = vpack.c.b16 %v1752, %v1751
      %v1763 = vpack.c.b16 %v1754, %v1753
      %v1764 = vpack.c.b16 %v1756, %v1755
      %1773 = vmatpush.bf16.msra.mxu0 %v1764
      %1774 = vmatpush.bf16.msra.mxu0 %v1763
      %1775 = vmatpush.bf16.msra.mxu0 %v1762
      %1776 = vmatpush.bf16.msra.mxu0 %v1761
      %1777 = vmatpush.bf16.msra.mxu0 %v1760
      %1778 = vmatpush.bf16.msra.mxu0 %v1759
      %1779 = vmatpush.bf16.msra.mxu0 %v1758
      %1780 = vmatpush.bf16.msra.mxu0 %v1757
      %1781 = vmatmul.bf16.gmra.mxu0 %v1715
      %v1782 = vpop.f32.mrf.mxu0
      %v1783 = vadd.f32 0.0, %v1782
      %v1784 = vpop.f32.mrf.mxu0
      %v1785 = vadd.f32 0.0, %v1784
      %1786 = vmatmul.bf16.gmra.mxu0 %v1716
      %v1787 = vpop.f32.mrf.mxu0
      %v1788 = vadd.f32 0.0, %v1787
      %v1789 = vpop.f32.mrf.mxu0
      %v1790 = vadd.f32 0.0, %v1789
      %1791 = vmatmul.bf16.gmra.mxu0 %v1717
      %v1792 = vpop.f32.mrf.mxu0
      %v1793 = vadd.f32 0.0, %v1792
      %v1794 = vpop.f32.mrf.mxu0
      %v1795 = vadd.f32 0.0, %v1794
      %1796 = vmatmul.bf16.gmra.mxu0 %v1718
      %v1797 = vpop.f32.mrf.mxu0
      %v1798 = vadd.f32 0.0, %v1797
      %v1799 = vpop.f32.mrf.mxu0
      %v1800 = vadd.f32 0.0, %v1799
      %1801 = vmatmul.bf16.gmra.mxu0 %v1719
      %v1802 = vpop.f32.mrf.mxu0
      %v1803 = vadd.f32 0.0, %v1802
      %v1804 = vpop.f32.mrf.mxu0
      %v1805 = vadd.f32 0.0, %v1804
      %1806 = vdwg.mxu0
      %v1807 = vadd.f32 %v1655, %v1783
      %v1808 = vadd.f32 %v1656, %v1785
      %v1809 = vadd.f32 %v1657, %v1788
      %v1810 = vadd.f32 %v1658, %v1790
      %v1811 = vadd.f32 %v1659, %v1793
      %v1812 = vadd.f32 %v1660, %v1795
      %v1813 = vadd.f32 %v1661, %v1798
      %v1814 = vadd.f32 %v1662, %v1800
      %v1815 = vadd.f32 %v1663, %v1803
      %v1816 = vadd.f32 %v1664, %v1805
      %s1817 = scalar_lea.vmem %s400, 640
      %v1818 = vld [vmem:[%s1817] sm:$0xf]
      %v1819 = vld [vmem:[%s1817 + $0x4] sm:$0xf]
      %v1820 = vld [vmem:[%s1817 + $0x8] sm:$0xf]
      %v1821 = vld [vmem:[%s1817 + $0xc] sm:$0xf]
      %v1822 = vld [vmem:[%s1817 + $0x10] sm:$0xf]
      %v1823 = vld [vmem:[%s1817 + $0x14] sm:$0xf]
      %v1824 = vld [vmem:[%s1817 + $0x18] sm:$0xf]
      %v1825 = vld [vmem:[%s1817 + $0x1c] sm:$0xf]
      %v1826 = vld [vmem:[%s1817 + $0x20] sm:$0xf]
      %v1827 = vld [vmem:[%s1817 + $0x24] sm:$0xf]
      %v1828 = vld [vmem:[%s1817 + $0x28] sm:$0xf]
      %v1829 = vld [vmem:[%s1817 + $0x2c] sm:$0xf]
      %v1830 = vld [vmem:[%s1817 + $0x30] sm:$0xf]
      %v1831 = vld [vmem:[%s1817 + $0x34] sm:$0xf]
      %v1832 = vld [vmem:[%s1817 + $0x38] sm:$0xf]
      %v1833 = vld [vmem:[%s1817 + $0x3c] sm:$0xf]
      %v1835 = vunpack.c.l.b16 %v1675
      %v1836 = vpack.c.b16 %v1835, %v1835
      %v1838 = vshrl.u32 %v1715, 16
      %v1840 = vshll.u32 %v1715, 16
      %v1842 = vrot.slane %v1840, 1
      %v1843 = vor.u32 %v1838, %v1842
      %v1845 = vshll.u32 %v1716, 16
      %v1847 = vrot.slane %v1845, 1
      %v1848 = vsel %vm490, %v1843, %v1847
      %v1849 = vshrl.u32 %v1716, 16
      %v1851 = vor.u32 %v1849, %v1847
      %v1853 = vshll.u32 %v1717, 16
      %v1855 = vrot.slane %v1853, 1
      %v1856 = vsel %vm490, %v1851, %v1855
      %v1857 = vshrl.u32 %v1717, 16
      %v1859 = vor.u32 %v1857, %v1855
      %v1861 = vshll.u32 %v1718, 16
      %v1863 = vrot.slane %v1861, 1
      %v1864 = vsel %vm490, %v1859, %v1863
      %v1865 = vshrl.u32 %v1718, 16
      %v1867 = vor.u32 %v1865, %v1863
      %v1869 = vshll.u32 %v1719, 16
      %v1871 = vrot.slane %v1869, 1
      %v1872 = vsel %vm490, %v1867, %v1871
      %v1873 = vshrl.u32 %v1719, 16
      %v1875 = vor.u32 %v1873, %v1871
      %v1877 = vshll.u32 %v1836, 16
      %v1879 = vrot.slane %v1877, 1
      %v1880 = vsel %vm490, %v1875, %v1879
      %v1902 = vunpack.c.l.b16 %v1818
      %v1903 = vunpack.c.l.b16 %v1819
      %v1904 = vunpack.c.l.b16 %v1820
      %v1905 = vunpack.c.l.b16 %v1821
      %v1906 = vunpack.c.l.b16 %v1822
      %v1907 = vunpack.c.l.b16 %v1823
      %v1908 = vunpack.c.l.b16 %v1824
      %v1909 = vunpack.c.l.b16 %v1825
      %v1910 = vunpack.c.l.b16 %v1826
      %v1911 = vunpack.c.l.b16 %v1827
      %v1912 = vunpack.c.l.b16 %v1828
      %v1913 = vunpack.c.l.b16 %v1829
      %v1914 = vunpack.c.l.b16 %v1830
      %v1915 = vunpack.c.l.b16 %v1831
      %v1916 = vunpack.c.l.b16 %v1832
      %v1917 = vunpack.c.l.b16 %v1833
      %v1918 = vpack.c.b16 %v1903, %v1902
      %v1919 = vpack.c.b16 %v1905, %v1904
      %v1920 = vpack.c.b16 %v1907, %v1906
      %v1921 = vpack.c.b16 %v1909, %v1908
      %v1922 = vpack.c.b16 %v1911, %v1910
      %v1923 = vpack.c.b16 %v1913, %v1912
      %v1924 = vpack.c.b16 %v1915, %v1914
      %v1925 = vpack.c.b16 %v1917, %v1916
      %1934 = vmatpush.bf16.msra.mxu0 %v1925
      %1935 = vmatpush.bf16.msra.mxu0 %v1924
      %1936 = vmatpush.bf16.msra.mxu0 %v1923
      %1937 = vmatpush.bf16.msra.mxu0 %v1922
      %1938 = vmatpush.bf16.msra.mxu0 %v1921
      %1939 = vmatpush.bf16.msra.mxu0 %v1920
      %1940 = vmatpush.bf16.msra.mxu0 %v1919
      %1941 = vmatpush.bf16.msra.mxu0 %v1918
      %1942 = vmatmul.bf16.gmra.mxu0 %v1848
      %v1943 = vpop.f32.mrf.mxu0
      %v1944 = vadd.f32 0.0, %v1943
      %v1945 = vpop.f32.mrf.mxu0
      %v1946 = vadd.f32 0.0, %v1945
      %1947 = vmatmul.bf16.gmra.mxu0 %v1856
      %v1948 = vpop.f32.mrf.mxu0
      %v1949 = vadd.f32 0.0, %v1948
      %v1950 = vpop.f32.mrf.mxu0
      %v1951 = vadd.f32 0.0, %v1950
      %1952 = vmatmul.bf16.gmra.mxu0 %v1864
      %v1953 = vpop.f32.mrf.mxu0
      %v1954 = vadd.f32 0.0, %v1953
      %v1955 = vpop.f32.mrf.mxu0
      %v1956 = vadd.f32 0.0, %v1955
      %1957 = vmatmul.bf16.gmra.mxu0 %v1872
      %v1958 = vpop.f32.mrf.mxu0
      %v1959 = vadd.f32 0.0, %v1958
      %v1960 = vpop.f32.mrf.mxu0
      %v1961 = vadd.f32 0.0, %v1960
      %1962 = vmatmul.bf16.gmra.mxu0 %v1880
      %v1963 = vpop.f32.mrf.mxu0
      %v1964 = vadd.f32 0.0, %v1963
      %v1965 = vpop.f32.mrf.mxu0
      %v1966 = vadd.f32 0.0, %v1965
      %1967 = vdwg.mxu0
      %v1968 = vadd.f32 %v1807, %v1944
      %v1969 = vadd.f32 %v1808, %v1946
      %v1970 = vadd.f32 %v1809, %v1949
      %v1971 = vadd.f32 %v1810, %v1951
      %v1972 = vadd.f32 %v1811, %v1954
      %v1973 = vadd.f32 %v1812, %v1956
      %v1974 = vadd.f32 %v1813, %v1959
      %v1975 = vadd.f32 %v1814, %v1961
      %v1976 = vadd.f32 %v1815, %v1964
      %v1977 = vadd.f32 %v1816, %v1966
      %s1978 = scalar_lea.vmem %s400, 704
      %v1979 = vld [vmem:[%s1978] sm:$0xf]
      %v1980 = vld [vmem:[%s1978 + $0x4] sm:$0xf]
      %v1981 = vld [vmem:[%s1978 + $0x8] sm:$0xf]
      %v1982 = vld [vmem:[%s1978 + $0xc] sm:$0xf]
      %v1983 = vld [vmem:[%s1978 + $0x10] sm:$0xf]
      %v1984 = vld [vmem:[%s1978 + $0x14] sm:$0xf]
      %v1985 = vld [vmem:[%s1978 + $0x18] sm:$0xf]
      %v1986 = vld [vmem:[%s1978 + $0x1c] sm:$0xf]
      %v1987 = vld [vmem:[%s1978 + $0x20] sm:$0xf]
      %v1988 = vld [vmem:[%s1978 + $0x24] sm:$0xf]
      %v1989 = vld [vmem:[%s1978 + $0x28] sm:$0xf]
      %v1990 = vld [vmem:[%s1978 + $0x2c] sm:$0xf]
      %v1991 = vld [vmem:[%s1978 + $0x30] sm:$0xf]
      %v1992 = vld [vmem:[%s1978 + $0x34] sm:$0xf]
      %v1993 = vld [vmem:[%s1978 + $0x38] sm:$0xf]
      %v1994 = vld [vmem:[%s1978 + $0x3c] sm:$0xf]
      %v1995 = vrot.slane %v1715, 1
      %v1996 = vrot.slane %v1716, 1
      %v1997 = vsel %vm726, %v1995, %v1996
      %v1998 = vrot.slane %v1717, 1
      %v1999 = vsel %vm726, %v1996, %v1998
      %v2000 = vrot.slane %v1718, 1
      %v2001 = vsel %vm726, %v1998, %v2000
      %v2002 = vrot.slane %v1719, 1
      %v2003 = vsel %vm726, %v2000, %v2002
      %v2004 = vrot.slane %v1836, 1
      %v2005 = vsel %vm726, %v2002, %v2004
      %v2027 = vunpack.c.l.b16 %v1979
      %v2028 = vunpack.c.l.b16 %v1980
      %v2029 = vunpack.c.l.b16 %v1981
      %v2030 = vunpack.c.l.b16 %v1982
      %v2031 = vunpack.c.l.b16 %v1983
      %v2032 = vunpack.c.l.b16 %v1984
      %v2033 = vunpack.c.l.b16 %v1985
      %v2034 = vunpack.c.l.b16 %v1986
      %v2035 = vunpack.c.l.b16 %v1987
      %v2036 = vunpack.c.l.b16 %v1988
      %v2037 = vunpack.c.l.b16 %v1989
      %v2038 = vunpack.c.l.b16 %v1990
      %v2039 = vunpack.c.l.b16 %v1991
      %v2040 = vunpack.c.l.b16 %v1992
      %v2041 = vunpack.c.l.b16 %v1993
      %v2042 = vunpack.c.l.b16 %v1994
      %v2043 = vpack.c.b16 %v2028, %v2027
      %v2044 = vpack.c.b16 %v2030, %v2029
      %v2045 = vpack.c.b16 %v2032, %v2031
      %v2046 = vpack.c.b16 %v2034, %v2033
      %v2047 = vpack.c.b16 %v2036, %v2035
      %v2048 = vpack.c.b16 %v2038, %v2037
      %v2049 = vpack.c.b16 %v2040, %v2039
      %v2050 = vpack.c.b16 %v2042, %v2041
      %2059 = vmatpush.bf16.msra.mxu0 %v2050
      %2060 = vmatpush.bf16.msra.mxu0 %v2049
      %2061 = vmatpush.bf16.msra.mxu0 %v2048
      %2062 = vmatpush.bf16.msra.mxu0 %v2047
      %2063 = vmatpush.bf16.msra.mxu0 %v2046
      %2064 = vmatpush.bf16.msra.mxu0 %v2045
      %2065 = vmatpush.bf16.msra.mxu0 %v2044
      %2066 = vmatpush.bf16.msra.mxu0 %v2043
      %2067 = vmatmul.bf16.gmra.mxu0 %v1997
      %v2068 = vpop.f32.mrf.mxu0
      %v2069 = vadd.f32 0.0, %v2068
      %v2070 = vpop.f32.mrf.mxu0
      %v2071 = vadd.f32 0.0, %v2070
      %2072 = vmatmul.bf16.gmra.mxu0 %v1999
      %v2073 = vpop.f32.mrf.mxu0
      %v2074 = vadd.f32 0.0, %v2073
      %v2075 = vpop.f32.mrf.mxu0
      %v2076 = vadd.f32 0.0, %v2075
      %2077 = vmatmul.bf16.gmra.mxu0 %v2001
      %v2078 = vpop.f32.mrf.mxu0
      %v2079 = vadd.f32 0.0, %v2078
      %v2080 = vpop.f32.mrf.mxu0
      %v2081 = vadd.f32 0.0, %v2080
      %2082 = vmatmul.bf16.gmra.mxu0 %v2003
      %v2083 = vpop.f32.mrf.mxu0
      %v2084 = vadd.f32 0.0, %v2083
      %v2085 = vpop.f32.mrf.mxu0
      %v2086 = vadd.f32 0.0, %v2085
      %2087 = vmatmul.bf16.gmra.mxu0 %v2005
      %v2088 = vpop.f32.mrf.mxu0
      %v2089 = vadd.f32 0.0, %v2088
      %v2090 = vpop.f32.mrf.mxu0
      %v2091 = vadd.f32 0.0, %v2090
      %2092 = vdwg.mxu0
      %v2093 = vadd.f32 %v1968, %v2069
      %v2094 = vadd.f32 %v1969, %v2071
      %v2095 = vadd.f32 %v1970, %v2074
      %v2096 = vadd.f32 %v1971, %v2076
      %v2097 = vadd.f32 %v1972, %v2079
      %v2098 = vadd.f32 %v1973, %v2081
      %v2099 = vadd.f32 %v1974, %v2084
      %v2100 = vadd.f32 %v1975, %v2086
      %v2101 = vadd.f32 %v1976, %v2089
      %v2102 = vadd.f32 %v1977, %v2091
      %s2103 = scalar_lea.vmem %s400, 768
      %v2104 = vld [vmem:[%s2103] sm:$0xf]
      %v2105 = vld [vmem:[%s2103 + $0x4] sm:$0xf]
      %v2106 = vld [vmem:[%s2103 + $0x8] sm:$0xf]
      %v2107 = vld [vmem:[%s2103 + $0xc] sm:$0xf]
      %v2108 = vld [vmem:[%s2103 + $0x10] sm:$0xf]
      %v2109 = vld [vmem:[%s2103 + $0x14] sm:$0xf]
      %v2110 = vld [vmem:[%s2103 + $0x18] sm:$0xf]
      %v2111 = vld [vmem:[%s2103 + $0x1c] sm:$0xf]
      %v2112 = vld [vmem:[%s2103 + $0x20] sm:$0xf]
      %v2113 = vld [vmem:[%s2103 + $0x24] sm:$0xf]
      %v2114 = vld [vmem:[%s2103 + $0x28] sm:$0xf]
      %v2115 = vld [vmem:[%s2103 + $0x2c] sm:$0xf]
      %v2116 = vld [vmem:[%s2103 + $0x30] sm:$0xf]
      %v2117 = vld [vmem:[%s2103 + $0x34] sm:$0xf]
      %v2118 = vld [vmem:[%s2103 + $0x38] sm:$0xf]
      %v2119 = vld [vmem:[%s2103 + $0x3c] sm:$0xf]
      %v2121 = vunpack.c.l.b16 %v1676
      %v2122 = vpack.c.b16 %v1707, %v1706
      %v2123 = vpack.c.b16 %v1709, %v1708
      %v2124 = vpack.c.b16 %v1711, %v1710
      %v2125 = vpack.c.b16 %v1713, %v1712
      %v2126 = vpack.c.b16 %v1835, %v1714
      %v2127 = vpack.c.b16 %v2121, %v2121
      %v2128 = vrot.slane %v2122, 1
      %v2129 = vrot.slane %v2123, 1
      %v2130 = vsel %vm726, %v2128, %v2129
      %v2131 = vrot.slane %v2124, 1
      %v2132 = vsel %vm726, %v2129, %v2131
      %v2133 = vrot.slane %v2125, 1
      %v2134 = vsel %vm726, %v2131, %v2133
      %v2135 = vrot.slane %v2126, 1
      %v2136 = vsel %vm726, %v2133, %v2135
      %v2137 = vrot.slane %v2127, 1
      %v2138 = vsel %vm726, %v2135, %v2137
      %v2160 = vunpack.c.l.b16 %v2104
      %v2161 = vunpack.c.l.b16 %v2105
      %v2162 = vunpack.c.l.b16 %v2106
      %v2163 = vunpack.c.l.b16 %v2107
      %v2164 = vunpack.c.l.b16 %v2108
      %v2165 = vunpack.c.l.b16 %v2109
      %v2166 = vunpack.c.l.b16 %v2110
      %v2167 = vunpack.c.l.b16 %v2111
      %v2168 = vunpack.c.l.b16 %v2112
      %v2169 = vunpack.c.l.b16 %v2113
      %v2170 = vunpack.c.l.b16 %v2114
      %v2171 = vunpack.c.l.b16 %v2115
      %v2172 = vunpack.c.l.b16 %v2116
      %v2173 = vunpack.c.l.b16 %v2117
      %v2174 = vunpack.c.l.b16 %v2118
      %v2175 = vunpack.c.l.b16 %v2119
      %v2176 = vpack.c.b16 %v2161, %v2160
      %v2177 = vpack.c.b16 %v2163, %v2162
      %v2178 = vpack.c.b16 %v2165, %v2164
      %v2179 = vpack.c.b16 %v2167, %v2166
      %v2180 = vpack.c.b16 %v2169, %v2168
      %v2181 = vpack.c.b16 %v2171, %v2170
      %v2182 = vpack.c.b16 %v2173, %v2172
      %v2183 = vpack.c.b16 %v2175, %v2174
      %2192 = vmatpush.bf16.msra.mxu0 %v2183
      %2193 = vmatpush.bf16.msra.mxu0 %v2182
      %2194 = vmatpush.bf16.msra.mxu0 %v2181
      %2195 = vmatpush.bf16.msra.mxu0 %v2180
      %2196 = vmatpush.bf16.msra.mxu0 %v2179
      %2197 = vmatpush.bf16.msra.mxu0 %v2178
      %2198 = vmatpush.bf16.msra.mxu0 %v2177
      %2199 = vmatpush.bf16.msra.mxu0 %v2176
      %2200 = vmatmul.bf16.gmra.mxu0 %v2130
      %v2201 = vpop.f32.mrf.mxu0
      %v2202 = vadd.f32 0.0, %v2201
      %v2203 = vpop.f32.mrf.mxu0
      %v2204 = vadd.f32 0.0, %v2203
      %2205 = vmatmul.bf16.gmra.mxu0 %v2132
      %v2206 = vpop.f32.mrf.mxu0
      %v2207 = vadd.f32 0.0, %v2206
      %v2208 = vpop.f32.mrf.mxu0
      %v2209 = vadd.f32 0.0, %v2208
      %2210 = vmatmul.bf16.gmra.mxu0 %v2134
      %v2211 = vpop.f32.mrf.mxu0
      %v2212 = vadd.f32 0.0, %v2211
      %v2213 = vpop.f32.mrf.mxu0
      %v2214 = vadd.f32 0.0, %v2213
      %2215 = vmatmul.bf16.gmra.mxu0 %v2136
      %v2216 = vpop.f32.mrf.mxu0
      %v2217 = vadd.f32 0.0, %v2216
      %v2218 = vpop.f32.mrf.mxu0
      %v2219 = vadd.f32 0.0, %v2218
      %2220 = vmatmul.bf16.gmra.mxu0 %v2138
      %v2221 = vpop.f32.mrf.mxu0
      %v2222 = vadd.f32 0.0, %v2221
      %v2223 = vpop.f32.mrf.mxu0
      %v2224 = vadd.f32 0.0, %v2223
      %2225 = vdwg.mxu0
      %v2226 = vadd.f32 %v2093, %v2202
      %v2227 = vadd.f32 %v2094, %v2204
      %v2228 = vadd.f32 %v2095, %v2207
      %v2229 = vadd.f32 %v2096, %v2209
      %v2230 = vadd.f32 %v2097, %v2212
      %v2231 = vadd.f32 %v2098, %v2214
      %v2232 = vadd.f32 %v2099, %v2217
      %v2233 = vadd.f32 %v2100, %v2219
      %v2234 = vadd.f32 %v2101, %v2222
      %v2235 = vadd.f32 %v2102, %v2224
      %s2236 = scalar_lea.vmem %s400, 832
      %v2237 = vld [vmem:[%s2236] sm:$0xf]
      %v2238 = vld [vmem:[%s2236 + $0x4] sm:$0xf]
      %v2239 = vld [vmem:[%s2236 + $0x8] sm:$0xf]
      %v2240 = vld [vmem:[%s2236 + $0xc] sm:$0xf]
      %v2241 = vld [vmem:[%s2236 + $0x10] sm:$0xf]
      %v2242 = vld [vmem:[%s2236 + $0x14] sm:$0xf]
      %v2243 = vld [vmem:[%s2236 + $0x18] sm:$0xf]
      %v2244 = vld [vmem:[%s2236 + $0x1c] sm:$0xf]
      %v2245 = vld [vmem:[%s2236 + $0x20] sm:$0xf]
      %v2246 = vld [vmem:[%s2236 + $0x24] sm:$0xf]
      %v2247 = vld [vmem:[%s2236 + $0x28] sm:$0xf]
      %v2248 = vld [vmem:[%s2236 + $0x2c] sm:$0xf]
      %v2249 = vld [vmem:[%s2236 + $0x30] sm:$0xf]
      %v2250 = vld [vmem:[%s2236 + $0x34] sm:$0xf]
      %v2251 = vld [vmem:[%s2236 + $0x38] sm:$0xf]
      %v2252 = vld [vmem:[%s2236 + $0x3c] sm:$0xf]
      %v2254 = vshrl.u32 %v2122, 16
      %v2256 = vrot.slane %v2254, 1
      %v2257 = vshll.u32 %v2122, 16
      %v2259 = vrot.slane %v2257, 2
      %v2260 = vor.u32 %v2256, %v2259
      %v2262 = vshrl.u32 %v2123, 16
      %v2264 = vrot.slane %v2262, 1
      %v2265 = vshll.u32 %v2123, 16
      %v2267 = vrot.slane %v2265, 2
      %v2268 = vor.u32 %v2264, %v2267
      %v2269 = vsel %vm985, %v2260, %v2268
      %v2271 = vshrl.u32 %v2124, 16
      %v2273 = vrot.slane %v2271, 1
      %v2274 = vshll.u32 %v2124, 16
      %v2276 = vrot.slane %v2274, 2
      %v2277 = vor.u32 %v2273, %v2276
      %v2278 = vsel %vm985, %v2268, %v2277
      %v2280 = vshrl.u32 %v2125, 16
      %v2282 = vrot.slane %v2280, 1
      %v2283 = vshll.u32 %v2125, 16
      %v2285 = vrot.slane %v2283, 2
      %v2286 = vor.u32 %v2282, %v2285
      %v2287 = vsel %vm985, %v2277, %v2286
      %v2289 = vshrl.u32 %v2126, 16
      %v2291 = vrot.slane %v2289, 1
      %v2292 = vshll.u32 %v2126, 16
      %v2294 = vrot.slane %v2292, 2
      %v2295 = vor.u32 %v2291, %v2294
      %v2296 = vsel %vm985, %v2286, %v2295
      %v2298 = vshrl.u32 %v2127, 16
      %v2300 = vrot.slane %v2298, 1
      %v2301 = vshll.u32 %v2127, 16
      %v2303 = vrot.slane %v2301, 2
      %v2304 = vor.u32 %v2300, %v2303
      %v2305 = vsel %vm985, %v2295, %v2304
      %v2327 = vunpack.c.l.b16 %v2237
      %v2328 = vunpack.c.l.b16 %v2238
      %v2329 = vunpack.c.l.b16 %v2239
      %v2330 = vunpack.c.l.b16 %v2240
      %v2331 = vunpack.c.l.b16 %v2241
      %v2332 = vunpack.c.l.b16 %v2242
      %v2333 = vunpack.c.l.b16 %v2243
      %v2334 = vunpack.c.l.b16 %v2244
      %v2335 = vunpack.c.l.b16 %v2245
      %v2336 = vunpack.c.l.b16 %v2246
      %v2337 = vunpack.c.l.b16 %v2247
      %v2338 = vunpack.c.l.b16 %v2248
      %v2339 = vunpack.c.l.b16 %v2249
      %v2340 = vunpack.c.l.b16 %v2250
      %v2341 = vunpack.c.l.b16 %v2251
      %v2342 = vunpack.c.l.b16 %v2252
      %v2343 = vpack.c.b16 %v2328, %v2327
      %v2344 = vpack.c.b16 %v2330, %v2329
      %v2345 = vpack.c.b16 %v2332, %v2331
      %v2346 = vpack.c.b16 %v2334, %v2333
      %v2347 = vpack.c.b16 %v2336, %v2335
      %v2348 = vpack.c.b16 %v2338, %v2337
      %v2349 = vpack.c.b16 %v2340, %v2339
      %v2350 = vpack.c.b16 %v2342, %v2341
      %2359 = vmatpush.bf16.msra.mxu0 %v2350
      %2360 = vmatpush.bf16.msra.mxu0 %v2349
      %2361 = vmatpush.bf16.msra.mxu0 %v2348
      %2362 = vmatpush.bf16.msra.mxu0 %v2347
      %2363 = vmatpush.bf16.msra.mxu0 %v2346
      %2364 = vmatpush.bf16.msra.mxu0 %v2345
      %2365 = vmatpush.bf16.msra.mxu0 %v2344
      %2366 = vmatpush.bf16.msra.mxu0 %v2343
      %2367 = vmatmul.bf16.gmra.mxu0 %v2269
      %v2368 = vpop.f32.mrf.mxu0
      %v2369 = vadd.f32 0.0, %v2368
      %v2370 = vpop.f32.mrf.mxu0
      %v2371 = vadd.f32 0.0, %v2370
      %2372 = vmatmul.bf16.gmra.mxu0 %v2278
      %v2373 = vpop.f32.mrf.mxu0
      %v2374 = vadd.f32 0.0, %v2373
      %v2375 = vpop.f32.mrf.mxu0
      %v2376 = vadd.f32 0.0, %v2375
      %2377 = vmatmul.bf16.gmra.mxu0 %v2287
      %v2378 = vpop.f32.mrf.mxu0
      %v2379 = vadd.f32 0.0, %v2378
      %v2380 = vpop.f32.mrf.mxu0
      %v2381 = vadd.f32 0.0, %v2380
      %2382 = vmatmul.bf16.gmra.mxu0 %v2296
      %v2383 = vpop.f32.mrf.mxu0
      %v2384 = vadd.f32 0.0, %v2383
      %v2385 = vpop.f32.mrf.mxu0
      %v2386 = vadd.f32 0.0, %v2385
      %2387 = vmatmul.bf16.gmra.mxu0 %v2305
      %v2388 = vpop.f32.mrf.mxu0
      %v2389 = vadd.f32 0.0, %v2388
      %v2390 = vpop.f32.mrf.mxu0
      %v2391 = vadd.f32 0.0, %v2390
      %2392 = vdwg.mxu0
      %v2393 = vadd.f32 %v2226, %v2369
      %v2394 = vadd.f32 %v2227, %v2371
      %v2395 = vadd.f32 %v2228, %v2374
      %v2396 = vadd.f32 %v2229, %v2376
      %v2397 = vadd.f32 %v2230, %v2379
      %v2398 = vadd.f32 %v2231, %v2381
      %v2399 = vadd.f32 %v2232, %v2384
      %v2400 = vadd.f32 %v2233, %v2386
      %v2401 = vadd.f32 %v2234, %v2389
      %v2402 = vadd.f32 %v2235, %v2391
      %s2403 = scalar_lea.vmem %s400, 896
      %v2404 = vld [vmem:[%s2403] sm:$0xf]
      %v2405 = vld [vmem:[%s2403 + $0x4] sm:$0xf]
      %v2406 = vld [vmem:[%s2403 + $0x8] sm:$0xf]
      %v2407 = vld [vmem:[%s2403 + $0xc] sm:$0xf]
      %v2408 = vld [vmem:[%s2403 + $0x10] sm:$0xf]
      %v2409 = vld [vmem:[%s2403 + $0x14] sm:$0xf]
      %v2410 = vld [vmem:[%s2403 + $0x18] sm:$0xf]
      %v2411 = vld [vmem:[%s2403 + $0x1c] sm:$0xf]
      %v2412 = vld [vmem:[%s2403 + $0x20] sm:$0xf]
      %v2413 = vld [vmem:[%s2403 + $0x24] sm:$0xf]
      %v2414 = vld [vmem:[%s2403 + $0x28] sm:$0xf]
      %v2415 = vld [vmem:[%s2403 + $0x2c] sm:$0xf]
      %v2416 = vld [vmem:[%s2403 + $0x30] sm:$0xf]
      %v2417 = vld [vmem:[%s2403 + $0x34] sm:$0xf]
      %v2418 = vld [vmem:[%s2403 + $0x38] sm:$0xf]
      %v2419 = vld [vmem:[%s2403 + $0x3c] sm:$0xf]
      %v2420 = vrot.slane %v2122, 2
      %v2421 = vrot.slane %v2123, 2
      %v2422 = vsel %vm1153, %v2420, %v2421
      %v2423 = vrot.slane %v2124, 2
      %v2424 = vsel %vm1153, %v2421, %v2423
      %v2425 = vrot.slane %v2125, 2
      %v2426 = vsel %vm1153, %v2423, %v2425
      %v2427 = vrot.slane %v2126, 2
      %v2428 = vsel %vm1153, %v2425, %v2427
      %v2429 = vrot.slane %v2127, 2
      %v2430 = vsel %vm1153, %v2427, %v2429
      %v2452 = vunpack.c.l.b16 %v2404
      %v2453 = vunpack.c.l.b16 %v2405
      %v2454 = vunpack.c.l.b16 %v2406
      %v2455 = vunpack.c.l.b16 %v2407
      %v2456 = vunpack.c.l.b16 %v2408
      %v2457 = vunpack.c.l.b16 %v2409
      %v2458 = vunpack.c.l.b16 %v2410
      %v2459 = vunpack.c.l.b16 %v2411
      %v2460 = vunpack.c.l.b16 %v2412
      %v2461 = vunpack.c.l.b16 %v2413
      %v2462 = vunpack.c.l.b16 %v2414
      %v2463 = vunpack.c.l.b16 %v2415
      %v2464 = vunpack.c.l.b16 %v2416
      %v2465 = vunpack.c.l.b16 %v2417
      %v2466 = vunpack.c.l.b16 %v2418
      %v2467 = vunpack.c.l.b16 %v2419
      %v2468 = vpack.c.b16 %v2453, %v2452
      %v2469 = vpack.c.b16 %v2455, %v2454
      %v2470 = vpack.c.b16 %v2457, %v2456
      %v2471 = vpack.c.b16 %v2459, %v2458
      %v2472 = vpack.c.b16 %v2461, %v2460
      %v2473 = vpack.c.b16 %v2463, %v2462
      %v2474 = vpack.c.b16 %v2465, %v2464
      %v2475 = vpack.c.b16 %v2467, %v2466
      %2484 = vmatpush.bf16.msra.mxu0 %v2475
      %2485 = vmatpush.bf16.msra.mxu0 %v2474
      %2486 = vmatpush.bf16.msra.mxu0 %v2473
      %2487 = vmatpush.bf16.msra.mxu0 %v2472
      %2488 = vmatpush.bf16.msra.mxu0 %v2471
      %2489 = vmatpush.bf16.msra.mxu0 %v2470
      %2490 = vmatpush.bf16.msra.mxu0 %v2469
      %2491 = vmatpush.bf16.msra.mxu0 %v2468
      %2492 = vmatmul.bf16.gmra.mxu0 %v2422
      %v2493 = vpop.f32.mrf.mxu0
      %v2494 = vadd.f32 0.0, %v2493
      %v2495 = vpop.f32.mrf.mxu0
      %v2496 = vadd.f32 0.0, %v2495
      %2497 = vmatmul.bf16.gmra.mxu0 %v2424
      %v2498 = vpop.f32.mrf.mxu0
      %v2499 = vadd.f32 0.0, %v2498
      %v2500 = vpop.f32.mrf.mxu0
      %v2501 = vadd.f32 0.0, %v2500
      %2502 = vmatmul.bf16.gmra.mxu0 %v2426
      %v2503 = vpop.f32.mrf.mxu0
      %v2504 = vadd.f32 0.0, %v2503
      %v2505 = vpop.f32.mrf.mxu0
      %v2506 = vadd.f32 0.0, %v2505
      %2507 = vmatmul.bf16.gmra.mxu0 %v2428
      %v2508 = vpop.f32.mrf.mxu0
      %v2509 = vadd.f32 0.0, %v2508
      %v2510 = vpop.f32.mrf.mxu0
      %v2511 = vadd.f32 0.0, %v2510
      %2512 = vmatmul.bf16.gmra.mxu0 %v2430
      %v2513 = vpop.f32.mrf.mxu0
      %v2514 = vadd.f32 0.0, %v2513
      %v2515 = vpop.f32.mrf.mxu0
      %v2516 = vadd.f32 0.0, %v2515
      %2517 = vdwg.mxu0
      %v2518 = vadd.f32 %v2393, %v2494
      %v2519 = vadd.f32 %v2394, %v2496
      %v2520 = vadd.f32 %v2395, %v2499
      %v2521 = vadd.f32 %v2396, %v2501
      %v2522 = vadd.f32 %v2397, %v2504
      %v2523 = vadd.f32 %v2398, %v2506
      %v2524 = vadd.f32 %v2399, %v2509
      %v2525 = vadd.f32 %v2400, %v2511
      %v2526 = vadd.f32 %v2401, %v2514
      %v2527 = vadd.f32 %v2402, %v2516
      %s2528 = scalar_lea.vmem %s400, 960
      %v2529 = vld [vmem:[%s2528] sm:$0xf]
      %v2530 = vld [vmem:[%s2528 + $0x4] sm:$0xf]
      %v2531 = vld [vmem:[%s2528 + $0x8] sm:$0xf]
      %v2532 = vld [vmem:[%s2528 + $0xc] sm:$0xf]
      %v2533 = vld [vmem:[%s2528 + $0x10] sm:$0xf]
      %v2534 = vld [vmem:[%s2528 + $0x14] sm:$0xf]
      %v2535 = vld [vmem:[%s2528 + $0x18] sm:$0xf]
      %v2536 = vld [vmem:[%s2528 + $0x1c] sm:$0xf]
      %v2537 = vld [vmem:[%s2528 + $0x20] sm:$0xf]
      %v2538 = vld [vmem:[%s2528 + $0x24] sm:$0xf]
      %v2539 = vld [vmem:[%s2528 + $0x28] sm:$0xf]
      %v2540 = vld [vmem:[%s2528 + $0x2c] sm:$0xf]
      %v2541 = vld [vmem:[%s2528 + $0x30] sm:$0xf]
      %v2542 = vld [vmem:[%s2528 + $0x34] sm:$0xf]
      %v2543 = vld [vmem:[%s2528 + $0x38] sm:$0xf]
      %v2544 = vld [vmem:[%s2528 + $0x3c] sm:$0xf]
      %v2546 = vunpack.c.l.b16 %v1677
      %v2547 = vpack.c.b16 %v2121, %v1835
      %v2548 = vpack.c.b16 %v2546, %v2546
      %v2549 = vrot.slane %v1716, 2
      %v2550 = vrot.slane %v1717, 2
      %v2551 = vsel %vm1153, %v2549, %v2550
      %v2552 = vrot.slane %v1718, 2
      %v2553 = vsel %vm1153, %v2550, %v2552
      %v2554 = vrot.slane %v1719, 2
      %v2555 = vsel %vm1153, %v2552, %v2554
      %v2556 = vrot.slane %v2547, 2
      %v2557 = vsel %vm1153, %v2554, %v2556
      %v2558 = vrot.slane %v2548, 2
      %v2559 = vsel %vm1153, %v2556, %v2558
      %v2581 = vunpack.c.l.b16 %v2529
      %v2582 = vunpack.c.l.b16 %v2530
      %v2583 = vunpack.c.l.b16 %v2531
      %v2584 = vunpack.c.l.b16 %v2532
      %v2585 = vunpack.c.l.b16 %v2533
      %v2586 = vunpack.c.l.b16 %v2534
      %v2587 = vunpack.c.l.b16 %v2535
      %v2588 = vunpack.c.l.b16 %v2536
      %v2589 = vunpack.c.l.b16 %v2537
      %v2590 = vunpack.c.l.b16 %v2538
      %v2591 = vunpack.c.l.b16 %v2539
      %v2592 = vunpack.c.l.b16 %v2540
      %v2593 = vunpack.c.l.b16 %v2541
      %v2594 = vunpack.c.l.b16 %v2542
      %v2595 = vunpack.c.l.b16 %v2543
      %v2596 = vunpack.c.l.b16 %v2544
      %v2597 = vpack.c.b16 %v2582, %v2581
      %v2598 = vpack.c.b16 %v2584, %v2583
      %v2599 = vpack.c.b16 %v2586, %v2585
      %v2600 = vpack.c.b16 %v2588, %v2587
      %v2601 = vpack.c.b16 %v2590, %v2589
      %v2602 = vpack.c.b16 %v2592, %v2591
      %v2603 = vpack.c.b16 %v2594, %v2593
      %v2604 = vpack.c.b16 %v2596, %v2595
      %2613 = vmatpush.bf16.msra.mxu0 %v2604
      %2614 = vmatpush.bf16.msra.mxu0 %v2603
      %2615 = vmatpush.bf16.msra.mxu0 %v2602
      %2616 = vmatpush.bf16.msra.mxu0 %v2601
      %2617 = vmatpush.bf16.msra.mxu0 %v2600
      %2618 = vmatpush.bf16.msra.mxu0 %v2599
      %2619 = vmatpush.bf16.msra.mxu0 %v2598
      %2620 = vmatpush.bf16.msra.mxu0 %v2597
      %2621 = vmatmul.bf16.gmra.mxu0 %v2551
      %v2622 = vpop.f32.mrf.mxu0
      %v2623 = vadd.f32 0.0, %v2622
      %v2624 = vpop.f32.mrf.mxu0
      %v2625 = vadd.f32 0.0, %v2624
      %2626 = vmatmul.bf16.gmra.mxu0 %v2553
      %v2627 = vpop.f32.mrf.mxu0
      %v2628 = vadd.f32 0.0, %v2627
      %v2629 = vpop.f32.mrf.mxu0
      %v2630 = vadd.f32 0.0, %v2629
      %2631 = vmatmul.bf16.gmra.mxu0 %v2555
      %v2632 = vpop.f32.mrf.mxu0
      %v2633 = vadd.f32 0.0, %v2632
      %v2634 = vpop.f32.mrf.mxu0
      %v2635 = vadd.f32 0.0, %v2634
      %2636 = vmatmul.bf16.gmra.mxu0 %v2557
      %v2637 = vpop.f32.mrf.mxu0
      %v2638 = vadd.f32 0.0, %v2637
      %v2639 = vpop.f32.mrf.mxu0
      %v2640 = vadd.f32 0.0, %v2639
      %2641 = vmatmul.bf16.gmra.mxu0 %v2559
      %v2642 = vpop.f32.mrf.mxu0
      %v2643 = vadd.f32 0.0, %v2642
      %v2644 = vpop.f32.mrf.mxu0
      %v2645 = vadd.f32 0.0, %v2644
      %2646 = vdwg.mxu0
      %v2647 = vadd.f32 %v2518, %v2623
      %v2648 = vadd.f32 %v2519, %v2625
      %v2649 = vadd.f32 %v2520, %v2628
      %v2650 = vadd.f32 %v2521, %v2630
      %v2651 = vadd.f32 %v2522, %v2633
      %v2652 = vadd.f32 %v2523, %v2635
      %v2653 = vadd.f32 %v2524, %v2638
      %v2654 = vadd.f32 %v2525, %v2640
      %v2655 = vadd.f32 %v2526, %v2643
      %v2656 = vadd.f32 %v2527, %v2645
      %s2657 = scalar_lea.vmem %s400, 1024
      %v2658 = vld [vmem:[%s2657] sm:$0xf]
      %v2659 = vld [vmem:[%s2657 + $0x4] sm:$0xf]
      %v2660 = vld [vmem:[%s2657 + $0x8] sm:$0xf]
      %v2661 = vld [vmem:[%s2657 + $0xc] sm:$0xf]
      %v2662 = vld [vmem:[%s2657 + $0x10] sm:$0xf]
      %v2663 = vld [vmem:[%s2657 + $0x14] sm:$0xf]
      %v2664 = vld [vmem:[%s2657 + $0x18] sm:$0xf]
      %v2665 = vld [vmem:[%s2657 + $0x1c] sm:$0xf]
      %v2666 = vld [vmem:[%s2657 + $0x20] sm:$0xf]
      %v2667 = vld [vmem:[%s2657 + $0x24] sm:$0xf]
      %v2668 = vld [vmem:[%s2657 + $0x28] sm:$0xf]
      %v2669 = vld [vmem:[%s2657 + $0x2c] sm:$0xf]
      %v2670 = vld [vmem:[%s2657 + $0x30] sm:$0xf]
      %v2671 = vld [vmem:[%s2657 + $0x34] sm:$0xf]
      %v2672 = vld [vmem:[%s2657 + $0x38] sm:$0xf]
      %v2673 = vld [vmem:[%s2657 + $0x3c] sm:$0xf]
      %v2674 = vrot.slane %v1849, 2
      %v2675 = vrot.slane %v1845, 3
      %v2676 = vor.u32 %v2674, %v2675
      %v2677 = vrot.slane %v1857, 2
      %v2678 = vrot.slane %v1853, 3
      %v2679 = vor.u32 %v2677, %v2678
      %v2680 = vsel %vm1408, %v2676, %v2679
      %v2681 = vrot.slane %v1865, 2
      %v2682 = vrot.slane %v1861, 3
      %v2683 = vor.u32 %v2681, %v2682
      %v2684 = vsel %vm1408, %v2679, %v2683
      %v2685 = vrot.slane %v1873, 2
      %v2686 = vrot.slane %v1869, 3
      %v2687 = vor.u32 %v2685, %v2686
      %v2688 = vsel %vm1408, %v2683, %v2687
      %v2690 = vshrl.u32 %v2547, 16
      %v2692 = vrot.slane %v2690, 2
      %v2693 = vshll.u32 %v2547, 16
      %v2695 = vrot.slane %v2693, 3
      %v2696 = vor.u32 %v2692, %v2695
      %v2697 = vsel %vm1408, %v2687, %v2696
      %v2699 = vshrl.u32 %v2548, 16
      %v2701 = vrot.slane %v2699, 2
      %v2702 = vshll.u32 %v2548, 16
      %v2704 = vrot.slane %v2702, 3
      %v2705 = vor.u32 %v2701, %v2704
      %v2706 = vsel %vm1408, %v2696, %v2705
      %v2728 = vunpack.c.l.b16 %v2658
      %v2729 = vunpack.c.l.b16 %v2659
      %v2730 = vunpack.c.l.b16 %v2660
      %v2731 = vunpack.c.l.b16 %v2661
      %v2732 = vunpack.c.l.b16 %v2662
      %v2733 = vunpack.c.l.b16 %v2663
      %v2734 = vunpack.c.l.b16 %v2664
      %v2735 = vunpack.c.l.b16 %v2665
      %v2736 = vunpack.c.l.b16 %v2666
      %v2737 = vunpack.c.l.b16 %v2667
      %v2738 = vunpack.c.l.b16 %v2668
      %v2739 = vunpack.c.l.b16 %v2669
      %v2740 = vunpack.c.l.b16 %v2670
      %v2741 = vunpack.c.l.b16 %v2671
      %v2742 = vunpack.c.l.b16 %v2672
      %v2743 = vunpack.c.l.b16 %v2673
      %v2744 = vpack.c.b16 %v2729, %v2728
      %v2745 = vpack.c.b16 %v2731, %v2730
      %v2746 = vpack.c.b16 %v2733, %v2732
      %v2747 = vpack.c.b16 %v2735, %v2734
      %v2748 = vpack.c.b16 %v2737, %v2736
      %v2749 = vpack.c.b16 %v2739, %v2738
      %v2750 = vpack.c.b16 %v2741, %v2740
      %v2751 = vpack.c.b16 %v2743, %v2742
      %2760 = vmatpush.bf16.msra.mxu0 %v2751
      %2761 = vmatpush.bf16.msra.mxu0 %v2750
      %2762 = vmatpush.bf16.msra.mxu0 %v2749
      %2763 = vmatpush.bf16.msra.mxu0 %v2748
      %2764 = vmatpush.bf16.msra.mxu0 %v2747
      %2765 = vmatpush.bf16.msra.mxu0 %v2746
      %2766 = vmatpush.bf16.msra.mxu0 %v2745
      %2767 = vmatpush.bf16.msra.mxu0 %v2744
      %2768 = vmatmul.bf16.gmra.mxu0 %v2680
      %v2769 = vpop.f32.mrf.mxu0
      %v2770 = vadd.f32 0.0, %v2769
      %v2771 = vpop.f32.mrf.mxu0
      %v2772 = vadd.f32 0.0, %v2771
      %2773 = vmatmul.bf16.gmra.mxu0 %v2684
      %v2774 = vpop.f32.mrf.mxu0
      %v2775 = vadd.f32 0.0, %v2774
      %v2776 = vpop.f32.mrf.mxu0
      %v2777 = vadd.f32 0.0, %v2776
      %2778 = vmatmul.bf16.gmra.mxu0 %v2688
      %v2779 = vpop.f32.mrf.mxu0
      %v2780 = vadd.f32 0.0, %v2779
      %v2781 = vpop.f32.mrf.mxu0
      %v2782 = vadd.f32 0.0, %v2781
      %2783 = vmatmul.bf16.gmra.mxu0 %v2697
      %v2784 = vpop.f32.mrf.mxu0
      %v2785 = vadd.f32 0.0, %v2784
      %v2786 = vpop.f32.mrf.mxu0
      %v2787 = vadd.f32 0.0, %v2786
      %2788 = vmatmul.bf16.gmra.mxu0 %v2706
      %v2789 = vpop.f32.mrf.mxu0
      %v2790 = vadd.f32 0.0, %v2789
      %v2791 = vpop.f32.mrf.mxu0
      %v2792 = vadd.f32 0.0, %v2791
      %2793 = vdwg.mxu0
      %v2794 = vadd.f32 %v2647, %v2770
      %v2795 = vadd.f32 %v2648, %v2772
      %v2796 = vadd.f32 %v2649, %v2775
      %v2797 = vadd.f32 %v2650, %v2777
      %v2798 = vadd.f32 %v2651, %v2780
      %v2799 = vadd.f32 %v2652, %v2782
      %v2800 = vadd.f32 %v2653, %v2785
      %v2801 = vadd.f32 %v2654, %v2787
      %v2802 = vadd.f32 %v2655, %v2790
      %v2803 = vadd.f32 %v2656, %v2792
      %s2804 = scalar_lea.vmem %s400, 1088
      %v2805 = vld [vmem:[%s2804] sm:$0xf]
      %v2806 = vld [vmem:[%s2804 + $0x4] sm:$0xf]
      %v2807 = vld [vmem:[%s2804 + $0x8] sm:$0xf]
      %v2808 = vld [vmem:[%s2804 + $0xc] sm:$0xf]
      %v2809 = vld [vmem:[%s2804 + $0x10] sm:$0xf]
      %v2810 = vld [vmem:[%s2804 + $0x14] sm:$0xf]
      %v2811 = vld [vmem:[%s2804 + $0x18] sm:$0xf]
      %v2812 = vld [vmem:[%s2804 + $0x1c] sm:$0xf]
      %v2813 = vld [vmem:[%s2804 + $0x20] sm:$0xf]
      %v2814 = vld [vmem:[%s2804 + $0x24] sm:$0xf]
      %v2815 = vld [vmem:[%s2804 + $0x28] sm:$0xf]
      %v2816 = vld [vmem:[%s2804 + $0x2c] sm:$0xf]
      %v2817 = vld [vmem:[%s2804 + $0x30] sm:$0xf]
      %v2818 = vld [vmem:[%s2804 + $0x34] sm:$0xf]
      %v2819 = vld [vmem:[%s2804 + $0x38] sm:$0xf]
      %v2820 = vld [vmem:[%s2804 + $0x3c] sm:$0xf]
      %v2821 = vrot.slane %v1716, 3
      %v2822 = vrot.slane %v1717, 3
      %v2823 = vsel %vm1556, %v2821, %v2822
      %v2824 = vrot.slane %v1718, 3
      %v2825 = vsel %vm1556, %v2822, %v2824
      %v2826 = vrot.slane %v1719, 3
      %v2827 = vsel %vm1556, %v2824, %v2826
      %v2828 = vrot.slane %v2547, 3
      %v2829 = vsel %vm1556, %v2826, %v2828
      %v2830 = vrot.slane %v2548, 3
      %v2831 = vsel %vm1556, %v2828, %v2830
      %v2853 = vunpack.c.l.b16 %v2805
      %v2854 = vunpack.c.l.b16 %v2806
      %v2855 = vunpack.c.l.b16 %v2807
      %v2856 = vunpack.c.l.b16 %v2808
      %v2857 = vunpack.c.l.b16 %v2809
      %v2858 = vunpack.c.l.b16 %v2810
      %v2859 = vunpack.c.l.b16 %v2811
      %v2860 = vunpack.c.l.b16 %v2812
      %v2861 = vunpack.c.l.b16 %v2813
      %v2862 = vunpack.c.l.b16 %v2814
      %v2863 = vunpack.c.l.b16 %v2815
      %v2864 = vunpack.c.l.b16 %v2816
      %v2865 = vunpack.c.l.b16 %v2817
      %v2866 = vunpack.c.l.b16 %v2818
      %v2867 = vunpack.c.l.b16 %v2819
      %v2868 = vunpack.c.l.b16 %v2820
      %v2869 = vpack.c.b16 %v2854, %v2853
      %v2870 = vpack.c.b16 %v2856, %v2855
      %v2871 = vpack.c.b16 %v2858, %v2857
      %v2872 = vpack.c.b16 %v2860, %v2859
      %v2873 = vpack.c.b16 %v2862, %v2861
      %v2874 = vpack.c.b16 %v2864, %v2863
      %v2875 = vpack.c.b16 %v2866, %v2865
      %v2876 = vpack.c.b16 %v2868, %v2867
      %2885 = vmatpush.bf16.msra.mxu0 %v2876
      %2886 = vmatpush.bf16.msra.mxu0 %v2875
      %2887 = vmatpush.bf16.msra.mxu0 %v2874
      %2888 = vmatpush.bf16.msra.mxu0 %v2873
      %2889 = vmatpush.bf16.msra.mxu0 %v2872
      %2890 = vmatpush.bf16.msra.mxu0 %v2871
      %2891 = vmatpush.bf16.msra.mxu0 %v2870
      %2892 = vmatpush.bf16.msra.mxu0 %v2869
      %2893 = vmatmul.bf16.gmra.mxu0 %v2823
      %v2894 = vpop.f32.mrf.mxu0
      %v2895 = vadd.f32 0.0, %v2894
      %v2896 = vpop.f32.mrf.mxu0
      %v2897 = vadd.f32 0.0, %v2896
      %2898 = vmatmul.bf16.gmra.mxu0 %v2825
      %v2899 = vpop.f32.mrf.mxu0
      %v2900 = vadd.f32 0.0, %v2899
      %v2901 = vpop.f32.mrf.mxu0
      %v2902 = vadd.f32 0.0, %v2901
      %2903 = vmatmul.bf16.gmra.mxu0 %v2827
      %v2904 = vpop.f32.mrf.mxu0
      %v2905 = vadd.f32 0.0, %v2904
      %v2906 = vpop.f32.mrf.mxu0
      %v2907 = vadd.f32 0.0, %v2906
      %2908 = vmatmul.bf16.gmra.mxu0 %v2829
      %v2909 = vpop.f32.mrf.mxu0
      %v2910 = vadd.f32 0.0, %v2909
      %v2911 = vpop.f32.mrf.mxu0
      %v2912 = vadd.f32 0.0, %v2911
      %2913 = vmatmul.bf16.gmra.mxu0 %v2831
      %v2914 = vpop.f32.mrf.mxu0
      %v2915 = vadd.f32 0.0, %v2914
      %v2916 = vpop.f32.mrf.mxu0
      %v2917 = vadd.f32 0.0, %v2916
      %2918 = vdwg.mxu0
      %v2919 = vadd.f32 %v2794, %v2895
      %v2920 = vadd.f32 %v2795, %v2897
      %v2921 = vadd.f32 %v2796, %v2900
      %v2922 = vadd.f32 %v2797, %v2902
      %v2923 = vadd.f32 %v2798, %v2905
      %v2924 = vadd.f32 %v2799, %v2907
      %v2925 = vadd.f32 %v2800, %v2910
      %v2926 = vadd.f32 %v2801, %v2912
      %v2927 = vadd.f32 %v2802, %v2915
      %v2928 = vadd.f32 %v2803, %v2917
      %v2929 = vld [vmem:[%s395] sm:$0xf]
      %v2930 = vld [vmem:[%s395 + $0x4] sm:$0xf]
      %v2931 = vld [vmem:[%s395 + $0x8] sm:$0xf]
      %v2932 = vld [vmem:[%s395 + $0xc] sm:$0xf]
      %v2933 = vld [vmem:[%s395 + $0x10] sm:$0xf]
      %v2934 = vld [vmem:[%s395 + $0x14] sm:$0xf]
      %v2935 = vld [vmem:[%s395 + $0x18] sm:$0xf]
      %v2936 = vld [vmem:[%s395 + $0x1c] sm:$0xf]
      %v2937 = vld [vmem:[%s395 + $0x20] sm:$0xf]
      %v2938 = vld [vmem:[%s395 + $0x24] sm:$0xf]
      %v2939 = vld [vmem:[%s395 + $0x28] sm:$0xf]
      %v2940 = vld [vmem:[%s395 + $0x2c] sm:$0xf]
      %v2941 = vld [vmem:[%s395 + $0x30] sm:$0xf]
      %s2942 = scalar_lea.vmem %s400, 1152
      %v2943 = vld [vmem:[%s2942] sm:$0xf]
      %v2944 = vld [vmem:[%s2942 + $0x4] sm:$0xf]
      %v2945 = vld [vmem:[%s2942 + $0x8] sm:$0xf]
      %v2946 = vld [vmem:[%s2942 + $0xc] sm:$0xf]
      %v2947 = vld [vmem:[%s2942 + $0x10] sm:$0xf]
      %v2948 = vld [vmem:[%s2942 + $0x14] sm:$0xf]
      %v2949 = vld [vmem:[%s2942 + $0x18] sm:$0xf]
      %v2950 = vld [vmem:[%s2942 + $0x1c] sm:$0xf]
      %v2951 = vld [vmem:[%s2942 + $0x20] sm:$0xf]
      %v2952 = vld [vmem:[%s2942 + $0x24] sm:$0xf]
      %v2953 = vld [vmem:[%s2942 + $0x28] sm:$0xf]
      %v2954 = vld [vmem:[%s2942 + $0x2c] sm:$0xf]
      %v2955 = vld [vmem:[%s2942 + $0x30] sm:$0xf]
      %v2956 = vld [vmem:[%s2942 + $0x34] sm:$0xf]
      %v2957 = vld [vmem:[%s2942 + $0x38] sm:$0xf]
      %v2958 = vld [vmem:[%s2942 + $0x3c] sm:$0xf]
      %v2969 = vunpack.c.l.b16 %v2929
      %v2970 = vunpack.c.l.b16 %v2930
      %v2971 = vunpack.c.l.b16 %v2931
      %v2972 = vunpack.c.l.b16 %v2932
      %v2973 = vunpack.c.l.b16 %v2933
      %v2974 = vunpack.c.l.b16 %v2934
      %v2975 = vunpack.c.l.b16 %v2935
      %v2976 = vunpack.c.l.b16 %v2936
      %v2977 = vunpack.c.l.b16 %v2937
      %v2978 = vunpack.c.l.b16 %v2938
      %v2979 = vpack.c.b16 %v2970, %v2969
      %v2980 = vpack.c.b16 %v2972, %v2971
      %v2981 = vpack.c.b16 %v2974, %v2973
      %v2982 = vpack.c.b16 %v2976, %v2975
      %v2983 = vpack.c.b16 %v2978, %v2977
      %v3005 = vunpack.c.l.b16 %v2943
      %v3006 = vunpack.c.l.b16 %v2944
      %v3007 = vunpack.c.l.b16 %v2945
      %v3008 = vunpack.c.l.b16 %v2946
      %v3009 = vunpack.c.l.b16 %v2947
      %v3010 = vunpack.c.l.b16 %v2948
      %v3011 = vunpack.c.l.b16 %v2949
      %v3012 = vunpack.c.l.b16 %v2950
      %v3013 = vunpack.c.l.b16 %v2951
      %v3014 = vunpack.c.l.b16 %v2952
      %v3015 = vunpack.c.l.b16 %v2953
      %v3016 = vunpack.c.l.b16 %v2954
      %v3017 = vunpack.c.l.b16 %v2955
      %v3018 = vunpack.c.l.b16 %v2956
      %v3019 = vunpack.c.l.b16 %v2957
      %v3020 = vunpack.c.l.b16 %v2958
      %v3021 = vpack.c.b16 %v3006, %v3005
      %v3022 = vpack.c.b16 %v3008, %v3007
      %v3023 = vpack.c.b16 %v3010, %v3009
      %v3024 = vpack.c.b16 %v3012, %v3011
      %v3025 = vpack.c.b16 %v3014, %v3013
      %v3026 = vpack.c.b16 %v3016, %v3015
      %v3027 = vpack.c.b16 %v3018, %v3017
      %v3028 = vpack.c.b16 %v3020, %v3019
      %3037 = vmatpush.bf16.msra.mxu0 %v3028
      %3038 = vmatpush.bf16.msra.mxu0 %v3027
      %3039 = vmatpush.bf16.msra.mxu0 %v3026
      %3040 = vmatpush.bf16.msra.mxu0 %v3025
      %3041 = vmatpush.bf16.msra.mxu0 %v3024
      %3042 = vmatpush.bf16.msra.mxu0 %v3023
      %3043 = vmatpush.bf16.msra.mxu0 %v3022
      %3044 = vmatpush.bf16.msra.mxu0 %v3021
      %3045 = vmatmul.bf16.gmra.mxu0 %v2979
      %v3046 = vpop.f32.mrf.mxu0
      %v3047 = vadd.f32 0.0, %v3046
      %v3048 = vpop.f32.mrf.mxu0
      %v3049 = vadd.f32 0.0, %v3048
      %3050 = vmatmul.bf16.gmra.mxu0 %v2980
      %v3051 = vpop.f32.mrf.mxu0
      %v3052 = vadd.f32 0.0, %v3051
      %v3053 = vpop.f32.mrf.mxu0
      %v3054 = vadd.f32 0.0, %v3053
      %3055 = vmatmul.bf16.gmra.mxu0 %v2981
      %v3056 = vpop.f32.mrf.mxu0
      %v3057 = vadd.f32 0.0, %v3056
      %v3058 = vpop.f32.mrf.mxu0
      %v3059 = vadd.f32 0.0, %v3058
      %3060 = vmatmul.bf16.gmra.mxu0 %v2982
      %v3061 = vpop.f32.mrf.mxu0
      %v3062 = vadd.f32 0.0, %v3061
      %v3063 = vpop.f32.mrf.mxu0
      %v3064 = vadd.f32 0.0, %v3063
      %3065 = vmatmul.bf16.gmra.mxu0 %v2983
      %v3066 = vpop.f32.mrf.mxu0
      %v3067 = vadd.f32 0.0, %v3066
      %v3068 = vpop.f32.mrf.mxu0
      %v3069 = vadd.f32 0.0, %v3068
      %3070 = vdwg.mxu0
      %v3071 = vadd.f32 %v2919, %v3047
      %v3072 = vadd.f32 %v2920, %v3049
      %v3073 = vadd.f32 %v2921, %v3052
      %v3074 = vadd.f32 %v2922, %v3054
      %v3075 = vadd.f32 %v2923, %v3057
      %v3076 = vadd.f32 %v2924, %v3059
      %v3077 = vadd.f32 %v2925, %v3062
      %v3078 = vadd.f32 %v2926, %v3064
      %v3079 = vadd.f32 %v2927, %v3067
      %v3080 = vadd.f32 %v2928, %v3069
      %s3081 = scalar_lea.vmem %s400, 1216
      %v3082 = vld [vmem:[%s3081] sm:$0xf]
      %v3083 = vld [vmem:[%s3081 + $0x4] sm:$0xf]
      %v3084 = vld [vmem:[%s3081 + $0x8] sm:$0xf]
      %v3085 = vld [vmem:[%s3081 + $0xc] sm:$0xf]
      %v3086 = vld [vmem:[%s3081 + $0x10] sm:$0xf]
      %v3087 = vld [vmem:[%s3081 + $0x14] sm:$0xf]
      %v3088 = vld [vmem:[%s3081 + $0x18] sm:$0xf]
      %v3089 = vld [vmem:[%s3081 + $0x1c] sm:$0xf]
      %v3090 = vld [vmem:[%s3081 + $0x20] sm:$0xf]
      %v3091 = vld [vmem:[%s3081 + $0x24] sm:$0xf]
      %v3092 = vld [vmem:[%s3081 + $0x28] sm:$0xf]
      %v3093 = vld [vmem:[%s3081 + $0x2c] sm:$0xf]
      %v3094 = vld [vmem:[%s3081 + $0x30] sm:$0xf]
      %v3095 = vld [vmem:[%s3081 + $0x34] sm:$0xf]
      %v3096 = vld [vmem:[%s3081 + $0x38] sm:$0xf]
      %v3097 = vld [vmem:[%s3081 + $0x3c] sm:$0xf]
      %v3099 = vunpack.c.l.b16 %v2939
      %v3100 = vpack.c.b16 %v3099, %v3099
      %v3102 = vshrl.u32 %v2979, 16
      %v3104 = vshll.u32 %v2979, 16
      %v3106 = vrot.slane %v3104, 1
      %v3107 = vor.u32 %v3102, %v3106
      %v3109 = vshll.u32 %v2980, 16
      %v3111 = vrot.slane %v3109, 1
      %v3112 = vsel %vm490, %v3107, %v3111
      %v3113 = vshrl.u32 %v2980, 16
      %v3115 = vor.u32 %v3113, %v3111
      %v3117 = vshll.u32 %v2981, 16
      %v3119 = vrot.slane %v3117, 1
      %v3120 = vsel %vm490, %v3115, %v3119
      %v3121 = vshrl.u32 %v2981, 16
      %v3123 = vor.u32 %v3121, %v3119
      %v3125 = vshll.u32 %v2982, 16
      %v3127 = vrot.slane %v3125, 1
      %v3128 = vsel %vm490, %v3123, %v3127
      %v3129 = vshrl.u32 %v2982, 16
      %v3131 = vor.u32 %v3129, %v3127
      %v3133 = vshll.u32 %v2983, 16
      %v3135 = vrot.slane %v3133, 1
      %v3136 = vsel %vm490, %v3131, %v3135
      %v3137 = vshrl.u32 %v2983, 16
      %v3139 = vor.u32 %v3137, %v3135
      %v3141 = vshll.u32 %v3100, 16
      %v3143 = vrot.slane %v3141, 1
      %v3144 = vsel %vm490, %v3139, %v3143
      %v3166 = vunpack.c.l.b16 %v3082
      %v3167 = vunpack.c.l.b16 %v3083
      %v3168 = vunpack.c.l.b16 %v3084
      %v3169 = vunpack.c.l.b16 %v3085
      %v3170 = vunpack.c.l.b16 %v3086
      %v3171 = vunpack.c.l.b16 %v3087
      %v3172 = vunpack.c.l.b16 %v3088
      %v3173 = vunpack.c.l.b16 %v3089
      %v3174 = vunpack.c.l.b16 %v3090
      %v3175 = vunpack.c.l.b16 %v3091
      %v3176 = vunpack.c.l.b16 %v3092
      %v3177 = vunpack.c.l.b16 %v3093
      %v3178 = vunpack.c.l.b16 %v3094
      %v3179 = vunpack.c.l.b16 %v3095
      %v3180 = vunpack.c.l.b16 %v3096
      %v3181 = vunpack.c.l.b16 %v3097
      %v3182 = vpack.c.b16 %v3167, %v3166
      %v3183 = vpack.c.b16 %v3169, %v3168
      %v3184 = vpack.c.b16 %v3171, %v3170
      %v3185 = vpack.c.b16 %v3173, %v3172
      %v3186 = vpack.c.b16 %v3175, %v3174
      %v3187 = vpack.c.b16 %v3177, %v3176
      %v3188 = vpack.c.b16 %v3179, %v3178
      %v3189 = vpack.c.b16 %v3181, %v3180
      %3198 = vmatpush.bf16.msra.mxu0 %v3189
      %3199 = vmatpush.bf16.msra.mxu0 %v3188
      %3200 = vmatpush.bf16.msra.mxu0 %v3187
      %3201 = vmatpush.bf16.msra.mxu0 %v3186
      %3202 = vmatpush.bf16.msra.mxu0 %v3185
      %3203 = vmatpush.bf16.msra.mxu0 %v3184
      %3204 = vmatpush.bf16.msra.mxu0 %v3183
      %3205 = vmatpush.bf16.msra.mxu0 %v3182
      %3206 = vmatmul.bf16.gmra.mxu0 %v3112
      %v3207 = vpop.f32.mrf.mxu0
      %v3208 = vadd.f32 0.0, %v3207
      %v3209 = vpop.f32.mrf.mxu0
      %v3210 = vadd.f32 0.0, %v3209
      %3211 = vmatmul.bf16.gmra.mxu0 %v3120
      %v3212 = vpop.f32.mrf.mxu0
      %v3213 = vadd.f32 0.0, %v3212
      %v3214 = vpop.f32.mrf.mxu0
      %v3215 = vadd.f32 0.0, %v3214
      %3216 = vmatmul.bf16.gmra.mxu0 %v3128
      %v3217 = vpop.f32.mrf.mxu0
      %v3218 = vadd.f32 0.0, %v3217
      %v3219 = vpop.f32.mrf.mxu0
      %v3220 = vadd.f32 0.0, %v3219
      %3221 = vmatmul.bf16.gmra.mxu0 %v3136
      %v3222 = vpop.f32.mrf.mxu0
      %v3223 = vadd.f32 0.0, %v3222
      %v3224 = vpop.f32.mrf.mxu0
      %v3225 = vadd.f32 0.0, %v3224
      %3226 = vmatmul.bf16.gmra.mxu0 %v3144
      %v3227 = vpop.f32.mrf.mxu0
      %v3228 = vadd.f32 0.0, %v3227
      %v3229 = vpop.f32.mrf.mxu0
      %v3230 = vadd.f32 0.0, %v3229
      %3231 = vdwg.mxu0
      %v3232 = vadd.f32 %v3071, %v3208
      %v3233 = vadd.f32 %v3072, %v3210
      %v3234 = vadd.f32 %v3073, %v3213
      %v3235 = vadd.f32 %v3074, %v3215
      %v3236 = vadd.f32 %v3075, %v3218
      %v3237 = vadd.f32 %v3076, %v3220
      %v3238 = vadd.f32 %v3077, %v3223
      %v3239 = vadd.f32 %v3078, %v3225
      %v3240 = vadd.f32 %v3079, %v3228
      %v3241 = vadd.f32 %v3080, %v3230
      %s3242 = scalar_lea.vmem %s400, 1280
      %v3243 = vld [vmem:[%s3242] sm:$0xf]
      %v3244 = vld [vmem:[%s3242 + $0x4] sm:$0xf]
      %v3245 = vld [vmem:[%s3242 + $0x8] sm:$0xf]
      %v3246 = vld [vmem:[%s3242 + $0xc] sm:$0xf]
      %v3247 = vld [vmem:[%s3242 + $0x10] sm:$0xf]
      %v3248 = vld [vmem:[%s3242 + $0x14] sm:$0xf]
      %v3249 = vld [vmem:[%s3242 + $0x18] sm:$0xf]
      %v3250 = vld [vmem:[%s3242 + $0x1c] sm:$0xf]
      %v3251 = vld [vmem:[%s3242 + $0x20] sm:$0xf]
      %v3252 = vld [vmem:[%s3242 + $0x24] sm:$0xf]
      %v3253 = vld [vmem:[%s3242 + $0x28] sm:$0xf]
      %v3254 = vld [vmem:[%s3242 + $0x2c] sm:$0xf]
      %v3255 = vld [vmem:[%s3242 + $0x30] sm:$0xf]
      %v3256 = vld [vmem:[%s3242 + $0x34] sm:$0xf]
      %v3257 = vld [vmem:[%s3242 + $0x38] sm:$0xf]
      %v3258 = vld [vmem:[%s3242 + $0x3c] sm:$0xf]
      %v3259 = vrot.slane %v2979, 1
      %v3260 = vrot.slane %v2980, 1
      %v3261 = vsel %vm726, %v3259, %v3260
      %v3262 = vrot.slane %v2981, 1
      %v3263 = vsel %vm726, %v3260, %v3262
      %v3264 = vrot.slane %v2982, 1
      %v3265 = vsel %vm726, %v3262, %v3264
      %v3266 = vrot.slane %v2983, 1
      %v3267 = vsel %vm726, %v3264, %v3266
      %v3268 = vrot.slane %v3100, 1
      %v3269 = vsel %vm726, %v3266, %v3268
      %v3291 = vunpack.c.l.b16 %v3243
      %v3292 = vunpack.c.l.b16 %v3244
      %v3293 = vunpack.c.l.b16 %v3245
      %v3294 = vunpack.c.l.b16 %v3246
      %v3295 = vunpack.c.l.b16 %v3247
      %v3296 = vunpack.c.l.b16 %v3248
      %v3297 = vunpack.c.l.b16 %v3249
      %v3298 = vunpack.c.l.b16 %v3250
      %v3299 = vunpack.c.l.b16 %v3251
      %v3300 = vunpack.c.l.b16 %v3252
      %v3301 = vunpack.c.l.b16 %v3253
      %v3302 = vunpack.c.l.b16 %v3254
      %v3303 = vunpack.c.l.b16 %v3255
      %v3304 = vunpack.c.l.b16 %v3256
      %v3305 = vunpack.c.l.b16 %v3257
      %v3306 = vunpack.c.l.b16 %v3258
      %v3307 = vpack.c.b16 %v3292, %v3291
      %v3308 = vpack.c.b16 %v3294, %v3293
      %v3309 = vpack.c.b16 %v3296, %v3295
      %v3310 = vpack.c.b16 %v3298, %v3297
      %v3311 = vpack.c.b16 %v3300, %v3299
      %v3312 = vpack.c.b16 %v3302, %v3301
      %v3313 = vpack.c.b16 %v3304, %v3303
      %v3314 = vpack.c.b16 %v3306, %v3305
      %3323 = vmatpush.bf16.msra.mxu0 %v3314
      %3324 = vmatpush.bf16.msra.mxu0 %v3313
      %3325 = vmatpush.bf16.msra.mxu0 %v3312
      %3326 = vmatpush.bf16.msra.mxu0 %v3311
      %3327 = vmatpush.bf16.msra.mxu0 %v3310
      %3328 = vmatpush.bf16.msra.mxu0 %v3309
      %3329 = vmatpush.bf16.msra.mxu0 %v3308
      %3330 = vmatpush.bf16.msra.mxu0 %v3307
      %3331 = vmatmul.bf16.gmra.mxu0 %v3261
      %v3332 = vpop.f32.mrf.mxu0
      %v3333 = vadd.f32 0.0, %v3332
      %v3334 = vpop.f32.mrf.mxu0
      %v3335 = vadd.f32 0.0, %v3334
      %3336 = vmatmul.bf16.gmra.mxu0 %v3263
      %v3337 = vpop.f32.mrf.mxu0
      %v3338 = vadd.f32 0.0, %v3337
      %v3339 = vpop.f32.mrf.mxu0
      %v3340 = vadd.f32 0.0, %v3339
      %3341 = vmatmul.bf16.gmra.mxu0 %v3265
      %v3342 = vpop.f32.mrf.mxu0
      %v3343 = vadd.f32 0.0, %v3342
      %v3344 = vpop.f32.mrf.mxu0
      %v3345 = vadd.f32 0.0, %v3344
      %3346 = vmatmul.bf16.gmra.mxu0 %v3267
      %v3347 = vpop.f32.mrf.mxu0
      %v3348 = vadd.f32 0.0, %v3347
      %v3349 = vpop.f32.mrf.mxu0
      %v3350 = vadd.f32 0.0, %v3349
      %3351 = vmatmul.bf16.gmra.mxu0 %v3269
      %v3352 = vpop.f32.mrf.mxu0
      %v3353 = vadd.f32 0.0, %v3352
      %v3354 = vpop.f32.mrf.mxu0
      %v3355 = vadd.f32 0.0, %v3354
      %3356 = vdwg.mxu0
      %v3357 = vadd.f32 %v3232, %v3333
      %v3358 = vadd.f32 %v3233, %v3335
      %v3359 = vadd.f32 %v3234, %v3338
      %v3360 = vadd.f32 %v3235, %v3340
      %v3361 = vadd.f32 %v3236, %v3343
      %v3362 = vadd.f32 %v3237, %v3345
      %v3363 = vadd.f32 %v3238, %v3348
      %v3364 = vadd.f32 %v3239, %v3350
      %v3365 = vadd.f32 %v3240, %v3353
      %v3366 = vadd.f32 %v3241, %v3355
      %s3367 = scalar_lea.vmem %s400, 1344
      %v3368 = vld [vmem:[%s3367] sm:$0xf]
      %v3369 = vld [vmem:[%s3367 + $0x4] sm:$0xf]
      %v3370 = vld [vmem:[%s3367 + $0x8] sm:$0xf]
      %v3371 = vld [vmem:[%s3367 + $0xc] sm:$0xf]
      %v3372 = vld [vmem:[%s3367 + $0x10] sm:$0xf]
      %v3373 = vld [vmem:[%s3367 + $0x14] sm:$0xf]
      %v3374 = vld [vmem:[%s3367 + $0x18] sm:$0xf]
      %v3375 = vld [vmem:[%s3367 + $0x1c] sm:$0xf]
      %v3376 = vld [vmem:[%s3367 + $0x20] sm:$0xf]
      %v3377 = vld [vmem:[%s3367 + $0x24] sm:$0xf]
      %v3378 = vld [vmem:[%s3367 + $0x28] sm:$0xf]
      %v3379 = vld [vmem:[%s3367 + $0x2c] sm:$0xf]
      %v3380 = vld [vmem:[%s3367 + $0x30] sm:$0xf]
      %v3381 = vld [vmem:[%s3367 + $0x34] sm:$0xf]
      %v3382 = vld [vmem:[%s3367 + $0x38] sm:$0xf]
      %v3383 = vld [vmem:[%s3367 + $0x3c] sm:$0xf]
      %v3385 = vunpack.c.l.b16 %v2940
      %v3386 = vpack.c.b16 %v2971, %v2970
      %v3387 = vpack.c.b16 %v2973, %v2972
      %v3388 = vpack.c.b16 %v2975, %v2974
      %v3389 = vpack.c.b16 %v2977, %v2976
      %v3390 = vpack.c.b16 %v3099, %v2978
      %v3391 = vpack.c.b16 %v3385, %v3385
      %v3392 = vrot.slane %v3386, 1
      %v3393 = vrot.slane %v3387, 1
      %v3394 = vsel %vm726, %v3392, %v3393
      %v3395 = vrot.slane %v3388, 1
      %v3396 = vsel %vm726, %v3393, %v3395
      %v3397 = vrot.slane %v3389, 1
      %v3398 = vsel %vm726, %v3395, %v3397
      %v3399 = vrot.slane %v3390, 1
      %v3400 = vsel %vm726, %v3397, %v3399
      %v3401 = vrot.slane %v3391, 1
      %v3402 = vsel %vm726, %v3399, %v3401
      %v3424 = vunpack.c.l.b16 %v3368
      %v3425 = vunpack.c.l.b16 %v3369
      %v3426 = vunpack.c.l.b16 %v3370
      %v3427 = vunpack.c.l.b16 %v3371
      %v3428 = vunpack.c.l.b16 %v3372
      %v3429 = vunpack.c.l.b16 %v3373
      %v3430 = vunpack.c.l.b16 %v3374
      %v3431 = vunpack.c.l.b16 %v3375
      %v3432 = vunpack.c.l.b16 %v3376
      %v3433 = vunpack.c.l.b16 %v3377
      %v3434 = vunpack.c.l.b16 %v3378
      %v3435 = vunpack.c.l.b16 %v3379
      %v3436 = vunpack.c.l.b16 %v3380
      %v3437 = vunpack.c.l.b16 %v3381
      %v3438 = vunpack.c.l.b16 %v3382
      %v3439 = vunpack.c.l.b16 %v3383
      %v3440 = vpack.c.b16 %v3425, %v3424
      %v3441 = vpack.c.b16 %v3427, %v3426
      %v3442 = vpack.c.b16 %v3429, %v3428
      %v3443 = vpack.c.b16 %v3431, %v3430
      %v3444 = vpack.c.b16 %v3433, %v3432
      %v3445 = vpack.c.b16 %v3435, %v3434
      %v3446 = vpack.c.b16 %v3437, %v3436
      %v3447 = vpack.c.b16 %v3439, %v3438
      %3456 = vmatpush.bf16.msra.mxu0 %v3447
      %3457 = vmatpush.bf16.msra.mxu0 %v3446
      %3458 = vmatpush.bf16.msra.mxu0 %v3445
      %3459 = vmatpush.bf16.msra.mxu0 %v3444
      %3460 = vmatpush.bf16.msra.mxu0 %v3443
      %3461 = vmatpush.bf16.msra.mxu0 %v3442
      %3462 = vmatpush.bf16.msra.mxu0 %v3441
      %3463 = vmatpush.bf16.msra.mxu0 %v3440
      %3464 = vmatmul.bf16.gmra.mxu0 %v3394
      %v3465 = vpop.f32.mrf.mxu0
      %v3466 = vadd.f32 0.0, %v3465
      %v3467 = vpop.f32.mrf.mxu0
      %v3468 = vadd.f32 0.0, %v3467
      %3469 = vmatmul.bf16.gmra.mxu0 %v3396
      %v3470 = vpop.f32.mrf.mxu0
      %v3471 = vadd.f32 0.0, %v3470
      %v3472 = vpop.f32.mrf.mxu0
      %v3473 = vadd.f32 0.0, %v3472
      %3474 = vmatmul.bf16.gmra.mxu0 %v3398
      %v3475 = vpop.f32.mrf.mxu0
      %v3476 = vadd.f32 0.0, %v3475
      %v3477 = vpop.f32.mrf.mxu0
      %v3478 = vadd.f32 0.0, %v3477
      %3479 = vmatmul.bf16.gmra.mxu0 %v3400
      %v3480 = vpop.f32.mrf.mxu0
      %v3481 = vadd.f32 0.0, %v3480
      %v3482 = vpop.f32.mrf.mxu0
      %v3483 = vadd.f32 0.0, %v3482
      %3484 = vmatmul.bf16.gmra.mxu0 %v3402
      %v3485 = vpop.f32.mrf.mxu0
      %v3486 = vadd.f32 0.0, %v3485
      %v3487 = vpop.f32.mrf.mxu0
      %v3488 = vadd.f32 0.0, %v3487
      %3489 = vdwg.mxu0
      %v3490 = vadd.f32 %v3357, %v3466
      %v3491 = vadd.f32 %v3358, %v3468
      %v3492 = vadd.f32 %v3359, %v3471
      %v3493 = vadd.f32 %v3360, %v3473
      %v3494 = vadd.f32 %v3361, %v3476
      %v3495 = vadd.f32 %v3362, %v3478
      %v3496 = vadd.f32 %v3363, %v3481
      %v3497 = vadd.f32 %v3364, %v3483
      %v3498 = vadd.f32 %v3365, %v3486
      %v3499 = vadd.f32 %v3366, %v3488
      %s3500 = scalar_lea.vmem %s400, 1408
      %v3501 = vld [vmem:[%s3500] sm:$0xf]
      %v3502 = vld [vmem:[%s3500 + $0x4] sm:$0xf]
      %v3503 = vld [vmem:[%s3500 + $0x8] sm:$0xf]
      %v3504 = vld [vmem:[%s3500 + $0xc] sm:$0xf]
      %v3505 = vld [vmem:[%s3500 + $0x10] sm:$0xf]
      %v3506 = vld [vmem:[%s3500 + $0x14] sm:$0xf]
      %v3507 = vld [vmem:[%s3500 + $0x18] sm:$0xf]
      %v3508 = vld [vmem:[%s3500 + $0x1c] sm:$0xf]
      %v3509 = vld [vmem:[%s3500 + $0x20] sm:$0xf]
      %v3510 = vld [vmem:[%s3500 + $0x24] sm:$0xf]
      %v3511 = vld [vmem:[%s3500 + $0x28] sm:$0xf]
      %v3512 = vld [vmem:[%s3500 + $0x2c] sm:$0xf]
      %v3513 = vld [vmem:[%s3500 + $0x30] sm:$0xf]
      %v3514 = vld [vmem:[%s3500 + $0x34] sm:$0xf]
      %v3515 = vld [vmem:[%s3500 + $0x38] sm:$0xf]
      %v3516 = vld [vmem:[%s3500 + $0x3c] sm:$0xf]
      %v3518 = vshrl.u32 %v3386, 16
      %v3520 = vrot.slane %v3518, 1
      %v3521 = vshll.u32 %v3386, 16
      %v3523 = vrot.slane %v3521, 2
      %v3524 = vor.u32 %v3520, %v3523
      %v3526 = vshrl.u32 %v3387, 16
      %v3528 = vrot.slane %v3526, 1
      %v3529 = vshll.u32 %v3387, 16
      %v3531 = vrot.slane %v3529, 2
      %v3532 = vor.u32 %v3528, %v3531
      %v3533 = vsel %vm985, %v3524, %v3532
      %v3535 = vshrl.u32 %v3388, 16
      %v3537 = vrot.slane %v3535, 1
      %v3538 = vshll.u32 %v3388, 16
      %v3540 = vrot.slane %v3538, 2
      %v3541 = vor.u32 %v3537, %v3540
      %v3542 = vsel %vm985, %v3532, %v3541
      %v3544 = vshrl.u32 %v3389, 16
      %v3546 = vrot.slane %v3544, 1
      %v3547 = vshll.u32 %v3389, 16
      %v3549 = vrot.slane %v3547, 2
      %v3550 = vor.u32 %v3546, %v3549
      %v3551 = vsel %vm985, %v3541, %v3550
      %v3553 = vshrl.u32 %v3390, 16
      %v3555 = vrot.slane %v3553, 1
      %v3556 = vshll.u32 %v3390, 16
      %v3558 = vrot.slane %v3556, 2
      %v3559 = vor.u32 %v3555, %v3558
      %v3560 = vsel %vm985, %v3550, %v3559
      %v3562 = vshrl.u32 %v3391, 16
      %v3564 = vrot.slane %v3562, 1
      %v3565 = vshll.u32 %v3391, 16
      %v3567 = vrot.slane %v3565, 2
      %v3568 = vor.u32 %v3564, %v3567
      %v3569 = vsel %vm985, %v3559, %v3568
      %v3591 = vunpack.c.l.b16 %v3501
      %v3592 = vunpack.c.l.b16 %v3502
      %v3593 = vunpack.c.l.b16 %v3503
      %v3594 = vunpack.c.l.b16 %v3504
      %v3595 = vunpack.c.l.b16 %v3505
      %v3596 = vunpack.c.l.b16 %v3506
      %v3597 = vunpack.c.l.b16 %v3507
      %v3598 = vunpack.c.l.b16 %v3508
      %v3599 = vunpack.c.l.b16 %v3509
      %v3600 = vunpack.c.l.b16 %v3510
      %v3601 = vunpack.c.l.b16 %v3511
      %v3602 = vunpack.c.l.b16 %v3512
      %v3603 = vunpack.c.l.b16 %v3513
      %v3604 = vunpack.c.l.b16 %v3514
      %v3605 = vunpack.c.l.b16 %v3515
      %v3606 = vunpack.c.l.b16 %v3516
      %v3607 = vpack.c.b16 %v3592, %v3591
      %v3608 = vpack.c.b16 %v3594, %v3593
      %v3609 = vpack.c.b16 %v3596, %v3595
      %v3610 = vpack.c.b16 %v3598, %v3597
      %v3611 = vpack.c.b16 %v3600, %v3599
      %v3612 = vpack.c.b16 %v3602, %v3601
      %v3613 = vpack.c.b16 %v3604, %v3603
      %v3614 = vpack.c.b16 %v3606, %v3605
      %3623 = vmatpush.bf16.msra.mxu0 %v3614
      %3624 = vmatpush.bf16.msra.mxu0 %v3613
      %3625 = vmatpush.bf16.msra.mxu0 %v3612
      %3626 = vmatpush.bf16.msra.mxu0 %v3611
      %3627 = vmatpush.bf16.msra.mxu0 %v3610
      %3628 = vmatpush.bf16.msra.mxu0 %v3609
      %3629 = vmatpush.bf16.msra.mxu0 %v3608
      %3630 = vmatpush.bf16.msra.mxu0 %v3607
      %3631 = vmatmul.bf16.gmra.mxu0 %v3533
      %v3632 = vpop.f32.mrf.mxu0
      %v3633 = vadd.f32 0.0, %v3632
      %v3634 = vpop.f32.mrf.mxu0
      %v3635 = vadd.f32 0.0, %v3634
      %3636 = vmatmul.bf16.gmra.mxu0 %v3542
      %v3637 = vpop.f32.mrf.mxu0
      %v3638 = vadd.f32 0.0, %v3637
      %v3639 = vpop.f32.mrf.mxu0
      %v3640 = vadd.f32 0.0, %v3639
      %3641 = vmatmul.bf16.gmra.mxu0 %v3551
      %v3642 = vpop.f32.mrf.mxu0
      %v3643 = vadd.f32 0.0, %v3642
      %v3644 = vpop.f32.mrf.mxu0
      %v3645 = vadd.f32 0.0, %v3644
      %3646 = vmatmul.bf16.gmra.mxu0 %v3560
      %v3647 = vpop.f32.mrf.mxu0
      %v3648 = vadd.f32 0.0, %v3647
      %v3649 = vpop.f32.mrf.mxu0
      %v3650 = vadd.f32 0.0, %v3649
      %3651 = vmatmul.bf16.gmra.mxu0 %v3569
      %v3652 = vpop.f32.mrf.mxu0
      %v3653 = vadd.f32 0.0, %v3652
      %v3654 = vpop.f32.mrf.mxu0
      %v3655 = vadd.f32 0.0, %v3654
      %3656 = vdwg.mxu0
      %v3657 = vadd.f32 %v3490, %v3633
      %v3658 = vadd.f32 %v3491, %v3635
      %v3659 = vadd.f32 %v3492, %v3638
      %v3660 = vadd.f32 %v3493, %v3640
      %v3661 = vadd.f32 %v3494, %v3643
      %v3662 = vadd.f32 %v3495, %v3645
      %v3663 = vadd.f32 %v3496, %v3648
      %v3664 = vadd.f32 %v3497, %v3650
      %v3665 = vadd.f32 %v3498, %v3653
      %v3666 = vadd.f32 %v3499, %v3655
      %s3667 = scalar_lea.vmem %s400, 1472
      %v3668 = vld [vmem:[%s3667] sm:$0xf]
      %v3669 = vld [vmem:[%s3667 + $0x4] sm:$0xf]
      %v3670 = vld [vmem:[%s3667 + $0x8] sm:$0xf]
      %v3671 = vld [vmem:[%s3667 + $0xc] sm:$0xf]
      %v3672 = vld [vmem:[%s3667 + $0x10] sm:$0xf]
      %v3673 = vld [vmem:[%s3667 + $0x14] sm:$0xf]
      %v3674 = vld [vmem:[%s3667 + $0x18] sm:$0xf]
      %v3675 = vld [vmem:[%s3667 + $0x1c] sm:$0xf]
      %v3676 = vld [vmem:[%s3667 + $0x20] sm:$0xf]
      %v3677 = vld [vmem:[%s3667 + $0x24] sm:$0xf]
      %v3678 = vld [vmem:[%s3667 + $0x28] sm:$0xf]
      %v3679 = vld [vmem:[%s3667 + $0x2c] sm:$0xf]
      %v3680 = vld [vmem:[%s3667 + $0x30] sm:$0xf]
      %v3681 = vld [vmem:[%s3667 + $0x34] sm:$0xf]
      %v3682 = vld [vmem:[%s3667 + $0x38] sm:$0xf]
      %v3683 = vld [vmem:[%s3667 + $0x3c] sm:$0xf]
      %v3684 = vrot.slane %v3386, 2
      %v3685 = vrot.slane %v3387, 2
      %v3686 = vsel %vm1153, %v3684, %v3685
      %v3687 = vrot.slane %v3388, 2
      %v3688 = vsel %vm1153, %v3685, %v3687
      %v3689 = vrot.slane %v3389, 2
      %v3690 = vsel %vm1153, %v3687, %v3689
      %v3691 = vrot.slane %v3390, 2
      %v3692 = vsel %vm1153, %v3689, %v3691
      %v3693 = vrot.slane %v3391, 2
      %v3694 = vsel %vm1153, %v3691, %v3693
      %v3716 = vunpack.c.l.b16 %v3668
      %v3717 = vunpack.c.l.b16 %v3669
      %v3718 = vunpack.c.l.b16 %v3670
      %v3719 = vunpack.c.l.b16 %v3671
      %v3720 = vunpack.c.l.b16 %v3672
      %v3721 = vunpack.c.l.b16 %v3673
      %v3722 = vunpack.c.l.b16 %v3674
      %v3723 = vunpack.c.l.b16 %v3675
      %v3724 = vunpack.c.l.b16 %v3676
      %v3725 = vunpack.c.l.b16 %v3677
      %v3726 = vunpack.c.l.b16 %v3678
      %v3727 = vunpack.c.l.b16 %v3679
      %v3728 = vunpack.c.l.b16 %v3680
      %v3729 = vunpack.c.l.b16 %v3681
      %v3730 = vunpack.c.l.b16 %v3682
      %v3731 = vunpack.c.l.b16 %v3683
      %v3732 = vpack.c.b16 %v3717, %v3716
      %v3733 = vpack.c.b16 %v3719, %v3718
      %v3734 = vpack.c.b16 %v3721, %v3720
      %v3735 = vpack.c.b16 %v3723, %v3722
      %v3736 = vpack.c.b16 %v3725, %v3724
      %v3737 = vpack.c.b16 %v3727, %v3726
      %v3738 = vpack.c.b16 %v3729, %v3728
      %v3739 = vpack.c.b16 %v3731, %v3730
      %3748 = vmatpush.bf16.msra.mxu0 %v3739
      %3749 = vmatpush.bf16.msra.mxu0 %v3738
      %3750 = vmatpush.bf16.msra.mxu0 %v3737
      %3751 = vmatpush.bf16.msra.mxu0 %v3736
      %3752 = vmatpush.bf16.msra.mxu0 %v3735
      %3753 = vmatpush.bf16.msra.mxu0 %v3734
      %3754 = vmatpush.bf16.msra.mxu0 %v3733
      %3755 = vmatpush.bf16.msra.mxu0 %v3732
      %3756 = vmatmul.bf16.gmra.mxu0 %v3686
      %v3757 = vpop.f32.mrf.mxu0
      %v3758 = vadd.f32 0.0, %v3757
      %v3759 = vpop.f32.mrf.mxu0
      %v3760 = vadd.f32 0.0, %v3759
      %3761 = vmatmul.bf16.gmra.mxu0 %v3688
      %v3762 = vpop.f32.mrf.mxu0
      %v3763 = vadd.f32 0.0, %v3762
      %v3764 = vpop.f32.mrf.mxu0
      %v3765 = vadd.f32 0.0, %v3764
      %3766 = vmatmul.bf16.gmra.mxu0 %v3690
      %v3767 = vpop.f32.mrf.mxu0
      %v3768 = vadd.f32 0.0, %v3767
      %v3769 = vpop.f32.mrf.mxu0
      %v3770 = vadd.f32 0.0, %v3769
      %3771 = vmatmul.bf16.gmra.mxu0 %v3692
      %v3772 = vpop.f32.mrf.mxu0
      %v3773 = vadd.f32 0.0, %v3772
      %v3774 = vpop.f32.mrf.mxu0
      %v3775 = vadd.f32 0.0, %v3774
      %3776 = vmatmul.bf16.gmra.mxu0 %v3694
      %v3777 = vpop.f32.mrf.mxu0
      %v3778 = vadd.f32 0.0, %v3777
      %v3779 = vpop.f32.mrf.mxu0
      %v3780 = vadd.f32 0.0, %v3779
      %3781 = vdwg.mxu0
      %v3782 = vadd.f32 %v3657, %v3758
      %v3783 = vadd.f32 %v3658, %v3760
      %v3784 = vadd.f32 %v3659, %v3763
      %v3785 = vadd.f32 %v3660, %v3765
      %v3786 = vadd.f32 %v3661, %v3768
      %v3787 = vadd.f32 %v3662, %v3770
      %v3788 = vadd.f32 %v3663, %v3773
      %v3789 = vadd.f32 %v3664, %v3775
      %v3790 = vadd.f32 %v3665, %v3778
      %v3791 = vadd.f32 %v3666, %v3780
      %s3792 = scalar_lea.vmem %s400, 1536
      %v3793 = vld [vmem:[%s3792] sm:$0xf]
      %v3794 = vld [vmem:[%s3792 + $0x4] sm:$0xf]
      %v3795 = vld [vmem:[%s3792 + $0x8] sm:$0xf]
      %v3796 = vld [vmem:[%s3792 + $0xc] sm:$0xf]
      %v3797 = vld [vmem:[%s3792 + $0x10] sm:$0xf]
      %v3798 = vld [vmem:[%s3792 + $0x14] sm:$0xf]
      %v3799 = vld [vmem:[%s3792 + $0x18] sm:$0xf]
      %v3800 = vld [vmem:[%s3792 + $0x1c] sm:$0xf]
      %v3801 = vld [vmem:[%s3792 + $0x20] sm:$0xf]
      %v3802 = vld [vmem:[%s3792 + $0x24] sm:$0xf]
      %v3803 = vld [vmem:[%s3792 + $0x28] sm:$0xf]
      %v3804 = vld [vmem:[%s3792 + $0x2c] sm:$0xf]
      %v3805 = vld [vmem:[%s3792 + $0x30] sm:$0xf]
      %v3806 = vld [vmem:[%s3792 + $0x34] sm:$0xf]
      %v3807 = vld [vmem:[%s3792 + $0x38] sm:$0xf]
      %v3808 = vld [vmem:[%s3792 + $0x3c] sm:$0xf]
      %v3810 = vunpack.c.l.b16 %v2941
      %v3811 = vpack.c.b16 %v3385, %v3099
      %v3812 = vpack.c.b16 %v3810, %v3810
      %v3813 = vrot.slane %v2980, 2
      %v3814 = vrot.slane %v2981, 2
      %v3815 = vsel %vm1153, %v3813, %v3814
      %v3816 = vrot.slane %v2982, 2
      %v3817 = vsel %vm1153, %v3814, %v3816
      %v3818 = vrot.slane %v2983, 2
      %v3819 = vsel %vm1153, %v3816, %v3818
      %v3820 = vrot.slane %v3811, 2
      %v3821 = vsel %vm1153, %v3818, %v3820
      %v3822 = vrot.slane %v3812, 2
      %v3823 = vsel %vm1153, %v3820, %v3822
      %v3845 = vunpack.c.l.b16 %v3793
      %v3846 = vunpack.c.l.b16 %v3794
      %v3847 = vunpack.c.l.b16 %v3795
      %v3848 = vunpack.c.l.b16 %v3796
      %v3849 = vunpack.c.l.b16 %v3797
      %v3850 = vunpack.c.l.b16 %v3798
      %v3851 = vunpack.c.l.b16 %v3799
      %v3852 = vunpack.c.l.b16 %v3800
      %v3853 = vunpack.c.l.b16 %v3801
      %v3854 = vunpack.c.l.b16 %v3802
      %v3855 = vunpack.c.l.b16 %v3803
      %v3856 = vunpack.c.l.b16 %v3804
      %v3857 = vunpack.c.l.b16 %v3805
      %v3858 = vunpack.c.l.b16 %v3806
      %v3859 = vunpack.c.l.b16 %v3807
      %v3860 = vunpack.c.l.b16 %v3808
      %v3861 = vpack.c.b16 %v3846, %v3845
      %v3862 = vpack.c.b16 %v3848, %v3847
      %v3863 = vpack.c.b16 %v3850, %v3849
      %v3864 = vpack.c.b16 %v3852, %v3851
      %v3865 = vpack.c.b16 %v3854, %v3853
      %v3866 = vpack.c.b16 %v3856, %v3855
      %v3867 = vpack.c.b16 %v3858, %v3857
      %v3868 = vpack.c.b16 %v3860, %v3859
      %3877 = vmatpush.bf16.msra.mxu0 %v3868
      %3878 = vmatpush.bf16.msra.mxu0 %v3867
      %3879 = vmatpush.bf16.msra.mxu0 %v3866
      %3880 = vmatpush.bf16.msra.mxu0 %v3865
      %3881 = vmatpush.bf16.msra.mxu0 %v3864
      %3882 = vmatpush.bf16.msra.mxu0 %v3863
      %3883 = vmatpush.bf16.msra.mxu0 %v3862
      %3884 = vmatpush.bf16.msra.mxu0 %v3861
      %3885 = vmatmul.bf16.gmra.mxu0 %v3815
      %v3886 = vpop.f32.mrf.mxu0
      %v3887 = vadd.f32 0.0, %v3886
      %v3888 = vpop.f32.mrf.mxu0
      %v3889 = vadd.f32 0.0, %v3888
      %3890 = vmatmul.bf16.gmra.mxu0 %v3817
      %v3891 = vpop.f32.mrf.mxu0
      %v3892 = vadd.f32 0.0, %v3891
      %v3893 = vpop.f32.mrf.mxu0
      %v3894 = vadd.f32 0.0, %v3893
      %3895 = vmatmul.bf16.gmra.mxu0 %v3819
      %v3896 = vpop.f32.mrf.mxu0
      %v3897 = vadd.f32 0.0, %v3896
      %v3898 = vpop.f32.mrf.mxu0
      %v3899 = vadd.f32 0.0, %v3898
      %3900 = vmatmul.bf16.gmra.mxu0 %v3821
      %v3901 = vpop.f32.mrf.mxu0
      %v3902 = vadd.f32 0.0, %v3901
      %v3903 = vpop.f32.mrf.mxu0
      %v3904 = vadd.f32 0.0, %v3903
      %3905 = vmatmul.bf16.gmra.mxu0 %v3823
      %v3906 = vpop.f32.mrf.mxu0
      %v3907 = vadd.f32 0.0, %v3906
      %v3908 = vpop.f32.mrf.mxu0
      %v3909 = vadd.f32 0.0, %v3908
      %3910 = vdwg.mxu0
      %v3911 = vadd.f32 %v3782, %v3887
      %v3912 = vadd.f32 %v3783, %v3889
      %v3913 = vadd.f32 %v3784, %v3892
      %v3914 = vadd.f32 %v3785, %v3894
      %v3915 = vadd.f32 %v3786, %v3897
      %v3916 = vadd.f32 %v3787, %v3899
      %v3917 = vadd.f32 %v3788, %v3902
      %v3918 = vadd.f32 %v3789, %v3904
      %v3919 = vadd.f32 %v3790, %v3907
      %v3920 = vadd.f32 %v3791, %v3909
      %s3921 = scalar_lea.vmem %s400, 1600
      %v3922 = vld [vmem:[%s3921] sm:$0xf]
      %v3923 = vld [vmem:[%s3921 + $0x4] sm:$0xf]
      %v3924 = vld [vmem:[%s3921 + $0x8] sm:$0xf]
      %v3925 = vld [vmem:[%s3921 + $0xc] sm:$0xf]
      %v3926 = vld [vmem:[%s3921 + $0x10] sm:$0xf]
      %v3927 = vld [vmem:[%s3921 + $0x14] sm:$0xf]
      %v3928 = vld [vmem:[%s3921 + $0x18] sm:$0xf]
      %v3929 = vld [vmem:[%s3921 + $0x1c] sm:$0xf]
      %v3930 = vld [vmem:[%s3921 + $0x20] sm:$0xf]
      %v3931 = vld [vmem:[%s3921 + $0x24] sm:$0xf]
      %v3932 = vld [vmem:[%s3921 + $0x28] sm:$0xf]
      %v3933 = vld [vmem:[%s3921 + $0x2c] sm:$0xf]
      %v3934 = vld [vmem:[%s3921 + $0x30] sm:$0xf]
      %v3935 = vld [vmem:[%s3921 + $0x34] sm:$0xf]
      %v3936 = vld [vmem:[%s3921 + $0x38] sm:$0xf]
      %v3937 = vld [vmem:[%s3921 + $0x3c] sm:$0xf]
      %v3938 = vrot.slane %v3113, 2
      %v3939 = vrot.slane %v3109, 3
      %v3940 = vor.u32 %v3938, %v3939
      %v3941 = vrot.slane %v3121, 2
      %v3942 = vrot.slane %v3117, 3
      %v3943 = vor.u32 %v3941, %v3942
      %v3944 = vsel %vm1408, %v3940, %v3943
      %v3945 = vrot.slane %v3129, 2
      %v3946 = vrot.slane %v3125, 3
      %v3947 = vor.u32 %v3945, %v3946
      %v3948 = vsel %vm1408, %v3943, %v3947
      %v3949 = vrot.slane %v3137, 2
      %v3950 = vrot.slane %v3133, 3
      %v3951 = vor.u32 %v3949, %v3950
      %v3952 = vsel %vm1408, %v3947, %v3951
      %v3954 = vshrl.u32 %v3811, 16
      %v3956 = vrot.slane %v3954, 2
      %v3957 = vshll.u32 %v3811, 16
      %v3959 = vrot.slane %v3957, 3
      %v3960 = vor.u32 %v3956, %v3959
      %v3961 = vsel %vm1408, %v3951, %v3960
      %v3963 = vshrl.u32 %v3812, 16
      %v3965 = vrot.slane %v3963, 2
      %v3966 = vshll.u32 %v3812, 16
      %v3968 = vrot.slane %v3966, 3
      %v3969 = vor.u32 %v3965, %v3968
      %v3970 = vsel %vm1408, %v3960, %v3969
      %v3992 = vunpack.c.l.b16 %v3922
      %v3993 = vunpack.c.l.b16 %v3923
      %v3994 = vunpack.c.l.b16 %v3924
      %v3995 = vunpack.c.l.b16 %v3925
      %v3996 = vunpack.c.l.b16 %v3926
      %v3997 = vunpack.c.l.b16 %v3927
      %v3998 = vunpack.c.l.b16 %v3928
      %v3999 = vunpack.c.l.b16 %v3929
      %v4000 = vunpack.c.l.b16 %v3930
      %v4001 = vunpack.c.l.b16 %v3931
      %v4002 = vunpack.c.l.b16 %v3932
      %v4003 = vunpack.c.l.b16 %v3933
      %v4004 = vunpack.c.l.b16 %v3934
      %v4005 = vunpack.c.l.b16 %v3935
      %v4006 = vunpack.c.l.b16 %v3936
      %v4007 = vunpack.c.l.b16 %v3937
      %v4008 = vpack.c.b16 %v3993, %v3992
      %v4009 = vpack.c.b16 %v3995, %v3994
      %v4010 = vpack.c.b16 %v3997, %v3996
      %v4011 = vpack.c.b16 %v3999, %v3998
      %v4012 = vpack.c.b16 %v4001, %v4000
      %v4013 = vpack.c.b16 %v4003, %v4002
      %v4014 = vpack.c.b16 %v4005, %v4004
      %v4015 = vpack.c.b16 %v4007, %v4006
      %4024 = vmatpush.bf16.msra.mxu0 %v4015
      %4025 = vmatpush.bf16.msra.mxu0 %v4014
      %4026 = vmatpush.bf16.msra.mxu0 %v4013
      %4027 = vmatpush.bf16.msra.mxu0 %v4012
      %4028 = vmatpush.bf16.msra.mxu0 %v4011
      %4029 = vmatpush.bf16.msra.mxu0 %v4010
      %4030 = vmatpush.bf16.msra.mxu0 %v4009
      %4031 = vmatpush.bf16.msra.mxu0 %v4008
      %4032 = vmatmul.bf16.gmra.mxu0 %v3944
      %v4033 = vpop.f32.mrf.mxu0
      %v4034 = vadd.f32 0.0, %v4033
      %v4035 = vpop.f32.mrf.mxu0
      %v4036 = vadd.f32 0.0, %v4035
      %4037 = vmatmul.bf16.gmra.mxu0 %v3948
      %v4038 = vpop.f32.mrf.mxu0
      %v4039 = vadd.f32 0.0, %v4038
      %v4040 = vpop.f32.mrf.mxu0
      %v4041 = vadd.f32 0.0, %v4040
      %4042 = vmatmul.bf16.gmra.mxu0 %v3952
      %v4043 = vpop.f32.mrf.mxu0
      %v4044 = vadd.f32 0.0, %v4043
      %v4045 = vpop.f32.mrf.mxu0
      %v4046 = vadd.f32 0.0, %v4045
      %4047 = vmatmul.bf16.gmra.mxu0 %v3961
      %v4048 = vpop.f32.mrf.mxu0
      %v4049 = vadd.f32 0.0, %v4048
      %v4050 = vpop.f32.mrf.mxu0
      %v4051 = vadd.f32 0.0, %v4050
      %4052 = vmatmul.bf16.gmra.mxu0 %v3970
      %v4053 = vpop.f32.mrf.mxu0
      %v4054 = vadd.f32 0.0, %v4053
      %v4055 = vpop.f32.mrf.mxu0
      %v4056 = vadd.f32 0.0, %v4055
      %4057 = vdwg.mxu0
      %v4058 = vadd.f32 %v3911, %v4034
      %v4059 = vadd.f32 %v3912, %v4036
      %v4060 = vadd.f32 %v3913, %v4039
      %v4061 = vadd.f32 %v3914, %v4041
      %v4062 = vadd.f32 %v3915, %v4044
      %v4063 = vadd.f32 %v3916, %v4046
      %v4064 = vadd.f32 %v3917, %v4049
      %v4065 = vadd.f32 %v3918, %v4051
      %v4066 = vadd.f32 %v3919, %v4054
      %v4067 = vadd.f32 %v3920, %v4056
      %s4068 = scalar_lea.vmem %s400, 1664
      %v4069 = vld [vmem:[%s4068] sm:$0xf]
      %v4070 = vld [vmem:[%s4068 + $0x4] sm:$0xf]
      %v4071 = vld [vmem:[%s4068 + $0x8] sm:$0xf]
      %v4072 = vld [vmem:[%s4068 + $0xc] sm:$0xf]
      %v4073 = vld [vmem:[%s4068 + $0x10] sm:$0xf]
      %v4074 = vld [vmem:[%s4068 + $0x14] sm:$0xf]
      %v4075 = vld [vmem:[%s4068 + $0x18] sm:$0xf]
      %v4076 = vld [vmem:[%s4068 + $0x1c] sm:$0xf]
      %v4077 = vld [vmem:[%s4068 + $0x20] sm:$0xf]
      %v4078 = vld [vmem:[%s4068 + $0x24] sm:$0xf]
      %v4079 = vld [vmem:[%s4068 + $0x28] sm:$0xf]
      %v4080 = vld [vmem:[%s4068 + $0x2c] sm:$0xf]
      %v4081 = vld [vmem:[%s4068 + $0x30] sm:$0xf]
      %v4082 = vld [vmem:[%s4068 + $0x34] sm:$0xf]
      %v4083 = vld [vmem:[%s4068 + $0x38] sm:$0xf]
      %v4084 = vld [vmem:[%s4068 + $0x3c] sm:$0xf]
      %v4085 = vrot.slane %v2980, 3
      %v4086 = vrot.slane %v2981, 3
      %v4087 = vsel %vm1556, %v4085, %v4086
      %v4088 = vrot.slane %v2982, 3
      %v4089 = vsel %vm1556, %v4086, %v4088
      %v4090 = vrot.slane %v2983, 3
      %v4091 = vsel %vm1556, %v4088, %v4090
      %v4092 = vrot.slane %v3811, 3
      %v4093 = vsel %vm1556, %v4090, %v4092
      %v4094 = vrot.slane %v3812, 3
      %v4095 = vsel %vm1556, %v4092, %v4094
      %v4117 = vunpack.c.l.b16 %v4069
      %v4118 = vunpack.c.l.b16 %v4070
      %v4119 = vunpack.c.l.b16 %v4071
      %v4120 = vunpack.c.l.b16 %v4072
      %v4121 = vunpack.c.l.b16 %v4073
      %v4122 = vunpack.c.l.b16 %v4074
      %v4123 = vunpack.c.l.b16 %v4075
      %v4124 = vunpack.c.l.b16 %v4076
      %v4125 = vunpack.c.l.b16 %v4077
      %v4126 = vunpack.c.l.b16 %v4078
      %v4127 = vunpack.c.l.b16 %v4079
      %v4128 = vunpack.c.l.b16 %v4080
      %v4129 = vunpack.c.l.b16 %v4081
      %v4130 = vunpack.c.l.b16 %v4082
      %v4131 = vunpack.c.l.b16 %v4083
      %v4132 = vunpack.c.l.b16 %v4084
      %v4133 = vpack.c.b16 %v4118, %v4117
      %v4134 = vpack.c.b16 %v4120, %v4119
      %v4135 = vpack.c.b16 %v4122, %v4121
      %v4136 = vpack.c.b16 %v4124, %v4123
      %v4137 = vpack.c.b16 %v4126, %v4125
      %v4138 = vpack.c.b16 %v4128, %v4127
      %v4139 = vpack.c.b16 %v4130, %v4129
      %v4140 = vpack.c.b16 %v4132, %v4131
      %4149 = vmatpush.bf16.msra.mxu0 %v4140
      %4150 = vmatpush.bf16.msra.mxu0 %v4139
      %4151 = vmatpush.bf16.msra.mxu0 %v4138
      %4152 = vmatpush.bf16.msra.mxu0 %v4137
      %4153 = vmatpush.bf16.msra.mxu0 %v4136
      %4154 = vmatpush.bf16.msra.mxu0 %v4135
      %4155 = vmatpush.bf16.msra.mxu0 %v4134
      %4156 = vmatpush.bf16.msra.mxu0 %v4133
      %4157 = vmatmul.bf16.gmra.mxu0 %v4087
      %v4158 = vpop.f32.mrf.mxu0
      %v4159 = vadd.f32 0.0, %v4158
      %v4160 = vpop.f32.mrf.mxu0
      %v4161 = vadd.f32 0.0, %v4160
      %4162 = vmatmul.bf16.gmra.mxu0 %v4089
      %v4163 = vpop.f32.mrf.mxu0
      %v4164 = vadd.f32 0.0, %v4163
      %v4165 = vpop.f32.mrf.mxu0
      %v4166 = vadd.f32 0.0, %v4165
      %4167 = vmatmul.bf16.gmra.mxu0 %v4091
      %v4168 = vpop.f32.mrf.mxu0
      %v4169 = vadd.f32 0.0, %v4168
      %v4170 = vpop.f32.mrf.mxu0
      %v4171 = vadd.f32 0.0, %v4170
      %4172 = vmatmul.bf16.gmra.mxu0 %v4093
      %v4173 = vpop.f32.mrf.mxu0
      %v4174 = vadd.f32 0.0, %v4173
      %v4175 = vpop.f32.mrf.mxu0
      %v4176 = vadd.f32 0.0, %v4175
      %4177 = vmatmul.bf16.gmra.mxu0 %v4095
      %v4178 = vpop.f32.mrf.mxu0
      %v4179 = vadd.f32 0.0, %v4178
      %v4180 = vpop.f32.mrf.mxu0
      %v4181 = vadd.f32 0.0, %v4180
      %4182 = vdwg.mxu0
      %v4183 = vadd.f32 %v4058, %v4159
      %v4184 = vadd.f32 %v4059, %v4161
      %v4185 = vadd.f32 %v4060, %v4164
      %v4186 = vadd.f32 %v4061, %v4166
      %v4187 = vadd.f32 %v4062, %v4169
      %v4188 = vadd.f32 %v4063, %v4171
      %v4189 = vadd.f32 %v4064, %v4174
      %v4190 = vadd.f32 %v4065, %v4176
      %v4191 = vadd.f32 %v4066, %v4179
      %v4192 = vadd.f32 %v4067, %v4181
      %v4193 = vld [vmem:[%s403] sm:$0x1]
      %v4195 = vperm.slane %v4193, 0
      %v4197 = vadd.f32 %v4183, %v4195
      %v4198 = vadd.f32 %v4184, %v4195
      %v4199 = vadd.f32 %v4185, %v4195
      %v4200 = vadd.f32 %v4186, %v4195
      %v4201 = vadd.f32 %v4187, %v4195
      %v4202 = vadd.f32 %v4188, %v4195
      %v4203 = vadd.f32 %v4189, %v4195
      %v4204 = vadd.f32 %v4190, %v4195
      %v4205 = vadd.f32 %v4191, %v4195
      %v4206 = vadd.f32 %v4192, %v4195
      %v4207 = vmax.f32 %v4197, 0.0
      %v4208 = vmax.f32 %v4198, 0.0
      %v4209 = vmax.f32 %v4199, 0.0
      %v4210 = vmax.f32 %v4200, 0.0
      %v4211 = vmax.f32 %v4201, 0.0
      %v4212 = vmax.f32 %v4202, 0.0
      %v4213 = vmax.f32 %v4203, 0.0
      %v4214 = vmax.f32 %v4204, 0.0
      %v4215 = vmax.f32 %v4205, 0.0
      %v4216 = vmax.f32 %v4206, 0.0
      %v4217 = vld [vmem:[%s5] sm:$0xff]
      %v4218 = vld [vmem:[%s5 + $0x8] sm:$0xff]
      %v4219 = vld [vmem:[%s5 + $0x10] sm:$0xff]
      %v4220 = vld [vmem:[%s5 + $0x18] sm:$0xff]
      %v4221 = vld [vmem:[%s5 + $0x20] sm:$0xff]
      %v4222 = vld [vmem:[%s5 + $0x28] sm:$0xff]
      %v4223 = vld [vmem:[%s5 + $0x30] sm:$0xff]
      %v4224 = vld [vmem:[%s5 + $0x38] sm:$0xff]
      %v4225 = vld [vmem:[%s5 + $0x40] sm:$0xff]
      %v4226 = vld [vmem:[%s5 + $0x48] sm:$0xff]
      %4228 = vset.pattern.permute.xlu0 0
      %4229 = vperm.xlu0 %4228, %v4217
      %v4230 = vpop.permute.xlu0 %4229
      %4233 = vset.pattern.permute.xlu0 0
      %4234 = vperm.xlu0 %4233, %v4218
      %v4235 = vpop.permute.xlu0 %4234
      %4238 = vset.pattern.permute.xlu0 0
      %4239 = vperm.xlu0 %4238, %v4219
      %v4240 = vpop.permute.xlu0 %4239
      %4243 = vset.pattern.permute.xlu0 0
      %4244 = vperm.xlu0 %4243, %v4220
      %v4245 = vpop.permute.xlu0 %4244
      %4248 = vset.pattern.permute.xlu0 0
      %4249 = vperm.xlu0 %4248, %v4221
      %v4250 = vpop.permute.xlu0 %4249
      %4253 = vset.pattern.permute.xlu0 0
      %4254 = vperm.xlu0 %4253, %v4222
      %v4255 = vpop.permute.xlu0 %4254
      %4258 = vset.pattern.permute.xlu0 0
      %4259 = vperm.xlu0 %4258, %v4223
      %v4260 = vpop.permute.xlu0 %4259
      %4263 = vset.pattern.permute.xlu0 0
      %4264 = vperm.xlu0 %4263, %v4224
      %v4265 = vpop.permute.xlu0 %4264
      %4268 = vset.pattern.permute.xlu0 0
      %4269 = vperm.xlu0 %4268, %v4225
      %v4270 = vpop.permute.xlu0 %4269
      %4273 = vset.pattern.permute.xlu0 0
      %4274 = vperm.xlu0 %4273, %v4226
      %v4275 = vpop.permute.xlu0 %4274
      %v4277 = vmul.f32 %v4207, %v4230
      %v4278 = vmul.f32 %v4208, %v4235
      %v4279 = vmul.f32 %v4209, %v4240
      %v4280 = vmul.f32 %v4210, %v4245
      %v4281 = vmul.f32 %v4211, %v4250
      %v4282 = vmul.f32 %v4212, %v4255
      %v4283 = vmul.f32 %v4213, %v4260
      %v4284 = vmul.f32 %v4214, %v4265
      %v4285 = vmul.f32 %v4215, %v4270
      %v4286 = vmul.f32 %v4216, %v4275
      %v4287 = vpack.c.bf16 %v4277, %v4277
      %v4288 = vpack.c.bf16 %v4278, %v4278
      %v4289 = vpack.c.bf16 %v4279, %v4279
      %v4290 = vpack.c.bf16 %v4280, %v4280
      %v4291 = vpack.c.bf16 %v4281, %v4281
      %v4292 = vpack.c.bf16 %v4282, %v4282
      %v4293 = vpack.c.bf16 %v4283, %v4283
      %v4294 = vpack.c.bf16 %v4284, %v4284
      %v4295 = vpack.c.bf16 %v4285, %v4285
      %v4296 = vpack.c.bf16 %v4286, %v4286
      %4297 = vst [vmem:[%s415] sm:$0xf] %v4287
      %4298 = vst [vmem:[%s415 + $0x4] sm:$0xf] %v4288
      %4299 = vst [vmem:[%s415 + $0x8] sm:$0xf] %v4289
      %4300 = vst [vmem:[%s415 + $0xc] sm:$0xf] %v4290
      %4301 = vst [vmem:[%s415 + $0x10] sm:$0xf] %v4291
      %4302 = vst [vmem:[%s415 + $0x14] sm:$0xf] %v4292
      %4303 = vst [vmem:[%s415 + $0x18] sm:$0xf] %v4293
      %4304 = vst [vmem:[%s415 + $0x1c] sm:$0xf] %v4294
      %4305 = vst [vmem:[%s415 + $0x20] sm:$0xf] %v4295
      %4306 = vst [vmem:[%s415 + $0x24] sm:$0xf] %v4296
      %p4307 = scmp.lt.s32.totalorder %s22, 1
      %s4308 = scalar_select %p4307, %s22, 1
      %p4309 = scmp.lt.s32.totalorder %s24, 7
      %s4310 = scalar_select %p4309, %s24, 7
      %p4311 = scmp.lt.s32.totalorder %s23, 0
      %s4312 = scalar_select %p4311, %s23, 0
      %s4313 = smul.addr %s4310, 10
      %s4314 = sadd.s32 %s4312, %s4313
      %s4315 = smul.addr %s4308, 80
      %s4316 = sadd.s32 %s4314, %s4315
      %s4317 = smul.addr %s4316, 4
      %s4318 = scalar_lea.vmem %s6, %s4317
      // Predicated region
      $region45: #{basic_block_forward.2} parent=43 // pred_check
        %p4319 = pneg %p219
      $region46: #{basic_block_forward.2} parent=43 // pred_check_branch
        %4321 = sbr.rel (%p4319) target = $region48
      $region47: #{basic_block_forward.2} parent=43 // pred_region
        _
      $region48: #{basic_block_forward.2} parent=43 // pred_fallthru
        _
    $region44: #{basic_block_forward.2} parent=5 // pred_fallthru
      _
    %p4322 = scmp.le.s32.totalorder 2, %s12
    // Predicated region
    $region49: #{basic_block_forward.2} parent=5 // pred_check
      %p4323 = pneg %p4322
    $region50: #{basic_block_forward.2} parent=5 // pred_check_branch
      %4325 = sbr.rel (%p4323) target = $region52
    $region51: #{basic_block_forward.2} parent=5 // pred_region
      %s4326 = ssub.s32 %s12, 2
      // Predicated region
      $region53: #{basic_block_forward.2} parent=51 // pred_check
        %p4327 = pneg %p225
      $region54: #{basic_block_forward.2} parent=51 // pred_check_branch
        %4329 = sbr.rel (%p4327) target = $region56
      $region55: #{basic_block_forward.2} parent=51 // pred_region
        %p4330 = scmp.lt.s32.totalorder %s25, 1
        %s4331 = scalar_select %p4330, %s25, 1
        %p4332 = scmp.lt.s32.totalorder %s27, 7
        %s4333 = scalar_select %p4332, %s27, 7
        %p4334 = scmp.lt.s32.totalorder %s26, 0
        %s4335 = scalar_select %p4334, %s26, 0
        %s4336 = smul.addr %s4333, 10
        %s4337 = sadd.s32 %s4335, %s4336
        %s4338 = smul.addr %s4331, 80
        %s4339 = sadd.s32 %s4337, %s4338
        %s4340 = smul.addr %s4339, 4
        %s4341 = scalar_lea.vmem %s6, %s4340
      $region56: #{basic_block_forward.2} parent=51 // pred_fallthru
        _
    $region52: #{basic_block_forward.2} parent=5 // pred_fallthru
      _
  $region6: #{basic_block_forward.2} parent=0 // loop_footer
    %s16 = sadd.s32 1, %s12
  $region7: #{basic_block_forward.2} parent=0 // loop_footer_branch
    %11 = sbr.rel target = $region3
  $region8: #{basic_block_forward.2} parent=0 // loop_exit
    _

// kernel: basic_block_forward.3
$region0: #{basic_block_forward.3}
  #allocation0 [shape = 'u32[]', space=smem, size = 0x4, offset = 0x4, fixed_abs, tag = 'smem constant byte address 0x4 - core index']
  #allocation1 [shape = 'u32[72,128]{1,0:T(1,128)}', space=vmem, size = 0x9000, scoped, tag = 'internal scratch']
  %s0 = inlined_call_operand.vmem [shape: bf16[2,10,104,128], index: 0, kind: input, shape index: {}, may-alias: {0,1,2}]
  %s1 = inlined_call_operand.vmem [shape: bf16[2,10,104,128], index: 1, kind: input, shape index: {}, may-alias: {0,1,2}]
  %s2 = inlined_call_operand.vmem [shape: bf16[2,10,104,128], index: 2, kind: input, shape index: {}, may-alias: {0,1,2}]
  %s3 = inlined_call_operand.vmem [shape: bf16[27,128,128], index: 3, kind: input, shape index: {}]
  %s4 = inlined_call_operand.vmem [shape: f32[1,128], index: 4, kind: input, shape index: {}]
  %s5 = inlined_call_operand.vmem [shape: f32[80,1], index: 5, kind: input, shape index: {}]
  %s6 = inlined_call_operand.vmem [shape: f32[2,8,80,128], index: 6, kind: input, shape index: {}]
  %s7 = inlined_call_operand.vmem [shape: f32[2,8,80,128], index: 7, kind: output, shape index: {}]
  %s8 = sld [smem:[#allocation0]]
  $region61: #{basic_block_forward.3} parent=0
    _
  %s10 = ssub.s32 1, %s8
  %s11 = scalar_select 0, %s10, %s8
  loop: start=0, step=1, limit=18
  $region2: #{basic_block_forward.3} parent=0 // loop_pre_header
    _
  $region3: #{basic_block_forward.3} parent=0 // loop_header
    %s13 = sphi 0, %s17
    %p14 = scmp.ge.s32.totalorder %s13, 18
    %s20 = sphi 0, %s39
    %s21 = sphi 0, %s35
    %s22 = sphi 0, %s31
    %s23 = sphi 0, %s20
    %s24 = sphi 0, %s21
    %s25 = sphi 0, %s22
    %s26 = sphi 0, %s23
    %s27 = sphi 0, %s24
    %s28 = sphi 0, %s25
    %s44 = sphi 0, %s46
    %s47 = sphi 0, %s44
    %s48 = sphi 0, %s47
    %s64 = sphi 0, %s48
    %s74 = sphi 0, %s76
    %s77 = sphi 0, %s74
    %s78 = sphi 0, %s77
    %s94 = sphi 0, %s78
    %s104 = sphi 0, %s106
    %s107 = sphi 0, %s104
    %s108 = sphi 0, %s107
    %s124 = sphi 0, %s108
    %s130 = sphi 0, %s132
    %s133 = sphi 0, %s130
    %s134 = sphi 0, %s133
    %s150 = sphi 0, %s134
    %s156 = sphi 0, %s158
    %s159 = sphi 0, %s156
    %s160 = sphi 0, %s159
    %s176 = sphi 0, %s160
    %s180 = sphi 0, %s180
    %s182 = sphi 0, %s180
    %s183 = sphi 0, %s182
    %s197 = sphi 0, %s183
    %s207 = sphi 0, %s209
    %s210 = sphi 0, %s207
    %s211 = sphi 0, %s210
    %s227 = sphi 0, %s211
    %s237 = sphi 0, %s239
    %s240 = sphi 0, %s237
    %s241 = sphi 0, %s240
    %s257 = sphi 0, %s241
  $region4: #{basic_block_forward.3} parent=0 // loop_header_branch
    %16 = sbr.rel (%p14) target = $region8
  $region5: #{basic_block_forward.3} parent=0 // loop_body
    %s18 = ssub.s32 %s13, 1
    %s19 = ssub.s32 %s13, 2
    %s29 = sadd.s32 1, %s22
    %p30 = scmp.ge.s32.totalorder %s29, 8
    %s31 = scalar_select %p30, 0, %s29
    %s32 = sadd.s32 1, %s21
    %s33 = scalar_select %p30, %s32, %s21
    %p34 = scmp.ge.s32.totalorder %s33, 1
    %s35 = scalar_select %p34, 0, %s33
    %s36 = sadd.s32 1, %s20
    %s37 = scalar_select %p34, %s36, %s20
    %p38 = scmp.ge.s32.totalorder %s37, 2
    %s39 = scalar_select %p38, 0, %s37
    %s40 = ssub.s32 %s20, %s39
    %s41 = ssub.s32 %s22, %s31
    %s42 = sor.u32 %s40, %s41
    %p43 = scmp.eq.s32.totalorder %s42, 0
    %s45 = sadd.s32 %s44, 1
    %s46 = scalar_select %p43, %s44, %s45
    %p49 = pneg %p43
    %p50 = scmp.eq.s32.totalorder %s13, 15
    %p51 = por %p49, %p50
    %p52 = scmp.ne.s32.totalorder %s44, %s47
    %p53 = scmp.eq.s32.totalorder %s13, 0
    %p54 = por %p52, %p53
    %p55 = scmp.ne.s32.totalorder %s44, %s47
    %p56 = scmp.eq.s32.totalorder %s18, 15
    %p57 = por %p55, %p56
    %p58 = scmp.ne.s32.totalorder %s47, %s48
    %p59 = scmp.eq.s32.totalorder %s18, 0
    %p60 = por %p58, %p59
    %p61 = scmp.ne.s32.totalorder %s47, %s48
    %p62 = scmp.eq.s32.totalorder %s19, 15
    %p63 = por %p61, %p62
    %p65 = scmp.ne.s32.totalorder %s48, %s64
    %p66 = scmp.eq.s32.totalorder %s19, 0
    %p67 = por %p65, %p66
    %s68 = sadd.s32 %s22, 1
    %s69 = sadd.s32 %s31, 1
    %s70 = ssub.s32 %s20, %s39
    %s71 = ssub.s32 %s68, %s69
    %s72 = sor.u32 %s70, %s71
    %p73 = scmp.eq.s32.totalorder %s72, 0
    %s75 = sadd.s32 %s74, 1
    %s76 = scalar_select %p73, %s74, %s75
    %p79 = pneg %p73
    %p80 = scmp.eq.s32.totalorder %s13, 15
    %p81 = por %p79, %p80
    %p82 = scmp.ne.s32.totalorder %s74, %s77
    %p83 = scmp.eq.s32.totalorder %s13, 0
    %p84 = por %p82, %p83
    %p85 = scmp.ne.s32.totalorder %s74, %s77
    %p86 = scmp.eq.s32.totalorder %s18, 15
    %p87 = por %p85, %p86
    %p88 = scmp.ne.s32.totalorder %s77, %s78
    %p89 = scmp.eq.s32.totalorder %s18, 0
    %p90 = por %p88, %p89
    %p91 = scmp.ne.s32.totalorder %s77, %s78
    %p92 = scmp.eq.s32.totalorder %s19, 15
    %p93 = por %p91, %p92
    %p95 = scmp.ne.s32.totalorder %s78, %s94
    %p96 = scmp.eq.s32.totalorder %s19, 0
    %p97 = por %p95, %p96
    %s98 = sadd.s32 %s22, 2
    %s99 = sadd.s32 %s31, 2
    %s100 = ssub.s32 %s20, %s39
    %s101 = ssub.s32 %s98, %s99
    %s102 = sor.u32 %s100, %s101
    %p103 = scmp.eq.s32.totalorder %s102, 0
    %s105 = sadd.s32 %s104, 1
    %s106 = scalar_select %p103, %s104, %s105
    %p109 = pneg %p103
    %p110 = scmp.eq.s32.totalorder %s13, 15
    %p111 = por %p109, %p110
    %p112 = scmp.ne.s32.totalorder %s104, %s107
    %p113 = scmp.eq.s32.totalorder %s13, 0
    %p114 = por %p112, %p113
    %p115 = scmp.ne.s32.totalorder %s104, %s107
    %p116 = scmp.eq.s32.totalorder %s18, 15
    %p117 = por %p115, %p116
    %p118 = scmp.ne.s32.totalorder %s107, %s108
    %p119 = scmp.eq.s32.totalorder %s18, 0
    %p120 = por %p118, %p119
    %p121 = scmp.ne.s32.totalorder %s107, %s108
    %p122 = scmp.eq.s32.totalorder %s19, 15
    %p123 = por %p121, %p122
    %p125 = scmp.ne.s32.totalorder %s108, %s124
    %p126 = scmp.eq.s32.totalorder %s19, 0
    %p127 = por %p125, %p126
    %s128 = ssub.s32 %s21, %s35
    %p129 = scmp.eq.s32.totalorder %s128, 0
    %s131 = sadd.s32 %s130, 1
    %s132 = scalar_select %p129, %s130, %s131
    %p135 = pneg %p129
    %p136 = scmp.eq.s32.totalorder %s13, 15
    %p137 = por %p135, %p136
    %p138 = scmp.ne.s32.totalorder %s130, %s133
    %p139 = scmp.eq.s32.totalorder %s13, 0
    %p140 = por %p138, %p139
    %p141 = scmp.ne.s32.totalorder %s130, %s133
    %p142 = scmp.eq.s32.totalorder %s18, 15
    %p143 = por %p141, %p142
    %p144 = scmp.ne.s32.totalorder %s133, %s134
    %p145 = scmp.eq.s32.totalorder %s18, 0
    %p146 = por %p144, %p145
    %p147 = scmp.ne.s32.totalorder %s133, %s134
    %p148 = scmp.eq.s32.totalorder %s19, 15
    %p149 = por %p147, %p148
    %p151 = scmp.ne.s32.totalorder %s134, %s150
    %p152 = scmp.eq.s32.totalorder %s19, 0
    %p153 = por %p151, %p152
    %s154 = ssub.s32 %s21, %s35
    %p155 = scmp.eq.s32.totalorder %s154, 0
    %s157 = sadd.s32 %s156, 1
    %s158 = scalar_select %p155, %s156, %s157
    %p161 = pneg %p155
    %p162 = scmp.eq.s32.totalorder %s13, 15
    %p163 = por %p161, %p162
    %p164 = scmp.ne.s32.totalorder %s156, %s159
    %p165 = scmp.eq.s32.totalorder %s13, 0
    %p166 = por %p164, %p165
    %p167 = scmp.ne.s32.totalorder %s156, %s159
    %p168 = scmp.eq.s32.totalorder %s18, 15
    %p169 = por %p167, %p168
    %p170 = scmp.ne.s32.totalorder %s159, %s160
    %p171 = scmp.eq.s32.totalorder %s18, 0
    %p172 = por %p170, %p171
    %p173 = scmp.ne.s32.totalorder %s159, %s160
    %p174 = scmp.eq.s32.totalorder %s19, 15
    %p175 = por %p173, %p174
    %p177 = scmp.ne.s32.totalorder %s160, %s176
    %p178 = scmp.eq.s32.totalorder %s19, 0
    %p179 = por %p177, %p178
    %s181 = sadd.s32 %s180, 1
    %p184 = scmp.eq.s32.totalorder %s13, 15
    %p185 = scmp.ne.s32.totalorder %s180, %s182
    %p186 = scmp.eq.s32.totalorder %s13, 0
    %p187 = por %p185, %p186
    %p188 = scmp.ne.s32.totalorder %s180, %s182
    %p189 = scmp.eq.s32.totalorder %s18, 15
    %p190 = por %p188, %p189
    %p191 = scmp.ne.s32.totalorder %s182, %s183
    %p192 = scmp.eq.s32.totalorder %s18, 0
    %p193 = por %p191, %p192
    %p194 = scmp.ne.s32.totalorder %s182, %s183
    %p195 = scmp.eq.s32.totalorder %s19, 15
    %p196 = por %p194, %p195
    %p198 = scmp.ne.s32.totalorder %s183, %s197
    %p199 = scmp.eq.s32.totalorder %s19, 0
    %p200 = por %p198, %p199
    %s201 = ssub.s32 %s20, %s39
    %s202 = ssub.s32 %s22, %s31
    %s203 = sor.u32 %s201, %s202
    %s204 = ssub.s32 %s21, %s35
    %s205 = sor.u32 %s203, %s204
    %p206 = scmp.eq.s32.totalorder %s205, 0
    %s208 = sadd.s32 %s207, 1
    %s209 = scalar_select %p206, %s207, %s208
    %p212 = pneg %p206
    %p213 = scmp.eq.s32.totalorder %s13, 15
    %p214 = por %p212, %p213
    %p215 = scmp.ne.s32.totalorder %s207, %s210
    %p216 = scmp.eq.s32.totalorder %s13, 0
    %p217 = por %p215, %p216
    %p218 = scmp.ne.s32.totalorder %s207, %s210
    %p219 = scmp.eq.s32.totalorder %s18, 15
    %p220 = por %p218, %p219
    %p221 = scmp.ne.s32.totalorder %s210, %s211
    %p222 = scmp.eq.s32.totalorder %s18, 0
    %p223 = por %p221, %p222
    %p224 = scmp.ne.s32.totalorder %s210, %s211
    %p225 = scmp.eq.s32.totalorder %s19, 15
    %p226 = por %p224, %p225
    %p228 = scmp.ne.s32.totalorder %s211, %s227
    %p229 = scmp.eq.s32.totalorder %s19, 0
    %p230 = por %p228, %p229
    %s231 = ssub.s32 %s20, %s39
    %s232 = ssub.s32 %s22, %s31
    %s233 = sor.u32 %s231, %s232
    %s234 = ssub.s32 %s21, %s35
    %s235 = sor.u32 %s233, %s234
    %p236 = scmp.eq.s32.totalorder %s235, 0
    %s238 = sadd.s32 %s237, 1
    %s239 = scalar_select %p236, %s237, %s238
    %p242 = pneg %p236
    %p243 = scmp.eq.s32.totalorder %s13, 15
    %p244 = por %p242, %p243
    %p245 = scmp.ne.s32.totalorder %s237, %s240
    %p246 = scmp.eq.s32.totalorder %s13, 0
    %p247 = por %p245, %p246
    %p248 = scmp.ne.s32.totalorder %s237, %s240
    %p249 = scmp.eq.s32.totalorder %s18, 15
    %p250 = por %p248, %p249
    %p251 = scmp.ne.s32.totalorder %s240, %s241
    %p252 = scmp.eq.s32.totalorder %s18, 0
    %p253 = por %p251, %p252
    %p254 = scmp.ne.s32.totalorder %s240, %s241
    %p255 = scmp.eq.s32.totalorder %s19, 15
    %p256 = por %p254, %p255
    %p258 = scmp.ne.s32.totalorder %s241, %s257
    %p259 = scmp.eq.s32.totalorder %s19, 0
    %p260 = por %p258, %p259
    %p261 = scmp.le.s32.totalorder 1, %s13
    %p262 = scmp.lt.s32.totalorder %s13, 17
    %p263 = pnand %p261, %p262
    %p264 = pneg %p263
    // Predicated region
    $region9: #{basic_block_forward.3} parent=5 // pred_check
      _
    $region10: #{basic_block_forward.3} parent=5 // pred_check_branch
      %266 = sbr.rel (%p263) target = $region12
    $region11: #{basic_block_forward.3} parent=5 // pred_region
      %s267 = ssub.s32 %s13, 1
      // Predicated region
      $region13: #{basic_block_forward.3} parent=11 // pred_check
        %p268 = pneg %p146
      $region14: #{basic_block_forward.3} parent=11 // pred_check_branch
        %270 = sbr.rel (%p268) target = $region16
      $region15: #{basic_block_forward.3} parent=11 // pred_region
        %p271 = scmp.lt.s32.totalorder %s24, 0
        %s272 = scalar_select %p271, %s24, 0
        %s273 = smul.addr %s272, 4
        %s274 = scalar_lea.vmem %s3, %s273
      $region16: #{basic_block_forward.3} parent=11 // pred_fallthru
        _
      // Predicated region
      $region17: #{basic_block_forward.3} parent=11 // pred_check
        %p275 = pneg %p172
      $region18: #{basic_block_forward.3} parent=11 // pred_check_branch
        %277 = sbr.rel (%p275) target = $region20
      $region19: #{basic_block_forward.3} parent=11 // pred_region
        %p278 = scmp.lt.s32.totalorder %s24, 0
        %s279 = scalar_select %p278, %s24, 0
        %s280 = scalar_lea.vmem %s4, %s279
      $region20: #{basic_block_forward.3} parent=11 // pred_fallthru
        _
      // Predicated region
      $region21: #{basic_block_forward.3} parent=11 // pred_check
        %p281 = pneg %p193
      $region22: #{basic_block_forward.3} parent=11 // pred_check_branch
        %283 = sbr.rel (%p281) target = $region24
      $region23: #{basic_block_forward.3} parent=11 // pred_region
        _
      $region24: #{basic_block_forward.3} parent=11 // pred_fallthru
        _
    $region12: #{basic_block_forward.3} parent=5 // pred_fallthru
      _
    %p284 = scmp.lt.s32.totalorder %s13, 16
    // Predicated region
    $region25: #{basic_block_forward.3} parent=5 // pred_check
      %p285 = pneg %p284
    $region26: #{basic_block_forward.3} parent=5 // pred_check_branch
      %287 = sbr.rel (%p285) target = $region28
    $region27: #{basic_block_forward.3} parent=5 // pred_region
      // Predicated region
      $region29: #{basic_block_forward.3} parent=27 // pred_check
        %p288 = pneg %p54
      $region30: #{basic_block_forward.3} parent=27 // pred_check_branch
        %290 = sbr.rel (%p288) target = $region32
      $region31: #{basic_block_forward.3} parent=27 // pred_region
        %p291 = scmp.lt.s32.totalorder %s20, 1
        %s292 = scalar_select %p291, %s20, 1
        %p293 = scmp.lt.s32.totalorder %s22, 9
        %s294 = scalar_select %p293, %s22, 9
        %s295 = smul.addr %s294, 13
        %s296 = smul.addr %s292, 130
        %s297 = sadd.s32 %s295, %s296
        %s298 = smul.addr %s297, 4
        %s299 = scalar_lea.vmem %s0, %s298
      $region32: #{basic_block_forward.3} parent=27 // pred_fallthru
        _
      // Predicated region
      $region33: #{basic_block_forward.3} parent=27 // pred_check
        %p300 = pneg %p84
      $region34: #{basic_block_forward.3} parent=27 // pred_check_branch
        %302 = sbr.rel (%p300) target = $region36
      $region35: #{basic_block_forward.3} parent=27 // pred_region
        %s303 = sadd.s32 %s22, 1
        %p304 = scmp.lt.s32.totalorder %s20, 1
        %s305 = scalar_select %p304, %s20, 1
        %p306 = scmp.lt.s32.totalorder %s303, 9
        %s307 = scalar_select %p306, %s303, 9
        %s308 = smul.addr %s307, 13
        %s309 = smul.addr %s305, 130
        %s310 = sadd.s32 %s308, %s309
        %s311 = smul.addr %s310, 4
        %s312 = scalar_lea.vmem %s1, %s311
        %s313 = sadd.s32 %s22, 1
      $region36: #{basic_block_forward.3} parent=27 // pred_fallthru
        _
      // Predicated region
      $region37: #{basic_block_forward.3} parent=27 // pred_check
        %p314 = pneg %p114
      $region38: #{basic_block_forward.3} parent=27 // pred_check_branch
        %316 = sbr.rel (%p314) target = $region40
      $region39: #{basic_block_forward.3} parent=27 // pred_region
        %s317 = sadd.s32 %s22, 2
        %p318 = scmp.lt.s32.totalorder %s20, 1
        %s319 = scalar_select %p318, %s20, 1
        %p320 = scmp.lt.s32.totalorder %s317, 9
        %s321 = scalar_select %p320, %s317, 9
        %s322 = smul.addr %s321, 13
        %s323 = smul.addr %s319, 130
        %s324 = sadd.s32 %s322, %s323
        %s325 = smul.addr %s324, 4
        %s326 = scalar_lea.vmem %s2, %s325
        %s327 = sadd.s32 %s22, 2
      $region40: #{basic_block_forward.3} parent=27 // pred_fallthru
        _
      // Predicated region
      $region41: #{basic_block_forward.3} parent=27 // pred_check
        %p328 = pneg %p217
      $region42: #{basic_block_forward.3} parent=27 // pred_check_branch
        %330 = sbr.rel (%p328) target = $region44
      $region43: #{basic_block_forward.3} parent=27 // pred_region
        %p331 = scmp.lt.s32.totalorder %s20, 1
        %s332 = scalar_select %p331, %s20, 1
        %p333 = scmp.lt.s32.totalorder %s22, 7
        %s334 = scalar_select %p333, %s22, 7
        %p335 = scmp.lt.s32.totalorder %s21, 0
        %s336 = scalar_select %p335, %s21, 0
        %s337 = smul.addr %s334, 10
        %s338 = sadd.s32 %s336, %s337
        %s339 = smul.addr %s332, 80
        %s340 = sadd.s32 %s338, %s339
        %s341 = smul.addr %s340, 8
        %s342 = scalar_lea.vmem %s6, %s341
      $region44: #{basic_block_forward.3} parent=27 // pred_fallthru
        _
    $region28: #{basic_block_forward.3} parent=5 // pred_fallthru
      _
    %p343 = scmp.le.s32.totalorder 1, %s13
    %p344 = scmp.lt.s32.totalorder %s13, 17
    %p345 = pnand %p343, %p344
    %p346 = pneg %p345
    // Predicated region
    $region45: #{basic_block_forward.3} parent=5 // pred_check
      _
    $region46: #{basic_block_forward.3} parent=5 // pred_check_branch
      %348 = sbr.rel (%p345) target = $region48
    $region47: #{basic_block_forward.3} parent=5 // pred_region
      %s349 = ssub.s32 %s13, 1
      %p350 = scmp.lt.s32.totalorder %s23, 1
      %s351 = scalar_select %p350, %s23, 1
      %p352 = scmp.lt.s32.totalorder %s25, 9
      %s353 = scalar_select %p352, %s25, 9
      %s354 = smul.addr %s353, 13
      %s355 = smul.addr %s351, 130
      %s356 = sadd.s32 %s354, %s355
      %s357 = smul.addr %s356, 4
      %s358 = scalar_lea.vmem %s0, %s357
      %p359 = pneg %p60
      %p360 = pneg %p57
      %s361 = sadd.s32 %s25, 1
      %p362 = scmp.lt.s32.totalorder %s23, 1
      %s363 = scalar_select %p362, %s23, 1
      %p364 = scmp.lt.s32.totalorder %s361, 9
      %s365 = scalar_select %p364, %s361, 9
      %s366 = smul.addr %s365, 13
      %s367 = smul.addr %s363, 130
      %s368 = sadd.s32 %s366, %s367
      %s369 = smul.addr %s368, 4
      %s370 = scalar_lea.vmem %s1, %s369
      %p371 = pneg %p90
      %p372 = pneg %p87
      %s373 = sadd.s32 %s25, 2
      %p374 = scmp.lt.s32.totalorder %s23, 1
      %s375 = scalar_select %p374, %s23, 1
      %p376 = scmp.lt.s32.totalorder %s373, 9
      %s377 = scalar_select %p376, %s373, 9
      %s378 = smul.addr %s377, 13
      %s379 = smul.addr %s375, 130
      %s380 = sadd.s32 %s378, %s379
      %s381 = smul.addr %s380, 4
      %s382 = scalar_lea.vmem %s2, %s381
      %p383 = pneg %p120
      %p384 = pneg %p117
      %p385 = scmp.lt.s32.totalorder %s24, 0
      %s386 = scalar_select %p385, %s24, 0
      %s387 = smul.addr %s386, 4
      %s388 = scalar_lea.vmem %s3, %s387
      %p389 = pneg %p146
      %p390 = pneg %p143
      %p391 = scmp.lt.s32.totalorder %s24, 0
      %s392 = scalar_select %p391, %s24, 0
      %s393 = scalar_lea.vmem %s4, %s392
      %p394 = pneg %p172
      %p395 = pneg %p169
      %p396 = pneg %p193
      %p397 = pneg %p190
      %p398 = scmp.lt.s32.totalorder %s23, 1
      %s399 = scalar_select %p398, %s23, 1
      %p400 = scmp.lt.s32.totalorder %s25, 7
      %s401 = scalar_select %p400, %s25, 7
      %p402 = scmp.lt.s32.totalorder %s24, 0
      %s403 = scalar_select %p402, %s24, 0
      %s404 = smul.addr %s401, 10
      %s405 = sadd.s32 %s403, %s404
      %s406 = smul.addr %s399, 80
      %s407 = sadd.s32 %s405, %s406
      %s408 = smul.addr %s407, 8
      %s409 = scalar_lea.vmem %s6, %s408
      %p410 = pneg %p223
      %p411 = pneg %p220
      %p412 = pneg %p253
      %p413 = pneg %p250
      %p414 = scmp.lt.s32.totalorder %s23, 1
      %s415 = scalar_select %p414, %s23, 1
      %p416 = scmp.lt.s32.totalorder %s25, 7
      %s417 = scalar_select %p416, %s25, 7
      %p418 = scmp.lt.s32.totalorder %s24, 0
      %s419 = scalar_select %p418, %s24, 0
      %s420 = smul.addr %s417, 10
      %s421 = sadd.s32 %s419, %s420
      %s422 = smul.addr %s415, 80
      %s423 = sadd.s32 %s421, %s422
      %s424 = smul.addr %s423, 8
      %s425 = scalar_lea.vmem %s7, %s424
      %p426 = scmp.lt.s32.totalorder %s23, 1
      %s427 = scalar_select %p426, %s23, 1
      %p428 = scmp.lt.s32.totalorder %s25, 9
      %s429 = scalar_select %p428, %s25, 9
      %s430 = smul.addr %s429, 13
      %s431 = smul.addr %s427, 130
      %s432 = sadd.s32 %s430, %s431
      %s433 = smul.addr %s432, 4
      %s434 = scalar_lea.vmem %s0, %s433
      %s435 = sadd.s32 %s25, 1
      %p436 = scmp.lt.s32.totalorder %s23, 1
      %s437 = scalar_select %p436, %s23, 1
      %p438 = scmp.lt.s32.totalorder %s435, 9
      %s439 = scalar_select %p438, %s435, 9
      %s440 = smul.addr %s439, 13
      %s441 = smul.addr %s437, 130
      %s442 = sadd.s32 %s440, %s441
      %s443 = smul.addr %s442, 4
      %s444 = scalar_lea.vmem %s1, %s443
      %s445 = sadd.s32 %s25, 1
      %s446 = sadd.s32 %s25, 2
      %p447 = scmp.lt.s32.totalorder %s23, 1
      %s448 = scalar_select %p447, %s23, 1
      %p449 = scmp.lt.s32.totalorder %s446, 9
      %s450 = scalar_select %p449, %s446, 9
      %s451 = smul.addr %s450, 13
      %s452 = smul.addr %s448, 130
      %s453 = sadd.s32 %s451, %s452
      %s454 = smul.addr %s453, 4
      %s455 = scalar_lea.vmem %s2, %s454
      %s456 = sadd.s32 %s25, 2
      %p457 = scmp.lt.s32.totalorder %s24, 0
      %s458 = scalar_select %p457, %s24, 0
      %s459 = smul.addr %s458, 4
      %s460 = scalar_lea.vmem %s3, %s459
      %p461 = scmp.lt.s32.totalorder %s24, 0
      %s462 = scalar_select %p461, %s24, 0
      %s463 = scalar_lea.vmem %s4, %s462
      %p464 = scmp.lt.s32.totalorder %s23, 1
      %s465 = scalar_select %p464, %s23, 1
      %p466 = scmp.lt.s32.totalorder %s25, 7
      %s467 = scalar_select %p466, %s25, 7
      %p468 = scmp.lt.s32.totalorder %s24, 0
      %s469 = scalar_select %p468, %s24, 0
      %s470 = smul.addr %s467, 10
      %s471 = sadd.s32 %s469, %s470
      %s472 = smul.addr %s465, 80
      %s473 = sadd.s32 %s471, %s472
      %s474 = smul.addr %s473, 8
      %s475 = scalar_lea.vmem %s6, %s474
      %p476 = scmp.lt.s32.totalorder %s23, 1
      %s477 = scalar_select %p476, %s23, 1
      %p478 = scmp.lt.s32.totalorder %s25, 7
      %s479 = scalar_select %p478, %s25, 7
      %p480 = scmp.lt.s32.totalorder %s24, 0
      %s481 = scalar_select %p480, %s24, 0
      %s482 = smul.addr %s479, 10
      %s483 = sadd.s32 %s481, %s482
      %s484 = smul.addr %s477, 80
      %s485 = sadd.s32 %s483, %s484
      %s486 = smul.addr %s485, 8
      %s487 = scalar_lea.vmem %s7, %s486
      %v488 = vld [vmem:[%s434] sm:$0xf]
      %v489 = vld [vmem:[%s434 + $0x4] sm:$0xf]
      %v490 = vld [vmem:[%s434 + $0x8] sm:$0xf]
      %v491 = vld [vmem:[%s434 + $0xc] sm:$0xf]
      %v492 = vld [vmem:[%s434 + $0x10] sm:$0xf]
      %v493 = vld [vmem:[%s434 + $0x14] sm:$0xf]
      %v494 = vld [vmem:[%s434 + $0x18] sm:$0xf]
      %v495 = vld [vmem:[%s434 + $0x1c] sm:$0xf]
      %v496 = vld [vmem:[%s434 + $0x20] sm:$0xf]
      %v497 = vld [vmem:[%s434 + $0x24] sm:$0xf]
      %v498 = vld [vmem:[%s434 + $0x28] sm:$0xf]
      %v499 = vld [vmem:[%s434 + $0x2c] sm:$0xf]
      %v500 = vld [vmem:[%s434 + $0x30] sm:$0xf]
      %v501 = vld [vmem:[%s460] sm:$0xf]
      %v502 = vld [vmem:[%s460 + $0x4] sm:$0xf]
      %v503 = vld [vmem:[%s460 + $0x8] sm:$0xf]
      %v504 = vld [vmem:[%s460 + $0xc] sm:$0xf]
      %v505 = vld [vmem:[%s460 + $0x10] sm:$0xf]
      %v506 = vld [vmem:[%s460 + $0x14] sm:$0xf]
      %v507 = vld [vmem:[%s460 + $0x18] sm:$0xf]
      %v508 = vld [vmem:[%s460 + $0x1c] sm:$0xf]
      %v509 = vld [vmem:[%s460 + $0x20] sm:$0xf]
      %v510 = vld [vmem:[%s460 + $0x24] sm:$0xf]
      %v511 = vld [vmem:[%s460 + $0x28] sm:$0xf]
      %v512 = vld [vmem:[%s460 + $0x2c] sm:$0xf]
      %v513 = vld [vmem:[%s460 + $0x30] sm:$0xf]
      %v514 = vld [vmem:[%s460 + $0x34] sm:$0xf]
      %v515 = vld [vmem:[%s460 + $0x38] sm:$0xf]
      %v516 = vld [vmem:[%s460 + $0x3c] sm:$0xf]
      %s517 = scalar_lea.vmem %s460, 64
      %v518 = vld [vmem:[%s517] sm:$0xf]
      %v519 = vld [vmem:[%s517 + $0x4] sm:$0xf]
      %v520 = vld [vmem:[%s517 + $0x8] sm:$0xf]
      %v521 = vld [vmem:[%s517 + $0xc] sm:$0xf]
      %v522 = vld [vmem:[%s517 + $0x10] sm:$0xf]
      %v523 = vld [vmem:[%s517 + $0x14] sm:$0xf]
      %v524 = vld [vmem:[%s517 + $0x18] sm:$0xf]
      %v525 = vld [vmem:[%s517 + $0x1c] sm:$0xf]
      %v526 = vld [vmem:[%s517 + $0x20] sm:$0xf]
      %v527 = vld [vmem:[%s517 + $0x24] sm:$0xf]
      %v528 = vld [vmem:[%s517 + $0x28] sm:$0xf]
      %v529 = vld [vmem:[%s517 + $0x2c] sm:$0xf]
      %v530 = vld [vmem:[%s517 + $0x30] sm:$0xf]
      %v531 = vld [vmem:[%s517 + $0x34] sm:$0xf]
      %v532 = vld [vmem:[%s517 + $0x38] sm:$0xf]
      %v533 = vld [vmem:[%s517 + $0x3c] sm:$0xf]
      %v545 = vunpack.c.l.b16 %v488
      %v546 = vunpack.c.l.b16 %v489
      %v547 = vunpack.c.l.b16 %v490
      %v548 = vunpack.c.l.b16 %v491
      %v549 = vunpack.c.l.b16 %v492
      %v550 = vunpack.c.l.b16 %v493
      %v551 = vunpack.c.l.b16 %v494
      %v552 = vunpack.c.l.b16 %v495
      %v553 = vunpack.c.l.b16 %v496
      %v554 = vunpack.c.l.b16 %v497
      %v555 = vunpack.c.l.b16 %v498
      %v556 = vpack.c.b16 %v546, %v545
      %v557 = vpack.c.b16 %v548, %v547
      %v558 = vpack.c.b16 %v550, %v549
      %v559 = vpack.c.b16 %v552, %v551
      %v560 = vpack.c.b16 %v554, %v553
      %v561 = vpack.c.b16 %v555, %v555
      %vm562 = vsmask.f32 7424
      %v564 = vshrl.u32 %v556, 16
      %v566 = vshll.u32 %v556, 16
      %v568 = vrot.slane %v566, 1
      %v569 = vor.u32 %v564, %v568
      %v571 = vshll.u32 %v557, 16
      %v573 = vrot.slane %v571, 1
      %v574 = vsel %vm562, %v569, %v573
      %v575 = vshrl.u32 %v557, 16
      %v577 = vor.u32 %v575, %v573
      %v579 = vshll.u32 %v558, 16
      %v581 = vrot.slane %v579, 1
      %v582 = vsel %vm562, %v577, %v581
      %v583 = vshrl.u32 %v558, 16
      %v585 = vor.u32 %v583, %v581
      %v587 = vshll.u32 %v559, 16
      %v589 = vrot.slane %v587, 1
      %v590 = vsel %vm562, %v585, %v589
      %v591 = vshrl.u32 %v559, 16
      %v593 = vor.u32 %v591, %v589
      %v595 = vshll.u32 %v560, 16
      %v597 = vrot.slane %v595, 1
      %v598 = vsel %vm562, %v593, %v597
      %v599 = vshrl.u32 %v560, 16
      %v601 = vor.u32 %v599, %v597
      %v603 = vshll.u32 %v561, 16
      %v605 = vrot.slane %v603, 1
      %v606 = vsel %vm562, %v601, %v605
      %v628 = vunpack.c.l.b16 %v518
      %v629 = vunpack.c.l.b16 %v519
      %v630 = vunpack.c.l.b16 %v520
      %v631 = vunpack.c.l.b16 %v521
      %v632 = vunpack.c.l.b16 %v522
      %v633 = vunpack.c.l.b16 %v523
      %v634 = vunpack.c.l.b16 %v524
      %v635 = vunpack.c.l.b16 %v525
      %v636 = vunpack.c.l.b16 %v526
      %v637 = vunpack.c.l.b16 %v527
      %v638 = vunpack.c.l.b16 %v528
      %v639 = vunpack.c.l.b16 %v529
      %v640 = vunpack.c.l.b16 %v530
      %v641 = vunpack.c.l.b16 %v531
      %v642 = vunpack.c.l.b16 %v532
      %v643 = vunpack.c.l.b16 %v533
      %v644 = vpack.c.b16 %v629, %v628
      %v645 = vpack.c.b16 %v631, %v630
      %v646 = vpack.c.b16 %v633, %v632
      %v647 = vpack.c.b16 %v635, %v634
      %v648 = vpack.c.b16 %v637, %v636
      %v649 = vpack.c.b16 %v639, %v638
      %v650 = vpack.c.b16 %v641, %v640
      %v651 = vpack.c.b16 %v643, %v642
      %660 = vmatpush.bf16.msra.mxu0 %v651
      %661 = vmatpush.bf16.msra.mxu0 %v650
      %662 = vmatpush.bf16.msra.mxu0 %v649
      %663 = vmatpush.bf16.msra.mxu0 %v648
      %664 = vmatpush.bf16.msra.mxu0 %v647
      %665 = vmatpush.bf16.msra.mxu0 %v646
      %666 = vmatpush.bf16.msra.mxu0 %v645
      %667 = vmatpush.bf16.msra.mxu0 %v644
      %668 = vmatmul.bf16.gmra.mxu0 %v574
      %v669 = vpop.f32.mrf.mxu0
      %v670 = vadd.f32 0.0, %v669
      %v671 = vpop.f32.mrf.mxu0
      %v672 = vadd.f32 0.0, %v671
      %673 = vmatmul.bf16.gmra.mxu0 %v582
      %v674 = vpop.f32.mrf.mxu0
      %v675 = vadd.f32 0.0, %v674
      %v676 = vpop.f32.mrf.mxu0
      %v677 = vadd.f32 0.0, %v676
      %678 = vmatmul.bf16.gmra.mxu0 %v590
      %v679 = vpop.f32.mrf.mxu0
      %v680 = vadd.f32 0.0, %v679
      %v681 = vpop.f32.mrf.mxu0
      %v682 = vadd.f32 0.0, %v681
      %683 = vmatmul.bf16.gmra.mxu0 %v598
      %v684 = vpop.f32.mrf.mxu0
      %v685 = vadd.f32 0.0, %v684
      %v686 = vpop.f32.mrf.mxu0
      %v687 = vadd.f32 0.0, %v686
      %688 = vmatmul.bf16.gmra.mxu0 %v606
      %v689 = vpop.f32.mrf.mxu0
      %v690 = vadd.f32 0.0, %v689
      %v691 = vpop.f32.mrf.mxu0
      %v692 = vadd.f32 0.0, %v691
      %693 = vdwg.mxu0
      %v715 = vunpack.c.l.b16 %v501
      %v716 = vunpack.c.l.b16 %v502
      %v717 = vunpack.c.l.b16 %v503
      %v718 = vunpack.c.l.b16 %v504
      %v719 = vunpack.c.l.b16 %v505
      %v720 = vunpack.c.l.b16 %v506
      %v721 = vunpack.c.l.b16 %v507
      %v722 = vunpack.c.l.b16 %v508
      %v723 = vunpack.c.l.b16 %v509
      %v724 = vunpack.c.l.b16 %v510
      %v725 = vunpack.c.l.b16 %v511
      %v726 = vunpack.c.l.b16 %v512
      %v727 = vunpack.c.l.b16 %v513
      %v728 = vunpack.c.l.b16 %v514
      %v729 = vunpack.c.l.b16 %v515
      %v730 = vunpack.c.l.b16 %v516
      %v731 = vpack.c.b16 %v716, %v715
      %v732 = vpack.c.b16 %v718, %v717
      %v733 = vpack.c.b16 %v720, %v719
      %v734 = vpack.c.b16 %v722, %v721
      %v735 = vpack.c.b16 %v724, %v723
      %v736 = vpack.c.b16 %v726, %v725
      %v737 = vpack.c.b16 %v728, %v727
      %v738 = vpack.c.b16 %v730, %v729
      %747 = vmatpush.bf16.msra.mxu0 %v738
      %748 = vmatpush.bf16.msra.mxu0 %v737
      %749 = vmatpush.bf16.msra.mxu0 %v736
      %750 = vmatpush.bf16.msra.mxu0 %v735
      %751 = vmatpush.bf16.msra.mxu0 %v734
      %752 = vmatpush.bf16.msra.mxu0 %v733
      %753 = vmatpush.bf16.msra.mxu0 %v732
      %754 = vmatpush.bf16.msra.mxu0 %v731
      %755 = vmatmul.bf16.gmra.mxu0 %v556
      %v756 = vpop.f32.mrf.mxu0
      %v757 = vadd.f32 %v670, %v756
      %v758 = vpop.f32.mrf.mxu0
      %v759 = vadd.f32 %v672, %v758
      %760 = vmatmul.bf16.gmra.mxu0 %v557
      %v761 = vpop.f32.mrf.mxu0
      %v762 = vadd.f32 %v675, %v761
      %v763 = vpop.f32.mrf.mxu0
      %v764 = vadd.f32 %v677, %v763
      %765 = vmatmul.bf16.gmra.mxu0 %v558
      %v766 = vpop.f32.mrf.mxu0
      %v767 = vadd.f32 %v680, %v766
      %v768 = vpop.f32.mrf.mxu0
      %v769 = vadd.f32 %v682, %v768
      %770 = vmatmul.bf16.gmra.mxu0 %v559
      %v771 = vpop.f32.mrf.mxu0
      %v772 = vadd.f32 %v685, %v771
      %v773 = vpop.f32.mrf.mxu0
      %v774 = vadd.f32 %v687, %v773
      %775 = vmatmul.bf16.gmra.mxu0 %v560
      %v776 = vpop.f32.mrf.mxu0
      %v777 = vadd.f32 %v690, %v776
      %v778 = vpop.f32.mrf.mxu0
      %v779 = vadd.f32 %v692, %v778
      %780 = vdwg.mxu0
      %s781 = scalar_lea.vmem %s460, 128
      %v782 = vld [vmem:[%s781] sm:$0xf]
      %v783 = vld [vmem:[%s781 + $0x4] sm:$0xf]
      %v784 = vld [vmem:[%s781 + $0x8] sm:$0xf]
      %v785 = vld [vmem:[%s781 + $0xc] sm:$0xf]
      %v786 = vld [vmem:[%s781 + $0x10] sm:$0xf]
      %v787 = vld [vmem:[%s781 + $0x14] sm:$0xf]
      %v788 = vld [vmem:[%s781 + $0x18] sm:$0xf]
      %v789 = vld [vmem:[%s781 + $0x1c] sm:$0xf]
      %v790 = vld [vmem:[%s781 + $0x20] sm:$0xf]
      %v791 = vld [vmem:[%s781 + $0x24] sm:$0xf]
      %v792 = vld [vmem:[%s781 + $0x28] sm:$0xf]
      %v793 = vld [vmem:[%s781 + $0x2c] sm:$0xf]
      %v794 = vld [vmem:[%s781 + $0x30] sm:$0xf]
      %v795 = vld [vmem:[%s781 + $0x34] sm:$0xf]
      %v796 = vld [vmem:[%s781 + $0x38] sm:$0xf]
      %v797 = vld [vmem:[%s781 + $0x3c] sm:$0xf]
      %vm798 = vcmask 1046528
      %v799 = vrot.slane %v556, 1
      %v800 = vrot.slane %v557, 1
      %v801 = vsel %vm798, %v799, %v800
      %v802 = vrot.slane %v558, 1
      %v803 = vsel %vm798, %v800, %v802
      %v804 = vrot.slane %v559, 1
      %v805 = vsel %vm798, %v802, %v804
      %v806 = vrot.slane %v560, 1
      %v807 = vsel %vm798, %v804, %v806
      %v808 = vrot.slane %v561, 1
      %v809 = vsel %vm798, %v806, %v808
      %v831 = vunpack.c.l.b16 %v782
      %v832 = vunpack.c.l.b16 %v783
      %v833 = vunpack.c.l.b16 %v784
      %v834 = vunpack.c.l.b16 %v785
      %v835 = vunpack.c.l.b16 %v786
      %v836 = vunpack.c.l.b16 %v787
      %v837 = vunpack.c.l.b16 %v788
      %v838 = vunpack.c.l.b16 %v789
      %v839 = vunpack.c.l.b16 %v790
      %v840 = vunpack.c.l.b16 %v791
      %v841 = vunpack.c.l.b16 %v792
      %v842 = vunpack.c.l.b16 %v793
      %v843 = vunpack.c.l.b16 %v794
      %v844 = vunpack.c.l.b16 %v795
      %v845 = vunpack.c.l.b16 %v796
      %v846 = vunpack.c.l.b16 %v797
      %v847 = vpack.c.b16 %v832, %v831
      %v848 = vpack.c.b16 %v834, %v833
      %v849 = vpack.c.b16 %v836, %v835
      %v850 = vpack.c.b16 %v838, %v837
      %v851 = vpack.c.b16 %v840, %v839
      %v852 = vpack.c.b16 %v842, %v841
      %v853 = vpack.c.b16 %v844, %v843
      %v854 = vpack.c.b16 %v846, %v845
      %863 = vmatpush.bf16.msra.mxu0 %v854
      %864 = vmatpush.bf16.msra.mxu0 %v853
      %865 = vmatpush.bf16.msra.mxu0 %v852
      %866 = vmatpush.bf16.msra.mxu0 %v851
      %867 = vmatpush.bf16.msra.mxu0 %v850
      %868 = vmatpush.bf16.msra.mxu0 %v849
      %869 = vmatpush.bf16.msra.mxu0 %v848
      %870 = vmatpush.bf16.msra.mxu0 %v847
      %871 = vmatmul.bf16.gmra.mxu0 %v801
      %v872 = vpop.f32.mrf.mxu0
      %v873 = vadd.f32 0.0, %v872
      %v874 = vpop.f32.mrf.mxu0
      %v875 = vadd.f32 0.0, %v874
      %876 = vmatmul.bf16.gmra.mxu0 %v803
      %v877 = vpop.f32.mrf.mxu0
      %v878 = vadd.f32 0.0, %v877
      %v879 = vpop.f32.mrf.mxu0
      %v880 = vadd.f32 0.0, %v879
      %881 = vmatmul.bf16.gmra.mxu0 %v805
      %v882 = vpop.f32.mrf.mxu0
      %v883 = vadd.f32 0.0, %v882
      %v884 = vpop.f32.mrf.mxu0
      %v885 = vadd.f32 0.0, %v884
      %886 = vmatmul.bf16.gmra.mxu0 %v807
      %v887 = vpop.f32.mrf.mxu0
      %v888 = vadd.f32 0.0, %v887
      %v889 = vpop.f32.mrf.mxu0
      %v890 = vadd.f32 0.0, %v889
      %891 = vmatmul.bf16.gmra.mxu0 %v809
      %v892 = vpop.f32.mrf.mxu0
      %v893 = vadd.f32 0.0, %v892
      %v894 = vpop.f32.mrf.mxu0
      %v895 = vadd.f32 0.0, %v894
      %896 = vdwg.mxu0
      %v897 = vadd.f32 %v757, %v873
      %v898 = vadd.f32 %v759, %v875
      %v899 = vadd.f32 %v762, %v878
      %v900 = vadd.f32 %v764, %v880
      %v901 = vadd.f32 %v767, %v883
      %v902 = vadd.f32 %v769, %v885
      %v903 = vadd.f32 %v772, %v888
      %v904 = vadd.f32 %v774, %v890
      %v905 = vadd.f32 %v777, %v893
      %v906 = vadd.f32 %v779, %v895
      %s907 = scalar_lea.vmem %s460, 192
      %v908 = vld [vmem:[%s907] sm:$0xf]
      %v909 = vld [vmem:[%s907 + $0x4] sm:$0xf]
      %v910 = vld [vmem:[%s907 + $0x8] sm:$0xf]
      %v911 = vld [vmem:[%s907 + $0xc] sm:$0xf]
      %v912 = vld [vmem:[%s907 + $0x10] sm:$0xf]
      %v913 = vld [vmem:[%s907 + $0x14] sm:$0xf]
      %v914 = vld [vmem:[%s907 + $0x18] sm:$0xf]
      %v915 = vld [vmem:[%s907 + $0x1c] sm:$0xf]
      %v916 = vld [vmem:[%s907 + $0x20] sm:$0xf]
      %v917 = vld [vmem:[%s907 + $0x24] sm:$0xf]
      %v918 = vld [vmem:[%s907 + $0x28] sm:$0xf]
      %v919 = vld [vmem:[%s907 + $0x2c] sm:$0xf]
      %v920 = vld [vmem:[%s907 + $0x30] sm:$0xf]
      %v921 = vld [vmem:[%s907 + $0x34] sm:$0xf]
      %v922 = vld [vmem:[%s907 + $0x38] sm:$0xf]
      %v923 = vld [vmem:[%s907 + $0x3c] sm:$0xf]
      %v925 = vunpack.c.l.b16 %v499
      %v926 = vpack.c.b16 %v547, %v546
      %v927 = vpack.c.b16 %v549, %v548
      %v928 = vpack.c.b16 %v551, %v550
      %v929 = vpack.c.b16 %v553, %v552
      %v930 = vpack.c.b16 %v555, %v554
      %v931 = vpack.c.b16 %v925, %v925
      %v932 = vrot.slane %v926, 1
      %v933 = vrot.slane %v927, 1
      %v934 = vsel %vm798, %v932, %v933
      %v935 = vrot.slane %v928, 1
      %v936 = vsel %vm798, %v933, %v935
      %v937 = vrot.slane %v929, 1
      %v938 = vsel %vm798, %v935, %v937
      %v939 = vrot.slane %v930, 1
      %v940 = vsel %vm798, %v937, %v939
      %v941 = vrot.slane %v931, 1
      %v942 = vsel %vm798, %v939, %v941
      %v964 = vunpack.c.l.b16 %v908
      %v965 = vunpack.c.l.b16 %v909
      %v966 = vunpack.c.l.b16 %v910
      %v967 = vunpack.c.l.b16 %v911
      %v968 = vunpack.c.l.b16 %v912
      %v969 = vunpack.c.l.b16 %v913
      %v970 = vunpack.c.l.b16 %v914
      %v971 = vunpack.c.l.b16 %v915
      %v972 = vunpack.c.l.b16 %v916
      %v973 = vunpack.c.l.b16 %v917
      %v974 = vunpack.c.l.b16 %v918
      %v975 = vunpack.c.l.b16 %v919
      %v976 = vunpack.c.l.b16 %v920
      %v977 = vunpack.c.l.b16 %v921
      %v978 = vunpack.c.l.b16 %v922
      %v979 = vunpack.c.l.b16 %v923
      %v980 = vpack.c.b16 %v965, %v964
      %v981 = vpack.c.b16 %v967, %v966
      %v982 = vpack.c.b16 %v969, %v968
      %v983 = vpack.c.b16 %v971, %v970
      %v984 = vpack.c.b16 %v973, %v972
      %v985 = vpack.c.b16 %v975, %v974
      %v986 = vpack.c.b16 %v977, %v976
      %v987 = vpack.c.b16 %v979, %v978
      %996 = vmatpush.bf16.msra.mxu0 %v987
      %997 = vmatpush.bf16.msra.mxu0 %v986
      %998 = vmatpush.bf16.msra.mxu0 %v985
      %999 = vmatpush.bf16.msra.mxu0 %v984
      %1000 = vmatpush.bf16.msra.mxu0 %v983
      %1001 = vmatpush.bf16.msra.mxu0 %v982
      %1002 = vmatpush.bf16.msra.mxu0 %v981
      %1003 = vmatpush.bf16.msra.mxu0 %v980
      %1004 = vmatmul.bf16.gmra.mxu0 %v934
      %v1005 = vpop.f32.mrf.mxu0
      %v1006 = vadd.f32 0.0, %v1005
      %v1007 = vpop.f32.mrf.mxu0
      %v1008 = vadd.f32 0.0, %v1007
      %1009 = vmatmul.bf16.gmra.mxu0 %v936
      %v1010 = vpop.f32.mrf.mxu0
      %v1011 = vadd.f32 0.0, %v1010
      %v1012 = vpop.f32.mrf.mxu0
      %v1013 = vadd.f32 0.0, %v1012
      %1014 = vmatmul.bf16.gmra.mxu0 %v938
      %v1015 = vpop.f32.mrf.mxu0
      %v1016 = vadd.f32 0.0, %v1015
      %v1017 = vpop.f32.mrf.mxu0
      %v1018 = vadd.f32 0.0, %v1017
      %1019 = vmatmul.bf16.gmra.mxu0 %v940
      %v1020 = vpop.f32.mrf.mxu0
      %v1021 = vadd.f32 0.0, %v1020
      %v1022 = vpop.f32.mrf.mxu0
      %v1023 = vadd.f32 0.0, %v1022
      %1024 = vmatmul.bf16.gmra.mxu0 %v942
      %v1025 = vpop.f32.mrf.mxu0
      %v1026 = vadd.f32 0.0, %v1025
      %v1027 = vpop.f32.mrf.mxu0
      %v1028 = vadd.f32 0.0, %v1027
      %1029 = vdwg.mxu0
      %v1030 = vadd.f32 %v897, %v1006
      %v1031 = vadd.f32 %v898, %v1008
      %v1032 = vadd.f32 %v899, %v1011
      %v1033 = vadd.f32 %v900, %v1013
      %v1034 = vadd.f32 %v901, %v1016
      %v1035 = vadd.f32 %v902, %v1018
      %v1036 = vadd.f32 %v903, %v1021
      %v1037 = vadd.f32 %v904, %v1023
      %v1038 = vadd.f32 %v905, %v1026
      %v1039 = vadd.f32 %v906, %v1028
      %s1040 = scalar_lea.vmem %s460, 256
      %v1041 = vld [vmem:[%s1040] sm:$0xf]
      %v1042 = vld [vmem:[%s1040 + $0x4] sm:$0xf]
      %v1043 = vld [vmem:[%s1040 + $0x8] sm:$0xf]
      %v1044 = vld [vmem:[%s1040 + $0xc] sm:$0xf]
      %v1045 = vld [vmem:[%s1040 + $0x10] sm:$0xf]
      %v1046 = vld [vmem:[%s1040 + $0x14] sm:$0xf]
      %v1047 = vld [vmem:[%s1040 + $0x18] sm:$0xf]
      %v1048 = vld [vmem:[%s1040 + $0x1c] sm:$0xf]
      %v1049 = vld [vmem:[%s1040 + $0x20] sm:$0xf]
      %v1050 = vld [vmem:[%s1040 + $0x24] sm:$0xf]
      %v1051 = vld [vmem:[%s1040 + $0x28] sm:$0xf]
      %v1052 = vld [vmem:[%s1040 + $0x2c] sm:$0xf]
      %v1053 = vld [vmem:[%s1040 + $0x30] sm:$0xf]
      %v1054 = vld [vmem:[%s1040 + $0x34] sm:$0xf]
      %v1055 = vld [vmem:[%s1040 + $0x38] sm:$0xf]
      %v1056 = vld [vmem:[%s1040 + $0x3c] sm:$0xf]
      %vm1057 = vsmask.f32 6400
      %v1059 = vshrl.u32 %v926, 16
      %v1061 = vrot.slane %v1059, 1
      %v1062 = vshll.u32 %v926, 16
      %v1064 = vrot.slane %v1062, 2
      %v1065 = vor.u32 %v1061, %v1064
      %v1067 = vshrl.u32 %v927, 16
      %v1069 = vrot.slane %v1067, 1
      %v1070 = vshll.u32 %v927, 16
      %v1072 = vrot.slane %v1070, 2
      %v1073 = vor.u32 %v1069, %v1072
      %v1074 = vsel %vm1057, %v1065, %v1073
      %v1076 = vshrl.u32 %v928, 16
      %v1078 = vrot.slane %v1076, 1
      %v1079 = vshll.u32 %v928, 16
      %v1081 = vrot.slane %v1079, 2
      %v1082 = vor.u32 %v1078, %v1081
      %v1083 = vsel %vm1057, %v1073, %v1082
      %v1085 = vshrl.u32 %v929, 16
      %v1087 = vrot.slane %v1085, 1
      %v1088 = vshll.u32 %v929, 16
      %v1090 = vrot.slane %v1088, 2
      %v1091 = vor.u32 %v1087, %v1090
      %v1092 = vsel %vm1057, %v1082, %v1091
      %v1094 = vshrl.u32 %v930, 16
      %v1096 = vrot.slane %v1094, 1
      %v1097 = vshll.u32 %v930, 16
      %v1099 = vrot.slane %v1097, 2
      %v1100 = vor.u32 %v1096, %v1099
      %v1101 = vsel %vm1057, %v1091, %v1100
      %v1103 = vshrl.u32 %v931, 16
      %v1105 = vrot.slane %v1103, 1
      %v1106 = vshll.u32 %v931, 16
      %v1108 = vrot.slane %v1106, 2
      %v1109 = vor.u32 %v1105, %v1108
      %v1110 = vsel %vm1057, %v1100, %v1109
      %v1132 = vunpack.c.l.b16 %v1041
      %v1133 = vunpack.c.l.b16 %v1042
      %v1134 = vunpack.c.l.b16 %v1043
      %v1135 = vunpack.c.l.b16 %v1044
      %v1136 = vunpack.c.l.b16 %v1045
      %v1137 = vunpack.c.l.b16 %v1046
      %v1138 = vunpack.c.l.b16 %v1047
      %v1139 = vunpack.c.l.b16 %v1048
      %v1140 = vunpack.c.l.b16 %v1049
      %v1141 = vunpack.c.l.b16 %v1050
      %v1142 = vunpack.c.l.b16 %v1051
      %v1143 = vunpack.c.l.b16 %v1052
      %v1144 = vunpack.c.l.b16 %v1053
      %v1145 = vunpack.c.l.b16 %v1054
      %v1146 = vunpack.c.l.b16 %v1055
      %v1147 = vunpack.c.l.b16 %v1056
      %v1148 = vpack.c.b16 %v1133, %v1132
      %v1149 = vpack.c.b16 %v1135, %v1134
      %v1150 = vpack.c.b16 %v1137, %v1136
      %v1151 = vpack.c.b16 %v1139, %v1138
      %v1152 = vpack.c.b16 %v1141, %v1140
      %v1153 = vpack.c.b16 %v1143, %v1142
      %v1154 = vpack.c.b16 %v1145, %v1144
      %v1155 = vpack.c.b16 %v1147, %v1146
      %1164 = vmatpush.bf16.msra.mxu0 %v1155
      %1165 = vmatpush.bf16.msra.mxu0 %v1154
      %1166 = vmatpush.bf16.msra.mxu0 %v1153
      %1167 = vmatpush.bf16.msra.mxu0 %v1152
      %1168 = vmatpush.bf16.msra.mxu0 %v1151
      %1169 = vmatpush.bf16.msra.mxu0 %v1150
      %1170 = vmatpush.bf16.msra.mxu0 %v1149
      %1171 = vmatpush.bf16.msra.mxu0 %v1148
      %1172 = vmatmul.bf16.gmra.mxu0 %v1074
      %v1173 = vpop.f32.mrf.mxu0
      %v1174 = vadd.f32 0.0, %v1173
      %v1175 = vpop.f32.mrf.mxu0
      %v1176 = vadd.f32 0.0, %v1175
      %1177 = vmatmul.bf16.gmra.mxu0 %v1083
      %v1178 = vpop.f32.mrf.mxu0
      %v1179 = vadd.f32 0.0, %v1178
      %v1180 = vpop.f32.mrf.mxu0
      %v1181 = vadd.f32 0.0, %v1180
      %1182 = vmatmul.bf16.gmra.mxu0 %v1092
      %v1183 = vpop.f32.mrf.mxu0
      %v1184 = vadd.f32 0.0, %v1183
      %v1185 = vpop.f32.mrf.mxu0
      %v1186 = vadd.f32 0.0, %v1185
      %1187 = vmatmul.bf16.gmra.mxu0 %v1101
      %v1188 = vpop.f32.mrf.mxu0
      %v1189 = vadd.f32 0.0, %v1188
      %v1190 = vpop.f32.mrf.mxu0
      %v1191 = vadd.f32 0.0, %v1190
      %1192 = vmatmul.bf16.gmra.mxu0 %v1110
      %v1193 = vpop.f32.mrf.mxu0
      %v1194 = vadd.f32 0.0, %v1193
      %v1195 = vpop.f32.mrf.mxu0
      %v1196 = vadd.f32 0.0, %v1195
      %1197 = vdwg.mxu0
      %v1198 = vadd.f32 %v1030, %v1174
      %v1199 = vadd.f32 %v1031, %v1176
      %v1200 = vadd.f32 %v1032, %v1179
      %v1201 = vadd.f32 %v1033, %v1181
      %v1202 = vadd.f32 %v1034, %v1184
      %v1203 = vadd.f32 %v1035, %v1186
      %v1204 = vadd.f32 %v1036, %v1189
      %v1205 = vadd.f32 %v1037, %v1191
      %v1206 = vadd.f32 %v1038, %v1194
      %v1207 = vadd.f32 %v1039, %v1196
      %s1208 = scalar_lea.vmem %s460, 320
      %v1209 = vld [vmem:[%s1208] sm:$0xf]
      %v1210 = vld [vmem:[%s1208 + $0x4] sm:$0xf]
      %v1211 = vld [vmem:[%s1208 + $0x8] sm:$0xf]
      %v1212 = vld [vmem:[%s1208 + $0xc] sm:$0xf]
      %v1213 = vld [vmem:[%s1208 + $0x10] sm:$0xf]
      %v1214 = vld [vmem:[%s1208 + $0x14] sm:$0xf]
      %v1215 = vld [vmem:[%s1208 + $0x18] sm:$0xf]
      %v1216 = vld [vmem:[%s1208 + $0x1c] sm:$0xf]
      %v1217 = vld [vmem:[%s1208 + $0x20] sm:$0xf]
      %v1218 = vld [vmem:[%s1208 + $0x24] sm:$0xf]
      %v1219 = vld [vmem:[%s1208 + $0x28] sm:$0xf]
      %v1220 = vld [vmem:[%s1208 + $0x2c] sm:$0xf]
      %v1221 = vld [vmem:[%s1208 + $0x30] sm:$0xf]
      %v1222 = vld [vmem:[%s1208 + $0x34] sm:$0xf]
      %v1223 = vld [vmem:[%s1208 + $0x38] sm:$0xf]
      %v1224 = vld [vmem:[%s1208 + $0x3c] sm:$0xf]
      %vm1225 = vcmask 1045504
      %v1226 = vrot.slane %v926, 2
      %v1227 = vrot.slane %v927, 2
      %v1228 = vsel %vm1225, %v1226, %v1227
      %v1229 = vrot.slane %v928, 2
      %v1230 = vsel %vm1225, %v1227, %v1229
      %v1231 = vrot.slane %v929, 2
      %v1232 = vsel %vm1225, %v1229, %v1231
      %v1233 = vrot.slane %v930, 2
      %v1234 = vsel %vm1225, %v1231, %v1233
      %v1235 = vrot.slane %v931, 2
      %v1236 = vsel %vm1225, %v1233, %v1235
      %v1258 = vunpack.c.l.b16 %v1209
      %v1259 = vunpack.c.l.b16 %v1210
      %v1260 = vunpack.c.l.b16 %v1211
      %v1261 = vunpack.c.l.b16 %v1212
      %v1262 = vunpack.c.l.b16 %v1213
      %v1263 = vunpack.c.l.b16 %v1214
      %v1264 = vunpack.c.l.b16 %v1215
      %v1265 = vunpack.c.l.b16 %v1216
      %v1266 = vunpack.c.l.b16 %v1217
      %v1267 = vunpack.c.l.b16 %v1218
      %v1268 = vunpack.c.l.b16 %v1219
      %v1269 = vunpack.c.l.b16 %v1220
      %v1270 = vunpack.c.l.b16 %v1221
      %v1271 = vunpack.c.l.b16 %v1222
      %v1272 = vunpack.c.l.b16 %v1223
      %v1273 = vunpack.c.l.b16 %v1224
      %v1274 = vpack.c.b16 %v1259, %v1258
      %v1275 = vpack.c.b16 %v1261, %v1260
      %v1276 = vpack.c.b16 %v1263, %v1262
      %v1277 = vpack.c.b16 %v1265, %v1264
      %v1278 = vpack.c.b16 %v1267, %v1266
      %v1279 = vpack.c.b16 %v1269, %v1268
      %v1280 = vpack.c.b16 %v1271, %v1270
      %v1281 = vpack.c.b16 %v1273, %v1272
      %1290 = vmatpush.bf16.msra.mxu0 %v1281
      %1291 = vmatpush.bf16.msra.mxu0 %v1280
      %1292 = vmatpush.bf16.msra.mxu0 %v1279
      %1293 = vmatpush.bf16.msra.mxu0 %v1278
      %1294 = vmatpush.bf16.msra.mxu0 %v1277
      %1295 = vmatpush.bf16.msra.mxu0 %v1276
      %1296 = vmatpush.bf16.msra.mxu0 %v1275
      %1297 = vmatpush.bf16.msra.mxu0 %v1274
      %1298 = vmatmul.bf16.gmra.mxu0 %v1228
      %v1299 = vpop.f32.mrf.mxu0
      %v1300 = vadd.f32 0.0, %v1299
      %v1301 = vpop.f32.mrf.mxu0
      %v1302 = vadd.f32 0.0, %v1301
      %1303 = vmatmul.bf16.gmra.mxu0 %v1230
      %v1304 = vpop.f32.mrf.mxu0
      %v1305 = vadd.f32 0.0, %v1304
      %v1306 = vpop.f32.mrf.mxu0
      %v1307 = vadd.f32 0.0, %v1306
      %1308 = vmatmul.bf16.gmra.mxu0 %v1232
      %v1309 = vpop.f32.mrf.mxu0
      %v1310 = vadd.f32 0.0, %v1309
      %v1311 = vpop.f32.mrf.mxu0
      %v1312 = vadd.f32 0.0, %v1311
      %1313 = vmatmul.bf16.gmra.mxu0 %v1234
      %v1314 = vpop.f32.mrf.mxu0
      %v1315 = vadd.f32 0.0, %v1314
      %v1316 = vpop.f32.mrf.mxu0
      %v1317 = vadd.f32 0.0, %v1316
      %1318 = vmatmul.bf16.gmra.mxu0 %v1236
      %v1319 = vpop.f32.mrf.mxu0
      %v1320 = vadd.f32 0.0, %v1319
      %v1321 = vpop.f32.mrf.mxu0
      %v1322 = vadd.f32 0.0, %v1321
      %1323 = vdwg.mxu0
      %v1324 = vadd.f32 %v1198, %v1300
      %v1325 = vadd.f32 %v1199, %v1302
      %v1326 = vadd.f32 %v1200, %v1305
      %v1327 = vadd.f32 %v1201, %v1307
      %v1328 = vadd.f32 %v1202, %v1310
      %v1329 = vadd.f32 %v1203, %v1312
      %v1330 = vadd.f32 %v1204, %v1315
      %v1331 = vadd.f32 %v1205, %v1317
      %v1332 = vadd.f32 %v1206, %v1320
      %v1333 = vadd.f32 %v1207, %v1322
      %s1334 = scalar_lea.vmem %s460, 384
      %v1335 = vld [vmem:[%s1334] sm:$0xf]
      %v1336 = vld [vmem:[%s1334 + $0x4] sm:$0xf]
      %v1337 = vld [vmem:[%s1334 + $0x8] sm:$0xf]
      %v1338 = vld [vmem:[%s1334 + $0xc] sm:$0xf]
      %v1339 = vld [vmem:[%s1334 + $0x10] sm:$0xf]
      %v1340 = vld [vmem:[%s1334 + $0x14] sm:$0xf]
      %v1341 = vld [vmem:[%s1334 + $0x18] sm:$0xf]
      %v1342 = vld [vmem:[%s1334 + $0x1c] sm:$0xf]
      %v1343 = vld [vmem:[%s1334 + $0x20] sm:$0xf]
      %v1344 = vld [vmem:[%s1334 + $0x24] sm:$0xf]
      %v1345 = vld [vmem:[%s1334 + $0x28] sm:$0xf]
      %v1346 = vld [vmem:[%s1334 + $0x2c] sm:$0xf]
      %v1347 = vld [vmem:[%s1334 + $0x30] sm:$0xf]
      %v1348 = vld [vmem:[%s1334 + $0x34] sm:$0xf]
      %v1349 = vld [vmem:[%s1334 + $0x38] sm:$0xf]
      %v1350 = vld [vmem:[%s1334 + $0x3c] sm:$0xf]
      %v1352 = vunpack.c.l.b16 %v500
      %v1353 = vpack.c.b16 %v925, %v555
      %v1354 = vpack.c.b16 %v1352, %v1352
      %v1355 = vrot.slane %v557, 2
      %v1356 = vrot.slane %v558, 2
      %v1357 = vsel %vm1225, %v1355, %v1356
      %v1358 = vrot.slane %v559, 2
      %v1359 = vsel %vm1225, %v1356, %v1358
      %v1360 = vrot.slane %v560, 2
      %v1361 = vsel %vm1225, %v1358, %v1360
      %v1362 = vrot.slane %v1353, 2
      %v1363 = vsel %vm1225, %v1360, %v1362
      %v1364 = vrot.slane %v1354, 2
      %v1365 = vsel %vm1225, %v1362, %v1364
      %v1387 = vunpack.c.l.b16 %v1335
      %v1388 = vunpack.c.l.b16 %v1336
      %v1389 = vunpack.c.l.b16 %v1337
      %v1390 = vunpack.c.l.b16 %v1338
      %v1391 = vunpack.c.l.b16 %v1339
      %v1392 = vunpack.c.l.b16 %v1340
      %v1393 = vunpack.c.l.b16 %v1341
      %v1394 = vunpack.c.l.b16 %v1342
      %v1395 = vunpack.c.l.b16 %v1343
      %v1396 = vunpack.c.l.b16 %v1344
      %v1397 = vunpack.c.l.b16 %v1345
      %v1398 = vunpack.c.l.b16 %v1346
      %v1399 = vunpack.c.l.b16 %v1347
      %v1400 = vunpack.c.l.b16 %v1348
      %v1401 = vunpack.c.l.b16 %v1349
      %v1402 = vunpack.c.l.b16 %v1350
      %v1403 = vpack.c.b16 %v1388, %v1387
      %v1404 = vpack.c.b16 %v1390, %v1389
      %v1405 = vpack.c.b16 %v1392, %v1391
      %v1406 = vpack.c.b16 %v1394, %v1393
      %v1407 = vpack.c.b16 %v1396, %v1395
      %v1408 = vpack.c.b16 %v1398, %v1397
      %v1409 = vpack.c.b16 %v1400, %v1399
      %v1410 = vpack.c.b16 %v1402, %v1401
      %1419 = vmatpush.bf16.msra.mxu0 %v1410
      %1420 = vmatpush.bf16.msra.mxu0 %v1409
      %1421 = vmatpush.bf16.msra.mxu0 %v1408
      %1422 = vmatpush.bf16.msra.mxu0 %v1407
      %1423 = vmatpush.bf16.msra.mxu0 %v1406
      %1424 = vmatpush.bf16.msra.mxu0 %v1405
      %1425 = vmatpush.bf16.msra.mxu0 %v1404
      %1426 = vmatpush.bf16.msra.mxu0 %v1403
      %1427 = vmatmul.bf16.gmra.mxu0 %v1357
      %v1428 = vpop.f32.mrf.mxu0
      %v1429 = vadd.f32 0.0, %v1428
      %v1430 = vpop.f32.mrf.mxu0
      %v1431 = vadd.f32 0.0, %v1430
      %1432 = vmatmul.bf16.gmra.mxu0 %v1359
      %v1433 = vpop.f32.mrf.mxu0
      %v1434 = vadd.f32 0.0, %v1433
      %v1435 = vpop.f32.mrf.mxu0
      %v1436 = vadd.f32 0.0, %v1435
      %1437 = vmatmul.bf16.gmra.mxu0 %v1361
      %v1438 = vpop.f32.mrf.mxu0
      %v1439 = vadd.f32 0.0, %v1438
      %v1440 = vpop.f32.mrf.mxu0
      %v1441 = vadd.f32 0.0, %v1440
      %1442 = vmatmul.bf16.gmra.mxu0 %v1363
      %v1443 = vpop.f32.mrf.mxu0
      %v1444 = vadd.f32 0.0, %v1443
      %v1445 = vpop.f32.mrf.mxu0
      %v1446 = vadd.f32 0.0, %v1445
      %1447 = vmatmul.bf16.gmra.mxu0 %v1365
      %v1448 = vpop.f32.mrf.mxu0
      %v1449 = vadd.f32 0.0, %v1448
      %v1450 = vpop.f32.mrf.mxu0
      %v1451 = vadd.f32 0.0, %v1450
      %1452 = vdwg.mxu0
      %v1453 = vadd.f32 %v1324, %v1429
      %v1454 = vadd.f32 %v1325, %v1431
      %v1455 = vadd.f32 %v1326, %v1434
      %v1456 = vadd.f32 %v1327, %v1436
      %v1457 = vadd.f32 %v1328, %v1439
      %v1458 = vadd.f32 %v1329, %v1441
      %v1459 = vadd.f32 %v1330, %v1444
      %v1460 = vadd.f32 %v1331, %v1446
      %v1461 = vadd.f32 %v1332, %v1449
      %v1462 = vadd.f32 %v1333, %v1451
      %s1463 = scalar_lea.vmem %s460, 448
      %v1464 = vld [vmem:[%s1463] sm:$0xf]
      %v1465 = vld [vmem:[%s1463 + $0x4] sm:$0xf]
      %v1466 = vld [vmem:[%s1463 + $0x8] sm:$0xf]
      %v1467 = vld [vmem:[%s1463 + $0xc] sm:$0xf]
      %v1468 = vld [vmem:[%s1463 + $0x10] sm:$0xf]
      %v1469 = vld [vmem:[%s1463 + $0x14] sm:$0xf]
      %v1470 = vld [vmem:[%s1463 + $0x18] sm:$0xf]
      %v1471 = vld [vmem:[%s1463 + $0x1c] sm:$0xf]
      %v1472 = vld [vmem:[%s1463 + $0x20] sm:$0xf]
      %v1473 = vld [vmem:[%s1463 + $0x24] sm:$0xf]
      %v1474 = vld [vmem:[%s1463 + $0x28] sm:$0xf]
      %v1475 = vld [vmem:[%s1463 + $0x2c] sm:$0xf]
      %v1476 = vld [vmem:[%s1463 + $0x30] sm:$0xf]
      %v1477 = vld [vmem:[%s1463 + $0x34] sm:$0xf]
      %v1478 = vld [vmem:[%s1463 + $0x38] sm:$0xf]
      %v1479 = vld [vmem:[%s1463 + $0x3c] sm:$0xf]
      %vm1480 = vsmask.f32 5376
      %v1481 = vrot.slane %v575, 2
      %v1482 = vrot.slane %v571, 3
      %v1483 = vor.u32 %v1481, %v1482
      %v1484 = vrot.slane %v583, 2
      %v1485 = vrot.slane %v579, 3
      %v1486 = vor.u32 %v1484, %v1485
      %v1487 = vsel %vm1480, %v1483, %v1486
      %v1488 = vrot.slane %v591, 2
      %v1489 = vrot.slane %v587, 3
      %v1490 = vor.u32 %v1488, %v1489
      %v1491 = vsel %vm1480, %v1486, %v1490
      %v1492 = vrot.slane %v599, 2
      %v1493 = vrot.slane %v595, 3
      %v1494 = vor.u32 %v1492, %v1493
      %v1495 = vsel %vm1480, %v1490, %v1494
      %v1497 = vshrl.u32 %v1353, 16
      %v1499 = vrot.slane %v1497, 2
      %v1500 = vshll.u32 %v1353, 16
      %v1502 = vrot.slane %v1500, 3
      %v1503 = vor.u32 %v1499, %v1502
      %v1504 = vsel %vm1480, %v1494, %v1503
      %v1506 = vshrl.u32 %v1354, 16
      %v1508 = vrot.slane %v1506, 2
      %v1509 = vshll.u32 %v1354, 16
      %v1511 = vrot.slane %v1509, 3
      %v1512 = vor.u32 %v1508, %v1511
      %v1513 = vsel %vm1480, %v1503, %v1512
      %v1535 = vunpack.c.l.b16 %v1464
      %v1536 = vunpack.c.l.b16 %v1465
      %v1537 = vunpack.c.l.b16 %v1466
      %v1538 = vunpack.c.l.b16 %v1467
      %v1539 = vunpack.c.l.b16 %v1468
      %v1540 = vunpack.c.l.b16 %v1469
      %v1541 = vunpack.c.l.b16 %v1470
      %v1542 = vunpack.c.l.b16 %v1471
      %v1543 = vunpack.c.l.b16 %v1472
      %v1544 = vunpack.c.l.b16 %v1473
      %v1545 = vunpack.c.l.b16 %v1474
      %v1546 = vunpack.c.l.b16 %v1475
      %v1547 = vunpack.c.l.b16 %v1476
      %v1548 = vunpack.c.l.b16 %v1477
      %v1549 = vunpack.c.l.b16 %v1478
      %v1550 = vunpack.c.l.b16 %v1479
      %v1551 = vpack.c.b16 %v1536, %v1535
      %v1552 = vpack.c.b16 %v1538, %v1537
      %v1553 = vpack.c.b16 %v1540, %v1539
      %v1554 = vpack.c.b16 %v1542, %v1541
      %v1555 = vpack.c.b16 %v1544, %v1543
      %v1556 = vpack.c.b16 %v1546, %v1545
      %v1557 = vpack.c.b16 %v1548, %v1547
      %v1558 = vpack.c.b16 %v1550, %v1549
      %1567 = vmatpush.bf16.msra.mxu0 %v1558
      %1568 = vmatpush.bf16.msra.mxu0 %v1557
      %1569 = vmatpush.bf16.msra.mxu0 %v1556
      %1570 = vmatpush.bf16.msra.mxu0 %v1555
      %1571 = vmatpush.bf16.msra.mxu0 %v1554
      %1572 = vmatpush.bf16.msra.mxu0 %v1553
      %1573 = vmatpush.bf16.msra.mxu0 %v1552
      %1574 = vmatpush.bf16.msra.mxu0 %v1551
      %1575 = vmatmul.bf16.gmra.mxu0 %v1487
      %v1576 = vpop.f32.mrf.mxu0
      %v1577 = vadd.f32 0.0, %v1576
      %v1578 = vpop.f32.mrf.mxu0
      %v1579 = vadd.f32 0.0, %v1578
      %1580 = vmatmul.bf16.gmra.mxu0 %v1491
      %v1581 = vpop.f32.mrf.mxu0
      %v1582 = vadd.f32 0.0, %v1581
      %v1583 = vpop.f32.mrf.mxu0
      %v1584 = vadd.f32 0.0, %v1583
      %1585 = vmatmul.bf16.gmra.mxu0 %v1495
      %v1586 = vpop.f32.mrf.mxu0
      %v1587 = vadd.f32 0.0, %v1586
      %v1588 = vpop.f32.mrf.mxu0
      %v1589 = vadd.f32 0.0, %v1588
      %1590 = vmatmul.bf16.gmra.mxu0 %v1504
      %v1591 = vpop.f32.mrf.mxu0
      %v1592 = vadd.f32 0.0, %v1591
      %v1593 = vpop.f32.mrf.mxu0
      %v1594 = vadd.f32 0.0, %v1593
      %1595 = vmatmul.bf16.gmra.mxu0 %v1513
      %v1596 = vpop.f32.mrf.mxu0
      %v1597 = vadd.f32 0.0, %v1596
      %v1598 = vpop.f32.mrf.mxu0
      %v1599 = vadd.f32 0.0, %v1598
      %1600 = vdwg.mxu0
      %v1601 = vadd.f32 %v1453, %v1577
      %v1602 = vadd.f32 %v1454, %v1579
      %v1603 = vadd.f32 %v1455, %v1582
      %v1604 = vadd.f32 %v1456, %v1584
      %v1605 = vadd.f32 %v1457, %v1587
      %v1606 = vadd.f32 %v1458, %v1589
      %v1607 = vadd.f32 %v1459, %v1592
      %v1608 = vadd.f32 %v1460, %v1594
      %v1609 = vadd.f32 %v1461, %v1597
      %v1610 = vadd.f32 %v1462, %v1599
      %s1611 = scalar_lea.vmem %s460, 512
      %v1612 = vld [vmem:[%s1611] sm:$0xf]
      %v1613 = vld [vmem:[%s1611 + $0x4] sm:$0xf]
      %v1614 = vld [vmem:[%s1611 + $0x8] sm:$0xf]
      %v1615 = vld [vmem:[%s1611 + $0xc] sm:$0xf]
      %v1616 = vld [vmem:[%s1611 + $0x10] sm:$0xf]
      %v1617 = vld [vmem:[%s1611 + $0x14] sm:$0xf]
      %v1618 = vld [vmem:[%s1611 + $0x18] sm:$0xf]
      %v1619 = vld [vmem:[%s1611 + $0x1c] sm:$0xf]
      %v1620 = vld [vmem:[%s1611 + $0x20] sm:$0xf]
      %v1621 = vld [vmem:[%s1611 + $0x24] sm:$0xf]
      %v1622 = vld [vmem:[%s1611 + $0x28] sm:$0xf]
      %v1623 = vld [vmem:[%s1611 + $0x2c] sm:$0xf]
      %v1624 = vld [vmem:[%s1611 + $0x30] sm:$0xf]
      %v1625 = vld [vmem:[%s1611 + $0x34] sm:$0xf]
      %v1626 = vld [vmem:[%s1611 + $0x38] sm:$0xf]
      %v1627 = vld [vmem:[%s1611 + $0x3c] sm:$0xf]
      %vm1628 = vcmask 1044480
      %v1629 = vrot.slane %v557, 3
      %v1630 = vrot.slane %v558, 3
      %v1631 = vsel %vm1628, %v1629, %v1630
      %v1632 = vrot.slane %v559, 3
      %v1633 = vsel %vm1628, %v1630, %v1632
      %v1634 = vrot.slane %v560, 3
      %v1635 = vsel %vm1628, %v1632, %v1634
      %v1636 = vrot.slane %v1353, 3
      %v1637 = vsel %vm1628, %v1634, %v1636
      %v1638 = vrot.slane %v1354, 3
      %v1639 = vsel %vm1628, %v1636, %v1638
      %v1661 = vunpack.c.l.b16 %v1612
      %v1662 = vunpack.c.l.b16 %v1613
      %v1663 = vunpack.c.l.b16 %v1614
      %v1664 = vunpack.c.l.b16 %v1615
      %v1665 = vunpack.c.l.b16 %v1616
      %v1666 = vunpack.c.l.b16 %v1617
      %v1667 = vunpack.c.l.b16 %v1618
      %v1668 = vunpack.c.l.b16 %v1619
      %v1669 = vunpack.c.l.b16 %v1620
      %v1670 = vunpack.c.l.b16 %v1621
      %v1671 = vunpack.c.l.b16 %v1622
      %v1672 = vunpack.c.l.b16 %v1623
      %v1673 = vunpack.c.l.b16 %v1624
      %v1674 = vunpack.c.l.b16 %v1625
      %v1675 = vunpack.c.l.b16 %v1626
      %v1676 = vunpack.c.l.b16 %v1627
      %v1677 = vpack.c.b16 %v1662, %v1661
      %v1678 = vpack.c.b16 %v1664, %v1663
      %v1679 = vpack.c.b16 %v1666, %v1665
      %v1680 = vpack.c.b16 %v1668, %v1667
      %v1681 = vpack.c.b16 %v1670, %v1669
      %v1682 = vpack.c.b16 %v1672, %v1671
      %v1683 = vpack.c.b16 %v1674, %v1673
      %v1684 = vpack.c.b16 %v1676, %v1675
      %1693 = vmatpush.bf16.msra.mxu0 %v1684
      %1694 = vmatpush.bf16.msra.mxu0 %v1683
      %1695 = vmatpush.bf16.msra.mxu0 %v1682
      %1696 = vmatpush.bf16.msra.mxu0 %v1681
      %1697 = vmatpush.bf16.msra.mxu0 %v1680
      %1698 = vmatpush.bf16.msra.mxu0 %v1679
      %1699 = vmatpush.bf16.msra.mxu0 %v1678
      %1700 = vmatpush.bf16.msra.mxu0 %v1677
      %1701 = vmatmul.bf16.gmra.mxu0 %v1631
      %v1702 = vpop.f32.mrf.mxu0
      %v1703 = vadd.f32 0.0, %v1702
      %v1704 = vpop.f32.mrf.mxu0
      %v1705 = vadd.f32 0.0, %v1704
      %1706 = vmatmul.bf16.gmra.mxu0 %v1633
      %v1707 = vpop.f32.mrf.mxu0
      %v1708 = vadd.f32 0.0, %v1707
      %v1709 = vpop.f32.mrf.mxu0
      %v1710 = vadd.f32 0.0, %v1709
      %1711 = vmatmul.bf16.gmra.mxu0 %v1635
      %v1712 = vpop.f32.mrf.mxu0
      %v1713 = vadd.f32 0.0, %v1712
      %v1714 = vpop.f32.mrf.mxu0
      %v1715 = vadd.f32 0.0, %v1714
      %1716 = vmatmul.bf16.gmra.mxu0 %v1637
      %v1717 = vpop.f32.mrf.mxu0
      %v1718 = vadd.f32 0.0, %v1717
      %v1719 = vpop.f32.mrf.mxu0
      %v1720 = vadd.f32 0.0, %v1719
      %1721 = vmatmul.bf16.gmra.mxu0 %v1639
      %v1722 = vpop.f32.mrf.mxu0
      %v1723 = vadd.f32 0.0, %v1722
      %v1724 = vpop.f32.mrf.mxu0
      %v1725 = vadd.f32 0.0, %v1724
      %1726 = vdwg.mxu0
      %v1727 = vadd.f32 %v1601, %v1703
      %v1728 = vadd.f32 %v1602, %v1705
      %v1729 = vadd.f32 %v1603, %v1708
      %v1730 = vadd.f32 %v1604, %v1710
      %v1731 = vadd.f32 %v1605, %v1713
      %v1732 = vadd.f32 %v1606, %v1715
      %v1733 = vadd.f32 %v1607, %v1718
      %v1734 = vadd.f32 %v1608, %v1720
      %v1735 = vadd.f32 %v1609, %v1723
      %v1736 = vadd.f32 %v1610, %v1725
      %v1737 = vld [vmem:[%s444] sm:$0xf]
      %v1738 = vld [vmem:[%s444 + $0x4] sm:$0xf]
      %v1739 = vld [vmem:[%s444 + $0x8] sm:$0xf]
      %v1740 = vld [vmem:[%s444 + $0xc] sm:$0xf]
      %v1741 = vld [vmem:[%s444 + $0x10] sm:$0xf]
      %v1742 = vld [vmem:[%s444 + $0x14] sm:$0xf]
      %v1743 = vld [vmem:[%s444 + $0x18] sm:$0xf]
      %v1744 = vld [vmem:[%s444 + $0x1c] sm:$0xf]
      %v1745 = vld [vmem:[%s444 + $0x20] sm:$0xf]
      %v1746 = vld [vmem:[%s444 + $0x24] sm:$0xf]
      %v1747 = vld [vmem:[%s444 + $0x28] sm:$0xf]
      %v1748 = vld [vmem:[%s444 + $0x2c] sm:$0xf]
      %v1749 = vld [vmem:[%s444 + $0x30] sm:$0xf]
      %s1750 = scalar_lea.vmem %s460, 576
      %v1751 = vld [vmem:[%s1750] sm:$0xf]
      %v1752 = vld [vmem:[%s1750 + $0x4] sm:$0xf]
      %v1753 = vld [vmem:[%s1750 + $0x8] sm:$0xf]
      %v1754 = vld [vmem:[%s1750 + $0xc] sm:$0xf]
      %v1755 = vld [vmem:[%s1750 + $0x10] sm:$0xf]
      %v1756 = vld [vmem:[%s1750 + $0x14] sm:$0xf]
      %v1757 = vld [vmem:[%s1750 + $0x18] sm:$0xf]
      %v1758 = vld [vmem:[%s1750 + $0x1c] sm:$0xf]
      %v1759 = vld [vmem:[%s1750 + $0x20] sm:$0xf]
      %v1760 = vld [vmem:[%s1750 + $0x24] sm:$0xf]
      %v1761 = vld [vmem:[%s1750 + $0x28] sm:$0xf]
      %v1762 = vld [vmem:[%s1750 + $0x2c] sm:$0xf]
      %v1763 = vld [vmem:[%s1750 + $0x30] sm:$0xf]
      %v1764 = vld [vmem:[%s1750 + $0x34] sm:$0xf]
      %v1765 = vld [vmem:[%s1750 + $0x38] sm:$0xf]
      %v1766 = vld [vmem:[%s1750 + $0x3c] sm:$0xf]
      %v1777 = vunpack.c.l.b16 %v1737
      %v1778 = vunpack.c.l.b16 %v1738
      %v1779 = vunpack.c.l.b16 %v1739
      %v1780 = vunpack.c.l.b16 %v1740
      %v1781 = vunpack.c.l.b16 %v1741
      %v1782 = vunpack.c.l.b16 %v1742
      %v1783 = vunpack.c.l.b16 %v1743
      %v1784 = vunpack.c.l.b16 %v1744
      %v1785 = vunpack.c.l.b16 %v1745
      %v1786 = vunpack.c.l.b16 %v1746
      %v1787 = vpack.c.b16 %v1778, %v1777
      %v1788 = vpack.c.b16 %v1780, %v1779
      %v1789 = vpack.c.b16 %v1782, %v1781
      %v1790 = vpack.c.b16 %v1784, %v1783
      %v1791 = vpack.c.b16 %v1786, %v1785
      %v1813 = vunpack.c.l.b16 %v1751
      %v1814 = vunpack.c.l.b16 %v1752
      %v1815 = vunpack.c.l.b16 %v1753
      %v1816 = vunpack.c.l.b16 %v1754
      %v1817 = vunpack.c.l.b16 %v1755
      %v1818 = vunpack.c.l.b16 %v1756
      %v1819 = vunpack.c.l.b16 %v1757
      %v1820 = vunpack.c.l.b16 %v1758
      %v1821 = vunpack.c.l.b16 %v1759
      %v1822 = vunpack.c.l.b16 %v1760
      %v1823 = vunpack.c.l.b16 %v1761
      %v1824 = vunpack.c.l.b16 %v1762
      %v1825 = vunpack.c.l.b16 %v1763
      %v1826 = vunpack.c.l.b16 %v1764
      %v1827 = vunpack.c.l.b16 %v1765
      %v1828 = vunpack.c.l.b16 %v1766
      %v1829 = vpack.c.b16 %v1814, %v1813
      %v1830 = vpack.c.b16 %v1816, %v1815
      %v1831 = vpack.c.b16 %v1818, %v1817
      %v1832 = vpack.c.b16 %v1820, %v1819
      %v1833 = vpack.c.b16 %v1822, %v1821
      %v1834 = vpack.c.b16 %v1824, %v1823
      %v1835 = vpack.c.b16 %v1826, %v1825
      %v1836 = vpack.c.b16 %v1828, %v1827
      %1845 = vmatpush.bf16.msra.mxu0 %v1836
      %1846 = vmatpush.bf16.msra.mxu0 %v1835
      %1847 = vmatpush.bf16.msra.mxu0 %v1834
      %1848 = vmatpush.bf16.msra.mxu0 %v1833
      %1849 = vmatpush.bf16.msra.mxu0 %v1832
      %1850 = vmatpush.bf16.msra.mxu0 %v1831
      %1851 = vmatpush.bf16.msra.mxu0 %v1830
      %1852 = vmatpush.bf16.msra.mxu0 %v1829
      %1853 = vmatmul.bf16.gmra.mxu0 %v1787
      %v1854 = vpop.f32.mrf.mxu0
      %v1855 = vadd.f32 0.0, %v1854
      %v1856 = vpop.f32.mrf.mxu0
      %v1857 = vadd.f32 0.0, %v1856
      %1858 = vmatmul.bf16.gmra.mxu0 %v1788
      %v1859 = vpop.f32.mrf.mxu0
      %v1860 = vadd.f32 0.0, %v1859
      %v1861 = vpop.f32.mrf.mxu0
      %v1862 = vadd.f32 0.0, %v1861
      %1863 = vmatmul.bf16.gmra.mxu0 %v1789
      %v1864 = vpop.f32.mrf.mxu0
      %v1865 = vadd.f32 0.0, %v1864
      %v1866 = vpop.f32.mrf.mxu0
      %v1867 = vadd.f32 0.0, %v1866
      %1868 = vmatmul.bf16.gmra.mxu0 %v1790
      %v1869 = vpop.f32.mrf.mxu0
      %v1870 = vadd.f32 0.0, %v1869
      %v1871 = vpop.f32.mrf.mxu0
      %v1872 = vadd.f32 0.0, %v1871
      %1873 = vmatmul.bf16.gmra.mxu0 %v1791
      %v1874 = vpop.f32.mrf.mxu0
      %v1875 = vadd.f32 0.0, %v1874
      %v1876 = vpop.f32.mrf.mxu0
      %v1877 = vadd.f32 0.0, %v1876
      %1878 = vdwg.mxu0
      %v1879 = vadd.f32 %v1727, %v1855
      %v1880 = vadd.f32 %v1728, %v1857
      %v1881 = vadd.f32 %v1729, %v1860
      %v1882 = vadd.f32 %v1730, %v1862
      %v1883 = vadd.f32 %v1731, %v1865
      %v1884 = vadd.f32 %v1732, %v1867
      %v1885 = vadd.f32 %v1733, %v1870
      %v1886 = vadd.f32 %v1734, %v1872
      %v1887 = vadd.f32 %v1735, %v1875
      %v1888 = vadd.f32 %v1736, %v1877
      %s1889 = scalar_lea.vmem %s460, 640
      %v1890 = vld [vmem:[%s1889] sm:$0xf]
      %v1891 = vld [vmem:[%s1889 + $0x4] sm:$0xf]
      %v1892 = vld [vmem:[%s1889 + $0x8] sm:$0xf]
      %v1893 = vld [vmem:[%s1889 + $0xc] sm:$0xf]
      %v1894 = vld [vmem:[%s1889 + $0x10] sm:$0xf]
      %v1895 = vld [vmem:[%s1889 + $0x14] sm:$0xf]
      %v1896 = vld [vmem:[%s1889 + $0x18] sm:$0xf]
      %v1897 = vld [vmem:[%s1889 + $0x1c] sm:$0xf]
      %v1898 = vld [vmem:[%s1889 + $0x20] sm:$0xf]
      %v1899 = vld [vmem:[%s1889 + $0x24] sm:$0xf]
      %v1900 = vld [vmem:[%s1889 + $0x28] sm:$0xf]
      %v1901 = vld [vmem:[%s1889 + $0x2c] sm:$0xf]
      %v1902 = vld [vmem:[%s1889 + $0x30] sm:$0xf]
      %v1903 = vld [vmem:[%s1889 + $0x34] sm:$0xf]
      %v1904 = vld [vmem:[%s1889 + $0x38] sm:$0xf]
      %v1905 = vld [vmem:[%s1889 + $0x3c] sm:$0xf]
      %v1907 = vunpack.c.l.b16 %v1747
      %v1908 = vpack.c.b16 %v1907, %v1907
      %v1910 = vshrl.u32 %v1787, 16
      %v1912 = vshll.u32 %v1787, 16
      %v1914 = vrot.slane %v1912, 1
      %v1915 = vor.u32 %v1910, %v1914
      %v1917 = vshll.u32 %v1788, 16
      %v1919 = vrot.slane %v1917, 1
      %v1920 = vsel %vm562, %v1915, %v1919
      %v1921 = vshrl.u32 %v1788, 16
      %v1923 = vor.u32 %v1921, %v1919
      %v1925 = vshll.u32 %v1789, 16
      %v1927 = vrot.slane %v1925, 1
      %v1928 = vsel %vm562, %v1923, %v1927
      %v1929 = vshrl.u32 %v1789, 16
      %v1931 = vor.u32 %v1929, %v1927
      %v1933 = vshll.u32 %v1790, 16
      %v1935 = vrot.slane %v1933, 1
      %v1936 = vsel %vm562, %v1931, %v1935
      %v1937 = vshrl.u32 %v1790, 16
      %v1939 = vor.u32 %v1937, %v1935
      %v1941 = vshll.u32 %v1791, 16
      %v1943 = vrot.slane %v1941, 1
      %v1944 = vsel %vm562, %v1939, %v1943
      %v1945 = vshrl.u32 %v1791, 16
      %v1947 = vor.u32 %v1945, %v1943
      %v1949 = vshll.u32 %v1908, 16
      %v1951 = vrot.slane %v1949, 1
      %v1952 = vsel %vm562, %v1947, %v1951
      %v1974 = vunpack.c.l.b16 %v1890
      %v1975 = vunpack.c.l.b16 %v1891
      %v1976 = vunpack.c.l.b16 %v1892
      %v1977 = vunpack.c.l.b16 %v1893
      %v1978 = vunpack.c.l.b16 %v1894
      %v1979 = vunpack.c.l.b16 %v1895
      %v1980 = vunpack.c.l.b16 %v1896
      %v1981 = vunpack.c.l.b16 %v1897
      %v1982 = vunpack.c.l.b16 %v1898
      %v1983 = vunpack.c.l.b16 %v1899
      %v1984 = vunpack.c.l.b16 %v1900
      %v1985 = vunpack.c.l.b16 %v1901
      %v1986 = vunpack.c.l.b16 %v1902
      %v1987 = vunpack.c.l.b16 %v1903
      %v1988 = vunpack.c.l.b16 %v1904
      %v1989 = vunpack.c.l.b16 %v1905
      %v1990 = vpack.c.b16 %v1975, %v1974
      %v1991 = vpack.c.b16 %v1977, %v1976
      %v1992 = vpack.c.b16 %v1979, %v1978
      %v1993 = vpack.c.b16 %v1981, %v1980
      %v1994 = vpack.c.b16 %v1983, %v1982
      %v1995 = vpack.c.b16 %v1985, %v1984
      %v1996 = vpack.c.b16 %v1987, %v1986
      %v1997 = vpack.c.b16 %v1989, %v1988
      %2006 = vmatpush.bf16.msra.mxu0 %v1997
      %2007 = vmatpush.bf16.msra.mxu0 %v1996
      %2008 = vmatpush.bf16.msra.mxu0 %v1995
      %2009 = vmatpush.bf16.msra.mxu0 %v1994
      %2010 = vmatpush.bf16.msra.mxu0 %v1993
      %2011 = vmatpush.bf16.msra.mxu0 %v1992
      %2012 = vmatpush.bf16.msra.mxu0 %v1991
      %2013 = vmatpush.bf16.msra.mxu0 %v1990
      %2014 = vmatmul.bf16.gmra.mxu0 %v1920
      %v2015 = vpop.f32.mrf.mxu0
      %v2016 = vadd.f32 0.0, %v2015
      %v2017 = vpop.f32.mrf.mxu0
      %v2018 = vadd.f32 0.0, %v2017
      %2019 = vmatmul.bf16.gmra.mxu0 %v1928
      %v2020 = vpop.f32.mrf.mxu0
      %v2021 = vadd.f32 0.0, %v2020
      %v2022 = vpop.f32.mrf.mxu0
      %v2023 = vadd.f32 0.0, %v2022
      %2024 = vmatmul.bf16.gmra.mxu0 %v1936
      %v2025 = vpop.f32.mrf.mxu0
      %v2026 = vadd.f32 0.0, %v2025
      %v2027 = vpop.f32.mrf.mxu0
      %v2028 = vadd.f32 0.0, %v2027
      %2029 = vmatmul.bf16.gmra.mxu0 %v1944
      %v2030 = vpop.f32.mrf.mxu0
      %v2031 = vadd.f32 0.0, %v2030
      %v2032 = vpop.f32.mrf.mxu0
      %v2033 = vadd.f32 0.0, %v2032
      %2034 = vmatmul.bf16.gmra.mxu0 %v1952
      %v2035 = vpop.f32.mrf.mxu0
      %v2036 = vadd.f32 0.0, %v2035
      %v2037 = vpop.f32.mrf.mxu0
      %v2038 = vadd.f32 0.0, %v2037
      %2039 = vdwg.mxu0
      %v2040 = vadd.f32 %v1879, %v2016
      %v2041 = vadd.f32 %v1880, %v2018
      %v2042 = vadd.f32 %v1881, %v2021
      %v2043 = vadd.f32 %v1882, %v2023
      %v2044 = vadd.f32 %v1883, %v2026
      %v2045 = vadd.f32 %v1884, %v2028
      %v2046 = vadd.f32 %v1885, %v2031
      %v2047 = vadd.f32 %v1886, %v2033
      %v2048 = vadd.f32 %v1887, %v2036
      %v2049 = vadd.f32 %v1888, %v2038
      %s2050 = scalar_lea.vmem %s460, 704
      %v2051 = vld [vmem:[%s2050] sm:$0xf]
      %v2052 = vld [vmem:[%s2050 + $0x4] sm:$0xf]
      %v2053 = vld [vmem:[%s2050 + $0x8] sm:$0xf]
      %v2054 = vld [vmem:[%s2050 + $0xc] sm:$0xf]
      %v2055 = vld [vmem:[%s2050 + $0x10] sm:$0xf]
      %v2056 = vld [vmem:[%s2050 + $0x14] sm:$0xf]
      %v2057 = vld [vmem:[%s2050 + $0x18] sm:$0xf]
      %v2058 = vld [vmem:[%s2050 + $0x1c] sm:$0xf]
      %v2059 = vld [vmem:[%s2050 + $0x20] sm:$0xf]
      %v2060 = vld [vmem:[%s2050 + $0x24] sm:$0xf]
      %v2061 = vld [vmem:[%s2050 + $0x28] sm:$0xf]
      %v2062 = vld [vmem:[%s2050 + $0x2c] sm:$0xf]
      %v2063 = vld [vmem:[%s2050 + $0x30] sm:$0xf]
      %v2064 = vld [vmem:[%s2050 + $0x34] sm:$0xf]
      %v2065 = vld [vmem:[%s2050 + $0x38] sm:$0xf]
      %v2066 = vld [vmem:[%s2050 + $0x3c] sm:$0xf]
      %v2067 = vrot.slane %v1787, 1
      %v2068 = vrot.slane %v1788, 1
      %v2069 = vsel %vm798, %v2067, %v2068
      %v2070 = vrot.slane %v1789, 1
      %v2071 = vsel %vm798, %v2068, %v2070
      %v2072 = vrot.slane %v1790, 1
      %v2073 = vsel %vm798, %v2070, %v2072
      %v2074 = vrot.slane %v1791, 1
      %v2075 = vsel %vm798, %v2072, %v2074
      %v2076 = vrot.slane %v1908, 1
      %v2077 = vsel %vm798, %v2074, %v2076
      %v2099 = vunpack.c.l.b16 %v2051
      %v2100 = vunpack.c.l.b16 %v2052
      %v2101 = vunpack.c.l.b16 %v2053
      %v2102 = vunpack.c.l.b16 %v2054
      %v2103 = vunpack.c.l.b16 %v2055
      %v2104 = vunpack.c.l.b16 %v2056
      %v2105 = vunpack.c.l.b16 %v2057
      %v2106 = vunpack.c.l.b16 %v2058
      %v2107 = vunpack.c.l.b16 %v2059
      %v2108 = vunpack.c.l.b16 %v2060
      %v2109 = vunpack.c.l.b16 %v2061
      %v2110 = vunpack.c.l.b16 %v2062
      %v2111 = vunpack.c.l.b16 %v2063
      %v2112 = vunpack.c.l.b16 %v2064
      %v2113 = vunpack.c.l.b16 %v2065
      %v2114 = vunpack.c.l.b16 %v2066
      %v2115 = vpack.c.b16 %v2100, %v2099
      %v2116 = vpack.c.b16 %v2102, %v2101
      %v2117 = vpack.c.b16 %v2104, %v2103
      %v2118 = vpack.c.b16 %v2106, %v2105
      %v2119 = vpack.c.b16 %v2108, %v2107
      %v2120 = vpack.c.b16 %v2110, %v2109
      %v2121 = vpack.c.b16 %v2112, %v2111
      %v2122 = vpack.c.b16 %v2114, %v2113
      %2131 = vmatpush.bf16.msra.mxu0 %v2122
      %2132 = vmatpush.bf16.msra.mxu0 %v2121
      %2133 = vmatpush.bf16.msra.mxu0 %v2120
      %2134 = vmatpush.bf16.msra.mxu0 %v2119
      %2135 = vmatpush.bf16.msra.mxu0 %v2118
      %2136 = vmatpush.bf16.msra.mxu0 %v2117
      %2137 = vmatpush.bf16.msra.mxu0 %v2116
      %2138 = vmatpush.bf16.msra.mxu0 %v2115
      %2139 = vmatmul.bf16.gmra.mxu0 %v2069
      %v2140 = vpop.f32.mrf.mxu0
      %v2141 = vadd.f32 0.0, %v2140
      %v2142 = vpop.f32.mrf.mxu0
      %v2143 = vadd.f32 0.0, %v2142
      %2144 = vmatmul.bf16.gmra.mxu0 %v2071
      %v2145 = vpop.f32.mrf.mxu0
      %v2146 = vadd.f32 0.0, %v2145
      %v2147 = vpop.f32.mrf.mxu0
      %v2148 = vadd.f32 0.0, %v2147
      %2149 = vmatmul.bf16.gmra.mxu0 %v2073
      %v2150 = vpop.f32.mrf.mxu0
      %v2151 = vadd.f32 0.0, %v2150
      %v2152 = vpop.f32.mrf.mxu0
      %v2153 = vadd.f32 0.0, %v2152
      %2154 = vmatmul.bf16.gmra.mxu0 %v2075
      %v2155 = vpop.f32.mrf.mxu0
      %v2156 = vadd.f32 0.0, %v2155
      %v2157 = vpop.f32.mrf.mxu0
      %v2158 = vadd.f32 0.0, %v2157
      %2159 = vmatmul.bf16.gmra.mxu0 %v2077
      %v2160 = vpop.f32.mrf.mxu0
      %v2161 = vadd.f32 0.0, %v2160
      %v2162 = vpop.f32.mrf.mxu0
      %v2163 = vadd.f32 0.0, %v2162
      %2164 = vdwg.mxu0
      %v2165 = vadd.f32 %v2040, %v2141
      %v2166 = vadd.f32 %v2041, %v2143
      %v2167 = vadd.f32 %v2042, %v2146
      %v2168 = vadd.f32 %v2043, %v2148
      %v2169 = vadd.f32 %v2044, %v2151
      %v2170 = vadd.f32 %v2045, %v2153
      %v2171 = vadd.f32 %v2046, %v2156
      %v2172 = vadd.f32 %v2047, %v2158
      %v2173 = vadd.f32 %v2048, %v2161
      %v2174 = vadd.f32 %v2049, %v2163
      %s2175 = scalar_lea.vmem %s460, 768
      %v2176 = vld [vmem:[%s2175] sm:$0xf]
      %v2177 = vld [vmem:[%s2175 + $0x4] sm:$0xf]
      %v2178 = vld [vmem:[%s2175 + $0x8] sm:$0xf]
      %v2179 = vld [vmem:[%s2175 + $0xc] sm:$0xf]
      %v2180 = vld [vmem:[%s2175 + $0x10] sm:$0xf]
      %v2181 = vld [vmem:[%s2175 + $0x14] sm:$0xf]
      %v2182 = vld [vmem:[%s2175 + $0x18] sm:$0xf]
      %v2183 = vld [vmem:[%s2175 + $0x1c] sm:$0xf]
      %v2184 = vld [vmem:[%s2175 + $0x20] sm:$0xf]
      %v2185 = vld [vmem:[%s2175 + $0x24] sm:$0xf]
      %v2186 = vld [vmem:[%s2175 + $0x28] sm:$0xf]
      %v2187 = vld [vmem:[%s2175 + $0x2c] sm:$0xf]
      %v2188 = vld [vmem:[%s2175 + $0x30] sm:$0xf]
      %v2189 = vld [vmem:[%s2175 + $0x34] sm:$0xf]
      %v2190 = vld [vmem:[%s2175 + $0x38] sm:$0xf]
      %v2191 = vld [vmem:[%s2175 + $0x3c] sm:$0xf]
      %v2193 = vunpack.c.l.b16 %v1748
      %v2194 = vpack.c.b16 %v1779, %v1778
      %v2195 = vpack.c.b16 %v1781, %v1780
      %v2196 = vpack.c.b16 %v1783, %v1782
      %v2197 = vpack.c.b16 %v1785, %v1784
      %v2198 = vpack.c.b16 %v1907, %v1786
      %v2199 = vpack.c.b16 %v2193, %v2193
      %v2200 = vrot.slane %v2194, 1
      %v2201 = vrot.slane %v2195, 1
      %v2202 = vsel %vm798, %v2200, %v2201
      %v2203 = vrot.slane %v2196, 1
      %v2204 = vsel %vm798, %v2201, %v2203
      %v2205 = vrot.slane %v2197, 1
      %v2206 = vsel %vm798, %v2203, %v2205
      %v2207 = vrot.slane %v2198, 1
      %v2208 = vsel %vm798, %v2205, %v2207
      %v2209 = vrot.slane %v2199, 1
      %v2210 = vsel %vm798, %v2207, %v2209
      %v2232 = vunpack.c.l.b16 %v2176
      %v2233 = vunpack.c.l.b16 %v2177
      %v2234 = vunpack.c.l.b16 %v2178
      %v2235 = vunpack.c.l.b16 %v2179
      %v2236 = vunpack.c.l.b16 %v2180
      %v2237 = vunpack.c.l.b16 %v2181
      %v2238 = vunpack.c.l.b16 %v2182
      %v2239 = vunpack.c.l.b16 %v2183
      %v2240 = vunpack.c.l.b16 %v2184
      %v2241 = vunpack.c.l.b16 %v2185
      %v2242 = vunpack.c.l.b16 %v2186
      %v2243 = vunpack.c.l.b16 %v2187
      %v2244 = vunpack.c.l.b16 %v2188
      %v2245 = vunpack.c.l.b16 %v2189
      %v2246 = vunpack.c.l.b16 %v2190
      %v2247 = vunpack.c.l.b16 %v2191
      %v2248 = vpack.c.b16 %v2233, %v2232
      %v2249 = vpack.c.b16 %v2235, %v2234
      %v2250 = vpack.c.b16 %v2237, %v2236
      %v2251 = vpack.c.b16 %v2239, %v2238
      %v2252 = vpack.c.b16 %v2241, %v2240
      %v2253 = vpack.c.b16 %v2243, %v2242
      %v2254 = vpack.c.b16 %v2245, %v2244
      %v2255 = vpack.c.b16 %v2247, %v2246
      %2264 = vmatpush.bf16.msra.mxu0 %v2255
      %2265 = vmatpush.bf16.msra.mxu0 %v2254
      %2266 = vmatpush.bf16.msra.mxu0 %v2253
      %2267 = vmatpush.bf16.msra.mxu0 %v2252
      %2268 = vmatpush.bf16.msra.mxu0 %v2251
      %2269 = vmatpush.bf16.msra.mxu0 %v2250
      %2270 = vmatpush.bf16.msra.mxu0 %v2249
      %2271 = vmatpush.bf16.msra.mxu0 %v2248
      %2272 = vmatmul.bf16.gmra.mxu0 %v2202
      %v2273 = vpop.f32.mrf.mxu0
      %v2274 = vadd.f32 0.0, %v2273
      %v2275 = vpop.f32.mrf.mxu0
      %v2276 = vadd.f32 0.0, %v2275
      %2277 = vmatmul.bf16.gmra.mxu0 %v2204
      %v2278 = vpop.f32.mrf.mxu0
      %v2279 = vadd.f32 0.0, %v2278
      %v2280 = vpop.f32.mrf.mxu0
      %v2281 = vadd.f32 0.0, %v2280
      %2282 = vmatmul.bf16.gmra.mxu0 %v2206
      %v2283 = vpop.f32.mrf.mxu0
      %v2284 = vadd.f32 0.0, %v2283
      %v2285 = vpop.f32.mrf.mxu0
      %v2286 = vadd.f32 0.0, %v2285
      %2287 = vmatmul.bf16.gmra.mxu0 %v2208
      %v2288 = vpop.f32.mrf.mxu0
      %v2289 = vadd.f32 0.0, %v2288
      %v2290 = vpop.f32.mrf.mxu0
      %v2291 = vadd.f32 0.0, %v2290
      %2292 = vmatmul.bf16.gmra.mxu0 %v2210
      %v2293 = vpop.f32.mrf.mxu0
      %v2294 = vadd.f32 0.0, %v2293
      %v2295 = vpop.f32.mrf.mxu0
      %v2296 = vadd.f32 0.0, %v2295
      %2297 = vdwg.mxu0
      %v2298 = vadd.f32 %v2165, %v2274
      %v2299 = vadd.f32 %v2166, %v2276
      %v2300 = vadd.f32 %v2167, %v2279
      %v2301 = vadd.f32 %v2168, %v2281
      %v2302 = vadd.f32 %v2169, %v2284
      %v2303 = vadd.f32 %v2170, %v2286
      %v2304 = vadd.f32 %v2171, %v2289
      %v2305 = vadd.f32 %v2172, %v2291
      %v2306 = vadd.f32 %v2173, %v2294
      %v2307 = vadd.f32 %v2174, %v2296
      %s2308 = scalar_lea.vmem %s460, 832
      %v2309 = vld [vmem:[%s2308] sm:$0xf]
      %v2310 = vld [vmem:[%s2308 + $0x4] sm:$0xf]
      %v2311 = vld [vmem:[%s2308 + $0x8] sm:$0xf]
      %v2312 = vld [vmem:[%s2308 + $0xc] sm:$0xf]
      %v2313 = vld [vmem:[%s2308 + $0x10] sm:$0xf]
      %v2314 = vld [vmem:[%s2308 + $0x14] sm:$0xf]
      %v2315 = vld [vmem:[%s2308 + $0x18] sm:$0xf]
      %v2316 = vld [vmem:[%s2308 + $0x1c] sm:$0xf]
      %v2317 = vld [vmem:[%s2308 + $0x20] sm:$0xf]
      %v2318 = vld [vmem:[%s2308 + $0x24] sm:$0xf]
      %v2319 = vld [vmem:[%s2308 + $0x28] sm:$0xf]
      %v2320 = vld [vmem:[%s2308 + $0x2c] sm:$0xf]
      %v2321 = vld [vmem:[%s2308 + $0x30] sm:$0xf]
      %v2322 = vld [vmem:[%s2308 + $0x34] sm:$0xf]
      %v2323 = vld [vmem:[%s2308 + $0x38] sm:$0xf]
      %v2324 = vld [vmem:[%s2308 + $0x3c] sm:$0xf]
      %v2326 = vshrl.u32 %v2194, 16
      %v2328 = vrot.slane %v2326, 1
      %v2329 = vshll.u32 %v2194, 16
      %v2331 = vrot.slane %v2329, 2
      %v2332 = vor.u32 %v2328, %v2331
      %v2334 = vshrl.u32 %v2195, 16
      %v2336 = vrot.slane %v2334, 1
      %v2337 = vshll.u32 %v2195, 16
      %v2339 = vrot.slane %v2337, 2
      %v2340 = vor.u32 %v2336, %v2339
      %v2341 = vsel %vm1057, %v2332, %v2340
      %v2343 = vshrl.u32 %v2196, 16
      %v2345 = vrot.slane %v2343, 1
      %v2346 = vshll.u32 %v2196, 16
      %v2348 = vrot.slane %v2346, 2
      %v2349 = vor.u32 %v2345, %v2348
      %v2350 = vsel %vm1057, %v2340, %v2349
      %v2352 = vshrl.u32 %v2197, 16
      %v2354 = vrot.slane %v2352, 1
      %v2355 = vshll.u32 %v2197, 16
      %v2357 = vrot.slane %v2355, 2
      %v2358 = vor.u32 %v2354, %v2357
      %v2359 = vsel %vm1057, %v2349, %v2358
      %v2361 = vshrl.u32 %v2198, 16
      %v2363 = vrot.slane %v2361, 1
      %v2364 = vshll.u32 %v2198, 16
      %v2366 = vrot.slane %v2364, 2
      %v2367 = vor.u32 %v2363, %v2366
      %v2368 = vsel %vm1057, %v2358, %v2367
      %v2370 = vshrl.u32 %v2199, 16
      %v2372 = vrot.slane %v2370, 1
      %v2373 = vshll.u32 %v2199, 16
      %v2375 = vrot.slane %v2373, 2
      %v2376 = vor.u32 %v2372, %v2375
      %v2377 = vsel %vm1057, %v2367, %v2376
      %v2399 = vunpack.c.l.b16 %v2309
      %v2400 = vunpack.c.l.b16 %v2310
      %v2401 = vunpack.c.l.b16 %v2311
      %v2402 = vunpack.c.l.b16 %v2312
      %v2403 = vunpack.c.l.b16 %v2313
      %v2404 = vunpack.c.l.b16 %v2314
      %v2405 = vunpack.c.l.b16 %v2315
      %v2406 = vunpack.c.l.b16 %v2316
      %v2407 = vunpack.c.l.b16 %v2317
      %v2408 = vunpack.c.l.b16 %v2318
      %v2409 = vunpack.c.l.b16 %v2319
      %v2410 = vunpack.c.l.b16 %v2320
      %v2411 = vunpack.c.l.b16 %v2321
      %v2412 = vunpack.c.l.b16 %v2322
      %v2413 = vunpack.c.l.b16 %v2323
      %v2414 = vunpack.c.l.b16 %v2324
      %v2415 = vpack.c.b16 %v2400, %v2399
      %v2416 = vpack.c.b16 %v2402, %v2401
      %v2417 = vpack.c.b16 %v2404, %v2403
      %v2418 = vpack.c.b16 %v2406, %v2405
      %v2419 = vpack.c.b16 %v2408, %v2407
      %v2420 = vpack.c.b16 %v2410, %v2409
      %v2421 = vpack.c.b16 %v2412, %v2411
      %v2422 = vpack.c.b16 %v2414, %v2413
      %2431 = vmatpush.bf16.msra.mxu0 %v2422
      %2432 = vmatpush.bf16.msra.mxu0 %v2421
      %2433 = vmatpush.bf16.msra.mxu0 %v2420
      %2434 = vmatpush.bf16.msra.mxu0 %v2419
      %2435 = vmatpush.bf16.msra.mxu0 %v2418
      %2436 = vmatpush.bf16.msra.mxu0 %v2417
      %2437 = vmatpush.bf16.msra.mxu0 %v2416
      %2438 = vmatpush.bf16.msra.mxu0 %v2415
      %2439 = vmatmul.bf16.gmra.mxu0 %v2341
      %v2440 = vpop.f32.mrf.mxu0
      %v2441 = vadd.f32 0.0, %v2440
      %v2442 = vpop.f32.mrf.mxu0
      %v2443 = vadd.f32 0.0, %v2442
      %2444 = vmatmul.bf16.gmra.mxu0 %v2350
      %v2445 = vpop.f32.mrf.mxu0
      %v2446 = vadd.f32 0.0, %v2445
      %v2447 = vpop.f32.mrf.mxu0
      %v2448 = vadd.f32 0.0, %v2447
      %2449 = vmatmul.bf16.gmra.mxu0 %v2359
      %v2450 = vpop.f32.mrf.mxu0
      %v2451 = vadd.f32 0.0, %v2450
      %v2452 = vpop.f32.mrf.mxu0
      %v2453 = vadd.f32 0.0, %v2452
      %2454 = vmatmul.bf16.gmra.mxu0 %v2368
      %v2455 = vpop.f32.mrf.mxu0
      %v2456 = vadd.f32 0.0, %v2455
      %v2457 = vpop.f32.mrf.mxu0
      %v2458 = vadd.f32 0.0, %v2457
      %2459 = vmatmul.bf16.gmra.mxu0 %v2377
      %v2460 = vpop.f32.mrf.mxu0
      %v2461 = vadd.f32 0.0, %v2460
      %v2462 = vpop.f32.mrf.mxu0
      %v2463 = vadd.f32 0.0, %v2462
      %2464 = vdwg.mxu0
      %v2465 = vadd.f32 %v2298, %v2441
      %v2466 = vadd.f32 %v2299, %v2443
      %v2467 = vadd.f32 %v2300, %v2446
      %v2468 = vadd.f32 %v2301, %v2448
      %v2469 = vadd.f32 %v2302, %v2451
      %v2470 = vadd.f32 %v2303, %v2453
      %v2471 = vadd.f32 %v2304, %v2456
      %v2472 = vadd.f32 %v2305, %v2458
      %v2473 = vadd.f32 %v2306, %v2461
      %v2474 = vadd.f32 %v2307, %v2463
      %s2475 = scalar_lea.vmem %s460, 896
      %v2476 = vld [vmem:[%s2475] sm:$0xf]
      %v2477 = vld [vmem:[%s2475 + $0x4] sm:$0xf]
      %v2478 = vld [vmem:[%s2475 + $0x8] sm:$0xf]
      %v2479 = vld [vmem:[%s2475 + $0xc] sm:$0xf]
      %v2480 = vld [vmem:[%s2475 + $0x10] sm:$0xf]
      %v2481 = vld [vmem:[%s2475 + $0x14] sm:$0xf]
      %v2482 = vld [vmem:[%s2475 + $0x18] sm:$0xf]
      %v2483 = vld [vmem:[%s2475 + $0x1c] sm:$0xf]
      %v2484 = vld [vmem:[%s2475 + $0x20] sm:$0xf]
      %v2485 = vld [vmem:[%s2475 + $0x24] sm:$0xf]
      %v2486 = vld [vmem:[%s2475 + $0x28] sm:$0xf]
      %v2487 = vld [vmem:[%s2475 + $0x2c] sm:$0xf]
      %v2488 = vld [vmem:[%s2475 + $0x30] sm:$0xf]
      %v2489 = vld [vmem:[%s2475 + $0x34] sm:$0xf]
      %v2490 = vld [vmem:[%s2475 + $0x38] sm:$0xf]
      %v2491 = vld [vmem:[%s2475 + $0x3c] sm:$0xf]
      %v2492 = vrot.slane %v2194, 2
      %v2493 = vrot.slane %v2195, 2
      %v2494 = vsel %vm1225, %v2492, %v2493
      %v2495 = vrot.slane %v2196, 2
      %v2496 = vsel %vm1225, %v2493, %v2495
      %v2497 = vrot.slane %v2197, 2
      %v2498 = vsel %vm1225, %v2495, %v2497
      %v2499 = vrot.slane %v2198, 2
      %v2500 = vsel %vm1225, %v2497, %v2499
      %v2501 = vrot.slane %v2199, 2
      %v2502 = vsel %vm1225, %v2499, %v2501
      %v2524 = vunpack.c.l.b16 %v2476
      %v2525 = vunpack.c.l.b16 %v2477
      %v2526 = vunpack.c.l.b16 %v2478
      %v2527 = vunpack.c.l.b16 %v2479
      %v2528 = vunpack.c.l.b16 %v2480
      %v2529 = vunpack.c.l.b16 %v2481
      %v2530 = vunpack.c.l.b16 %v2482
      %v2531 = vunpack.c.l.b16 %v2483
      %v2532 = vunpack.c.l.b16 %v2484
      %v2533 = vunpack.c.l.b16 %v2485
      %v2534 = vunpack.c.l.b16 %v2486
      %v2535 = vunpack.c.l.b16 %v2487
      %v2536 = vunpack.c.l.b16 %v2488
      %v2537 = vunpack.c.l.b16 %v2489
      %v2538 = vunpack.c.l.b16 %v2490
      %v2539 = vunpack.c.l.b16 %v2491
      %v2540 = vpack.c.b16 %v2525, %v2524
      %v2541 = vpack.c.b16 %v2527, %v2526
      %v2542 = vpack.c.b16 %v2529, %v2528
      %v2543 = vpack.c.b16 %v2531, %v2530
      %v2544 = vpack.c.b16 %v2533, %v2532
      %v2545 = vpack.c.b16 %v2535, %v2534
      %v2546 = vpack.c.b16 %v2537, %v2536
      %v2547 = vpack.c.b16 %v2539, %v2538
      %2556 = vmatpush.bf16.msra.mxu0 %v2547
      %2557 = vmatpush.bf16.msra.mxu0 %v2546
      %2558 = vmatpush.bf16.msra.mxu0 %v2545
      %2559 = vmatpush.bf16.msra.mxu0 %v2544
      %2560 = vmatpush.bf16.msra.mxu0 %v2543
      %2561 = vmatpush.bf16.msra.mxu0 %v2542
      %2562 = vmatpush.bf16.msra.mxu0 %v2541
      %2563 = vmatpush.bf16.msra.mxu0 %v2540
      %2564 = vmatmul.bf16.gmra.mxu0 %v2494
      %v2565 = vpop.f32.mrf.mxu0
      %v2566 = vadd.f32 0.0, %v2565
      %v2567 = vpop.f32.mrf.mxu0
      %v2568 = vadd.f32 0.0, %v2567
      %2569 = vmatmul.bf16.gmra.mxu0 %v2496
      %v2570 = vpop.f32.mrf.mxu0
      %v2571 = vadd.f32 0.0, %v2570
      %v2572 = vpop.f32.mrf.mxu0
      %v2573 = vadd.f32 0.0, %v2572
      %2574 = vmatmul.bf16.gmra.mxu0 %v2498
      %v2575 = vpop.f32.mrf.mxu0
      %v2576 = vadd.f32 0.0, %v2575
      %v2577 = vpop.f32.mrf.mxu0
      %v2578 = vadd.f32 0.0, %v2577
      %2579 = vmatmul.bf16.gmra.mxu0 %v2500
      %v2580 = vpop.f32.mrf.mxu0
      %v2581 = vadd.f32 0.0, %v2580
      %v2582 = vpop.f32.mrf.mxu0
      %v2583 = vadd.f32 0.0, %v2582
      %2584 = vmatmul.bf16.gmra.mxu0 %v2502
      %v2585 = vpop.f32.mrf.mxu0
      %v2586 = vadd.f32 0.0, %v2585
      %v2587 = vpop.f32.mrf.mxu0
      %v2588 = vadd.f32 0.0, %v2587
      %2589 = vdwg.mxu0
      %v2590 = vadd.f32 %v2465, %v2566
      %v2591 = vadd.f32 %v2466, %v2568
      %v2592 = vadd.f32 %v2467, %v2571
      %v2593 = vadd.f32 %v2468, %v2573
      %v2594 = vadd.f32 %v2469, %v2576
      %v2595 = vadd.f32 %v2470, %v2578
      %v2596 = vadd.f32 %v2471, %v2581
      %v2597 = vadd.f32 %v2472, %v2583
      %v2598 = vadd.f32 %v2473, %v2586
      %v2599 = vadd.f32 %v2474, %v2588
      %s2600 = scalar_lea.vmem %s460, 960
      %v2601 = vld [vmem:[%s2600] sm:$0xf]
      %v2602 = vld [vmem:[%s2600 + $0x4] sm:$0xf]
      %v2603 = vld [vmem:[%s2600 + $0x8] sm:$0xf]
      %v2604 = vld [vmem:[%s2600 + $0xc] sm:$0xf]
      %v2605 = vld [vmem:[%s2600 + $0x10] sm:$0xf]
      %v2606 = vld [vmem:[%s2600 + $0x14] sm:$0xf]
      %v2607 = vld [vmem:[%s2600 + $0x18] sm:$0xf]
      %v2608 = vld [vmem:[%s2600 + $0x1c] sm:$0xf]
      %v2609 = vld [vmem:[%s2600 + $0x20] sm:$0xf]
      %v2610 = vld [vmem:[%s2600 + $0x24] sm:$0xf]
      %v2611 = vld [vmem:[%s2600 + $0x28] sm:$0xf]
      %v2612 = vld [vmem:[%s2600 + $0x2c] sm:$0xf]
      %v2613 = vld [vmem:[%s2600 + $0x30] sm:$0xf]
      %v2614 = vld [vmem:[%s2600 + $0x34] sm:$0xf]
      %v2615 = vld [vmem:[%s2600 + $0x38] sm:$0xf]
      %v2616 = vld [vmem:[%s2600 + $0x3c] sm:$0xf]
      %v2618 = vunpack.c.l.b16 %v1749
      %v2619 = vpack.c.b16 %v2193, %v1907
      %v2620 = vpack.c.b16 %v2618, %v2618
      %v2621 = vrot.slane %v1788, 2
      %v2622 = vrot.slane %v1789, 2
      %v2623 = vsel %vm1225, %v2621, %v2622
      %v2624 = vrot.slane %v1790, 2
      %v2625 = vsel %vm1225, %v2622, %v2624
      %v2626 = vrot.slane %v1791, 2
      %v2627 = vsel %vm1225, %v2624, %v2626
      %v2628 = vrot.slane %v2619, 2
      %v2629 = vsel %vm1225, %v2626, %v2628
      %v2630 = vrot.slane %v2620, 2
      %v2631 = vsel %vm1225, %v2628, %v2630
      %v2653 = vunpack.c.l.b16 %v2601
      %v2654 = vunpack.c.l.b16 %v2602
      %v2655 = vunpack.c.l.b16 %v2603
      %v2656 = vunpack.c.l.b16 %v2604
      %v2657 = vunpack.c.l.b16 %v2605
      %v2658 = vunpack.c.l.b16 %v2606
      %v2659 = vunpack.c.l.b16 %v2607
      %v2660 = vunpack.c.l.b16 %v2608
      %v2661 = vunpack.c.l.b16 %v2609
      %v2662 = vunpack.c.l.b16 %v2610
      %v2663 = vunpack.c.l.b16 %v2611
      %v2664 = vunpack.c.l.b16 %v2612
      %v2665 = vunpack.c.l.b16 %v2613
      %v2666 = vunpack.c.l.b16 %v2614
      %v2667 = vunpack.c.l.b16 %v2615
      %v2668 = vunpack.c.l.b16 %v2616
      %v2669 = vpack.c.b16 %v2654, %v2653
      %v2670 = vpack.c.b16 %v2656, %v2655
      %v2671 = vpack.c.b16 %v2658, %v2657
      %v2672 = vpack.c.b16 %v2660, %v2659
      %v2673 = vpack.c.b16 %v2662, %v2661
      %v2674 = vpack.c.b16 %v2664, %v2663
      %v2675 = vpack.c.b16 %v2666, %v2665
      %v2676 = vpack.c.b16 %v2668, %v2667
      %2685 = vmatpush.bf16.msra.mxu0 %v2676
      %2686 = vmatpush.bf16.msra.mxu0 %v2675
      %2687 = vmatpush.bf16.msra.mxu0 %v2674
      %2688 = vmatpush.bf16.msra.mxu0 %v2673
      %2689 = vmatpush.bf16.msra.mxu0 %v2672
      %2690 = vmatpush.bf16.msra.mxu0 %v2671
      %2691 = vmatpush.bf16.msra.mxu0 %v2670
      %2692 = vmatpush.bf16.msra.mxu0 %v2669
      %2693 = vmatmul.bf16.gmra.mxu0 %v2623
      %v2694 = vpop.f32.mrf.mxu0
      %v2695 = vadd.f32 0.0, %v2694
      %v2696 = vpop.f32.mrf.mxu0
      %v2697 = vadd.f32 0.0, %v2696
      %2698 = vmatmul.bf16.gmra.mxu0 %v2625
      %v2699 = vpop.f32.mrf.mxu0
      %v2700 = vadd.f32 0.0, %v2699
      %v2701 = vpop.f32.mrf.mxu0
      %v2702 = vadd.f32 0.0, %v2701
      %2703 = vmatmul.bf16.gmra.mxu0 %v2627
      %v2704 = vpop.f32.mrf.mxu0
      %v2705 = vadd.f32 0.0, %v2704
      %v2706 = vpop.f32.mrf.mxu0
      %v2707 = vadd.f32 0.0, %v2706
      %2708 = vmatmul.bf16.gmra.mxu0 %v2629
      %v2709 = vpop.f32.mrf.mxu0
      %v2710 = vadd.f32 0.0, %v2709
      %v2711 = vpop.f32.mrf.mxu0
      %v2712 = vadd.f32 0.0, %v2711
      %2713 = vmatmul.bf16.gmra.mxu0 %v2631
      %v2714 = vpop.f32.mrf.mxu0
      %v2715 = vadd.f32 0.0, %v2714
      %v2716 = vpop.f32.mrf.mxu0
      %v2717 = vadd.f32 0.0, %v2716
      %2718 = vdwg.mxu0
      %v2719 = vadd.f32 %v2590, %v2695
      %v2720 = vadd.f32 %v2591, %v2697
      %v2721 = vadd.f32 %v2592, %v2700
      %v2722 = vadd.f32 %v2593, %v2702
      %v2723 = vadd.f32 %v2594, %v2705
      %v2724 = vadd.f32 %v2595, %v2707
      %v2725 = vadd.f32 %v2596, %v2710
      %v2726 = vadd.f32 %v2597, %v2712
      %v2727 = vadd.f32 %v2598, %v2715
      %v2728 = vadd.f32 %v2599, %v2717
      %s2729 = scalar_lea.vmem %s460, 1024
      %v2730 = vld [vmem:[%s2729] sm:$0xf]
      %v2731 = vld [vmem:[%s2729 + $0x4] sm:$0xf]
      %v2732 = vld [vmem:[%s2729 + $0x8] sm:$0xf]
      %v2733 = vld [vmem:[%s2729 + $0xc] sm:$0xf]
      %v2734 = vld [vmem:[%s2729 + $0x10] sm:$0xf]
      %v2735 = vld [vmem:[%s2729 + $0x14] sm:$0xf]
      %v2736 = vld [vmem:[%s2729 + $0x18] sm:$0xf]
      %v2737 = vld [vmem:[%s2729 + $0x1c] sm:$0xf]
      %v2738 = vld [vmem:[%s2729 + $0x20] sm:$0xf]
      %v2739 = vld [vmem:[%s2729 + $0x24] sm:$0xf]
      %v2740 = vld [vmem:[%s2729 + $0x28] sm:$0xf]
      %v2741 = vld [vmem:[%s2729 + $0x2c] sm:$0xf]
      %v2742 = vld [vmem:[%s2729 + $0x30] sm:$0xf]
      %v2743 = vld [vmem:[%s2729 + $0x34] sm:$0xf]
      %v2744 = vld [vmem:[%s2729 + $0x38] sm:$0xf]
      %v2745 = vld [vmem:[%s2729 + $0x3c] sm:$0xf]
      %v2746 = vrot.slane %v1921, 2
      %v2747 = vrot.slane %v1917, 3
      %v2748 = vor.u32 %v2746, %v2747
      %v2749 = vrot.slane %v1929, 2
      %v2750 = vrot.slane %v1925, 3
      %v2751 = vor.u32 %v2749, %v2750
      %v2752 = vsel %vm1480, %v2748, %v2751
      %v2753 = vrot.slane %v1937, 2
      %v2754 = vrot.slane %v1933, 3
      %v2755 = vor.u32 %v2753, %v2754
      %v2756 = vsel %vm1480, %v2751, %v2755
      %v2757 = vrot.slane %v1945, 2
      %v2758 = vrot.slane %v1941, 3
      %v2759 = vor.u32 %v2757, %v2758
      %v2760 = vsel %vm1480, %v2755, %v2759
      %v2762 = vshrl.u32 %v2619, 16
      %v2764 = vrot.slane %v2762, 2
      %v2765 = vshll.u32 %v2619, 16
      %v2767 = vrot.slane %v2765, 3
      %v2768 = vor.u32 %v2764, %v2767
      %v2769 = vsel %vm1480, %v2759, %v2768
      %v2771 = vshrl.u32 %v2620, 16
      %v2773 = vrot.slane %v2771, 2
      %v2774 = vshll.u32 %v2620, 16
      %v2776 = vrot.slane %v2774, 3
      %v2777 = vor.u32 %v2773, %v2776
      %v2778 = vsel %vm1480, %v2768, %v2777
      %v2800 = vunpack.c.l.b16 %v2730
      %v2801 = vunpack.c.l.b16 %v2731
      %v2802 = vunpack.c.l.b16 %v2732
      %v2803 = vunpack.c.l.b16 %v2733
      %v2804 = vunpack.c.l.b16 %v2734
      %v2805 = vunpack.c.l.b16 %v2735
      %v2806 = vunpack.c.l.b16 %v2736
      %v2807 = vunpack.c.l.b16 %v2737
      %v2808 = vunpack.c.l.b16 %v2738
      %v2809 = vunpack.c.l.b16 %v2739
      %v2810 = vunpack.c.l.b16 %v2740
      %v2811 = vunpack.c.l.b16 %v2741
      %v2812 = vunpack.c.l.b16 %v2742
      %v2813 = vunpack.c.l.b16 %v2743
      %v2814 = vunpack.c.l.b16 %v2744
      %v2815 = vunpack.c.l.b16 %v2745
      %v2816 = vpack.c.b16 %v2801, %v2800
      %v2817 = vpack.c.b16 %v2803, %v2802
      %v2818 = vpack.c.b16 %v2805, %v2804
      %v2819 = vpack.c.b16 %v2807, %v2806
      %v2820 = vpack.c.b16 %v2809, %v2808
      %v2821 = vpack.c.b16 %v2811, %v2810
      %v2822 = vpack.c.b16 %v2813, %v2812
      %v2823 = vpack.c.b16 %v2815, %v2814
      %2832 = vmatpush.bf16.msra.mxu0 %v2823
      %2833 = vmatpush.bf16.msra.mxu0 %v2822
      %2834 = vmatpush.bf16.msra.mxu0 %v2821
      %2835 = vmatpush.bf16.msra.mxu0 %v2820
      %2836 = vmatpush.bf16.msra.mxu0 %v2819
      %2837 = vmatpush.bf16.msra.mxu0 %v2818
      %2838 = vmatpush.bf16.msra.mxu0 %v2817
      %2839 = vmatpush.bf16.msra.mxu0 %v2816
      %2840 = vmatmul.bf16.gmra.mxu0 %v2752
      %v2841 = vpop.f32.mrf.mxu0
      %v2842 = vadd.f32 0.0, %v2841
      %v2843 = vpop.f32.mrf.mxu0
      %v2844 = vadd.f32 0.0, %v2843
      %2845 = vmatmul.bf16.gmra.mxu0 %v2756
      %v2846 = vpop.f32.mrf.mxu0
      %v2847 = vadd.f32 0.0, %v2846
      %v2848 = vpop.f32.mrf.mxu0
      %v2849 = vadd.f32 0.0, %v2848
      %2850 = vmatmul.bf16.gmra.mxu0 %v2760
      %v2851 = vpop.f32.mrf.mxu0
      %v2852 = vadd.f32 0.0, %v2851
      %v2853 = vpop.f32.mrf.mxu0
      %v2854 = vadd.f32 0.0, %v2853
      %2855 = vmatmul.bf16.gmra.mxu0 %v2769
      %v2856 = vpop.f32.mrf.mxu0
      %v2857 = vadd.f32 0.0, %v2856
      %v2858 = vpop.f32.mrf.mxu0
      %v2859 = vadd.f32 0.0, %v2858
      %2860 = vmatmul.bf16.gmra.mxu0 %v2778
      %v2861 = vpop.f32.mrf.mxu0
      %v2862 = vadd.f32 0.0, %v2861
      %v2863 = vpop.f32.mrf.mxu0
      %v2864 = vadd.f32 0.0, %v2863
      %2865 = vdwg.mxu0
      %v2866 = vadd.f32 %v2719, %v2842
      %v2867 = vadd.f32 %v2720, %v2844
      %v2868 = vadd.f32 %v2721, %v2847
      %v2869 = vadd.f32 %v2722, %v2849
      %v2870 = vadd.f32 %v2723, %v2852
      %v2871 = vadd.f32 %v2724, %v2854
      %v2872 = vadd.f32 %v2725, %v2857
      %v2873 = vadd.f32 %v2726, %v2859
      %v2874 = vadd.f32 %v2727, %v2862
      %v2875 = vadd.f32 %v2728, %v2864
      %s2876 = scalar_lea.vmem %s460, 1088
      %v2877 = vld [vmem:[%s2876] sm:$0xf]
      %v2878 = vld [vmem:[%s2876 + $0x4] sm:$0xf]
      %v2879 = vld [vmem:[%s2876 + $0x8] sm:$0xf]
      %v2880 = vld [vmem:[%s2876 + $0xc] sm:$0xf]
      %v2881 = vld [vmem:[%s2876 + $0x10] sm:$0xf]
      %v2882 = vld [vmem:[%s2876 + $0x14] sm:$0xf]
      %v2883 = vld [vmem:[%s2876 + $0x18] sm:$0xf]
      %v2884 = vld [vmem:[%s2876 + $0x1c] sm:$0xf]
      %v2885 = vld [vmem:[%s2876 + $0x20] sm:$0xf]
      %v2886 = vld [vmem:[%s2876 + $0x24] sm:$0xf]
      %v2887 = vld [vmem:[%s2876 + $0x28] sm:$0xf]
      %v2888 = vld [vmem:[%s2876 + $0x2c] sm:$0xf]
      %v2889 = vld [vmem:[%s2876 + $0x30] sm:$0xf]
      %v2890 = vld [vmem:[%s2876 + $0x34] sm:$0xf]
      %v2891 = vld [vmem:[%s2876 + $0x38] sm:$0xf]
      %v2892 = vld [vmem:[%s2876 + $0x3c] sm:$0xf]
      %v2893 = vrot.slane %v1788, 3
      %v2894 = vrot.slane %v1789, 3
      %v2895 = vsel %vm1628, %v2893, %v2894
      %v2896 = vrot.slane %v1790, 3
      %v2897 = vsel %vm1628, %v2894, %v2896
      %v2898 = vrot.slane %v1791, 3
      %v2899 = vsel %vm1628, %v2896, %v2898
      %v2900 = vrot.slane %v2619, 3
      %v2901 = vsel %vm1628, %v2898, %v2900
      %v2902 = vrot.slane %v2620, 3
      %v2903 = vsel %vm1628, %v2900, %v2902
      %v2925 = vunpack.c.l.b16 %v2877
      %v2926 = vunpack.c.l.b16 %v2878
      %v2927 = vunpack.c.l.b16 %v2879
      %v2928 = vunpack.c.l.b16 %v2880
      %v2929 = vunpack.c.l.b16 %v2881
      %v2930 = vunpack.c.l.b16 %v2882
      %v2931 = vunpack.c.l.b16 %v2883
      %v2932 = vunpack.c.l.b16 %v2884
      %v2933 = vunpack.c.l.b16 %v2885
      %v2934 = vunpack.c.l.b16 %v2886
      %v2935 = vunpack.c.l.b16 %v2887
      %v2936 = vunpack.c.l.b16 %v2888
      %v2937 = vunpack.c.l.b16 %v2889
      %v2938 = vunpack.c.l.b16 %v2890
      %v2939 = vunpack.c.l.b16 %v2891
      %v2940 = vunpack.c.l.b16 %v2892
      %v2941 = vpack.c.b16 %v2926, %v2925
      %v2942 = vpack.c.b16 %v2928, %v2927
      %v2943 = vpack.c.b16 %v2930, %v2929
      %v2944 = vpack.c.b16 %v2932, %v2931
      %v2945 = vpack.c.b16 %v2934, %v2933
      %v2946 = vpack.c.b16 %v2936, %v2935
      %v2947 = vpack.c.b16 %v2938, %v2937
      %v2948 = vpack.c.b16 %v2940, %v2939
      %2957 = vmatpush.bf16.msra.mxu0 %v2948
      %2958 = vmatpush.bf16.msra.mxu0 %v2947
      %2959 = vmatpush.bf16.msra.mxu0 %v2946
      %2960 = vmatpush.bf16.msra.mxu0 %v2945
      %2961 = vmatpush.bf16.msra.mxu0 %v2944
      %2962 = vmatpush.bf16.msra.mxu0 %v2943
      %2963 = vmatpush.bf16.msra.mxu0 %v2942
      %2964 = vmatpush.bf16.msra.mxu0 %v2941
      %2965 = vmatmul.bf16.gmra.mxu0 %v2895
      %v2966 = vpop.f32.mrf.mxu0
      %v2967 = vadd.f32 0.0, %v2966
      %v2968 = vpop.f32.mrf.mxu0
      %v2969 = vadd.f32 0.0, %v2968
      %2970 = vmatmul.bf16.gmra.mxu0 %v2897
      %v2971 = vpop.f32.mrf.mxu0
      %v2972 = vadd.f32 0.0, %v2971
      %v2973 = vpop.f32.mrf.mxu0
      %v2974 = vadd.f32 0.0, %v2973
      %2975 = vmatmul.bf16.gmra.mxu0 %v2899
      %v2976 = vpop.f32.mrf.mxu0
      %v2977 = vadd.f32 0.0, %v2976
      %v2978 = vpop.f32.mrf.mxu0
      %v2979 = vadd.f32 0.0, %v2978
      %2980 = vmatmul.bf16.gmra.mxu0 %v2901
      %v2981 = vpop.f32.mrf.mxu0
      %v2982 = vadd.f32 0.0, %v2981
      %v2983 = vpop.f32.mrf.mxu0
      %v2984 = vadd.f32 0.0, %v2983
      %2985 = vmatmul.bf16.gmra.mxu0 %v2903
      %v2986 = vpop.f32.mrf.mxu0
      %v2987 = vadd.f32 0.0, %v2986
      %v2988 = vpop.f32.mrf.mxu0
      %v2989 = vadd.f32 0.0, %v2988
      %2990 = vdwg.mxu0
      %v2991 = vadd.f32 %v2866, %v2967
      %v2992 = vadd.f32 %v2867, %v2969
      %v2993 = vadd.f32 %v2868, %v2972
      %v2994 = vadd.f32 %v2869, %v2974
      %v2995 = vadd.f32 %v2870, %v2977
      %v2996 = vadd.f32 %v2871, %v2979
      %v2997 = vadd.f32 %v2872, %v2982
      %v2998 = vadd.f32 %v2873, %v2984
      %v2999 = vadd.f32 %v2874, %v2987
      %v3000 = vadd.f32 %v2875, %v2989
      %v3001 = vld [vmem:[%s455] sm:$0xf]
      %v3002 = vld [vmem:[%s455 + $0x4] sm:$0xf]
      %v3003 = vld [vmem:[%s455 + $0x8] sm:$0xf]
      %v3004 = vld [vmem:[%s455 + $0xc] sm:$0xf]
      %v3005 = vld [vmem:[%s455 + $0x10] sm:$0xf]
      %v3006 = vld [vmem:[%s455 + $0x14] sm:$0xf]
      %v3007 = vld [vmem:[%s455 + $0x18] sm:$0xf]
      %v3008 = vld [vmem:[%s455 + $0x1c] sm:$0xf]
      %v3009 = vld [vmem:[%s455 + $0x20] sm:$0xf]
      %v3010 = vld [vmem:[%s455 + $0x24] sm:$0xf]
      %v3011 = vld [vmem:[%s455 + $0x28] sm:$0xf]
      %v3012 = vld [vmem:[%s455 + $0x2c] sm:$0xf]
      %v3013 = vld [vmem:[%s455 + $0x30] sm:$0xf]
      %s3014 = scalar_lea.vmem %s460, 1152
      %v3015 = vld [vmem:[%s3014] sm:$0xf]
      %v3016 = vld [vmem:[%s3014 + $0x4] sm:$0xf]
      %v3017 = vld [vmem:[%s3014 + $0x8] sm:$0xf]
      %v3018 = vld [vmem:[%s3014 + $0xc] sm:$0xf]
      %v3019 = vld [vmem:[%s3014 + $0x10] sm:$0xf]
      %v3020 = vld [vmem:[%s3014 + $0x14] sm:$0xf]
      %v3021 = vld [vmem:[%s3014 + $0x18] sm:$0xf]
      %v3022 = vld [vmem:[%s3014 + $0x1c] sm:$0xf]
      %v3023 = vld [vmem:[%s3014 + $0x20] sm:$0xf]
      %v3024 = vld [vmem:[%s3014 + $0x24] sm:$0xf]
      %v3025 = vld [vmem:[%s3014 + $0x28] sm:$0xf]
      %v3026 = vld [vmem:[%s3014 + $0x2c] sm:$0xf]
      %v3027 = vld [vmem:[%s3014 + $0x30] sm:$0xf]
      %v3028 = vld [vmem:[%s3014 + $0x34] sm:$0xf]
      %v3029 = vld [vmem:[%s3014 + $0x38] sm:$0xf]
      %v3030 = vld [vmem:[%s3014 + $0x3c] sm:$0xf]
      %v3041 = vunpack.c.l.b16 %v3001
      %v3042 = vunpack.c.l.b16 %v3002
      %v3043 = vunpack.c.l.b16 %v3003
      %v3044 = vunpack.c.l.b16 %v3004
      %v3045 = vunpack.c.l.b16 %v3005
      %v3046 = vunpack.c.l.b16 %v3006
      %v3047 = vunpack.c.l.b16 %v3007
      %v3048 = vunpack.c.l.b16 %v3008
      %v3049 = vunpack.c.l.b16 %v3009
      %v3050 = vunpack.c.l.b16 %v3010
      %v3051 = vpack.c.b16 %v3042, %v3041
      %v3052 = vpack.c.b16 %v3044, %v3043
      %v3053 = vpack.c.b16 %v3046, %v3045
      %v3054 = vpack.c.b16 %v3048, %v3047
      %v3055 = vpack.c.b16 %v3050, %v3049
      %v3077 = vunpack.c.l.b16 %v3015
      %v3078 = vunpack.c.l.b16 %v3016
      %v3079 = vunpack.c.l.b16 %v3017
      %v3080 = vunpack.c.l.b16 %v3018
      %v3081 = vunpack.c.l.b16 %v3019
      %v3082 = vunpack.c.l.b16 %v3020
      %v3083 = vunpack.c.l.b16 %v3021
      %v3084 = vunpack.c.l.b16 %v3022
      %v3085 = vunpack.c.l.b16 %v3023
      %v3086 = vunpack.c.l.b16 %v3024
      %v3087 = vunpack.c.l.b16 %v3025
      %v3088 = vunpack.c.l.b16 %v3026
      %v3089 = vunpack.c.l.b16 %v3027
      %v3090 = vunpack.c.l.b16 %v3028
      %v3091 = vunpack.c.l.b16 %v3029
      %v3092 = vunpack.c.l.b16 %v3030
      %v3093 = vpack.c.b16 %v3078, %v3077
      %v3094 = vpack.c.b16 %v3080, %v3079
      %v3095 = vpack.c.b16 %v3082, %v3081
      %v3096 = vpack.c.b16 %v3084, %v3083
      %v3097 = vpack.c.b16 %v3086, %v3085
      %v3098 = vpack.c.b16 %v3088, %v3087
      %v3099 = vpack.c.b16 %v3090, %v3089
      %v3100 = vpack.c.b16 %v3092, %v3091
      %3109 = vmatpush.bf16.msra.mxu0 %v3100
      %3110 = vmatpush.bf16.msra.mxu0 %v3099
      %3111 = vmatpush.bf16.msra.mxu0 %v3098
      %3112 = vmatpush.bf16.msra.mxu0 %v3097
      %3113 = vmatpush.bf16.msra.mxu0 %v3096
      %3114 = vmatpush.bf16.msra.mxu0 %v3095
      %3115 = vmatpush.bf16.msra.mxu0 %v3094
      %3116 = vmatpush.bf16.msra.mxu0 %v3093
      %3117 = vmatmul.bf16.gmra.mxu0 %v3051
      %v3118 = vpop.f32.mrf.mxu0
      %v3119 = vadd.f32 0.0, %v3118
      %v3120 = vpop.f32.mrf.mxu0
      %v3121 = vadd.f32 0.0, %v3120
      %3122 = vmatmul.bf16.gmra.mxu0 %v3052
      %v3123 = vpop.f32.mrf.mxu0
      %v3124 = vadd.f32 0.0, %v3123
      %v3125 = vpop.f32.mrf.mxu0
      %v3126 = vadd.f32 0.0, %v3125
      %3127 = vmatmul.bf16.gmra.mxu0 %v3053
      %v3128 = vpop.f32.mrf.mxu0
      %v3129 = vadd.f32 0.0, %v3128
      %v3130 = vpop.f32.mrf.mxu0
      %v3131 = vadd.f32 0.0, %v3130
      %3132 = vmatmul.bf16.gmra.mxu0 %v3054
      %v3133 = vpop.f32.mrf.mxu0
      %v3134 = vadd.f32 0.0, %v3133
      %v3135 = vpop.f32.mrf.mxu0
      %v3136 = vadd.f32 0.0, %v3135
      %3137 = vmatmul.bf16.gmra.mxu0 %v3055
      %v3138 = vpop.f32.mrf.mxu0
      %v3139 = vadd.f32 0.0, %v3138
      %v3140 = vpop.f32.mrf.mxu0
      %v3141 = vadd.f32 0.0, %v3140
      %3142 = vdwg.mxu0
      %v3143 = vadd.f32 %v2991, %v3119
      %v3144 = vadd.f32 %v2992, %v3121
      %v3145 = vadd.f32 %v2993, %v3124
      %v3146 = vadd.f32 %v2994, %v3126
      %v3147 = vadd.f32 %v2995, %v3129
      %v3148 = vadd.f32 %v2996, %v3131
      %v3149 = vadd.f32 %v2997, %v3134
      %v3150 = vadd.f32 %v2998, %v3136
      %v3151 = vadd.f32 %v2999, %v3139
      %v3152 = vadd.f32 %v3000, %v3141
      %s3153 = scalar_lea.vmem %s460, 1216
      %v3154 = vld [vmem:[%s3153] sm:$0xf]
      %v3155 = vld [vmem:[%s3153 + $0x4] sm:$0xf]
      %v3156 = vld [vmem:[%s3153 + $0x8] sm:$0xf]
      %v3157 = vld [vmem:[%s3153 + $0xc] sm:$0xf]
      %v3158 = vld [vmem:[%s3153 + $0x10] sm:$0xf]
      %v3159 = vld [vmem:[%s3153 + $0x14] sm:$0xf]
      %v3160 = vld [vmem:[%s3153 + $0x18] sm:$0xf]
      %v3161 = vld [vmem:[%s3153 + $0x1c] sm:$0xf]
      %v3162 = vld [vmem:[%s3153 + $0x20] sm:$0xf]
      %v3163 = vld [vmem:[%s3153 + $0x24] sm:$0xf]
      %v3164 = vld [vmem:[%s3153 + $0x28] sm:$0xf]
      %v3165 = vld [vmem:[%s3153 + $0x2c] sm:$0xf]
      %v3166 = vld [vmem:[%s3153 + $0x30] sm:$0xf]
      %v3167 = vld [vmem:[%s3153 + $0x34] sm:$0xf]
      %v3168 = vld [vmem:[%s3153 + $0x38] sm:$0xf]
      %v3169 = vld [vmem:[%s3153 + $0x3c] sm:$0xf]
      %v3171 = vunpack.c.l.b16 %v3011
      %v3172 = vpack.c.b16 %v3171, %v3171
      %v3174 = vshrl.u32 %v3051, 16
      %v3176 = vshll.u32 %v3051, 16
      %v3178 = vrot.slane %v3176, 1
      %v3179 = vor.u32 %v3174, %v3178
      %v3181 = vshll.u32 %v3052, 16
      %v3183 = vrot.slane %v3181, 1
      %v3184 = vsel %vm562, %v3179, %v3183
      %v3185 = vshrl.u32 %v3052, 16
      %v3187 = vor.u32 %v3185, %v3183
      %v3189 = vshll.u32 %v3053, 16
      %v3191 = vrot.slane %v3189, 1
      %v3192 = vsel %vm562, %v3187, %v3191
      %v3193 = vshrl.u32 %v3053, 16
      %v3195 = vor.u32 %v3193, %v3191
      %v3197 = vshll.u32 %v3054, 16
      %v3199 = vrot.slane %v3197, 1
      %v3200 = vsel %vm562, %v3195, %v3199
      %v3201 = vshrl.u32 %v3054, 16
      %v3203 = vor.u32 %v3201, %v3199
      %v3205 = vshll.u32 %v3055, 16
      %v3207 = vrot.slane %v3205, 1
      %v3208 = vsel %vm562, %v3203, %v3207
      %v3209 = vshrl.u32 %v3055, 16
      %v3211 = vor.u32 %v3209, %v3207
      %v3213 = vshll.u32 %v3172, 16
      %v3215 = vrot.slane %v3213, 1
      %v3216 = vsel %vm562, %v3211, %v3215
      %v3238 = vunpack.c.l.b16 %v3154
      %v3239 = vunpack.c.l.b16 %v3155
      %v3240 = vunpack.c.l.b16 %v3156
      %v3241 = vunpack.c.l.b16 %v3157
      %v3242 = vunpack.c.l.b16 %v3158
      %v3243 = vunpack.c.l.b16 %v3159
      %v3244 = vunpack.c.l.b16 %v3160
      %v3245 = vunpack.c.l.b16 %v3161
      %v3246 = vunpack.c.l.b16 %v3162
      %v3247 = vunpack.c.l.b16 %v3163
      %v3248 = vunpack.c.l.b16 %v3164
      %v3249 = vunpack.c.l.b16 %v3165
      %v3250 = vunpack.c.l.b16 %v3166
      %v3251 = vunpack.c.l.b16 %v3167
      %v3252 = vunpack.c.l.b16 %v3168
      %v3253 = vunpack.c.l.b16 %v3169
      %v3254 = vpack.c.b16 %v3239, %v3238
      %v3255 = vpack.c.b16 %v3241, %v3240
      %v3256 = vpack.c.b16 %v3243, %v3242
      %v3257 = vpack.c.b16 %v3245, %v3244
      %v3258 = vpack.c.b16 %v3247, %v3246
      %v3259 = vpack.c.b16 %v3249, %v3248
      %v3260 = vpack.c.b16 %v3251, %v3250
      %v3261 = vpack.c.b16 %v3253, %v3252
      %3270 = vmatpush.bf16.msra.mxu0 %v3261
      %3271 = vmatpush.bf16.msra.mxu0 %v3260
      %3272 = vmatpush.bf16.msra.mxu0 %v3259
      %3273 = vmatpush.bf16.msra.mxu0 %v3258
      %3274 = vmatpush.bf16.msra.mxu0 %v3257
      %3275 = vmatpush.bf16.msra.mxu0 %v3256
      %3276 = vmatpush.bf16.msra.mxu0 %v3255
      %3277 = vmatpush.bf16.msra.mxu0 %v3254
      %3278 = vmatmul.bf16.gmra.mxu0 %v3184
      %v3279 = vpop.f32.mrf.mxu0
      %v3280 = vadd.f32 0.0, %v3279
      %v3281 = vpop.f32.mrf.mxu0
      %v3282 = vadd.f32 0.0, %v3281
      %3283 = vmatmul.bf16.gmra.mxu0 %v3192
      %v3284 = vpop.f32.mrf.mxu0
      %v3285 = vadd.f32 0.0, %v3284
      %v3286 = vpop.f32.mrf.mxu0
      %v3287 = vadd.f32 0.0, %v3286
      %3288 = vmatmul.bf16.gmra.mxu0 %v3200
      %v3289 = vpop.f32.mrf.mxu0
      %v3290 = vadd.f32 0.0, %v3289
      %v3291 = vpop.f32.mrf.mxu0
      %v3292 = vadd.f32 0.0, %v3291
      %3293 = vmatmul.bf16.gmra.mxu0 %v3208
      %v3294 = vpop.f32.mrf.mxu0
      %v3295 = vadd.f32 0.0, %v3294
      %v3296 = vpop.f32.mrf.mxu0
      %v3297 = vadd.f32 0.0, %v3296
      %3298 = vmatmul.bf16.gmra.mxu0 %v3216
      %v3299 = vpop.f32.mrf.mxu0
      %v3300 = vadd.f32 0.0, %v3299
      %v3301 = vpop.f32.mrf.mxu0
      %v3302 = vadd.f32 0.0, %v3301
      %3303 = vdwg.mxu0
      %v3304 = vadd.f32 %v3143, %v3280
      %v3305 = vadd.f32 %v3144, %v3282
      %v3306 = vadd.f32 %v3145, %v3285
      %v3307 = vadd.f32 %v3146, %v3287
      %v3308 = vadd.f32 %v3147, %v3290
      %v3309 = vadd.f32 %v3148, %v3292
      %v3310 = vadd.f32 %v3149, %v3295
      %v3311 = vadd.f32 %v3150, %v3297
      %v3312 = vadd.f32 %v3151, %v3300
      %v3313 = vadd.f32 %v3152, %v3302
      %s3314 = scalar_lea.vmem %s460, 1280
      %v3315 = vld [vmem:[%s3314] sm:$0xf]
      %v3316 = vld [vmem:[%s3314 + $0x4] sm:$0xf]
      %v3317 = vld [vmem:[%s3314 + $0x8] sm:$0xf]
      %v3318 = vld [vmem:[%s3314 + $0xc] sm:$0xf]
      %v3319 = vld [vmem:[%s3314 + $0x10] sm:$0xf]
      %v3320 = vld [vmem:[%s3314 + $0x14] sm:$0xf]
      %v3321 = vld [vmem:[%s3314 + $0x18] sm:$0xf]
      %v3322 = vld [vmem:[%s3314 + $0x1c] sm:$0xf]
      %v3323 = vld [vmem:[%s3314 + $0x20] sm:$0xf]
      %v3324 = vld [vmem:[%s3314 + $0x24] sm:$0xf]
      %v3325 = vld [vmem:[%s3314 + $0x28] sm:$0xf]
      %v3326 = vld [vmem:[%s3314 + $0x2c] sm:$0xf]
      %v3327 = vld [vmem:[%s3314 + $0x30] sm:$0xf]
      %v3328 = vld [vmem:[%s3314 + $0x34] sm:$0xf]
      %v3329 = vld [vmem:[%s3314 + $0x38] sm:$0xf]
      %v3330 = vld [vmem:[%s3314 + $0x3c] sm:$0xf]
      %v3331 = vrot.slane %v3051, 1
      %v3332 = vrot.slane %v3052, 1
      %v3333 = vsel %vm798, %v3331, %v3332
      %v3334 = vrot.slane %v3053, 1
      %v3335 = vsel %vm798, %v3332, %v3334
      %v3336 = vrot.slane %v3054, 1
      %v3337 = vsel %vm798, %v3334, %v3336
      %v3338 = vrot.slane %v3055, 1
      %v3339 = vsel %vm798, %v3336, %v3338
      %v3340 = vrot.slane %v3172, 1
      %v3341 = vsel %vm798, %v3338, %v3340
      %v3363 = vunpack.c.l.b16 %v3315
      %v3364 = vunpack.c.l.b16 %v3316
      %v3365 = vunpack.c.l.b16 %v3317
      %v3366 = vunpack.c.l.b16 %v3318
      %v3367 = vunpack.c.l.b16 %v3319
      %v3368 = vunpack.c.l.b16 %v3320
      %v3369 = vunpack.c.l.b16 %v3321
      %v3370 = vunpack.c.l.b16 %v3322
      %v3371 = vunpack.c.l.b16 %v3323
      %v3372 = vunpack.c.l.b16 %v3324
      %v3373 = vunpack.c.l.b16 %v3325
      %v3374 = vunpack.c.l.b16 %v3326
      %v3375 = vunpack.c.l.b16 %v3327
      %v3376 = vunpack.c.l.b16 %v3328
      %v3377 = vunpack.c.l.b16 %v3329
      %v3378 = vunpack.c.l.b16 %v3330
      %v3379 = vpack.c.b16 %v3364, %v3363
      %v3380 = vpack.c.b16 %v3366, %v3365
      %v3381 = vpack.c.b16 %v3368, %v3367
      %v3382 = vpack.c.b16 %v3370, %v3369
      %v3383 = vpack.c.b16 %v3372, %v3371
      %v3384 = vpack.c.b16 %v3374, %v3373
      %v3385 = vpack.c.b16 %v3376, %v3375
      %v3386 = vpack.c.b16 %v3378, %v3377
      %3395 = vmatpush.bf16.msra.mxu0 %v3386
      %3396 = vmatpush.bf16.msra.mxu0 %v3385
      %3397 = vmatpush.bf16.msra.mxu0 %v3384
      %3398 = vmatpush.bf16.msra.mxu0 %v3383
      %3399 = vmatpush.bf16.msra.mxu0 %v3382
      %3400 = vmatpush.bf16.msra.mxu0 %v3381
      %3401 = vmatpush.bf16.msra.mxu0 %v3380
      %3402 = vmatpush.bf16.msra.mxu0 %v3379
      %3403 = vmatmul.bf16.gmra.mxu0 %v3333
      %v3404 = vpop.f32.mrf.mxu0
      %v3405 = vadd.f32 0.0, %v3404
      %v3406 = vpop.f32.mrf.mxu0
      %v3407 = vadd.f32 0.0, %v3406
      %3408 = vmatmul.bf16.gmra.mxu0 %v3335
      %v3409 = vpop.f32.mrf.mxu0
      %v3410 = vadd.f32 0.0, %v3409
      %v3411 = vpop.f32.mrf.mxu0
      %v3412 = vadd.f32 0.0, %v3411
      %3413 = vmatmul.bf16.gmra.mxu0 %v3337
      %v3414 = vpop.f32.mrf.mxu0
      %v3415 = vadd.f32 0.0, %v3414
      %v3416 = vpop.f32.mrf.mxu0
      %v3417 = vadd.f32 0.0, %v3416
      %3418 = vmatmul.bf16.gmra.mxu0 %v3339
      %v3419 = vpop.f32.mrf.mxu0
      %v3420 = vadd.f32 0.0, %v3419
      %v3421 = vpop.f32.mrf.mxu0
      %v3422 = vadd.f32 0.0, %v3421
      %3423 = vmatmul.bf16.gmra.mxu0 %v3341
      %v3424 = vpop.f32.mrf.mxu0
      %v3425 = vadd.f32 0.0, %v3424
      %v3426 = vpop.f32.mrf.mxu0
      %v3427 = vadd.f32 0.0, %v3426
      %3428 = vdwg.mxu0
      %v3429 = vadd.f32 %v3304, %v3405
      %v3430 = vadd.f32 %v3305, %v3407
      %v3431 = vadd.f32 %v3306, %v3410
      %v3432 = vadd.f32 %v3307, %v3412
      %v3433 = vadd.f32 %v3308, %v3415
      %v3434 = vadd.f32 %v3309, %v3417
      %v3435 = vadd.f32 %v3310, %v3420
      %v3436 = vadd.f32 %v3311, %v3422
      %v3437 = vadd.f32 %v3312, %v3425
      %v3438 = vadd.f32 %v3313, %v3427
      %s3439 = scalar_lea.vmem %s460, 1344
      %v3440 = vld [vmem:[%s3439] sm:$0xf]
      %v3441 = vld [vmem:[%s3439 + $0x4] sm:$0xf]
      %v3442 = vld [vmem:[%s3439 + $0x8] sm:$0xf]
      %v3443 = vld [vmem:[%s3439 + $0xc] sm:$0xf]
      %v3444 = vld [vmem:[%s3439 + $0x10] sm:$0xf]
      %v3445 = vld [vmem:[%s3439 + $0x14] sm:$0xf]
      %v3446 = vld [vmem:[%s3439 + $0x18] sm:$0xf]
      %v3447 = vld [vmem:[%s3439 + $0x1c] sm:$0xf]
      %v3448 = vld [vmem:[%s3439 + $0x20] sm:$0xf]
      %v3449 = vld [vmem:[%s3439 + $0x24] sm:$0xf]
      %v3450 = vld [vmem:[%s3439 + $0x28] sm:$0xf]
      %v3451 = vld [vmem:[%s3439 + $0x2c] sm:$0xf]
      %v3452 = vld [vmem:[%s3439 + $0x30] sm:$0xf]
      %v3453 = vld [vmem:[%s3439 + $0x34] sm:$0xf]
      %v3454 = vld [vmem:[%s3439 + $0x38] sm:$0xf]
      %v3455 = vld [vmem:[%s3439 + $0x3c] sm:$0xf]
      %v3457 = vunpack.c.l.b16 %v3012
      %v3458 = vpack.c.b16 %v3043, %v3042
      %v3459 = vpack.c.b16 %v3045, %v3044
      %v3460 = vpack.c.b16 %v3047, %v3046
      %v3461 = vpack.c.b16 %v3049, %v3048
      %v3462 = vpack.c.b16 %v3171, %v3050
      %v3463 = vpack.c.b16 %v3457, %v3457
      %v3464 = vrot.slane %v3458, 1
      %v3465 = vrot.slane %v3459, 1
      %v3466 = vsel %vm798, %v3464, %v3465
      %v3467 = vrot.slane %v3460, 1
      %v3468 = vsel %vm798, %v3465, %v3467
      %v3469 = vrot.slane %v3461, 1
      %v3470 = vsel %vm798, %v3467, %v3469
      %v3471 = vrot.slane %v3462, 1
      %v3472 = vsel %vm798, %v3469, %v3471
      %v3473 = vrot.slane %v3463, 1
      %v3474 = vsel %vm798, %v3471, %v3473
      %v3496 = vunpack.c.l.b16 %v3440
      %v3497 = vunpack.c.l.b16 %v3441
      %v3498 = vunpack.c.l.b16 %v3442
      %v3499 = vunpack.c.l.b16 %v3443
      %v3500 = vunpack.c.l.b16 %v3444
      %v3501 = vunpack.c.l.b16 %v3445
      %v3502 = vunpack.c.l.b16 %v3446
      %v3503 = vunpack.c.l.b16 %v3447
      %v3504 = vunpack.c.l.b16 %v3448
      %v3505 = vunpack.c.l.b16 %v3449
      %v3506 = vunpack.c.l.b16 %v3450
      %v3507 = vunpack.c.l.b16 %v3451
      %v3508 = vunpack.c.l.b16 %v3452
      %v3509 = vunpack.c.l.b16 %v3453
      %v3510 = vunpack.c.l.b16 %v3454
      %v3511 = vunpack.c.l.b16 %v3455
      %v3512 = vpack.c.b16 %v3497, %v3496
      %v3513 = vpack.c.b16 %v3499, %v3498
      %v3514 = vpack.c.b16 %v3501, %v3500
      %v3515 = vpack.c.b16 %v3503, %v3502
      %v3516 = vpack.c.b16 %v3505, %v3504
      %v3517 = vpack.c.b16 %v3507, %v3506
      %v3518 = vpack.c.b16 %v3509, %v3508
      %v3519 = vpack.c.b16 %v3511, %v3510
      %3528 = vmatpush.bf16.msra.mxu0 %v3519
      %3529 = vmatpush.bf16.msra.mxu0 %v3518
      %3530 = vmatpush.bf16.msra.mxu0 %v3517
      %3531 = vmatpush.bf16.msra.mxu0 %v3516
      %3532 = vmatpush.bf16.msra.mxu0 %v3515
      %3533 = vmatpush.bf16.msra.mxu0 %v3514
      %3534 = vmatpush.bf16.msra.mxu0 %v3513
      %3535 = vmatpush.bf16.msra.mxu0 %v3512
      %3536 = vmatmul.bf16.gmra.mxu0 %v3466
      %v3537 = vpop.f32.mrf.mxu0
      %v3538 = vadd.f32 0.0, %v3537
      %v3539 = vpop.f32.mrf.mxu0
      %v3540 = vadd.f32 0.0, %v3539
      %3541 = vmatmul.bf16.gmra.mxu0 %v3468
      %v3542 = vpop.f32.mrf.mxu0
      %v3543 = vadd.f32 0.0, %v3542
      %v3544 = vpop.f32.mrf.mxu0
      %v3545 = vadd.f32 0.0, %v3544
      %3546 = vmatmul.bf16.gmra.mxu0 %v3470
      %v3547 = vpop.f32.mrf.mxu0
      %v3548 = vadd.f32 0.0, %v3547
      %v3549 = vpop.f32.mrf.mxu0
      %v3550 = vadd.f32 0.0, %v3549
      %3551 = vmatmul.bf16.gmra.mxu0 %v3472
      %v3552 = vpop.f32.mrf.mxu0
      %v3553 = vadd.f32 0.0, %v3552
      %v3554 = vpop.f32.mrf.mxu0
      %v3555 = vadd.f32 0.0, %v3554
      %3556 = vmatmul.bf16.gmra.mxu0 %v3474
      %v3557 = vpop.f32.mrf.mxu0
      %v3558 = vadd.f32 0.0, %v3557
      %v3559 = vpop.f32.mrf.mxu0
      %v3560 = vadd.f32 0.0, %v3559
      %3561 = vdwg.mxu0
      %v3562 = vadd.f32 %v3429, %v3538
      %v3563 = vadd.f32 %v3430, %v3540
      %v3564 = vadd.f32 %v3431, %v3543
      %v3565 = vadd.f32 %v3432, %v3545
      %v3566 = vadd.f32 %v3433, %v3548
      %v3567 = vadd.f32 %v3434, %v3550
      %v3568 = vadd.f32 %v3435, %v3553
      %v3569 = vadd.f32 %v3436, %v3555
      %v3570 = vadd.f32 %v3437, %v3558
      %v3571 = vadd.f32 %v3438, %v3560
      %s3572 = scalar_lea.vmem %s460, 1408
      %v3573 = vld [vmem:[%s3572] sm:$0xf]
      %v3574 = vld [vmem:[%s3572 + $0x4] sm:$0xf]
      %v3575 = vld [vmem:[%s3572 + $0x8] sm:$0xf]
      %v3576 = vld [vmem:[%s3572 + $0xc] sm:$0xf]
      %v3577 = vld [vmem:[%s3572 + $0x10] sm:$0xf]
      %v3578 = vld [vmem:[%s3572 + $0x14] sm:$0xf]
      %v3579 = vld [vmem:[%s3572 + $0x18] sm:$0xf]
      %v3580 = vld [vmem:[%s3572 + $0x1c] sm:$0xf]
      %v3581 = vld [vmem:[%s3572 + $0x20] sm:$0xf]
      %v3582 = vld [vmem:[%s3572 + $0x24] sm:$0xf]
      %v3583 = vld [vmem:[%s3572 + $0x28] sm:$0xf]
      %v3584 = vld [vmem:[%s3572 + $0x2c] sm:$0xf]
      %v3585 = vld [vmem:[%s3572 + $0x30] sm:$0xf]
      %v3586 = vld [vmem:[%s3572 + $0x34] sm:$0xf]
      %v3587 = vld [vmem:[%s3572 + $0x38] sm:$0xf]
      %v3588 = vld [vmem:[%s3572 + $0x3c] sm:$0xf]
      %v3590 = vshrl.u32 %v3458, 16
      %v3592 = vrot.slane %v3590, 1
      %v3593 = vshll.u32 %v3458, 16
      %v3595 = vrot.slane %v3593, 2
      %v3596 = vor.u32 %v3592, %v3595
      %v3598 = vshrl.u32 %v3459, 16
      %v3600 = vrot.slane %v3598, 1
      %v3601 = vshll.u32 %v3459, 16
      %v3603 = vrot.slane %v3601, 2
      %v3604 = vor.u32 %v3600, %v3603
      %v3605 = vsel %vm1057, %v3596, %v3604
      %v3607 = vshrl.u32 %v3460, 16
      %v3609 = vrot.slane %v3607, 1
      %v3610 = vshll.u32 %v3460, 16
      %v3612 = vrot.slane %v3610, 2
      %v3613 = vor.u32 %v3609, %v3612
      %v3614 = vsel %vm1057, %v3604, %v3613
      %v3616 = vshrl.u32 %v3461, 16
      %v3618 = vrot.slane %v3616, 1
      %v3619 = vshll.u32 %v3461, 16
      %v3621 = vrot.slane %v3619, 2
      %v3622 = vor.u32 %v3618, %v3621
      %v3623 = vsel %vm1057, %v3613, %v3622
      %v3625 = vshrl.u32 %v3462, 16
      %v3627 = vrot.slane %v3625, 1
      %v3628 = vshll.u32 %v3462, 16
      %v3630 = vrot.slane %v3628, 2
      %v3631 = vor.u32 %v3627, %v3630
      %v3632 = vsel %vm1057, %v3622, %v3631
      %v3634 = vshrl.u32 %v3463, 16
      %v3636 = vrot.slane %v3634, 1
      %v3637 = vshll.u32 %v3463, 16
      %v3639 = vrot.slane %v3637, 2
      %v3640 = vor.u32 %v3636, %v3639
      %v3641 = vsel %vm1057, %v3631, %v3640
      %v3663 = vunpack.c.l.b16 %v3573
      %v3664 = vunpack.c.l.b16 %v3574
      %v3665 = vunpack.c.l.b16 %v3575
      %v3666 = vunpack.c.l.b16 %v3576
      %v3667 = vunpack.c.l.b16 %v3577
      %v3668 = vunpack.c.l.b16 %v3578
      %v3669 = vunpack.c.l.b16 %v3579
      %v3670 = vunpack.c.l.b16 %v3580
      %v3671 = vunpack.c.l.b16 %v3581
      %v3672 = vunpack.c.l.b16 %v3582
      %v3673 = vunpack.c.l.b16 %v3583
      %v3674 = vunpack.c.l.b16 %v3584
      %v3675 = vunpack.c.l.b16 %v3585
      %v3676 = vunpack.c.l.b16 %v3586
      %v3677 = vunpack.c.l.b16 %v3587
      %v3678 = vunpack.c.l.b16 %v3588
      %v3679 = vpack.c.b16 %v3664, %v3663
      %v3680 = vpack.c.b16 %v3666, %v3665
      %v3681 = vpack.c.b16 %v3668, %v3667
      %v3682 = vpack.c.b16 %v3670, %v3669
      %v3683 = vpack.c.b16 %v3672, %v3671
      %v3684 = vpack.c.b16 %v3674, %v3673
      %v3685 = vpack.c.b16 %v3676, %v3675
      %v3686 = vpack.c.b16 %v3678, %v3677
      %3695 = vmatpush.bf16.msra.mxu0 %v3686
      %3696 = vmatpush.bf16.msra.mxu0 %v3685
      %3697 = vmatpush.bf16.msra.mxu0 %v3684
      %3698 = vmatpush.bf16.msra.mxu0 %v3683
      %3699 = vmatpush.bf16.msra.mxu0 %v3682
      %3700 = vmatpush.bf16.msra.mxu0 %v3681
      %3701 = vmatpush.bf16.msra.mxu0 %v3680
      %3702 = vmatpush.bf16.msra.mxu0 %v3679
      %3703 = vmatmul.bf16.gmra.mxu0 %v3605
      %v3704 = vpop.f32.mrf.mxu0
      %v3705 = vadd.f32 0.0, %v3704
      %v3706 = vpop.f32.mrf.mxu0
      %v3707 = vadd.f32 0.0, %v3706
      %3708 = vmatmul.bf16.gmra.mxu0 %v3614
      %v3709 = vpop.f32.mrf.mxu0
      %v3710 = vadd.f32 0.0, %v3709
      %v3711 = vpop.f32.mrf.mxu0
      %v3712 = vadd.f32 0.0, %v3711
      %3713 = vmatmul.bf16.gmra.mxu0 %v3623
      %v3714 = vpop.f32.mrf.mxu0
      %v3715 = vadd.f32 0.0, %v3714
      %v3716 = vpop.f32.mrf.mxu0
      %v3717 = vadd.f32 0.0, %v3716
      %3718 = vmatmul.bf16.gmra.mxu0 %v3632
      %v3719 = vpop.f32.mrf.mxu0
      %v3720 = vadd.f32 0.0, %v3719
      %v3721 = vpop.f32.mrf.mxu0
      %v3722 = vadd.f32 0.0, %v3721
      %3723 = vmatmul.bf16.gmra.mxu0 %v3641
      %v3724 = vpop.f32.mrf.mxu0
      %v3725 = vadd.f32 0.0, %v3724
      %v3726 = vpop.f32.mrf.mxu0
      %v3727 = vadd.f32 0.0, %v3726
      %3728 = vdwg.mxu0
      %v3729 = vadd.f32 %v3562, %v3705
      %v3730 = vadd.f32 %v3563, %v3707
      %v3731 = vadd.f32 %v3564, %v3710
      %v3732 = vadd.f32 %v3565, %v3712
      %v3733 = vadd.f32 %v3566, %v3715
      %v3734 = vadd.f32 %v3567, %v3717
      %v3735 = vadd.f32 %v3568, %v3720
      %v3736 = vadd.f32 %v3569, %v3722
      %v3737 = vadd.f32 %v3570, %v3725
      %v3738 = vadd.f32 %v3571, %v3727
      %s3739 = scalar_lea.vmem %s460, 1472
      %v3740 = vld [vmem:[%s3739] sm:$0xf]
      %v3741 = vld [vmem:[%s3739 + $0x4] sm:$0xf]
      %v3742 = vld [vmem:[%s3739 + $0x8] sm:$0xf]
      %v3743 = vld [vmem:[%s3739 + $0xc] sm:$0xf]
      %v3744 = vld [vmem:[%s3739 + $0x10] sm:$0xf]
      %v3745 = vld [vmem:[%s3739 + $0x14] sm:$0xf]
      %v3746 = vld [vmem:[%s3739 + $0x18] sm:$0xf]
      %v3747 = vld [vmem:[%s3739 + $0x1c] sm:$0xf]
      %v3748 = vld [vmem:[%s3739 + $0x20] sm:$0xf]
      %v3749 = vld [vmem:[%s3739 + $0x24] sm:$0xf]
      %v3750 = vld [vmem:[%s3739 + $0x28] sm:$0xf]
      %v3751 = vld [vmem:[%s3739 + $0x2c] sm:$0xf]
      %v3752 = vld [vmem:[%s3739 + $0x30] sm:$0xf]
      %v3753 = vld [vmem:[%s3739 + $0x34] sm:$0xf]
      %v3754 = vld [vmem:[%s3739 + $0x38] sm:$0xf]
      %v3755 = vld [vmem:[%s3739 + $0x3c] sm:$0xf]
      %v3756 = vrot.slane %v3458, 2
      %v3757 = vrot.slane %v3459, 2
      %v3758 = vsel %vm1225, %v3756, %v3757
      %v3759 = vrot.slane %v3460, 2
      %v3760 = vsel %vm1225, %v3757, %v3759
      %v3761 = vrot.slane %v3461, 2
      %v3762 = vsel %vm1225, %v3759, %v3761
      %v3763 = vrot.slane %v3462, 2
      %v3764 = vsel %vm1225, %v3761, %v3763
      %v3765 = vrot.slane %v3463, 2
      %v3766 = vsel %vm1225, %v3763, %v3765
      %v3788 = vunpack.c.l.b16 %v3740
      %v3789 = vunpack.c.l.b16 %v3741
      %v3790 = vunpack.c.l.b16 %v3742
      %v3791 = vunpack.c.l.b16 %v3743
      %v3792 = vunpack.c.l.b16 %v3744
      %v3793 = vunpack.c.l.b16 %v3745
      %v3794 = vunpack.c.l.b16 %v3746
      %v3795 = vunpack.c.l.b16 %v3747
      %v3796 = vunpack.c.l.b16 %v3748
      %v3797 = vunpack.c.l.b16 %v3749
      %v3798 = vunpack.c.l.b16 %v3750
      %v3799 = vunpack.c.l.b16 %v3751
      %v3800 = vunpack.c.l.b16 %v3752
      %v3801 = vunpack.c.l.b16 %v3753
      %v3802 = vunpack.c.l.b16 %v3754
      %v3803 = vunpack.c.l.b16 %v3755
      %v3804 = vpack.c.b16 %v3789, %v3788
      %v3805 = vpack.c.b16 %v3791, %v3790
      %v3806 = vpack.c.b16 %v3793, %v3792
      %v3807 = vpack.c.b16 %v3795, %v3794
      %v3808 = vpack.c.b16 %v3797, %v3796
      %v3809 = vpack.c.b16 %v3799, %v3798
      %v3810 = vpack.c.b16 %v3801, %v3800
      %v3811 = vpack.c.b16 %v3803, %v3802
      %3820 = vmatpush.bf16.msra.mxu0 %v3811
      %3821 = vmatpush.bf16.msra.mxu0 %v3810
      %3822 = vmatpush.bf16.msra.mxu0 %v3809
      %3823 = vmatpush.bf16.msra.mxu0 %v3808
      %3824 = vmatpush.bf16.msra.mxu0 %v3807
      %3825 = vmatpush.bf16.msra.mxu0 %v3806
      %3826 = vmatpush.bf16.msra.mxu0 %v3805
      %3827 = vmatpush.bf16.msra.mxu0 %v3804
      %3828 = vmatmul.bf16.gmra.mxu0 %v3758
      %v3829 = vpop.f32.mrf.mxu0
      %v3830 = vadd.f32 0.0, %v3829
      %v3831 = vpop.f32.mrf.mxu0
      %v3832 = vadd.f32 0.0, %v3831
      %3833 = vmatmul.bf16.gmra.mxu0 %v3760
      %v3834 = vpop.f32.mrf.mxu0
      %v3835 = vadd.f32 0.0, %v3834
      %v3836 = vpop.f32.mrf.mxu0
      %v3837 = vadd.f32 0.0, %v3836
      %3838 = vmatmul.bf16.gmra.mxu0 %v3762
      %v3839 = vpop.f32.mrf.mxu0
      %v3840 = vadd.f32 0.0, %v3839
      %v3841 = vpop.f32.mrf.mxu0
      %v3842 = vadd.f32 0.0, %v3841
      %3843 = vmatmul.bf16.gmra.mxu0 %v3764
      %v3844 = vpop.f32.mrf.mxu0
      %v3845 = vadd.f32 0.0, %v3844
      %v3846 = vpop.f32.mrf.mxu0
      %v3847 = vadd.f32 0.0, %v3846
      %3848 = vmatmul.bf16.gmra.mxu0 %v3766
      %v3849 = vpop.f32.mrf.mxu0
      %v3850 = vadd.f32 0.0, %v3849
      %v3851 = vpop.f32.mrf.mxu0
      %v3852 = vadd.f32 0.0, %v3851
      %3853 = vdwg.mxu0
      %v3854 = vadd.f32 %v3729, %v3830
      %v3855 = vadd.f32 %v3730, %v3832
      %v3856 = vadd.f32 %v3731, %v3835
      %v3857 = vadd.f32 %v3732, %v3837
      %v3858 = vadd.f32 %v3733, %v3840
      %v3859 = vadd.f32 %v3734, %v3842
      %v3860 = vadd.f32 %v3735, %v3845
      %v3861 = vadd.f32 %v3736, %v3847
      %v3862 = vadd.f32 %v3737, %v3850
      %v3863 = vadd.f32 %v3738, %v3852
      %s3864 = scalar_lea.vmem %s460, 1536
      %v3865 = vld [vmem:[%s3864] sm:$0xf]
      %v3866 = vld [vmem:[%s3864 + $0x4] sm:$0xf]
      %v3867 = vld [vmem:[%s3864 + $0x8] sm:$0xf]
      %v3868 = vld [vmem:[%s3864 + $0xc] sm:$0xf]
      %v3869 = vld [vmem:[%s3864 + $0x10] sm:$0xf]
      %v3870 = vld [vmem:[%s3864 + $0x14] sm:$0xf]
      %v3871 = vld [vmem:[%s3864 + $0x18] sm:$0xf]
      %v3872 = vld [vmem:[%s3864 + $0x1c] sm:$0xf]
      %v3873 = vld [vmem:[%s3864 + $0x20] sm:$0xf]
      %v3874 = vld [vmem:[%s3864 + $0x24] sm:$0xf]
      %v3875 = vld [vmem:[%s3864 + $0x28] sm:$0xf]
      %v3876 = vld [vmem:[%s3864 + $0x2c] sm:$0xf]
      %v3877 = vld [vmem:[%s3864 + $0x30] sm:$0xf]
      %v3878 = vld [vmem:[%s3864 + $0x34] sm:$0xf]
      %v3879 = vld [vmem:[%s3864 + $0x38] sm:$0xf]
      %v3880 = vld [vmem:[%s3864 + $0x3c] sm:$0xf]
      %v3882 = vunpack.c.l.b16 %v3013
      %v3883 = vpack.c.b16 %v3457, %v3171
      %v3884 = vpack.c.b16 %v3882, %v3882
      %v3885 = vrot.slane %v3052, 2
      %v3886 = vrot.slane %v3053, 2
      %v3887 = vsel %vm1225, %v3885, %v3886
      %v3888 = vrot.slane %v3054, 2
      %v3889 = vsel %vm1225, %v3886, %v3888
      %v3890 = vrot.slane %v3055, 2
      %v3891 = vsel %vm1225, %v3888, %v3890
      %v3892 = vrot.slane %v3883, 2
      %v3893 = vsel %vm1225, %v3890, %v3892
      %v3894 = vrot.slane %v3884, 2
      %v3895 = vsel %vm1225, %v3892, %v3894
      %v3917 = vunpack.c.l.b16 %v3865
      %v3918 = vunpack.c.l.b16 %v3866
      %v3919 = vunpack.c.l.b16 %v3867
      %v3920 = vunpack.c.l.b16 %v3868
      %v3921 = vunpack.c.l.b16 %v3869
      %v3922 = vunpack.c.l.b16 %v3870
      %v3923 = vunpack.c.l.b16 %v3871
      %v3924 = vunpack.c.l.b16 %v3872
      %v3925 = vunpack.c.l.b16 %v3873
      %v3926 = vunpack.c.l.b16 %v3874
      %v3927 = vunpack.c.l.b16 %v3875
      %v3928 = vunpack.c.l.b16 %v3876
      %v3929 = vunpack.c.l.b16 %v3877
      %v3930 = vunpack.c.l.b16 %v3878
      %v3931 = vunpack.c.l.b16 %v3879
      %v3932 = vunpack.c.l.b16 %v3880
      %v3933 = vpack.c.b16 %v3918, %v3917
      %v3934 = vpack.c.b16 %v3920, %v3919
      %v3935 = vpack.c.b16 %v3922, %v3921
      %v3936 = vpack.c.b16 %v3924, %v3923
      %v3937 = vpack.c.b16 %v3926, %v3925
      %v3938 = vpack.c.b16 %v3928, %v3927
      %v3939 = vpack.c.b16 %v3930, %v3929
      %v3940 = vpack.c.b16 %v3932, %v3931
      %3949 = vmatpush.bf16.msra.mxu0 %v3940
      %3950 = vmatpush.bf16.msra.mxu0 %v3939
      %3951 = vmatpush.bf16.msra.mxu0 %v3938
      %3952 = vmatpush.bf16.msra.mxu0 %v3937
      %3953 = vmatpush.bf16.msra.mxu0 %v3936
      %3954 = vmatpush.bf16.msra.mxu0 %v3935
      %3955 = vmatpush.bf16.msra.mxu0 %v3934
      %3956 = vmatpush.bf16.msra.mxu0 %v3933
      %3957 = vmatmul.bf16.gmra.mxu0 %v3887
      %v3958 = vpop.f32.mrf.mxu0
      %v3959 = vadd.f32 0.0, %v3958
      %v3960 = vpop.f32.mrf.mxu0
      %v3961 = vadd.f32 0.0, %v3960
      %3962 = vmatmul.bf16.gmra.mxu0 %v3889
      %v3963 = vpop.f32.mrf.mxu0
      %v3964 = vadd.f32 0.0, %v3963
      %v3965 = vpop.f32.mrf.mxu0
      %v3966 = vadd.f32 0.0, %v3965
      %3967 = vmatmul.bf16.gmra.mxu0 %v3891
      %v3968 = vpop.f32.mrf.mxu0
      %v3969 = vadd.f32 0.0, %v3968
      %v3970 = vpop.f32.mrf.mxu0
      %v3971 = vadd.f32 0.0, %v3970
      %3972 = vmatmul.bf16.gmra.mxu0 %v3893
      %v3973 = vpop.f32.mrf.mxu0
      %v3974 = vadd.f32 0.0, %v3973
      %v3975 = vpop.f32.mrf.mxu0
      %v3976 = vadd.f32 0.0, %v3975
      %3977 = vmatmul.bf16.gmra.mxu0 %v3895
      %v3978 = vpop.f32.mrf.mxu0
      %v3979 = vadd.f32 0.0, %v3978
      %v3980 = vpop.f32.mrf.mxu0
      %v3981 = vadd.f32 0.0, %v3980
      %3982 = vdwg.mxu0
      %v3983 = vadd.f32 %v3854, %v3959
      %v3984 = vadd.f32 %v3855, %v3961
      %v3985 = vadd.f32 %v3856, %v3964
      %v3986 = vadd.f32 %v3857, %v3966
      %v3987 = vadd.f32 %v3858, %v3969
      %v3988 = vadd.f32 %v3859, %v3971
      %v3989 = vadd.f32 %v3860, %v3974
      %v3990 = vadd.f32 %v3861, %v3976
      %v3991 = vadd.f32 %v3862, %v3979
      %v3992 = vadd.f32 %v3863, %v3981
      %s3993 = scalar_lea.vmem %s460, 1600
      %v3994 = vld [vmem:[%s3993] sm:$0xf]
      %v3995 = vld [vmem:[%s3993 + $0x4] sm:$0xf]
      %v3996 = vld [vmem:[%s3993 + $0x8] sm:$0xf]
      %v3997 = vld [vmem:[%s3993 + $0xc] sm:$0xf]
      %v3998 = vld [vmem:[%s3993 + $0x10] sm:$0xf]
      %v3999 = vld [vmem:[%s3993 + $0x14] sm:$0xf]
      %v4000 = vld [vmem:[%s3993 + $0x18] sm:$0xf]
      %v4001 = vld [vmem:[%s3993 + $0x1c] sm:$0xf]
      %v4002 = vld [vmem:[%s3993 + $0x20] sm:$0xf]
      %v4003 = vld [vmem:[%s3993 + $0x24] sm:$0xf]
      %v4004 = vld [vmem:[%s3993 + $0x28] sm:$0xf]
      %v4005 = vld [vmem:[%s3993 + $0x2c] sm:$0xf]
      %v4006 = vld [vmem:[%s3993 + $0x30] sm:$0xf]
      %v4007 = vld [vmem:[%s3993 + $0x34] sm:$0xf]
      %v4008 = vld [vmem:[%s3993 + $0x38] sm:$0xf]
      %v4009 = vld [vmem:[%s3993 + $0x3c] sm:$0xf]
      %v4010 = vrot.slane %v3185, 2
      %v4011 = vrot.slane %v3181, 3
      %v4012 = vor.u32 %v4010, %v4011
      %v4013 = vrot.slane %v3193, 2
      %v4014 = vrot.slane %v3189, 3
      %v4015 = vor.u32 %v4013, %v4014
      %v4016 = vsel %vm1480, %v4012, %v4015
      %v4017 = vrot.slane %v3201, 2
      %v4018 = vrot.slane %v3197, 3
      %v4019 = vor.u32 %v4017, %v4018
      %v4020 = vsel %vm1480, %v4015, %v4019
      %v4021 = vrot.slane %v3209, 2
      %v4022 = vrot.slane %v3205, 3
      %v4023 = vor.u32 %v4021, %v4022
      %v4024 = vsel %vm1480, %v4019, %v4023
      %v4026 = vshrl.u32 %v3883, 16
      %v4028 = vrot.slane %v4026, 2
      %v4029 = vshll.u32 %v3883, 16
      %v4031 = vrot.slane %v4029, 3
      %v4032 = vor.u32 %v4028, %v4031
      %v4033 = vsel %vm1480, %v4023, %v4032
      %v4035 = vshrl.u32 %v3884, 16
      %v4037 = vrot.slane %v4035, 2
      %v4038 = vshll.u32 %v3884, 16
      %v4040 = vrot.slane %v4038, 3
      %v4041 = vor.u32 %v4037, %v4040
      %v4042 = vsel %vm1480, %v4032, %v4041
      %v4064 = vunpack.c.l.b16 %v3994
      %v4065 = vunpack.c.l.b16 %v3995
      %v4066 = vunpack.c.l.b16 %v3996
      %v4067 = vunpack.c.l.b16 %v3997
      %v4068 = vunpack.c.l.b16 %v3998
      %v4069 = vunpack.c.l.b16 %v3999
      %v4070 = vunpack.c.l.b16 %v4000
      %v4071 = vunpack.c.l.b16 %v4001
      %v4072 = vunpack.c.l.b16 %v4002
      %v4073 = vunpack.c.l.b16 %v4003
      %v4074 = vunpack.c.l.b16 %v4004
      %v4075 = vunpack.c.l.b16 %v4005
      %v4076 = vunpack.c.l.b16 %v4006
      %v4077 = vunpack.c.l.b16 %v4007
      %v4078 = vunpack.c.l.b16 %v4008
      %v4079 = vunpack.c.l.b16 %v4009
      %v4080 = vpack.c.b16 %v4065, %v4064
      %v4081 = vpack.c.b16 %v4067, %v4066
      %v4082 = vpack.c.b16 %v4069, %v4068
      %v4083 = vpack.c.b16 %v4071, %v4070
      %v4084 = vpack.c.b16 %v4073, %v4072
      %v4085 = vpack.c.b16 %v4075, %v4074
      %v4086 = vpack.c.b16 %v4077, %v4076
      %v4087 = vpack.c.b16 %v4079, %v4078
      %4096 = vmatpush.bf16.msra.mxu0 %v4087
      %4097 = vmatpush.bf16.msra.mxu0 %v4086
      %4098 = vmatpush.bf16.msra.mxu0 %v4085
      %4099 = vmatpush.bf16.msra.mxu0 %v4084
      %4100 = vmatpush.bf16.msra.mxu0 %v4083
      %4101 = vmatpush.bf16.msra.mxu0 %v4082
      %4102 = vmatpush.bf16.msra.mxu0 %v4081
      %4103 = vmatpush.bf16.msra.mxu0 %v4080
      %4104 = vmatmul.bf16.gmra.mxu0 %v4016
      %v4105 = vpop.f32.mrf.mxu0
      %v4106 = vadd.f32 0.0, %v4105
      %v4107 = vpop.f32.mrf.mxu0
      %v4108 = vadd.f32 0.0, %v4107
      %4109 = vmatmul.bf16.gmra.mxu0 %v4020
      %v4110 = vpop.f32.mrf.mxu0
      %v4111 = vadd.f32 0.0, %v4110
      %v4112 = vpop.f32.mrf.mxu0
      %v4113 = vadd.f32 0.0, %v4112
      %4114 = vmatmul.bf16.gmra.mxu0 %v4024
      %v4115 = vpop.f32.mrf.mxu0
      %v4116 = vadd.f32 0.0, %v4115
      %v4117 = vpop.f32.mrf.mxu0
      %v4118 = vadd.f32 0.0, %v4117
      %4119 = vmatmul.bf16.gmra.mxu0 %v4033
      %v4120 = vpop.f32.mrf.mxu0
      %v4121 = vadd.f32 0.0, %v4120
      %v4122 = vpop.f32.mrf.mxu0
      %v4123 = vadd.f32 0.0, %v4122
      %4124 = vmatmul.bf16.gmra.mxu0 %v4042
      %v4125 = vpop.f32.mrf.mxu0
      %v4126 = vadd.f32 0.0, %v4125
      %v4127 = vpop.f32.mrf.mxu0
      %v4128 = vadd.f32 0.0, %v4127
      %4129 = vdwg.mxu0
      %v4130 = vadd.f32 %v3983, %v4106
      %v4131 = vadd.f32 %v3984, %v4108
      %v4132 = vadd.f32 %v3985, %v4111
      %v4133 = vadd.f32 %v3986, %v4113
      %v4134 = vadd.f32 %v3987, %v4116
      %v4135 = vadd.f32 %v3988, %v4118
      %v4136 = vadd.f32 %v3989, %v4121
      %v4137 = vadd.f32 %v3990, %v4123
      %v4138 = vadd.f32 %v3991, %v4126
      %v4139 = vadd.f32 %v3992, %v4128
      %s4140 = scalar_lea.vmem %s460, 1664
      %v4141 = vld [vmem:[%s4140] sm:$0xf]
      %v4142 = vld [vmem:[%s4140 + $0x4] sm:$0xf]
      %v4143 = vld [vmem:[%s4140 + $0x8] sm:$0xf]
      %v4144 = vld [vmem:[%s4140 + $0xc] sm:$0xf]
      %v4145 = vld [vmem:[%s4140 + $0x10] sm:$0xf]
      %v4146 = vld [vmem:[%s4140 + $0x14] sm:$0xf]
      %v4147 = vld [vmem:[%s4140 + $0x18] sm:$0xf]
      %v4148 = vld [vmem:[%s4140 + $0x1c] sm:$0xf]
      %v4149 = vld [vmem:[%s4140 + $0x20] sm:$0xf]
      %v4150 = vld [vmem:[%s4140 + $0x24] sm:$0xf]
      %v4151 = vld [vmem:[%s4140 + $0x28] sm:$0xf]
      %v4152 = vld [vmem:[%s4140 + $0x2c] sm:$0xf]
      %v4153 = vld [vmem:[%s4140 + $0x30] sm:$0xf]
      %v4154 = vld [vmem:[%s4140 + $0x34] sm:$0xf]
      %v4155 = vld [vmem:[%s4140 + $0x38] sm:$0xf]
      %v4156 = vld [vmem:[%s4140 + $0x3c] sm:$0xf]
      %v4157 = vrot.slane %v3052, 3
      %v4158 = vrot.slane %v3053, 3
      %v4159 = vsel %vm1628, %v4157, %v4158
      %v4160 = vrot.slane %v3054, 3
      %v4161 = vsel %vm1628, %v4158, %v4160
      %v4162 = vrot.slane %v3055, 3
      %v4163 = vsel %vm1628, %v4160, %v4162
      %v4164 = vrot.slane %v3883, 3
      %v4165 = vsel %vm1628, %v4162, %v4164
      %v4166 = vrot.slane %v3884, 3
      %v4167 = vsel %vm1628, %v4164, %v4166
      %v4189 = vunpack.c.l.b16 %v4141
      %v4190 = vunpack.c.l.b16 %v4142
      %v4191 = vunpack.c.l.b16 %v4143
      %v4192 = vunpack.c.l.b16 %v4144
      %v4193 = vunpack.c.l.b16 %v4145
      %v4194 = vunpack.c.l.b16 %v4146
      %v4195 = vunpack.c.l.b16 %v4147
      %v4196 = vunpack.c.l.b16 %v4148
      %v4197 = vunpack.c.l.b16 %v4149
      %v4198 = vunpack.c.l.b16 %v4150
      %v4199 = vunpack.c.l.b16 %v4151
      %v4200 = vunpack.c.l.b16 %v4152
      %v4201 = vunpack.c.l.b16 %v4153
      %v4202 = vunpack.c.l.b16 %v4154
      %v4203 = vunpack.c.l.b16 %v4155
      %v4204 = vunpack.c.l.b16 %v4156
      %v4205 = vpack.c.b16 %v4190, %v4189
      %v4206 = vpack.c.b16 %v4192, %v4191
      %v4207 = vpack.c.b16 %v4194, %v4193
      %v4208 = vpack.c.b16 %v4196, %v4195
      %v4209 = vpack.c.b16 %v4198, %v4197
      %v4210 = vpack.c.b16 %v4200, %v4199
      %v4211 = vpack.c.b16 %v4202, %v4201
      %v4212 = vpack.c.b16 %v4204, %v4203
      %4221 = vmatpush.bf16.msra.mxu0 %v4212
      %4222 = vmatpush.bf16.msra.mxu0 %v4211
      %4223 = vmatpush.bf16.msra.mxu0 %v4210
      %4224 = vmatpush.bf16.msra.mxu0 %v4209
      %4225 = vmatpush.bf16.msra.mxu0 %v4208
      %4226 = vmatpush.bf16.msra.mxu0 %v4207
      %4227 = vmatpush.bf16.msra.mxu0 %v4206
      %4228 = vmatpush.bf16.msra.mxu0 %v4205
      %4229 = vmatmul.bf16.gmra.mxu0 %v4159
      %v4230 = vpop.f32.mrf.mxu0
      %v4231 = vadd.f32 0.0, %v4230
      %v4232 = vpop.f32.mrf.mxu0
      %v4233 = vadd.f32 0.0, %v4232
      %4234 = vmatmul.bf16.gmra.mxu0 %v4161
      %v4235 = vpop.f32.mrf.mxu0
      %v4236 = vadd.f32 0.0, %v4235
      %v4237 = vpop.f32.mrf.mxu0
      %v4238 = vadd.f32 0.0, %v4237
      %4239 = vmatmul.bf16.gmra.mxu0 %v4163
      %v4240 = vpop.f32.mrf.mxu0
      %v4241 = vadd.f32 0.0, %v4240
      %v4242 = vpop.f32.mrf.mxu0
      %v4243 = vadd.f32 0.0, %v4242
      %4244 = vmatmul.bf16.gmra.mxu0 %v4165
      %v4245 = vpop.f32.mrf.mxu0
      %v4246 = vadd.f32 0.0, %v4245
      %v4247 = vpop.f32.mrf.mxu0
      %v4248 = vadd.f32 0.0, %v4247
      %4249 = vmatmul.bf16.gmra.mxu0 %v4167
      %v4250 = vpop.f32.mrf.mxu0
      %v4251 = vadd.f32 0.0, %v4250
      %v4252 = vpop.f32.mrf.mxu0
      %v4253 = vadd.f32 0.0, %v4252
      %4254 = vdwg.mxu0
      %v4255 = vadd.f32 %v4130, %v4231
      %v4256 = vadd.f32 %v4131, %v4233
      %v4257 = vadd.f32 %v4132, %v4236
      %v4258 = vadd.f32 %v4133, %v4238
      %v4259 = vadd.f32 %v4134, %v4241
      %v4260 = vadd.f32 %v4135, %v4243
      %v4261 = vadd.f32 %v4136, %v4246
      %v4262 = vadd.f32 %v4137, %v4248
      %v4263 = vadd.f32 %v4138, %v4251
      %v4264 = vadd.f32 %v4139, %v4253
      %v4265 = vld [vmem:[%s463] sm:$0x1]
      %v4267 = vperm.slane %v4265, 0
      %v4269 = vadd.f32 %v4255, %v4267
      %v4270 = vadd.f32 %v4256, %v4267
      %v4271 = vadd.f32 %v4257, %v4267
      %v4272 = vadd.f32 %v4258, %v4267
      %v4273 = vadd.f32 %v4259, %v4267
      %v4274 = vadd.f32 %v4260, %v4267
      %v4275 = vadd.f32 %v4261, %v4267
      %v4276 = vadd.f32 %v4262, %v4267
      %v4277 = vadd.f32 %v4263, %v4267
      %v4278 = vadd.f32 %v4264, %v4267
      %v4279 = vld [vmem:[%s475] sm:$0xff]
      %v4280 = vld [vmem:[%s475 + $0x8] sm:$0xff]
      %v4281 = vld [vmem:[%s475 + $0x10] sm:$0xff]
      %v4282 = vld [vmem:[%s475 + $0x18] sm:$0xff]
      %v4283 = vld [vmem:[%s475 + $0x20] sm:$0xff]
      %v4284 = vld [vmem:[%s475 + $0x28] sm:$0xff]
      %v4285 = vld [vmem:[%s475 + $0x30] sm:$0xff]
      %v4286 = vld [vmem:[%s475 + $0x38] sm:$0xff]
      %v4287 = vld [vmem:[%s475 + $0x40] sm:$0xff]
      %v4288 = vld [vmem:[%s475 + $0x48] sm:$0xff]
      %v4289 = vadd.f32 %v4269, %v4279
      %v4290 = vadd.f32 %v4270, %v4280
      %v4291 = vadd.f32 %v4271, %v4281
      %v4292 = vadd.f32 %v4272, %v4282
      %v4293 = vadd.f32 %v4273, %v4283
      %v4294 = vadd.f32 %v4274, %v4284
      %v4295 = vadd.f32 %v4275, %v4285
      %v4296 = vadd.f32 %v4276, %v4286
      %v4297 = vadd.f32 %v4277, %v4287
      %v4298 = vadd.f32 %v4278, %v4288
      %v4299 = vmax.f32 %v4289, 0.0
      %v4300 = vmax.f32 %v4290, 0.0
      %v4301 = vmax.f32 %v4291, 0.0
      %v4302 = vmax.f32 %v4292, 0.0
      %v4303 = vmax.f32 %v4293, 0.0
      %v4304 = vmax.f32 %v4294, 0.0
      %v4305 = vmax.f32 %v4295, 0.0
      %v4306 = vmax.f32 %v4296, 0.0
      %v4307 = vmax.f32 %v4297, 0.0
      %v4308 = vmax.f32 %v4298, 0.0
      %v4309 = vld [vmem:[%s5] sm:$0xff]
      %v4310 = vld [vmem:[%s5 + $0x8] sm:$0xff]
      %v4311 = vld [vmem:[%s5 + $0x10] sm:$0xff]
      %v4312 = vld [vmem:[%s5 + $0x18] sm:$0xff]
      %v4313 = vld [vmem:[%s5 + $0x20] sm:$0xff]
      %v4314 = vld [vmem:[%s5 + $0x28] sm:$0xff]
      %v4315 = vld [vmem:[%s5 + $0x30] sm:$0xff]
      %v4316 = vld [vmem:[%s5 + $0x38] sm:$0xff]
      %v4317 = vld [vmem:[%s5 + $0x40] sm:$0xff]
      %v4318 = vld [vmem:[%s5 + $0x48] sm:$0xff]
      %4320 = vset.pattern.permute.xlu0 0
      %4321 = vperm.xlu0 %4320, %v4309
      %v4322 = vpop.permute.xlu0 %4321
      %4325 = vset.pattern.permute.xlu0 0
      %4326 = vperm.xlu0 %4325, %v4310
      %v4327 = vpop.permute.xlu0 %4326
      %4330 = vset.pattern.permute.xlu0 0
      %4331 = vperm.xlu0 %4330, %v4311
      %v4332 = vpop.permute.xlu0 %4331
      %4335 = vset.pattern.permute.xlu0 0
      %4336 = vperm.xlu0 %4335, %v4312
      %v4337 = vpop.permute.xlu0 %4336
      %4340 = vset.pattern.permute.xlu0 0
      %4341 = vperm.xlu0 %4340, %v4313
      %v4342 = vpop.permute.xlu0 %4341
      %4345 = vset.pattern.permute.xlu0 0
      %4346 = vperm.xlu0 %4345, %v4314
      %v4347 = vpop.permute.xlu0 %4346
      %4350 = vset.pattern.permute.xlu0 0
      %4351 = vperm.xlu0 %4350, %v4315
      %v4352 = vpop.permute.xlu0 %4351
      %4355 = vset.pattern.permute.xlu0 0
      %4356 = vperm.xlu0 %4355, %v4316
      %v4357 = vpop.permute.xlu0 %4356
      %4360 = vset.pattern.permute.xlu0 0
      %4361 = vperm.xlu0 %4360, %v4317
      %v4362 = vpop.permute.xlu0 %4361
      %4365 = vset.pattern.permute.xlu0 0
      %4366 = vperm.xlu0 %4365, %v4318
      %v4367 = vpop.permute.xlu0 %4366
      %v4369 = vmul.f32 %v4299, %v4322
      %v4370 = vmul.f32 %v4300, %v4327
      %v4371 = vmul.f32 %v4301, %v4332
      %v4372 = vmul.f32 %v4302, %v4337
      %v4373 = vmul.f32 %v4303, %v4342
      %v4374 = vmul.f32 %v4304, %v4347
      %v4375 = vmul.f32 %v4305, %v4352
      %v4376 = vmul.f32 %v4306, %v4357
      %v4377 = vmul.f32 %v4307, %v4362
      %v4378 = vmul.f32 %v4308, %v4367
      %4379 = vst [vmem:[%s487] sm:$0xff] %v4369
      %4380 = vst [vmem:[%s487 + $0x8] sm:$0xff] %v4370
      %4381 = vst [vmem:[%s487 + $0x10] sm:$0xff] %v4371
      %4382 = vst [vmem:[%s487 + $0x18] sm:$0xff] %v4372
      %4383 = vst [vmem:[%s487 + $0x20] sm:$0xff] %v4373
      %4384 = vst [vmem:[%s487 + $0x28] sm:$0xff] %v4374
      %4385 = vst [vmem:[%s487 + $0x30] sm:$0xff] %v4375
      %4386 = vst [vmem:[%s487 + $0x38] sm:$0xff] %v4376
      %4387 = vst [vmem:[%s487 + $0x40] sm:$0xff] %v4377
      %4388 = vst [vmem:[%s487 + $0x48] sm:$0xff] %v4378
      %p4389 = scmp.lt.s32.totalorder %s23, 1
      %s4390 = scalar_select %p4389, %s23, 1
      %p4391 = scmp.lt.s32.totalorder %s25, 7
      %s4392 = scalar_select %p4391, %s25, 7
      %p4393 = scmp.lt.s32.totalorder %s24, 0
      %s4394 = scalar_select %p4393, %s24, 0
      %s4395 = smul.addr %s4392, 10
      %s4396 = sadd.s32 %s4394, %s4395
      %s4397 = smul.addr %s4390, 80
      %s4398 = sadd.s32 %s4396, %s4397
      %s4399 = smul.addr %s4398, 8
      %s4400 = scalar_lea.vmem %s7, %s4399
      // Predicated region
      $region49: #{basic_block_forward.3} parent=47 // pred_check
        %p4401 = pneg %p250
      $region50: #{basic_block_forward.3} parent=47 // pred_check_branch
        %4403 = sbr.rel (%p4401) target = $region52
      $region51: #{basic_block_forward.3} parent=47 // pred_region
        _
      $region52: #{basic_block_forward.3} parent=47 // pred_fallthru
        _
    $region48: #{basic_block_forward.3} parent=5 // pred_fallthru
      _
    %p4404 = scmp.le.s32.totalorder 2, %s13
    // Predicated region
    $region53: #{basic_block_forward.3} parent=5 // pred_check
      %p4405 = pneg %p4404
    $region54: #{basic_block_forward.3} parent=5 // pred_check_branch
      %4407 = sbr.rel (%p4405) target = $region56
    $region55: #{basic_block_forward.3} parent=5 // pred_region
      %s4408 = ssub.s32 %s13, 2
      // Predicated region
      $region57: #{basic_block_forward.3} parent=55 // pred_check
        %p4409 = pneg %p256
      $region58: #{basic_block_forward.3} parent=55 // pred_check_branch
        %4411 = sbr.rel (%p4409) target = $region60
      $region59: #{basic_block_forward.3} parent=55 // pred_region
        %p4412 = scmp.lt.s32.totalorder %s26, 1
        %s4413 = scalar_select %p4412, %s26, 1
        %p4414 = scmp.lt.s32.totalorder %s28, 7
        %s4415 = scalar_select %p4414, %s28, 7
        %p4416 = scmp.lt.s32.totalorder %s27, 0
        %s4417 = scalar_select %p4416, %s27, 0
        %s4418 = smul.addr %s4415, 10
        %s4419 = sadd.s32 %s4417, %s4418
        %s4420 = smul.addr %s4413, 80
        %s4421 = sadd.s32 %s4419, %s4420
        %s4422 = smul.addr %s4421, 8
        %s4423 = scalar_lea.vmem %s7, %s4422
      $region60: #{basic_block_forward.3} parent=55 // pred_fallthru
        _
    $region56: #{basic_block_forward.3} parent=5 // pred_fallthru
      _
  $region6: #{basic_block_forward.3} parent=0 // loop_footer
    %s17 = sadd.s32 1, %s13
  $region7: #{basic_block_forward.3} parent=0 // loop_footer_branch
    %12 = sbr.rel target = $region3
  $region8: #{basic_block_forward.3} parent=0 // loop_exit
    _

</llo_original>
